<compile_context>
chip_gen: v6e
topology: v6e:2x2x1
jax: 0.10.0
libtpu: 0.0.40
codegen_flags: <defaults>
</compile_context>

<pallas_src>
import functools

import jax
import jax.numpy as jnp
from jax.experimental import pallas as pl
from jax.experimental.pallas import tpu as pltpu


# -----------------------------------------------------------------------------
# Pallas kernel: fused "sum over branches of conv (+folded BN) + bias + ReLU".
#
# Per grid step (one batch sample), for every branch b we get
#   x_b : (Cin_b, Lp)          bf16  flattened zero-padded activation,
#                                    Lp = (H+4)*(W+2)
#   w_b : (T_b, Cout, Cin_b)   bf16  one (Cout, Cin) matrix per tap
# and accumulate      acc += sum_t  w_b[t] @ x_b[:, off_t : off_t + L]
# where off_t is a *static* per-tap lane offset (kh*Wp + kw for a 3x3 conv,
# Wp+1 for the 1x1 identity conv) and L = (H+1)*Wp covers every valid output
# position.  No im2col buffer ever exists in HBM or VMEM.
# -----------------------------------------------------------------------------
def _fused_conv_kernel(*refs, branch_offsets, relu):
    nb = len(branch_offsets)
    b_ref = refs[2 * nb]           # (Cout, 1) f32 fused bias
    o_ref = refs[2 * nb + 1]       # (Cout, L)
    cout, out_len = o_ref.shape

    acc = jnp.zeros((cout, out_len), jnp.float32)
    for bi, offsets in enumerate(branch_offsets):
        x = refs[2 * bi][...]          # (Cin_b, Lp) bf16, loaded once
        w_ref = refs[2 * bi + 1]       # (T_b, Cout, Cin_b) bf16
        for t, off in enumerate(offsets):
            acc = acc + jnp.dot(w_ref[t], x[:, off:off + out_len],
                                preferred_element_type=jnp.float32)

    y = acc + b_ref[...]               # f32 epilogue (bias has BN shift folded)
    if relu:
        y = jnp.maximum(y, 0.0)
    o_ref[...] = y.astype(o_ref.dtype)  # cast only at the store (bf16 or f32)


def fused_conv_stage(xs, wts, bias, *, relu=True, out_dtype=jnp.bfloat16):
    """One conv_3nV1 stage:  relu( sum_b conv_b(x_b) + fused_bias ).

    xs   : list of (N, Cin_b, H, W) activations, all at the target resolution.
    wts  : list of (T_b, Cout, Cin_b) bf16 tap matrices (T_b = 9 or 1).
    bias : (Cout, 1) f32 fused bias (conv biases + folded BN shift).
    Returns (N, Cout, H, W) in out_dtype.
    """
    N, _, H, W = xs[0].shape
    cout = wts[0].shape[1]
    Wp = W + 2                      # 1-pixel left/right zero pad
    Hp = H + 4                      # 2-pixel top/bottom pad: halo slack so
    Lp = Hp * Wp                    #   every static tap slice stays in bounds
    L = (H + 1) * Wp                # computed positions (pad cols discarded later)
    base = Wp + 1                   # flat offset of valid output (y=0, x=0)

    inputs, in_specs, offsets = [], [], []
    flops = 0
    bytes_acc = N * cout * L * jnp.dtype(out_dtype).itemsize + cout * 4
    for x, w in zip(xs, wts):
        cin = int(x.shape[1])
        ntaps = int(w.shape[0])
        xp = jnp.pad(x.astype(jnp.bfloat16),
                     ((0, 0), (0, 0), (2, 2), (1, 1))).reshape(N, cin, Lp)
        inputs += [xp, w]
        in_specs += [pl.BlockSpec((None, cin, Lp), lambda n: (n, 0, 0)),
                     pl.BlockSpec(w.shape, lambda n: (0, 0, 0))]
        if ntaps == 9:      # 3x3 conv taps, row-major (kh, kw)
            offsets.append(tuple(kh * Wp + kw for kh in range(3) for kw in range(3)))
        else:               # 1x1 conv (identity branch)
            offsets.append((base,))
        flops += 2 * N * cout * L * ntaps * cin
        bytes_acc += N * cin * Lp * 2 + ntaps * cout * cin * 2
    inputs.append(bias)
    in_specs.append(pl.BlockSpec(bias.shape, lambda n: (0, 0)))

    out = pl.pallas_call(
        functools.partial(_fused_conv_kernel,
                          branch_offsets=tuple(offsets), relu=relu),
        out_shape=jax.ShapeDtypeStruct((N, cout, L), out_dtype),
        grid=(N,),
        in_specs=in_specs,
        out_specs=pl.BlockSpec((None, cout, L), lambda n: (n, 0, 0)),
        compiler_params=pltpu.CompilerParams(
            dimension_semantics=("parallel",),     # batch-parallel: feeds both v7x TCs
            vmem_limit_bytes=32 * 1024 * 1024),    # explicit; re-derive if H*W grows
        cost_estimate=pl.CostEstimate(flops=flops, transcendentals=0,
                                      bytes_accessed=bytes_acc),
    )(*inputs)

    # (N, Cout, L) -> dense NCHW: rows 1..H of the (H+1, Wp) layout, cols 0..W-1.
    return out.reshape(N, cout, H + 1, Wp)[:, :, 1:H + 1, :W]


# -----------------------------------------------------------------------------
# Pool / upsample glue (NCHW), plain JAX between the stage kernels.
# -----------------------------------------------------------------------------
def downsample(x):   # nn.AvgPool2d((2, 2), stride=2)
    N, C, H, W = x.shape
    assert H % 2 == 0 and W % 2 == 0, "AvgPool2d(2,2) needs even spatial dims"
    y = x.astype(jnp.float32).reshape(N, C, H // 2, 2, W // 2, 2).mean(axis=(3, 5))
    return y.astype(x.dtype)


def upsample(x):     # nn.Upsample(scale_factor=2, mode='nearest')
    return jnp.repeat(jnp.repeat(x, 2, axis=2), 2, axis=3)


# -----------------------------------------------------------------------------
# Parameters (deterministic, synthetic), BN folding, per-branch tap packing.
# -----------------------------------------------------------------------------
def _make_conv(key, cin, cout, k=3):
    kw, kb = jax.random.split(key)
    if k == 3:
        w = 0.1 * jax.random.normal(kw, (3, 3, cin, cout), jnp.float32)
    else:
        w = 0.1 * jax.random.normal(kw, (cin, cout), jnp.float32)
    b = 0.1 * jax.random.normal(kb, (cout,), jnp.float32)
    return {"w": w, "b": b}


def _make_bn(key, c):
    k1, k2, k3, k4 = jax.random.split(key, 4)
    return {
        "gamma": 1.0 + 0.1 * jax.random.normal(k1, (c,), jnp.float32),
        "beta": 0.1 * jax.random.normal(k2, (c,), jnp.float32),
        "mean": 0.1 * jax.random.normal(k3, (c,), jnp.float32),
        "var": 1.0 + 0.5 * jax.random.uniform(k4, (c,), jnp.float32),
    }


def init_raw_params(key, in_hc, in_mc, in_lc, out_c):
    mid_c = min(in_hc, in_mc, in_lc)
    conv3_defs = [
        ("h2h_0", in_hc, mid_c), ("m2m_0", in_mc, mid_c), ("l2l_0", in_lc, mid_c),
        ("h2h_1", mid_c, mid_c), ("h2m_1", mid_c, mid_c), ("m2h_1", mid_c, mid_c),
        ("m2m_1", mid_c, mid_c), ("m2l_1", mid_c, mid_c), ("l2m_1", mid_c, mid_c),
        ("l2l_1", mid_c, mid_c), ("h2m_2", mid_c, mid_c), ("l2m_2", mid_c, mid_c),
        ("m2m_2", mid_c, mid_c), ("m2m_3", mid_c, out_c),
    ]
    bn_defs = [("bnh_0", mid_c), ("bnm_0", mid_c), ("bnl_0", mid_c),
               ("bnh_1", mid_c), ("bnm_1", mid_c), ("bnl_1", mid_c),
               ("bnm_2", mid_c), ("bnm_3", out_c)]
    keys = jax.random.split(key, len(conv3_defs) + len(bn_defs) + 1)
    raw = {}
    for (name, ci, co), k in zip(conv3_defs, keys[:len(conv3_defs)]):
        raw[name] = _make_conv(k, ci, co, 3)
    for (name, c), k in zip(bn_defs, keys[len(conv3_defs):-1]):
        raw[name] = _make_bn(k, c)
    raw["identity"] = _make_conv(keys[-1], in_mc, out_c, 1)
    return raw


def _bn_scale_shift(bn, eps=1e-5):
    scale = bn["gamma"] / jnp.sqrt(bn["var"] + eps)
    shift = bn["beta"] - bn["mean"] * scale
    return scale, shift


def fold_params(raw):
    """Fold eval-mode BN into each conv; pack per-branch (9, Cout, Cin) bf16 taps."""

    def fold3(conv, scale, shift=None):
        w = conv["w"] * scale                      # (3,3,Cin,Cout), scale over Cout
        b = conv["b"] * scale + (shift if shift is not None else 0.0)
        cin, cout = w.shape[2], w.shape[3]
        wt = jnp.transpose(w.reshape(9, cin, cout), (0, 2, 1)).astype(jnp.bfloat16)
        return wt, b                               # (9, Cout, Cin), (Cout,)

    def pack(branches):
        ws = [w for w, _ in branches]
        b = sum(bb for _, bb in branches).reshape(-1, 1).astype(jnp.float32)
        return {"ws": ws, "b": b}

    s, sh = _bn_scale_shift(raw["bnh_0"]); f_h0 = fold3(raw["h2h_0"], s, sh)
    s, sh = _bn_scale_shift(raw["bnm_0"]); f_m0 = fold3(raw["m2m_0"], s, sh)
    s, sh = _bn_scale_shift(raw["bnl_0"]); f_l0 = fold3(raw["l2l_0"], s, sh)

    s, sh = _bn_scale_shift(raw["bnh_1"])
    f_h2h1 = fold3(raw["h2h_1"], s, sh); f_m2h1 = fold3(raw["m2h_1"], s)
    s, sh = _bn_scale_shift(raw["bnm_1"])
    f_h2m1 = fold3(raw["h2m_1"], s, sh); f_m2m1 = fold3(raw["m2m_1"], s)
    f_l2m1 = fold3(raw["l2m_1"], s)
    s, sh = _bn_scale_shift(raw["bnl_1"])
    f_m2l1 = fold3(raw["m2l_1"], s, sh); f_l2l1 = fold3(raw["l2l_1"], s)

    s, sh = _bn_scale_shift(raw["bnm_2"])
    f_h2m2 = fold3(raw["h2m_2"], s, sh); f_m2m2 = fold3(raw["m2m_2"], s)
    f_l2m2 = fold3(raw["l2m_2"], s)

    s, sh = _bn_scale_shift(raw["bnm_3"]); f_m2m3 = fold3(raw["m2m_3"], s, sh)
    # identity 1x1 conv is NOT under bnm_3 in the reference module.
    f_id = (raw["identity"]["w"].T[None].astype(jnp.bfloat16),  # (1, Cout, Cin)
            raw["identity"]["b"])

    return {
        "s0_h": pack([f_h0]), "s0_m": pack([f_m0]), "s0_l": pack([f_l0]),
        "s1_h": pack([f_h2h1, f_m2h1]),
        "s1_m": pack([f_h2m1, f_m2m1, f_l2m1]),
        "s1_l": pack([f_m2l1, f_l2l1]),
        "s2_m": pack([f_h2m2, f_m2m2, f_l2m2]),
        "s3":   pack([f_m2m3, f_id]),
    }


# -----------------------------------------------------------------------------
# Forward pass (mirrors conv_3nV1.forward), NCHW, 8 fused Pallas calls.
# -----------------------------------------------------------------------------
def conv_3nv1_forward(fused, in_h, in_m, in_l):
    Hh, Wh = in_h.shape[2], in_h.shape[3]
    Hm, Wm = in_m.shape[2], in_m.shape[3]
    Hl, Wl = in_l.shape[2], in_l.shape[3]

    def stage(name, xs, out_dtype=jnp.bfloat16):
        p = fused[name]
        return fused_conv_stage(xs, p["ws"], p["b"], relu=True, out_dtype=out_dtype)

    # Stage 0: conv + BN + ReLU (BN folded).
    h0 = stage("s0_h", [in_h])
    m0 = stage("s0_m", [in_m])
    l0 = stage("s0_l", [in_l])

    # Stage 1: each output = one fused multi-branch conv (+BN +ReLU).
    h1 = stage("s1_h", [h0, upsample(m0)])
    m1 = stage("s1_m", [downsample(h0), m0, upsample(l0)])
    l1 = stage("s1_l", [downsample(m0), l0])

    # Stage 2.
    m2 = stage("s2_m", [downsample(h1), m1, upsample(l1)])

    # Stage 3: m2m_3 (+bnm_3) fused with the 1x1 identity conv on the raw in_m,
    # ReLU applied to the sum (matches the reference module).  f32 output.
    out = stage("s3", [m2, in_m], out_dtype=jnp.float32)
    return out


# -----------------------------------------------------------------------------
# Pure-f32 reference (raw params + explicit eval-mode BN) for a tolerance check.
# -----------------------------------------------------------------------------
def _conv3x3_ref(x, conv):
    w = jnp.transpose(conv["w"], (3, 2, 0, 1))     # OIHW
    y = jax.lax.conv_general_dilated(
        x, w, window_strides=(1, 1), padding=((1, 1), (1, 1)),
        dimension_numbers=("NCHW", "OIHW", "NCHW"))
    return y + conv["b"][None, :, None, None]


def _bn_ref(x, bn, eps=1e-5):
    s = bn["gamma"] / jnp.sqrt(bn["var"] + eps)
    return ((x - bn["mean"][None, :, None, None]) * s[None, :, None, None]
            + bn["beta"][None, :, None, None])


def conv_3nv1_reference(raw, in_h, in_m, in_l):
    relu = lambda x: jnp.maximum(x, 0.0)
    h = relu(_bn_ref(_conv3x3_ref(in_h, raw["h2h_0"]), raw["bnh_0"]))
    m = relu(_bn_ref(_conv3x3_ref(in_m, raw["m2m_0"]), raw["bnm_0"]))
    l = relu(_bn_ref(_conv3x3_ref(in_l, raw["l2l_0"]), raw["bnl_0"]))
    h2h = _conv3x3_ref(h, raw["h2h_1"])
    m2h = _conv3x3_ref(upsample(m), raw["m2h_1"])
    h2m = _conv3x3_ref(downsample(h), raw["h2m_1"])
    m2m = _conv3x3_ref(m, raw["m2m_1"])
    l2m = _conv3x3_ref(upsample(l), raw["l2m_1"])
    m2l = _conv3x3_ref(downsample(m), raw["m2l_1"])
    l2l = _conv3x3_ref(l, raw["l2l_1"])
    h1 = relu(_bn_ref(h2h + m2h, raw["bnh_1"]))
    m1 = relu(_bn_ref(h2m + m2m + l2m, raw["bnm_1"]))
    l1 = relu(_bn_ref(m2l + l2l, raw["bnl_1"]))
    h2m2 = _conv3x3_ref(downsample(h1), raw["h2m_2"])
    m2m2 = _conv3x3_ref(m1, raw["m2m_2"])
    l2m2 = _conv3x3_ref(upsample(l1), raw["l2m_2"])
    m2 = relu(_bn_ref(h2m2 + m2m2 + l2m2, raw["bnm_2"]))
    ident = (jnp.einsum("nchw,co->nohw", in_m, raw["identity"]["w"])
             + raw["identity"]["b"][None, :, None, None])
    return relu(_bn_ref(_conv3x3_ref(m2, raw["m2m_3"]), raw["bnm_3"]) + ident)


# -----------------------------------------------------------------------------
# Main
# -----------------------------------------------------------------------------
if __name__ == "__main__":
    N = 2
    in_hc, in_mc, in_lc, out_c = 16, 32, 64, 16     # mid_c = 16
    Hh, Hm, Hl = 16, 8, 4                           # high = 2x mid = 4x low

    key = jax.random.PRNGKey(0)
    kp, kh, km, kl = jax.random.split(key, 4)
    raw = init_raw_params(kp, in_hc, in_mc, in_lc, out_c)
    fused = fold_params(raw)

    in_h = jax.random.normal(kh, (N, in_hc, Hh, Hh), jnp.float32)
    in_m = jax.random.normal(km, (N, in_mc, Hm, Hm), jnp.float32)
    in_l = jax.random.normal(kl, (N, in_lc, Hl, Hl), jnp.float32)

    fwd = jax.jit(conv_3nv1_forward)
    out = jax.block_until_ready(fwd(fused, in_h, in_m, in_l))

    ref = jax.block_until_ready(jax.jit(conv_3nv1_reference)(raw, in_h, in_m, in_l))

    assert out.shape == (N, out_c, Hm, Hm)
    assert bool(jnp.all(jnp.isfinite(out)))
    rel_err = float(jnp.max(jnp.abs(out - ref)) / (jnp.max(jnp.abs(ref)) + 1e-6))
    assert rel_err < 0.1, f"mismatch vs f32 reference: rel_err={rel_err}"
    print("KERNEL_OK")
</pallas_src>

<mosaic_0001>
module attributes {stable_mosaic.version = 11 : i64} {
  func.func @_fused_conv_kernel(%arg0: i32, %arg1: memref<1x64x48xbf16, #tpu.memory_space<vmem>>, %arg2: memref<9x16x64xbf16, #tpu.memory_space<vmem>>, %arg3: memref<16x1xf32, #tpu.memory_space<vmem>>, %arg4: memref<1x16x30xbf16, #tpu.memory_space<vmem>>) attributes {dimension_semantics = [#tpu.dimension_semantics<parallel>], iteration_bounds = array<i64: 2>, scalar_prefetch = 0 : i64, scratch_operands = 0 : i64, tpu.core_type = #tpu.core_type<tc>, window_params = [{transform_indices = @transform_0, window_bounds = array<i64: 1, 64, 48>}, {pipeline_mode = #tpu.pipeline_mode<synchronous>, transform_indices = @transform_1, window_bounds = array<i64: 9, 16, 64>}, {pipeline_mode = #tpu.pipeline_mode<synchronous>, transform_indices = @transform_2, window_bounds = array<i64: 16, 1>}, {transform_indices = @transform_3, window_bounds = array<i64: 1, 16, 30>}]} {
    %cst = arith.constant 0.000000e+00 : f32
    %0 = vector.broadcast %cst : f32 to vector<16x30xf32>
    %c0 = arith.constant 0 : index
    %c0_0 = arith.constant 0 : index
    %c0_1 = arith.constant 0 : index
    %1 = vector.load %arg1[%c0, %c0_0, %c0_1] : memref<1x64x48xbf16, #tpu.memory_space<vmem>>, vector<1x64x48xbf16>
    %2 = vector.shape_cast %1 : vector<1x64x48xbf16> to vector<64x48xbf16>
    %c0_2 = arith.constant 0 : index
    %c0_3 = arith.constant 0 : index
    %c0_4 = arith.constant 0 : index
    %3 = vector.load %arg2[%c0_2, %c0_3, %c0_4] : memref<9x16x64xbf16, #tpu.memory_space<vmem>>, vector<1x16x64xbf16>
    %4 = vector.shape_cast %3 : vector<1x16x64xbf16> to vector<16x64xbf16>
    %5 = vector.extract_strided_slice %2 {offsets = [0, 0], sizes = [64, 30], strides = [1, 1]} : vector<64x48xbf16> to vector<64x30xbf16>
    %cst_5 = arith.constant dense<0.000000e+00> : vector<16x30xf32>
    %6 = tpu.matmul %4, %5, %cst_5 {dimension_numbers = #tpu.dot_dimension_numbers<[1], [0], [0], [1], [0, 0, 1, 1], [], []>} : vector<16x64xbf16>, vector<64x30xbf16>, vector<16x30xf32> -> vector<16x30xf32>
    %7 = arith.addf %0, %6 : vector<16x30xf32>
    %c1 = arith.constant 1 : index
    %c0_6 = arith.constant 0 : index
    %c0_7 = arith.constant 0 : index
    %8 = vector.load %arg2[%c1, %c0_6, %c0_7] : memref<9x16x64xbf16, #tpu.memory_space<vmem>>, vector<1x16x64xbf16>
    %9 = vector.shape_cast %8 : vector<1x16x64xbf16> to vector<16x64xbf16>
    %10 = vector.extract_strided_slice %2 {offsets = [0, 1], sizes = [64, 30], strides = [1, 1]} : vector<64x48xbf16> to vector<64x30xbf16>
    %cst_8 = arith.constant dense<0.000000e+00> : vector<16x30xf32>
    %11 = tpu.matmul %9, %10, %cst_8 {dimension_numbers = #tpu.dot_dimension_numbers<[1], [0], [0], [1], [0, 0, 1, 1], [], []>} : vector<16x64xbf16>, vector<64x30xbf16>, vector<16x30xf32> -> vector<16x30xf32>
    %12 = arith.addf %7, %11 : vector<16x30xf32>
    %c2 = arith.constant 2 : index
    %c0_9 = arith.constant 0 : index
    %c0_10 = arith.constant 0 : index
    %13 = vector.load %arg2[%c2, %c0_9, %c0_10] : memref<9x16x64xbf16, #tpu.memory_space<vmem>>, vector<1x16x64xbf16>
    %14 = vector.shape_cast %13 : vector<1x16x64xbf16> to vector<16x64xbf16>
    %15 = vector.extract_strided_slice %2 {offsets = [0, 2], sizes = [64, 30], strides = [1, 1]} : vector<64x48xbf16> to vector<64x30xbf16>
    %cst_11 = arith.constant dense<0.000000e+00> : vector<16x30xf32>
    %16 = tpu.matmul %14, %15, %cst_11 {dimension_numbers = #tpu.dot_dimension_numbers<[1], [0], [0], [1], [0, 0, 1, 1], [], []>} : vector<16x64xbf16>, vector<64x30xbf16>, vector<16x30xf32> -> vector<16x30xf32>
    %17 = arith.addf %12, %16 : vector<16x30xf32>
    %c3 = arith.constant 3 : index
    %c0_12 = arith.constant 0 : index
    %c0_13 = arith.constant 0 : index
    %18 = vector.load %arg2[%c3, %c0_12, %c0_13] : memref<9x16x64xbf16, #tpu.memory_space<vmem>>, vector<1x16x64xbf16>
    %19 = vector.shape_cast %18 : vector<1x16x64xbf16> to vector<16x64xbf16>
    %20 = vector.extract_strided_slice %2 {offsets = [0, 6], sizes = [64, 30], strides = [1, 1]} : vector<64x48xbf16> to vector<64x30xbf16>
    %cst_14 = arith.constant dense<0.000000e+00> : vector<16x30xf32>
    %21 = tpu.matmul %19, %20, %cst_14 {dimension_numbers = #tpu.dot_dimension_numbers<[1], [0], [0], [1], [0, 0, 1, 1], [], []>} : vector<16x64xbf16>, vector<64x30xbf16>, vector<16x30xf32> -> vector<16x30xf32>
    %22 = arith.addf %17, %21 : vector<16x30xf32>
    %c4 = arith.constant 4 : index
    %c0_15 = arith.constant 0 : index
    %c0_16 = arith.constant 0 : index
    %23 = vector.load %arg2[%c4, %c0_15, %c0_16] : memref<9x16x64xbf16, #tpu.memory_space<vmem>>, vector<1x16x64xbf16>
    %24 = vector.shape_cast %23 : vector<1x16x64xbf16> to vector<16x64xbf16>
    %25 = vector.extract_strided_slice %2 {offsets = [0, 7], sizes = [64, 30], strides = [1, 1]} : vector<64x48xbf16> to vector<64x30xbf16>
    %cst_17 = arith.constant dense<0.000000e+00> : vector<16x30xf32>
    %26 = tpu.matmul %24, %25, %cst_17 {dimension_numbers = #tpu.dot_dimension_numbers<[1], [0], [0], [1], [0, 0, 1, 1], [], []>} : vector<16x64xbf16>, vector<64x30xbf16>, vector<16x30xf32> -> vector<16x30xf32>
    %27 = arith.addf %22, %26 : vector<16x30xf32>
    %c5 = arith.constant 5 : index
    %c0_18 = arith.constant 0 : index
    %c0_19 = arith.constant 0 : index
    %28 = vector.load %arg2[%c5, %c0_18, %c0_19] : memref<9x16x64xbf16, #tpu.memory_space<vmem>>, vector<1x16x64xbf16>
    %29 = vector.shape_cast %28 : vector<1x16x64xbf16> to vector<16x64xbf16>
    %30 = vector.extract_strided_slice %2 {offsets = [0, 8], sizes = [64, 30], strides = [1, 1]} : vector<64x48xbf16> to vector<64x30xbf16>
    %cst_20 = arith.constant dense<0.000000e+00> : vector<16x30xf32>
    %31 = tpu.matmul %29, %30, %cst_20 {dimension_numbers = #tpu.dot_dimension_numbers<[1], [0], [0], [1], [0, 0, 1, 1], [], []>} : vector<16x64xbf16>, vector<64x30xbf16>, vector<16x30xf32> -> vector<16x30xf32>
    %32 = arith.addf %27, %31 : vector<16x30xf32>
    %c6 = arith.constant 6 : index
    %c0_21 = arith.constant 0 : index
    %c0_22 = arith.constant 0 : index
    %33 = vector.load %arg2[%c6, %c0_21, %c0_22] : memref<9x16x64xbf16, #tpu.memory_space<vmem>>, vector<1x16x64xbf16>
    %34 = vector.shape_cast %33 : vector<1x16x64xbf16> to vector<16x64xbf16>
    %35 = vector.extract_strided_slice %2 {offsets = [0, 12], sizes = [64, 30], strides = [1, 1]} : vector<64x48xbf16> to vector<64x30xbf16>
    %cst_23 = arith.constant dense<0.000000e+00> : vector<16x30xf32>
    %36 = tpu.matmul %34, %35, %cst_23 {dimension_numbers = #tpu.dot_dimension_numbers<[1], [0], [0], [1], [0, 0, 1, 1], [], []>} : vector<16x64xbf16>, vector<64x30xbf16>, vector<16x30xf32> -> vector<16x30xf32>
    %37 = arith.addf %32, %36 : vector<16x30xf32>
    %c7 = arith.constant 7 : index
    %c0_24 = arith.constant 0 : index
    %c0_25 = arith.constant 0 : index
    %38 = vector.load %arg2[%c7, %c0_24, %c0_25] : memref<9x16x64xbf16, #tpu.memory_space<vmem>>, vector<1x16x64xbf16>
    %39 = vector.shape_cast %38 : vector<1x16x64xbf16> to vector<16x64xbf16>
    %40 = vector.extract_strided_slice %2 {offsets = [0, 13], sizes = [64, 30], strides = [1, 1]} : vector<64x48xbf16> to vector<64x30xbf16>
    %cst_26 = arith.constant dense<0.000000e+00> : vector<16x30xf32>
    %41 = tpu.matmul %39, %40, %cst_26 {dimension_numbers = #tpu.dot_dimension_numbers<[1], [0], [0], [1], [0, 0, 1, 1], [], []>} : vector<16x64xbf16>, vector<64x30xbf16>, vector<16x30xf32> -> vector<16x30xf32>
    %42 = arith.addf %37, %41 : vector<16x30xf32>
    %c8 = arith.constant 8 : index
    %c0_27 = arith.constant 0 : index
    %c0_28 = arith.constant 0 : index
    %43 = vector.load %arg2[%c8, %c0_27, %c0_28] : memref<9x16x64xbf16, #tpu.memory_space<vmem>>, vector<1x16x64xbf16>
    %44 = vector.shape_cast %43 : vector<1x16x64xbf16> to vector<16x64xbf16>
    %45 = vector.extract_strided_slice %2 {offsets = [0, 14], sizes = [64, 30], strides = [1, 1]} : vector<64x48xbf16> to vector<64x30xbf16>
    %cst_29 = arith.constant dense<0.000000e+00> : vector<16x30xf32>
    %46 = tpu.matmul %44, %45, %cst_29 {dimension_numbers = #tpu.dot_dimension_numbers<[1], [0], [0], [1], [0, 0, 1, 1], [], []>} : vector<16x64xbf16>, vector<64x30xbf16>, vector<16x30xf32> -> vector<16x30xf32>
    %47 = arith.addf %42, %46 : vector<16x30xf32>
    %c0_30 = arith.constant 0 : index
    %c0_31 = arith.constant 0 : index
    %48 = vector.load %arg3[%c0_30, %c0_31] : memref<16x1xf32, #tpu.memory_space<vmem>>, vector<16x1xf32>
    %49 = vector.broadcast %48 : vector<16x1xf32> to vector<16x30xf32>
    %50 = arith.addf %47, %49 : vector<16x30xf32>
    %cst_32 = arith.constant 0.000000e+00 : f32
    %51 = vector.broadcast %cst_32 : f32 to vector<16x30xf32>
    %52 = arith.maximumf %50, %51 : vector<16x30xf32>
    %53 = arith.truncf %52 : vector<16x30xf32> to vector<16x30xbf16>
    %c0_33 = arith.constant 0 : index
    %c0_34 = arith.constant 0 : index
    %c0_35 = arith.constant 0 : index
    %54 = vector.load %arg4[%c0_33, %c0_34, %c0_35] : memref<1x16x30xbf16, #tpu.memory_space<vmem>>, vector<1x16x30xbf16>
    %55 = vector.shape_cast %54 : vector<1x16x30xbf16> to vector<16x30xbf16>
    %56 = vector.shape_cast %53 : vector<16x30xbf16> to vector<1x16x30xbf16>
    tpu.vector_store %arg4[%c0_33, %c0_34, %c0_35], %56 {strides = array<i32>} : memref<1x16x30xbf16, #tpu.memory_space<vmem>>, vector<1x16x30xbf16>,
    return
  }
  func.func @transform_0(%arg0: i32) -> (i32, i32, i32) {
    %c0_i32 = arith.constant 0 : i32
    %c0_i32_0 = arith.constant 0 : i32
    %c0_i32_1 = arith.constant 0 : i32
    return %arg0, %c0_i32, %c0_i32_0 : i32, i32, i32
  }
  func.func @transform_1(%arg0: i32) -> (i32, i32, i32) {
    %c0_i32 = arith.constant 0 : i32
    %c0_i32_0 = arith.constant 0 : i32
    %c0_i32_1 = arith.constant 0 : i32
    %c0_i32_2 = arith.constant 0 : i32
    return %c0_i32, %c0_i32_0, %c0_i32_1 : i32, i32, i32
  }
  func.func @transform_2(%arg0: i32) -> (i32, i32) {
    %c0_i32 = arith.constant 0 : i32
    %c0_i32_0 = arith.constant 0 : i32
    %c0_i32_1 = arith.constant 0 : i32
    return %c0_i32, %c0_i32_0 : i32, i32
  }
  func.func @transform_3(%arg0: i32) -> (i32, i32, i32) {
    %c0_i32 = arith.constant 0 : i32
    %c0_i32_0 = arith.constant 0 : i32
    %c0_i32_1 = arith.constant 0 : i32
    return %arg0, %c0_i32, %c0_i32_0 : i32, i32, i32
  }
}

module attributes {stable_mosaic.version = 11 : i64} {
  func.func @_fused_conv_kernel(%arg0: i32, %arg1: memref<1x32x120xbf16, #tpu.memory_space<vmem>>, %arg2: memref<9x16x32xbf16, #tpu.memory_space<vmem>>, %arg3: memref<16x1xf32, #tpu.memory_space<vmem>>, %arg4: memref<1x16x90xbf16, #tpu.memory_space<vmem>>) attributes {dimension_semantics = [#tpu.dimension_semantics<parallel>], iteration_bounds = array<i64: 2>, scalar_prefetch = 0 : i64, scratch_operands = 0 : i64, tpu.core_type = #tpu.core_type<tc>, window_params = [{transform_indices = @transform_0, window_bounds = array<i64: 1, 32, 120>}, {pipeline_mode = #tpu.pipeline_mode<synchronous>, transform_indices = @transform_1, window_bounds = array<i64: 9, 16, 32>}, {pipeline_mode = #tpu.pipeline_mode<synchronous>, transform_indices = @transform_2, window_bounds = array<i64: 16, 1>}, {transform_indices = @transform_3, window_bounds = array<i64: 1, 16, 90>}]} {
    %cst = arith.constant 0.000000e+00 : f32
    %0 = vector.broadcast %cst : f32 to vector<16x90xf32>
    %c0 = arith.constant 0 : index
    %c0_0 = arith.constant 0 : index
    %c0_1 = arith.constant 0 : index
    %1 = vector.load %arg1[%c0, %c0_0, %c0_1] : memref<1x32x120xbf16, #tpu.memory_space<vmem>>, vector<1x32x120xbf16>
    %2 = vector.shape_cast %1 : vector<1x32x120xbf16> to vector<32x120xbf16>
    %c0_2 = arith.constant 0 : index
    %c0_3 = arith.constant 0 : index
    %c0_4 = arith.constant 0 : index
    %3 = vector.load %arg2[%c0_2, %c0_3, %c0_4] : memref<9x16x32xbf16, #tpu.memory_space<vmem>>, vector<1x16x32xbf16>
    %4 = vector.shape_cast %3 : vector<1x16x32xbf16> to vector<16x32xbf16>
    %5 = vector.extract_strided_slice %2 {offsets = [0, 0], sizes = [32, 90], strides = [1, 1]} : vector<32x120xbf16> to vector<32x90xbf16>
    %cst_5 = arith.constant dense<0.000000e+00> : vector<16x90xf32>
    %6 = tpu.matmul %4, %5, %cst_5 {dimension_numbers = #tpu.dot_dimension_numbers<[1], [0], [0], [1], [0, 0, 1, 1], [], []>} : vector<16x32xbf16>, vector<32x90xbf16>, vector<16x90xf32> -> vector<16x90xf32>
    %7 = arith.addf %0, %6 : vector<16x90xf32>
    %c1 = arith.constant 1 : index
    %c0_6 = arith.constant 0 : index
    %c0_7 = arith.constant 0 : index
    %8 = vector.load %arg2[%c1, %c0_6, %c0_7] : memref<9x16x32xbf16, #tpu.memory_space<vmem>>, vector<1x16x32xbf16>
    %9 = vector.shape_cast %8 : vector<1x16x32xbf16> to vector<16x32xbf16>
    %10 = vector.extract_strided_slice %2 {offsets = [0, 1], sizes = [32, 90], strides = [1, 1]} : vector<32x120xbf16> to vector<32x90xbf16>
    %cst_8 = arith.constant dense<0.000000e+00> : vector<16x90xf32>
    %11 = tpu.matmul %9, %10, %cst_8 {dimension_numbers = #tpu.dot_dimension_numbers<[1], [0], [0], [1], [0, 0, 1, 1], [], []>} : vector<16x32xbf16>, vector<32x90xbf16>, vector<16x90xf32> -> vector<16x90xf32>
    %12 = arith.addf %7, %11 : vector<16x90xf32>
    %c2 = arith.constant 2 : index
    %c0_9 = arith.constant 0 : index
    %c0_10 = arith.constant 0 : index
    %13 = vector.load %arg2[%c2, %c0_9, %c0_10] : memref<9x16x32xbf16, #tpu.memory_space<vmem>>, vector<1x16x32xbf16>
    %14 = vector.shape_cast %13 : vector<1x16x32xbf16> to vector<16x32xbf16>
    %15 = vector.extract_strided_slice %2 {offsets = [0, 2], sizes = [32, 90], strides = [1, 1]} : vector<32x120xbf16> to vector<32x90xbf16>
    %cst_11 = arith.constant dense<0.000000e+00> : vector<16x90xf32>
    %16 = tpu.matmul %14, %15, %cst_11 {dimension_numbers = #tpu.dot_dimension_numbers<[1], [0], [0], [1], [0, 0, 1, 1], [], []>} : vector<16x32xbf16>, vector<32x90xbf16>, vector<16x90xf32> -> vector<16x90xf32>
    %17 = arith.addf %12, %16 : vector<16x90xf32>
    %c3 = arith.constant 3 : index
    %c0_12 = arith.constant 0 : index
    %c0_13 = arith.constant 0 : index
    %18 = vector.load %arg2[%c3, %c0_12, %c0_13] : memref<9x16x32xbf16, #tpu.memory_space<vmem>>, vector<1x16x32xbf16>
    %19 = vector.shape_cast %18 : vector<1x16x32xbf16> to vector<16x32xbf16>
    %20 = vector.extract_strided_slice %2 {offsets = [0, 10], sizes = [32, 90], strides = [1, 1]} : vector<32x120xbf16> to vector<32x90xbf16>
    %cst_14 = arith.constant dense<0.000000e+00> : vector<16x90xf32>
    %21 = tpu.matmul %19, %20, %cst_14 {dimension_numbers = #tpu.dot_dimension_numbers<[1], [0], [0], [1], [0, 0, 1, 1], [], []>} : vector<16x32xbf16>, vector<32x90xbf16>, vector<16x90xf32> -> vector<16x90xf32>
    %22 = arith.addf %17, %21 : vector<16x90xf32>
    %c4 = arith.constant 4 : index
    %c0_15 = arith.constant 0 : index
    %c0_16 = arith.constant 0 : index
    %23 = vector.load %arg2[%c4, %c0_15, %c0_16] : memref<9x16x32xbf16, #tpu.memory_space<vmem>>, vector<1x16x32xbf16>
    %24 = vector.shape_cast %23 : vector<1x16x32xbf16> to vector<16x32xbf16>
    %25 = vector.extract_strided_slice %2 {offsets = [0, 11], sizes = [32, 90], strides = [1, 1]} : vector<32x120xbf16> to vector<32x90xbf16>
    %cst_17 = arith.constant dense<0.000000e+00> : vector<16x90xf32>
    %26 = tpu.matmul %24, %25, %cst_17 {dimension_numbers = #tpu.dot_dimension_numbers<[1], [0], [0], [1], [0, 0, 1, 1], [], []>} : vector<16x32xbf16>, vector<32x90xbf16>, vector<16x90xf32> -> vector<16x90xf32>
    %27 = arith.addf %22, %26 : vector<16x90xf32>
    %c5 = arith.constant 5 : index
    %c0_18 = arith.constant 0 : index
    %c0_19 = arith.constant 0 : index
    %28 = vector.load %arg2[%c5, %c0_18, %c0_19] : memref<9x16x32xbf16, #tpu.memory_space<vmem>>, vector<1x16x32xbf16>
    %29 = vector.shape_cast %28 : vector<1x16x32xbf16> to vector<16x32xbf16>
    %30 = vector.extract_strided_slice %2 {offsets = [0, 12], sizes = [32, 90], strides = [1, 1]} : vector<32x120xbf16> to vector<32x90xbf16>
    %cst_20 = arith.constant dense<0.000000e+00> : vector<16x90xf32>
    %31 = tpu.matmul %29, %30, %cst_20 {dimension_numbers = #tpu.dot_dimension_numbers<[1], [0], [0], [1], [0, 0, 1, 1], [], []>} : vector<16x32xbf16>, vector<32x90xbf16>, vector<16x90xf32> -> vector<16x90xf32>
    %32 = arith.addf %27, %31 : vector<16x90xf32>
    %c6 = arith.constant 6 : index
    %c0_21 = arith.constant 0 : index
    %c0_22 = arith.constant 0 : index
    %33 = vector.load %arg2[%c6, %c0_21, %c0_22] : memref<9x16x32xbf16, #tpu.memory_space<vmem>>, vector<1x16x32xbf16>
    %34 = vector.shape_cast %33 : vector<1x16x32xbf16> to vector<16x32xbf16>
    %35 = vector.extract_strided_slice %2 {offsets = [0, 20], sizes = [32, 90], strides = [1, 1]} : vector<32x120xbf16> to vector<32x90xbf16>
    %cst_23 = arith.constant dense<0.000000e+00> : vector<16x90xf32>
    %36 = tpu.matmul %34, %35, %cst_23 {dimension_numbers = #tpu.dot_dimension_numbers<[1], [0], [0], [1], [0, 0, 1, 1], [], []>} : vector<16x32xbf16>, vector<32x90xbf16>, vector<16x90xf32> -> vector<16x90xf32>
    %37 = arith.addf %32, %36 : vector<16x90xf32>
    %c7 = arith.constant 7 : index
    %c0_24 = arith.constant 0 : index
    %c0_25 = arith.constant 0 : index
    %38 = vector.load %arg2[%c7, %c0_24, %c0_25] : memref<9x16x32xbf16, #tpu.memory_space<vmem>>, vector<1x16x32xbf16>
    %39 = vector.shape_cast %38 : vector<1x16x32xbf16> to vector<16x32xbf16>
    %40 = vector.extract_strided_slice %2 {offsets = [0, 21], sizes = [32, 90], strides = [1, 1]} : vector<32x120xbf16> to vector<32x90xbf16>
    %cst_26 = arith.constant dense<0.000000e+00> : vector<16x90xf32>
    %41 = tpu.matmul %39, %40, %cst_26 {dimension_numbers = #tpu.dot_dimension_numbers<[1], [0], [0], [1], [0, 0, 1, 1], [], []>} : vector<16x32xbf16>, vector<32x90xbf16>, vector<16x90xf32> -> vector<16x90xf32>
    %42 = arith.addf %37, %41 : vector<16x90xf32>
    %c8 = arith.constant 8 : index
    %c0_27 = arith.constant 0 : index
    %c0_28 = arith.constant 0 : index
    %43 = vector.load %arg2[%c8, %c0_27, %c0_28] : memref<9x16x32xbf16, #tpu.memory_space<vmem>>, vector<1x16x32xbf16>
    %44 = vector.shape_cast %43 : vector<1x16x32xbf16> to vector<16x32xbf16>
    %45 = vector.extract_strided_slice %2 {offsets = [0, 22], sizes = [32, 90], strides = [1, 1]} : vector<32x120xbf16> to vector<32x90xbf16>
    %cst_29 = arith.constant dense<0.000000e+00> : vector<16x90xf32>
    %46 = tpu.matmul %44, %45, %cst_29 {dimension_numbers = #tpu.dot_dimension_numbers<[1], [0], [0], [1], [0, 0, 1, 1], [], []>} : vector<16x32xbf16>, vector<32x90xbf16>, vector<16x90xf32> -> vector<16x90xf32>
    %47 = arith.addf %42, %46 : vector<16x90xf32>
    %c0_30 = arith.constant 0 : index
    %c0_31 = arith.constant 0 : index
    %48 = vector.load %arg3[%c0_30, %c0_31] : memref<16x1xf32, #tpu.memory_space<vmem>>, vector<16x1xf32>
    %49 = vector.broadcast %48 : vector<16x1xf32> to vector<16x90xf32>
    %50 = arith.addf %47, %49 : vector<16x90xf32>
    %cst_32 = arith.constant 0.000000e+00 : f32
    %51 = vector.broadcast %cst_32 : f32 to vector<16x90xf32>
    %52 = arith.maximumf %50, %51 : vector<16x90xf32>
    %53 = arith.truncf %52 : vector<16x90xf32> to vector<16x90xbf16>
    %c0_33 = arith.constant 0 : index
    %c0_34 = arith.constant 0 : index
    %c0_35 = arith.constant 0 : index
    %54 = vector.load %arg4[%c0_33, %c0_34, %c0_35] : memref<1x16x90xbf16, #tpu.memory_space<vmem>>, vector<1x16x90xbf16>
    %55 = vector.shape_cast %54 : vector<1x16x90xbf16> to vector<16x90xbf16>
    %56 = vector.shape_cast %53 : vector<16x90xbf16> to vector<1x16x90xbf16>
    tpu.vector_store %arg4[%c0_33, %c0_34, %c0_35], %56 {strides = array<i32>} : memref<1x16x90xbf16, #tpu.memory_space<vmem>>, vector<1x16x90xbf16>,
    return
  }
  func.func @transform_0(%arg0: i32) -> (i32, i32, i32) {
    %c0_i32 = arith.constant 0 : i32
    %c0_i32_0 = arith.constant 0 : i32
    %c0_i32_1 = arith.constant 0 : i32
    return %arg0, %c0_i32, %c0_i32_0 : i32, i32, i32
  }
  func.func @transform_1(%arg0: i32) -> (i32, i32, i32) {
    %c0_i32 = arith.constant 0 : i32
    %c0_i32_0 = arith.constant 0 : i32
    %c0_i32_1 = arith.constant 0 : i32
    %c0_i32_2 = arith.constant 0 : i32
    return %c0_i32, %c0_i32_0, %c0_i32_1 : i32, i32, i32
  }
  func.func @transform_2(%arg0: i32) -> (i32, i32) {
    %c0_i32 = arith.constant 0 : i32
    %c0_i32_0 = arith.constant 0 : i32
    %c0_i32_1 = arith.constant 0 : i32
    return %c0_i32, %c0_i32_0 : i32, i32
  }
  func.func @transform_3(%arg0: i32) -> (i32, i32, i32) {
    %c0_i32 = arith.constant 0 : i32
    %c0_i32_0 = arith.constant 0 : i32
    %c0_i32_1 = arith.constant 0 : i32
    return %arg0, %c0_i32, %c0_i32_0 : i32, i32, i32
  }
}

module attributes {stable_mosaic.version = 11 : i64} {
  func.func @_fused_conv_kernel(%arg0: i32, %arg1: memref<1x16x48xbf16, #tpu.memory_space<vmem>>, %arg2: memref<9x16x16xbf16, #tpu.memory_space<vmem>>, %arg3: memref<1x16x48xbf16, #tpu.memory_space<vmem>>, %arg4: memref<9x16x16xbf16, #tpu.memory_space<vmem>>, %arg5: memref<16x1xf32, #tpu.memory_space<vmem>>, %arg6: memref<1x16x30xbf16, #tpu.memory_space<vmem>>) attributes {dimension_semantics = [#tpu.dimension_semantics<parallel>], iteration_bounds = array<i64: 2>, scalar_prefetch = 0 : i64, scratch_operands = 0 : i64, tpu.core_type = #tpu.core_type<tc>, window_params = [{transform_indices = @transform_0, window_bounds = array<i64: 1, 16, 48>}, {pipeline_mode = #tpu.pipeline_mode<synchronous>, transform_indices = @transform_1, window_bounds = array<i64: 9, 16, 16>}, {transform_indices = @transform_2, window_bounds = array<i64: 1, 16, 48>}, {pipeline_mode = #tpu.pipeline_mode<synchronous>, transform_indices = @transform_3, window_bounds = array<i64: 9, 16, 16>}, {pipeline_mode = #tpu.pipeline_mode<synchronous>, transform_indices = @transform_4, window_bounds = array<i64: 16, 1>}, {transform_indices = @transform_5, window_bounds = array<i64: 1, 16, 30>}]} {
    %cst = arith.constant 0.000000e+00 : f32
    %0 = vector.broadcast %cst : f32 to vector<16x30xf32>
    %c0 = arith.constant 0 : index
    %c0_0 = arith.constant 0 : index
    %c0_1 = arith.constant 0 : index
    %1 = vector.load %arg1[%c0, %c0_0, %c0_1] : memref<1x16x48xbf16, #tpu.memory_space<vmem>>, vector<1x16x48xbf16>
    %2 = vector.shape_cast %1 : vector<1x16x48xbf16> to vector<16x48xbf16>
    %c0_2 = arith.constant 0 : index
    %c0_3 = arith.constant 0 : index
    %c0_4 = arith.constant 0 : index
    %3 = vector.load %arg2[%c0_2, %c0_3, %c0_4] : memref<9x16x16xbf16, #tpu.memory_space<vmem>>, vector<1x16x16xbf16>
    %4 = vector.shape_cast %3 : vector<1x16x16xbf16> to vector<16x16xbf16>
    %5 = vector.extract_strided_slice %2 {offsets = [0, 0], sizes = [16, 30], strides = [1, 1]} : vector<16x48xbf16> to vector<16x30xbf16>
    %cst_5 = arith.constant dense<0.000000e+00> : vector<16x30xf32>
    %6 = tpu.matmul %4, %5, %cst_5 {dimension_numbers = #tpu.dot_dimension_numbers<[1], [0], [0], [1], [0, 0, 1, 1], [], []>} : vector<16x16xbf16>, vector<16x30xbf16>, vector<16x30xf32> -> vector<16x30xf32>
    %7 = arith.addf %0, %6 : vector<16x30xf32>
    %c1 = arith.constant 1 : index
    %c0_6 = arith.constant 0 : index
    %c0_7 = arith.constant 0 : index
    %8 = vector.load %arg2[%c1, %c0_6, %c0_7] : memref<9x16x16xbf16, #tpu.memory_space<vmem>>, vector<1x16x16xbf16>
    %9 = vector.shape_cast %8 : vector<1x16x16xbf16> to vector<16x16xbf16>
    %10 = vector.extract_strided_slice %2 {offsets = [0, 1], sizes = [16, 30], strides = [1, 1]} : vector<16x48xbf16> to vector<16x30xbf16>
    %cst_8 = arith.constant dense<0.000000e+00> : vector<16x30xf32>
    %11 = tpu.matmul %9, %10, %cst_8 {dimension_numbers = #tpu.dot_dimension_numbers<[1], [0], [0], [1], [0, 0, 1, 1], [], []>} : vector<16x16xbf16>, vector<16x30xbf16>, vector<16x30xf32> -> vector<16x30xf32>
    %12 = arith.addf %7, %11 : vector<16x30xf32>
    %c2 = arith.constant 2 : index
    %c0_9 = arith.constant 0 : index
    %c0_10 = arith.constant 0 : index
    %13 = vector.load %arg2[%c2, %c0_9, %c0_10] : memref<9x16x16xbf16, #tpu.memory_space<vmem>>, vector<1x16x16xbf16>
    %14 = vector.shape_cast %13 : vector<1x16x16xbf16> to vector<16x16xbf16>
    %15 = vector.extract_strided_slice %2 {offsets = [0, 2], sizes = [16, 30], strides = [1, 1]} : vector<16x48xbf16> to vector<16x30xbf16>
    %cst_11 = arith.constant dense<0.000000e+00> : vector<16x30xf32>
    %16 = tpu.matmul %14, %15, %cst_11 {dimension_numbers = #tpu.dot_dimension_numbers<[1], [0], [0], [1], [0, 0, 1, 1], [], []>} : vector<16x16xbf16>, vector<16x30xbf16>, vector<16x30xf32> -> vector<16x30xf32>
    %17 = arith.addf %12, %16 : vector<16x30xf32>
    %c3 = arith.constant 3 : index
    %c0_12 = arith.constant 0 : index
    %c0_13 = arith.constant 0 : index
    %18 = vector.load %arg2[%c3, %c0_12, %c0_13] : memref<9x16x16xbf16, #tpu.memory_space<vmem>>, vector<1x16x16xbf16>
    %19 = vector.shape_cast %18 : vector<1x16x16xbf16> to vector<16x16xbf16>
    %20 = vector.extract_strided_slice %2 {offsets = [0, 6], sizes = [16, 30], strides = [1, 1]} : vector<16x48xbf16> to vector<16x30xbf16>
    %cst_14 = arith.constant dense<0.000000e+00> : vector<16x30xf32>
    %21 = tpu.matmul %19, %20, %cst_14 {dimension_numbers = #tpu.dot_dimension_numbers<[1], [0], [0], [1], [0, 0, 1, 1], [], []>} : vector<16x16xbf16>, vector<16x30xbf16>, vector<16x30xf32> -> vector<16x30xf32>
    %22 = arith.addf %17, %21 : vector<16x30xf32>
    %c4 = arith.constant 4 : index
    %c0_15 = arith.constant 0 : index
    %c0_16 = arith.constant 0 : index
    %23 = vector.load %arg2[%c4, %c0_15, %c0_16] : memref<9x16x16xbf16, #tpu.memory_space<vmem>>, vector<1x16x16xbf16>
    %24 = vector.shape_cast %23 : vector<1x16x16xbf16> to vector<16x16xbf16>
    %25 = vector.extract_strided_slice %2 {offsets = [0, 7], sizes = [16, 30], strides = [1, 1]} : vector<16x48xbf16> to vector<16x30xbf16>
    %cst_17 = arith.constant dense<0.000000e+00> : vector<16x30xf32>
    %26 = tpu.matmul %24, %25, %cst_17 {dimension_numbers = #tpu.dot_dimension_numbers<[1], [0], [0], [1], [0, 0, 1, 1], [], []>} : vector<16x16xbf16>, vector<16x30xbf16>, vector<16x30xf32> -> vector<16x30xf32>
    %27 = arith.addf %22, %26 : vector<16x30xf32>
    %c5 = arith.constant 5 : index
    %c0_18 = arith.constant 0 : index
    %c0_19 = arith.constant 0 : index
    %28 = vector.load %arg2[%c5, %c0_18, %c0_19] : memref<9x16x16xbf16, #tpu.memory_space<vmem>>, vector<1x16x16xbf16>
    %29 = vector.shape_cast %28 : vector<1x16x16xbf16> to vector<16x16xbf16>
    %30 = vector.extract_strided_slice %2 {offsets = [0, 8], sizes = [16, 30], strides = [1, 1]} : vector<16x48xbf16> to vector<16x30xbf16>
    %cst_20 = arith.constant dense<0.000000e+00> : vector<16x30xf32>
    %31 = tpu.matmul %29, %30, %cst_20 {dimension_numbers = #tpu.dot_dimension_numbers<[1], [0], [0], [1], [0, 0, 1, 1], [], []>} : vector<16x16xbf16>, vector<16x30xbf16>, vector<16x30xf32> -> vector<16x30xf32>
    %32 = arith.addf %27, %31 : vector<16x30xf32>
    %c6 = arith.constant 6 : index
    %c0_21 = arith.constant 0 : index
    %c0_22 = arith.constant 0 : index
    %33 = vector.load %arg2[%c6, %c0_21, %c0_22] : memref<9x16x16xbf16, #tpu.memory_space<vmem>>, vector<1x16x16xbf16>
    %34 = vector.shape_cast %33 : vector<1x16x16xbf16> to vector<16x16xbf16>
    %35 = vector.extract_strided_slice %2 {offsets = [0, 12], sizes = [16, 30], strides = [1, 1]} : vector<16x48xbf16> to vector<16x30xbf16>
    %cst_23 = arith.constant dense<0.000000e+00> : vector<16x30xf32>
    %36 = tpu.matmul %34, %35, %cst_23 {dimension_numbers = #tpu.dot_dimension_numbers<[1], [0], [0], [1], [0, 0, 1, 1], [], []>} : vector<16x16xbf16>, vector<16x30xbf16>, vector<16x30xf32> -> vector<16x30xf32>
    %37 = arith.addf %32, %36 : vector<16x30xf32>
    %c7 = arith.constant 7 : index
    %c0_24 = arith.constant 0 : index
    %c0_25 = arith.constant 0 : index
    %38 = vector.load %arg2[%c7, %c0_24, %c0_25] : memref<9x16x16xbf16, #tpu.memory_space<vmem>>, vector<1x16x16xbf16>
    %39 = vector.shape_cast %38 : vector<1x16x16xbf16> to vector<16x16xbf16>
    %40 = vector.extract_strided_slice %2 {offsets = [0, 13], sizes = [16, 30], strides = [1, 1]} : vector<16x48xbf16> to vector<16x30xbf16>
    %cst_26 = arith.constant dense<0.000000e+00> : vector<16x30xf32>
    %41 = tpu.matmul %39, %40, %cst_26 {dimension_numbers = #tpu.dot_dimension_numbers<[1], [0], [0], [1], [0, 0, 1, 1], [], []>} : vector<16x16xbf16>, vector<16x30xbf16>, vector<16x30xf32> -> vector<16x30xf32>
    %42 = arith.addf %37, %41 : vector<16x30xf32>
    %c8 = arith.constant 8 : index
    %c0_27 = arith.constant 0 : index
    %c0_28 = arith.constant 0 : index
    %43 = vector.load %arg2[%c8, %c0_27, %c0_28] : memref<9x16x16xbf16, #tpu.memory_space<vmem>>, vector<1x16x16xbf16>
    %44 = vector.shape_cast %43 : vector<1x16x16xbf16> to vector<16x16xbf16>
    %45 = vector.extract_strided_slice %2 {offsets = [0, 14], sizes = [16, 30], strides = [1, 1]} : vector<16x48xbf16> to vector<16x30xbf16>
    %cst_29 = arith.constant dense<0.000000e+00> : vector<16x30xf32>
    %46 = tpu.matmul %44, %45, %cst_29 {dimension_numbers = #tpu.dot_dimension_numbers<[1], [0], [0], [1], [0, 0, 1, 1], [], []>} : vector<16x16xbf16>, vector<16x30xbf16>, vector<16x30xf32> -> vector<16x30xf32>
    %47 = arith.addf %42, %46 : vector<16x30xf32>
    %c0_30 = arith.constant 0 : index
    %c0_31 = arith.constant 0 : index
    %c0_32 = arith.constant 0 : index
    %48 = vector.load %arg3[%c0_30, %c0_31, %c0_32] : memref<1x16x48xbf16, #tpu.memory_space<vmem>>, vector<1x16x48xbf16>
    %49 = vector.shape_cast %48 : vector<1x16x48xbf16> to vector<16x48xbf16>
    %c0_33 = arith.constant 0 : index
    %c0_34 = arith.constant 0 : index
    %c0_35 = arith.constant 0 : index
    %50 = vector.load %arg4[%c0_33, %c0_34, %c0_35] : memref<9x16x16xbf16, #tpu.memory_space<vmem>>, vector<1x16x16xbf16>
    %51 = vector.shape_cast %50 : vector<1x16x16xbf16> to vector<16x16xbf16>
    %52 = vector.extract_strided_slice %49 {offsets = [0, 0], sizes = [16, 30], strides = [1, 1]} : vector<16x48xbf16> to vector<16x30xbf16>
    %cst_36 = arith.constant dense<0.000000e+00> : vector<16x30xf32>
    %53 = tpu.matmul %51, %52, %cst_36 {dimension_numbers = #tpu.dot_dimension_numbers<[1], [0], [0], [1], [0, 0, 1, 1], [], []>} : vector<16x16xbf16>, vector<16x30xbf16>, vector<16x30xf32> -> vector<16x30xf32>
    %54 = arith.addf %47, %53 : vector<16x30xf32>
    %c1_37 = arith.constant 1 : index
    %c0_38 = arith.constant 0 : index
    %c0_39 = arith.constant 0 : index
    %55 = vector.load %arg4[%c1_37, %c0_38, %c0_39] : memref<9x16x16xbf16, #tpu.memory_space<vmem>>, vector<1x16x16xbf16>
    %56 = vector.shape_cast %55 : vector<1x16x16xbf16> to vector<16x16xbf16>
    %57 = vector.extract_strided_slice %49 {offsets = [0, 1], sizes = [16, 30], strides = [1, 1]} : vector<16x48xbf16> to vector<16x30xbf16>
    %cst_40 = arith.constant dense<0.000000e+00> : vector<16x30xf32>
    %58 = tpu.matmul %56, %57, %cst_40 {dimension_numbers = #tpu.dot_dimension_numbers<[1], [0], [0], [1], [0, 0, 1, 1], [], []>} : vector<16x16xbf16>, vector<16x30xbf16>, vector<16x30xf32> -> vector<16x30xf32>
    %59 = arith.addf %54, %58 : vector<16x30xf32>
    %c2_41 = arith.constant 2 : index
    %c0_42 = arith.constant 0 : index
    %c0_43 = arith.constant 0 : index
    %60 = vector.load %arg4[%c2_41, %c0_42, %c0_43] : memref<9x16x16xbf16, #tpu.memory_space<vmem>>, vector<1x16x16xbf16>
    %61 = vector.shape_cast %60 : vector<1x16x16xbf16> to vector<16x16xbf16>
    %62 = vector.extract_strided_slice %49 {offsets = [0, 2], sizes = [16, 30], strides = [1, 1]} : vector<16x48xbf16> to vector<16x30xbf16>
    %cst_44 = arith.constant dense<0.000000e+00> : vector<16x30xf32>
    %63 = tpu.matmul %61, %62, %cst_44 {dimension_numbers = #tpu.dot_dimension_numbers<[1], [0], [0], [1], [0, 0, 1, 1], [], []>} : vector<16x16xbf16>, vector<16x30xbf16>, vector<16x30xf32> -> vector<16x30xf32>
    %64 = arith.addf %59, %63 : vector<16x30xf32>
    %c3_45 = arith.constant 3 : index
    %c0_46 = arith.constant 0 : index
    %c0_47 = arith.constant 0 : index
    %65 = vector.load %arg4[%c3_45, %c0_46, %c0_47] : memref<9x16x16xbf16, #tpu.memory_space<vmem>>, vector<1x16x16xbf16>
    %66 = vector.shape_cast %65 : vector<1x16x16xbf16> to vector<16x16xbf16>
    %67 = vector.extract_strided_slice %49 {offsets = [0, 6], sizes = [16, 30], strides = [1, 1]} : vector<16x48xbf16> to vector<16x30xbf16>
    %cst_48 = arith.constant dense<0.000000e+00> : vector<16x30xf32>
    %68 = tpu.matmul %66, %67, %cst_48 {dimension_numbers = #tpu.dot_dimension_numbers<[1], [0], [0], [1], [0, 0, 1, 1], [], []>} : vector<16x16xbf16>, vector<16x30xbf16>, vector<16x30xf32> -> vector<16x30xf32>
    %69 = arith.addf %64, %68 : vector<16x30xf32>
    %c4_49 = arith.constant 4 : index
    %c0_50 = arith.constant 0 : index
    %c0_51 = arith.constant 0 : index
    %70 = vector.load %arg4[%c4_49, %c0_50, %c0_51] : memref<9x16x16xbf16, #tpu.memory_space<vmem>>, vector<1x16x16xbf16>
    %71 = vector.shape_cast %70 : vector<1x16x16xbf16> to vector<16x16xbf16>
    %72 = vector.extract_strided_slice %49 {offsets = [0, 7], sizes = [16, 30], strides = [1, 1]} : vector<16x48xbf16> to vector<16x30xbf16>
    %cst_52 = arith.constant dense<0.000000e+00> : vector<16x30xf32>
    %73 = tpu.matmul %71, %72, %cst_52 {dimension_numbers = #tpu.dot_dimension_numbers<[1], [0], [0], [1], [0, 0, 1, 1], [], []>} : vector<16x16xbf16>, vector<16x30xbf16>, vector<16x30xf32> -> vector<16x30xf32>
    %74 = arith.addf %69, %73 : vector<16x30xf32>
    %c5_53 = arith.constant 5 : index
    %c0_54 = arith.constant 0 : index
    %c0_55 = arith.constant 0 : index
    %75 = vector.load %arg4[%c5_53, %c0_54, %c0_55] : memref<9x16x16xbf16, #tpu.memory_space<vmem>>, vector<1x16x16xbf16>
    %76 = vector.shape_cast %75 : vector<1x16x16xbf16> to vector<16x16xbf16>
    %77 = vector.extract_strided_slice %49 {offsets = [0, 8], sizes = [16, 30], strides = [1, 1]} : vector<16x48xbf16> to vector<16x30xbf16>
    %cst_56 = arith.constant dense<0.000000e+00> : vector<16x30xf32>
    %78 = tpu.matmul %76, %77, %cst_56 {dimension_numbers = #tpu.dot_dimension_numbers<[1], [0], [0], [1], [0, 0, 1, 1], [], []>} : vector<16x16xbf16>, vector<16x30xbf16>, vector<16x30xf32> -> vector<16x30xf32>
    %79 = arith.addf %74, %78 : vector<16x30xf32>
    %c6_57 = arith.constant 6 : index
    %c0_58 = arith.constant 0 : index
    %c0_59 = arith.constant 0 : index
    %80 = vector.load %arg4[%c6_57, %c0_58, %c0_59] : memref<9x16x16xbf16, #tpu.memory_space<vmem>>, vector<1x16x16xbf16>
    %81 = vector.shape_cast %80 : vector<1x16x16xbf16> to vector<16x16xbf16>
    %82 = vector.extract_strided_slice %49 {offsets = [0, 12], sizes = [16, 30], strides = [1, 1]} : vector<16x48xbf16> to vector<16x30xbf16>
    %cst_60 = arith.constant dense<0.000000e+00> : vector<16x30xf32>
    %83 = tpu.matmul %81, %82, %cst_60 {dimension_numbers = #tpu.dot_dimension_numbers<[1], [0], [0], [1], [0, 0, 1, 1], [], []>} : vector<16x16xbf16>, vector<16x30xbf16>, vector<16x30xf32> -> vector<16x30xf32>
    %84 = arith.addf %79, %83 : vector<16x30xf32>
    %c7_61 = arith.constant 7 : index
    %c0_62 = arith.constant 0 : index
    %c0_63 = arith.constant 0 : index
    %85 = vector.load %arg4[%c7_61, %c0_62, %c0_63] : memref<9x16x16xbf16, #tpu.memory_space<vmem>>, vector<1x16x16xbf16>
    %86 = vector.shape_cast %85 : vector<1x16x16xbf16> to vector<16x16xbf16>
    %87 = vector.extract_strided_slice %49 {offsets = [0, 13], sizes = [16, 30], strides = [1, 1]} : vector<16x48xbf16> to vector<16x30xbf16>
    %cst_64 = arith.constant dense<0.000000e+00> : vector<16x30xf32>
    %88 = tpu.matmul %86, %87, %cst_64 {dimension_numbers = #tpu.dot_dimension_numbers<[1], [0], [0], [1], [0, 0, 1, 1], [], []>} : vector<16x16xbf16>, vector<16x30xbf16>, vector<16x30xf32> -> vector<16x30xf32>
    %89 = arith.addf %84, %88 : vector<16x30xf32>
    %c8_65 = arith.constant 8 : index
    %c0_66 = arith.constant 0 : index
    %c0_67 = arith.constant 0 : index
    %90 = vector.load %arg4[%c8_65, %c0_66, %c0_67] : memref<9x16x16xbf16, #tpu.memory_space<vmem>>, vector<1x16x16xbf16>
    %91 = vector.shape_cast %90 : vector<1x16x16xbf16> to vector<16x16xbf16>
    %92 = vector.extract_strided_slice %49 {offsets = [0, 14], sizes = [16, 30], strides = [1, 1]} : vector<16x48xbf16> to vector<16x30xbf16>
    %cst_68 = arith.constant dense<0.000000e+00> : vector<16x30xf32>
    %93 = tpu.matmul %91, %92, %cst_68 {dimension_numbers = #tpu.dot_dimension_numbers<[1], [0], [0], [1], [0, 0, 1, 1], [], []>} : vector<16x16xbf16>, vector<16x30xbf16>, vector<16x30xf32> -> vector<16x30xf32>
    %94 = arith.addf %89, %93 : vector<16x30xf32>
    %c0_69 = arith.constant 0 : index
    %c0_70 = arith.constant 0 : index
    %95 = vector.load %arg5[%c0_69, %c0_70] : memref<16x1xf32, #tpu.memory_space<vmem>>, vector<16x1xf32>
    %96 = vector.broadcast %95 : vector<16x1xf32> to vector<16x30xf32>
    %97 = arith.addf %94, %96 : vector<16x30xf32>
    %cst_71 = arith.constant 0.000000e+00 : f32
    %98 = vector.broadcast %cst_71 : f32 to vector<16x30xf32>
    %99 = arith.maximumf %97, %98 : vector<16x30xf32>
    %100 = arith.truncf %99 : vector<16x30xf32> to vector<16x30xbf16>
    %c0_72 = arith.constant 0 : index
    %c0_73 = arith.constant 0 : index
    %c0_74 = arith.constant 0 : index
    %101 = vector.load %arg6[%c0_72, %c0_73, %c0_74] : memref<1x16x30xbf16, #tpu.memory_space<vmem>>, vector<1x16x30xbf16>
    %102 = vector.shape_cast %101 : vector<1x16x30xbf16> to vector<16x30xbf16>
    %103 = vector.shape_cast %100 : vector<16x30xbf16> to vector<1x16x30xbf16>
    tpu.vector_store %arg6[%c0_72, %c0_73, %c0_74], %103 {strides = array<i32>} : memref<1x16x30xbf16, #tpu.memory_space<vmem>>, vector<1x16x30xbf16>,
    return
  }
  func.func @transform_0(%arg0: i32) -> (i32, i32, i32) {
    %c0_i32 = arith.constant 0 : i32
    %c0_i32_0 = arith.constant 0 : i32
    %c0_i32_1 = arith.constant 0 : i32
    return %arg0, %c0_i32, %c0_i32_0 : i32, i32, i32
  }
  func.func @transform_1(%arg0: i32) -> (i32, i32, i32) {
    %c0_i32 = arith.constant 0 : i32
    %c0_i32_0 = arith.constant 0 : i32
    %c0_i32_1 = arith.constant 0 : i32
    %c0_i32_2 = arith.constant 0 : i32
    return %c0_i32, %c0_i32_0, %c0_i32_1 : i32, i32, i32
  }
  func.func @transform_2(%arg0: i32) -> (i32, i32, i32) {
    %c0_i32 = arith.constant 0 : i32
    %c0_i32_0 = arith.constant 0 : i32
    %c0_i32_1 = arith.constant 0 : i32
    return %arg0, %c0_i32, %c0_i32_0 : i32, i32, i32
  }
  func.func @transform_3(%arg0: i32) -> (i32, i32, i32) {
    %c0_i32 = arith.constant 0 : i32
    %c0_i32_0 = arith.constant 0 : i32
    %c0_i32_1 = arith.constant 0 : i32
    %c0_i32_2 = arith.constant 0 : i32
    return %c0_i32, %c0_i32_0, %c0_i32_1 : i32, i32, i32
  }
  func.func @transform_4(%arg0: i32) -> (i32, i32) {
    %c0_i32 = arith.constant 0 : i32
    %c0_i32_0 = arith.constant 0 : i32
    %c0_i32_1 = arith.constant 0 : i32
    return %c0_i32, %c0_i32_0 : i32, i32
  }
  func.func @transform_5(%arg0: i32) -> (i32, i32, i32) {
    %c0_i32 = arith.constant 0 : i32
    %c0_i32_0 = arith.constant 0 : i32
    %c0_i32_1 = arith.constant 0 : i32
    return %arg0, %c0_i32, %c0_i32_0 : i32, i32, i32
  }
}

module attributes {stable_mosaic.version = 11 : i64} {
  func.func @_fused_conv_kernel(%arg0: i32, %arg1: memref<1x16x360xbf16, #tpu.memory_space<vmem>>, %arg2: memref<9x16x16xbf16, #tpu.memory_space<vmem>>, %arg3: memref<16x1xf32, #tpu.memory_space<vmem>>, %arg4: memref<1x16x306xbf16, #tpu.memory_space<vmem>>) attributes {dimension_semantics = [#tpu.dimension_semantics<parallel>], iteration_bounds = array<i64: 2>, scalar_prefetch = 0 : i64, scratch_operands = 0 : i64, tpu.core_type = #tpu.core_type<tc>, window_params = [{transform_indices = @transform_0, window_bounds = array<i64: 1, 16, 360>}, {pipeline_mode = #tpu.pipeline_mode<synchronous>, transform_indices = @transform_1, window_bounds = array<i64: 9, 16, 16>}, {pipeline_mode = #tpu.pipeline_mode<synchronous>, transform_indices = @transform_2, window_bounds = array<i64: 16, 1>}, {transform_indices = @transform_3, window_bounds = array<i64: 1, 16, 306>}]} {
    %cst = arith.constant 0.000000e+00 : f32
    %0 = vector.broadcast %cst : f32 to vector<16x306xf32>
    %c0 = arith.constant 0 : index
    %c0_0 = arith.constant 0 : index
    %c0_1 = arith.constant 0 : index
    %1 = vector.load %arg1[%c0, %c0_0, %c0_1] : memref<1x16x360xbf16, #tpu.memory_space<vmem>>, vector<1x16x360xbf16>
    %2 = vector.shape_cast %1 : vector<1x16x360xbf16> to vector<16x360xbf16>
    %c0_2 = arith.constant 0 : index
    %c0_3 = arith.constant 0 : index
    %c0_4 = arith.constant 0 : index
    %3 = vector.load %arg2[%c0_2, %c0_3, %c0_4] : memref<9x16x16xbf16, #tpu.memory_space<vmem>>, vector<1x16x16xbf16>
    %4 = vector.shape_cast %3 : vector<1x16x16xbf16> to vector<16x16xbf16>
    %5 = vector.extract_strided_slice %2 {offsets = [0, 0], sizes = [16, 306], strides = [1, 1]} : vector<16x360xbf16> to vector<16x306xbf16>
    %cst_5 = arith.constant dense<0.000000e+00> : vector<16x306xf32>
    %6 = tpu.matmul %4, %5, %cst_5 {dimension_numbers = #tpu.dot_dimension_numbers<[1], [0], [0], [1], [0, 0, 1, 1], [], []>} : vector<16x16xbf16>, vector<16x306xbf16>, vector<16x306xf32> -> vector<16x306xf32>
    %7 = arith.addf %0, %6 : vector<16x306xf32>
    %c1 = arith.constant 1 : index
    %c0_6 = arith.constant 0 : index
    %c0_7 = arith.constant 0 : index
    %8 = vector.load %arg2[%c1, %c0_6, %c0_7] : memref<9x16x16xbf16, #tpu.memory_space<vmem>>, vector<1x16x16xbf16>
    %9 = vector.shape_cast %8 : vector<1x16x16xbf16> to vector<16x16xbf16>
    %10 = vector.extract_strided_slice %2 {offsets = [0, 1], sizes = [16, 306], strides = [1, 1]} : vector<16x360xbf16> to vector<16x306xbf16>
    %cst_8 = arith.constant dense<0.000000e+00> : vector<16x306xf32>
    %11 = tpu.matmul %9, %10, %cst_8 {dimension_numbers = #tpu.dot_dimension_numbers<[1], [0], [0], [1], [0, 0, 1, 1], [], []>} : vector<16x16xbf16>, vector<16x306xbf16>, vector<16x306xf32> -> vector<16x306xf32>
    %12 = arith.addf %7, %11 : vector<16x306xf32>
    %c2 = arith.constant 2 : index
    %c0_9 = arith.constant 0 : index
    %c0_10 = arith.constant 0 : index
    %13 = vector.load %arg2[%c2, %c0_9, %c0_10] : memref<9x16x16xbf16, #tpu.memory_space<vmem>>, vector<1x16x16xbf16>
    %14 = vector.shape_cast %13 : vector<1x16x16xbf16> to vector<16x16xbf16>
    %15 = vector.extract_strided_slice %2 {offsets = [0, 2], sizes = [16, 306], strides = [1, 1]} : vector<16x360xbf16> to vector<16x306xbf16>
    %cst_11 = arith.constant dense<0.000000e+00> : vector<16x306xf32>
    %16 = tpu.matmul %14, %15, %cst_11 {dimension_numbers = #tpu.dot_dimension_numbers<[1], [0], [0], [1], [0, 0, 1, 1], [], []>} : vector<16x16xbf16>, vector<16x306xbf16>, vector<16x306xf32> -> vector<16x306xf32>
    %17 = arith.addf %12, %16 : vector<16x306xf32>
    %c3 = arith.constant 3 : index
    %c0_12 = arith.constant 0 : index
    %c0_13 = arith.constant 0 : index
    %18 = vector.load %arg2[%c3, %c0_12, %c0_13] : memref<9x16x16xbf16, #tpu.memory_space<vmem>>, vector<1x16x16xbf16>
    %19 = vector.shape_cast %18 : vector<1x16x16xbf16> to vector<16x16xbf16>
    %20 = vector.extract_strided_slice %2 {offsets = [0, 18], sizes = [16, 306], strides = [1, 1]} : vector<16x360xbf16> to vector<16x306xbf16>
    %cst_14 = arith.constant dense<0.000000e+00> : vector<16x306xf32>
    %21 = tpu.matmul %19, %20, %cst_14 {dimension_numbers = #tpu.dot_dimension_numbers<[1], [0], [0], [1], [0, 0, 1, 1], [], []>} : vector<16x16xbf16>, vector<16x306xbf16>, vector<16x306xf32> -> vector<16x306xf32>
    %22 = arith.addf %17, %21 : vector<16x306xf32>
    %c4 = arith.constant 4 : index
    %c0_15 = arith.constant 0 : index
    %c0_16 = arith.constant 0 : index
    %23 = vector.load %arg2[%c4, %c0_15, %c0_16] : memref<9x16x16xbf16, #tpu.memory_space<vmem>>, vector<1x16x16xbf16>
    %24 = vector.shape_cast %23 : vector<1x16x16xbf16> to vector<16x16xbf16>
    %25 = vector.extract_strided_slice %2 {offsets = [0, 19], sizes = [16, 306], strides = [1, 1]} : vector<16x360xbf16> to vector<16x306xbf16>
    %cst_17 = arith.constant dense<0.000000e+00> : vector<16x306xf32>
    %26 = tpu.matmul %24, %25, %cst_17 {dimension_numbers = #tpu.dot_dimension_numbers<[1], [0], [0], [1], [0, 0, 1, 1], [], []>} : vector<16x16xbf16>, vector<16x306xbf16>, vector<16x306xf32> -> vector<16x306xf32>
    %27 = arith.addf %22, %26 : vector<16x306xf32>
    %c5 = arith.constant 5 : index
    %c0_18 = arith.constant 0 : index
    %c0_19 = arith.constant 0 : index
    %28 = vector.load %arg2[%c5, %c0_18, %c0_19] : memref<9x16x16xbf16, #tpu.memory_space<vmem>>, vector<1x16x16xbf16>
    %29 = vector.shape_cast %28 : vector<1x16x16xbf16> to vector<16x16xbf16>
    %30 = vector.extract_strided_slice %2 {offsets = [0, 20], sizes = [16, 306], strides = [1, 1]} : vector<16x360xbf16> to vector<16x306xbf16>
    %cst_20 = arith.constant dense<0.000000e+00> : vector<16x306xf32>
    %31 = tpu.matmul %29, %30, %cst_20 {dimension_numbers = #tpu.dot_dimension_numbers<[1], [0], [0], [1], [0, 0, 1, 1], [], []>} : vector<16x16xbf16>, vector<16x306xbf16>, vector<16x306xf32> -> vector<16x306xf32>
    %32 = arith.addf %27, %31 : vector<16x306xf32>
    %c6 = arith.constant 6 : index
    %c0_21 = arith.constant 0 : index
    %c0_22 = arith.constant 0 : index
    %33 = vector.load %arg2[%c6, %c0_21, %c0_22] : memref<9x16x16xbf16, #tpu.memory_space<vmem>>, vector<1x16x16xbf16>
    %34 = vector.shape_cast %33 : vector<1x16x16xbf16> to vector<16x16xbf16>
    %35 = vector.extract_strided_slice %2 {offsets = [0, 36], sizes = [16, 306], strides = [1, 1]} : vector<16x360xbf16> to vector<16x306xbf16>
    %cst_23 = arith.constant dense<0.000000e+00> : vector<16x306xf32>
    %36 = tpu.matmul %34, %35, %cst_23 {dimension_numbers = #tpu.dot_dimension_numbers<[1], [0], [0], [1], [0, 0, 1, 1], [], []>} : vector<16x16xbf16>, vector<16x306xbf16>, vector<16x306xf32> -> vector<16x306xf32>
    %37 = arith.addf %32, %36 : vector<16x306xf32>
    %c7 = arith.constant 7 : index
    %c0_24 = arith.constant 0 : index
    %c0_25 = arith.constant 0 : index
    %38 = vector.load %arg2[%c7, %c0_24, %c0_25] : memref<9x16x16xbf16, #tpu.memory_space<vmem>>, vector<1x16x16xbf16>
    %39 = vector.shape_cast %38 : vector<1x16x16xbf16> to vector<16x16xbf16>
    %40 = vector.extract_strided_slice %2 {offsets = [0, 37], sizes = [16, 306], strides = [1, 1]} : vector<16x360xbf16> to vector<16x306xbf16>
    %cst_26 = arith.constant dense<0.000000e+00> : vector<16x306xf32>
    %41 = tpu.matmul %39, %40, %cst_26 {dimension_numbers = #tpu.dot_dimension_numbers<[1], [0], [0], [1], [0, 0, 1, 1], [], []>} : vector<16x16xbf16>, vector<16x306xbf16>, vector<16x306xf32> -> vector<16x306xf32>
    %42 = arith.addf %37, %41 : vector<16x306xf32>
    %c8 = arith.constant 8 : index
    %c0_27 = arith.constant 0 : index
    %c0_28 = arith.constant 0 : index
    %43 = vector.load %arg2[%c8, %c0_27, %c0_28] : memref<9x16x16xbf16, #tpu.memory_space<vmem>>, vector<1x16x16xbf16>
    %44 = vector.shape_cast %43 : vector<1x16x16xbf16> to vector<16x16xbf16>
    %45 = vector.extract_strided_slice %2 {offsets = [0, 38], sizes = [16, 306], strides = [1, 1]} : vector<16x360xbf16> to vector<16x306xbf16>
    %cst_29 = arith.constant dense<0.000000e+00> : vector<16x306xf32>
    %46 = tpu.matmul %44, %45, %cst_29 {dimension_numbers = #tpu.dot_dimension_numbers<[1], [0], [0], [1], [0, 0, 1, 1], [], []>} : vector<16x16xbf16>, vector<16x306xbf16>, vector<16x306xf32> -> vector<16x306xf32>
    %47 = arith.addf %42, %46 : vector<16x306xf32>
    %c0_30 = arith.constant 0 : index
    %c0_31 = arith.constant 0 : index
    %48 = vector.load %arg3[%c0_30, %c0_31] : memref<16x1xf32, #tpu.memory_space<vmem>>, vector<16x1xf32>
    %49 = vector.broadcast %48 : vector<16x1xf32> to vector<16x306xf32>
    %50 = arith.addf %47, %49 : vector<16x306xf32>
    %cst_32 = arith.constant 0.000000e+00 : f32
    %51 = vector.broadcast %cst_32 : f32 to vector<16x306xf32>
    %52 = arith.maximumf %50, %51 : vector<16x306xf32>
    %53 = arith.truncf %52 : vector<16x306xf32> to vector<16x306xbf16>
    %c0_33 = arith.constant 0 : index
    %c0_34 = arith.constant 0 : index
    %c0_35 = arith.constant 0 : index
    %54 = vector.load %arg4[%c0_33, %c0_34, %c0_35] : memref<1x16x306xbf16, #tpu.memory_space<vmem>>, vector<1x16x306xbf16>
    %55 = vector.shape_cast %54 : vector<1x16x306xbf16> to vector<16x306xbf16>
    %56 = vector.shape_cast %53 : vector<16x306xbf16> to vector<1x16x306xbf16>
    tpu.vector_store %arg4[%c0_33, %c0_34, %c0_35], %56 {strides = array<i32>} : memref<1x16x306xbf16, #tpu.memory_space<vmem>>, vector<1x16x306xbf16>,
    return
  }
  func.func @transform_0(%arg0: i32) -> (i32, i32, i32) {
    %c0_i32 = arith.constant 0 : i32
    %c0_i32_0 = arith.constant 0 : i32
    %c0_i32_1 = arith.constant 0 : i32
    return %arg0, %c0_i32, %c0_i32_0 : i32, i32, i32
  }
  func.func @transform_1(%arg0: i32) -> (i32, i32, i32) {
    %c0_i32 = arith.constant 0 : i32
    %c0_i32_0 = arith.constant 0 : i32
    %c0_i32_1 = arith.constant 0 : i32
    %c0_i32_2 = arith.constant 0 : i32
    return %c0_i32, %c0_i32_0, %c0_i32_1 : i32, i32, i32
  }
  func.func @transform_2(%arg0: i32) -> (i32, i32) {
    %c0_i32 = arith.constant 0 : i32
    %c0_i32_0 = arith.constant 0 : i32
    %c0_i32_1 = arith.constant 0 : i32
    return %c0_i32, %c0_i32_0 : i32, i32
  }
  func.func @transform_3(%arg0: i32) -> (i32, i32, i32) {
    %c0_i32 = arith.constant 0 : i32
    %c0_i32_0 = arith.constant 0 : i32
    %c0_i32_1 = arith.constant 0 : i32
    return %arg0, %c0_i32, %c0_i32_0 : i32, i32, i32
  }
}

module attributes {stable_mosaic.version = 11 : i64} {
  func.func @_fused_conv_kernel(%arg0: i32, %arg1: memref<1x16x120xbf16, #tpu.memory_space<vmem>>, %arg2: memref<9x16x16xbf16, #tpu.memory_space<vmem>>, %arg3: memref<1x16x120xbf16, #tpu.memory_space<vmem>>, %arg4: memref<9x16x16xbf16, #tpu.memory_space<vmem>>, %arg5: memref<1x16x120xbf16, #tpu.memory_space<vmem>>, %arg6: memref<9x16x16xbf16, #tpu.memory_space<vmem>>, %arg7: memref<16x1xf32, #tpu.memory_space<vmem>>, %arg8: memref<1x16x90xbf16, #tpu.memory_space<vmem>>) attributes {dimension_semantics = [#tpu.dimension_semantics<parallel>], iteration_bounds = array<i64: 2>, scalar_prefetch = 0 : i64, scratch_operands = 0 : i64, tpu.core_type = #tpu.core_type<tc>, window_params = [{transform_indices = @transform_0, window_bounds = array<i64: 1, 16, 120>}, {pipeline_mode = #tpu.pipeline_mode<synchronous>, transform_indices = @transform_1, window_bounds = array<i64: 9, 16, 16>}, {transform_indices = @transform_2, window_bounds = array<i64: 1, 16, 120>}, {pipeline_mode = #tpu.pipeline_mode<synchronous>, transform_indices = @transform_3, window_bounds = array<i64: 9, 16, 16>}, {transform_indices = @transform_4, window_bounds = array<i64: 1, 16, 120>}, {pipeline_mode = #tpu.pipeline_mode<synchronous>, transform_indices = @transform_5, window_bounds = array<i64: 9, 16, 16>}, {pipeline_mode = #tpu.pipeline_mode<synchronous>, transform_indices = @transform_6, window_bounds = array<i64: 16, 1>}, {transform_indices = @transform_7, window_bounds = array<i64: 1, 16, 90>}]} {
    %cst = arith.constant 0.000000e+00 : f32
    %0 = vector.broadcast %cst : f32 to vector<16x90xf32>
    %c0 = arith.constant 0 : index
    %c0_0 = arith.constant 0 : index
    %c0_1 = arith.constant 0 : index
    %1 = vector.load %arg1[%c0, %c0_0, %c0_1] : memref<1x16x120xbf16, #tpu.memory_space<vmem>>, vector<1x16x120xbf16>
    %2 = vector.shape_cast %1 : vector<1x16x120xbf16> to vector<16x120xbf16>
    %c0_2 = arith.constant 0 : index
    %c0_3 = arith.constant 0 : index
    %c0_4 = arith.constant 0 : index
    %3 = vector.load %arg2[%c0_2, %c0_3, %c0_4] : memref<9x16x16xbf16, #tpu.memory_space<vmem>>, vector<1x16x16xbf16>
    %4 = vector.shape_cast %3 : vector<1x16x16xbf16> to vector<16x16xbf16>
    %5 = vector.extract_strided_slice %2 {offsets = [0, 0], sizes = [16, 90], strides = [1, 1]} : vector<16x120xbf16> to vector<16x90xbf16>
    %cst_5 = arith.constant dense<0.000000e+00> : vector<16x90xf32>
    %6 = tpu.matmul %4, %5, %cst_5 {dimension_numbers = #tpu.dot_dimension_numbers<[1], [0], [0], [1], [0, 0, 1, 1], [], []>} : vector<16x16xbf16>, vector<16x90xbf16>, vector<16x90xf32> -> vector<16x90xf32>
    %7 = arith.addf %0, %6 : vector<16x90xf32>
    %c1 = arith.constant 1 : index
    %c0_6 = arith.constant 0 : index
    %c0_7 = arith.constant 0 : index
    %8 = vector.load %arg2[%c1, %c0_6, %c0_7] : memref<9x16x16xbf16, #tpu.memory_space<vmem>>, vector<1x16x16xbf16>
    %9 = vector.shape_cast %8 : vector<1x16x16xbf16> to vector<16x16xbf16>
    %10 = vector.extract_strided_slice %2 {offsets = [0, 1], sizes = [16, 90], strides = [1, 1]} : vector<16x120xbf16> to vector<16x90xbf16>
    %cst_8 = arith.constant dense<0.000000e+00> : vector<16x90xf32>
    %11 = tpu.matmul %9, %10, %cst_8 {dimension_numbers = #tpu.dot_dimension_numbers<[1], [0], [0], [1], [0, 0, 1, 1], [], []>} : vector<16x16xbf16>, vector<16x90xbf16>, vector<16x90xf32> -> vector<16x90xf32>
    %12 = arith.addf %7, %11 : vector<16x90xf32>
    %c2 = arith.constant 2 : index
    %c0_9 = arith.constant 0 : index
    %c0_10 = arith.constant 0 : index
    %13 = vector.load %arg2[%c2, %c0_9, %c0_10] : memref<9x16x16xbf16, #tpu.memory_space<vmem>>, vector<1x16x16xbf16>
    %14 = vector.shape_cast %13 : vector<1x16x16xbf16> to vector<16x16xbf16>
    %15 = vector.extract_strided_slice %2 {offsets = [0, 2], sizes = [16, 90], strides = [1, 1]} : vector<16x120xbf16> to vector<16x90xbf16>
    %cst_11 = arith.constant dense<0.000000e+00> : vector<16x90xf32>
    %16 = tpu.matmul %14, %15, %cst_11 {dimension_numbers = #tpu.dot_dimension_numbers<[1], [0], [0], [1], [0, 0, 1, 1], [], []>} : vector<16x16xbf16>, vector<16x90xbf16>, vector<16x90xf32> -> vector<16x90xf32>
    %17 = arith.addf %12, %16 : vector<16x90xf32>
    %c3 = arith.constant 3 : index
    %c0_12 = arith.constant 0 : index
    %c0_13 = arith.constant 0 : index
    %18 = vector.load %arg2[%c3, %c0_12, %c0_13] : memref<9x16x16xbf16, #tpu.memory_space<vmem>>, vector<1x16x16xbf16>
    %19 = vector.shape_cast %18 : vector<1x16x16xbf16> to vector<16x16xbf16>
    %20 = vector.extract_strided_slice %2 {offsets = [0, 10], sizes = [16, 90], strides = [1, 1]} : vector<16x120xbf16> to vector<16x90xbf16>
    %cst_14 = arith.constant dense<0.000000e+00> : vector<16x90xf32>
    %21 = tpu.matmul %19, %20, %cst_14 {dimension_numbers = #tpu.dot_dimension_numbers<[1], [0], [0], [1], [0, 0, 1, 1], [], []>} : vector<16x16xbf16>, vector<16x90xbf16>, vector<16x90xf32> -> vector<16x90xf32>
    %22 = arith.addf %17, %21 : vector<16x90xf32>
    %c4 = arith.constant 4 : index
    %c0_15 = arith.constant 0 : index
    %c0_16 = arith.constant 0 : index
    %23 = vector.load %arg2[%c4, %c0_15, %c0_16] : memref<9x16x16xbf16, #tpu.memory_space<vmem>>, vector<1x16x16xbf16>
    %24 = vector.shape_cast %23 : vector<1x16x16xbf16> to vector<16x16xbf16>
    %25 = vector.extract_strided_slice %2 {offsets = [0, 11], sizes = [16, 90], strides = [1, 1]} : vector<16x120xbf16> to vector<16x90xbf16>
    %cst_17 = arith.constant dense<0.000000e+00> : vector<16x90xf32>
    %26 = tpu.matmul %24, %25, %cst_17 {dimension_numbers = #tpu.dot_dimension_numbers<[1], [0], [0], [1], [0, 0, 1, 1], [], []>} : vector<16x16xbf16>, vector<16x90xbf16>, vector<16x90xf32> -> vector<16x90xf32>
    %27 = arith.addf %22, %26 : vector<16x90xf32>
    %c5 = arith.constant 5 : index
    %c0_18 = arith.constant 0 : index
    %c0_19 = arith.constant 0 : index
    %28 = vector.load %arg2[%c5, %c0_18, %c0_19] : memref<9x16x16xbf16, #tpu.memory_space<vmem>>, vector<1x16x16xbf16>
    %29 = vector.shape_cast %28 : vector<1x16x16xbf16> to vector<16x16xbf16>
    %30 = vector.extract_strided_slice %2 {offsets = [0, 12], sizes = [16, 90], strides = [1, 1]} : vector<16x120xbf16> to vector<16x90xbf16>
    %cst_20 = arith.constant dense<0.000000e+00> : vector<16x90xf32>
    %31 = tpu.matmul %29, %30, %cst_20 {dimension_numbers = #tpu.dot_dimension_numbers<[1], [0], [0], [1], [0, 0, 1, 1], [], []>} : vector<16x16xbf16>, vector<16x90xbf16>, vector<16x90xf32> -> vector<16x90xf32>
    %32 = arith.addf %27, %31 : vector<16x90xf32>
    %c6 = arith.constant 6 : index
    %c0_21 = arith.constant 0 : index
    %c0_22 = arith.constant 0 : index
    %33 = vector.load %arg2[%c6, %c0_21, %c0_22] : memref<9x16x16xbf16, #tpu.memory_space<vmem>>, vector<1x16x16xbf16>
    %34 = vector.shape_cast %33 : vector<1x16x16xbf16> to vector<16x16xbf16>
    %35 = vector.extract_strided_slice %2 {offsets = [0, 20], sizes = [16, 90], strides = [1, 1]} : vector<16x120xbf16> to vector<16x90xbf16>
    %cst_23 = arith.constant dense<0.000000e+00> : vector<16x90xf32>
    %36 = tpu.matmul %34, %35, %cst_23 {dimension_numbers = #tpu.dot_dimension_numbers<[1], [0], [0], [1], [0, 0, 1, 1], [], []>} : vector<16x16xbf16>, vector<16x90xbf16>, vector<16x90xf32> -> vector<16x90xf32>
    %37 = arith.addf %32, %36 : vector<16x90xf32>
    %c7 = arith.constant 7 : index
    %c0_24 = arith.constant 0 : index
    %c0_25 = arith.constant 0 : index
    %38 = vector.load %arg2[%c7, %c0_24, %c0_25] : memref<9x16x16xbf16, #tpu.memory_space<vmem>>, vector<1x16x16xbf16>
    %39 = vector.shape_cast %38 : vector<1x16x16xbf16> to vector<16x16xbf16>
    %40 = vector.extract_strided_slice %2 {offsets = [0, 21], sizes = [16, 90], strides = [1, 1]} : vector<16x120xbf16> to vector<16x90xbf16>
    %cst_26 = arith.constant dense<0.000000e+00> : vector<16x90xf32>
    %41 = tpu.matmul %39, %40, %cst_26 {dimension_numbers = #tpu.dot_dimension_numbers<[1], [0], [0], [1], [0, 0, 1, 1], [], []>} : vector<16x16xbf16>, vector<16x90xbf16>, vector<16x90xf32> -> vector<16x90xf32>
    %42 = arith.addf %37, %41 : vector<16x90xf32>
    %c8 = arith.constant 8 : index
    %c0_27 = arith.constant 0 : index
    %c0_28 = arith.constant 0 : index
    %43 = vector.load %arg2[%c8, %c0_27, %c0_28] : memref<9x16x16xbf16, #tpu.memory_space<vmem>>, vector<1x16x16xbf16>
    %44 = vector.shape_cast %43 : vector<1x16x16xbf16> to vector<16x16xbf16>
    %45 = vector.extract_strided_slice %2 {offsets = [0, 22], sizes = [16, 90], strides = [1, 1]} : vector<16x120xbf16> to vector<16x90xbf16>
    %cst_29 = arith.constant dense<0.000000e+00> : vector<16x90xf32>
    %46 = tpu.matmul %44, %45, %cst_29 {dimension_numbers = #tpu.dot_dimension_numbers<[1], [0], [0], [1], [0, 0, 1, 1], [], []>} : vector<16x16xbf16>, vector<16x90xbf16>, vector<16x90xf32> -> vector<16x90xf32>
    %47 = arith.addf %42, %46 : vector<16x90xf32>
    %c0_30 = arith.constant 0 : index
    %c0_31 = arith.constant 0 : index
    %c0_32 = arith.constant 0 : index
    %48 = vector.load %arg3[%c0_30, %c0_31, %c0_32] : memref<1x16x120xbf16, #tpu.memory_space<vmem>>, vector<1x16x120xbf16>
    %49 = vector.shape_cast %48 : vector<1x16x120xbf16> to vector<16x120xbf16>
    %c0_33 = arith.constant 0 : index
    %c0_34 = arith.constant 0 : index
    %c0_35 = arith.constant 0 : index
    %50 = vector.load %arg4[%c0_33, %c0_34, %c0_35] : memref<9x16x16xbf16, #tpu.memory_space<vmem>>, vector<1x16x16xbf16>
    %51 = vector.shape_cast %50 : vector<1x16x16xbf16> to vector<16x16xbf16>
    %52 = vector.extract_strided_slice %49 {offsets = [0, 0], sizes = [16, 90], strides = [1, 1]} : vector<16x120xbf16> to vector<16x90xbf16>
    %cst_36 = arith.constant dense<0.000000e+00> : vector<16x90xf32>
    %53 = tpu.matmul %51, %52, %cst_36 {dimension_numbers = #tpu.dot_dimension_numbers<[1], [0], [0], [1], [0, 0, 1, 1], [], []>} : vector<16x16xbf16>, vector<16x90xbf16>, vector<16x90xf32> -> vector<16x90xf32>
    %54 = arith.addf %47, %53 : vector<16x90xf32>
    %c1_37 = arith.constant 1 : index
    %c0_38 = arith.constant 0 : index
    %c0_39 = arith.constant 0 : index
    %55 = vector.load %arg4[%c1_37, %c0_38, %c0_39] : memref<9x16x16xbf16, #tpu.memory_space<vmem>>, vector<1x16x16xbf16>
    %56 = vector.shape_cast %55 : vector<1x16x16xbf16> to vector<16x16xbf16>
    %57 = vector.extract_strided_slice %49 {offsets = [0, 1], sizes = [16, 90], strides = [1, 1]} : vector<16x120xbf16> to vector<16x90xbf16>
    %cst_40 = arith.constant dense<0.000000e+00> : vector<16x90xf32>
    %58 = tpu.matmul %56, %57, %cst_40 {dimension_numbers = #tpu.dot_dimension_numbers<[1], [0], [0], [1], [0, 0, 1, 1], [], []>} : vector<16x16xbf16>, vector<16x90xbf16>, vector<16x90xf32> -> vector<16x90xf32>
    %59 = arith.addf %54, %58 : vector<16x90xf32>
    %c2_41 = arith.constant 2 : index
    %c0_42 = arith.constant 0 : index
    %c0_43 = arith.constant 0 : index
    %60 = vector.load %arg4[%c2_41, %c0_42, %c0_43] : memref<9x16x16xbf16, #tpu.memory_space<vmem>>, vector<1x16x16xbf16>
    %61 = vector.shape_cast %60 : vector<1x16x16xbf16> to vector<16x16xbf16>
    %62 = vector.extract_strided_slice %49 {offsets = [0, 2], sizes = [16, 90], strides = [1, 1]} : vector<16x120xbf16> to vector<16x90xbf16>
    %cst_44 = arith.constant dense<0.000000e+00> : vector<16x90xf32>
    %63 = tpu.matmul %61, %62, %cst_44 {dimension_numbers = #tpu.dot_dimension_numbers<[1], [0], [0], [1], [0, 0, 1, 1], [], []>} : vector<16x16xbf16>, vector<16x90xbf16>, vector<16x90xf32> -> vector<16x90xf32>
    %64 = arith.addf %59, %63 : vector<16x90xf32>
    %c3_45 = arith.constant 3 : index
    %c0_46 = arith.constant 0 : index
    %c0_47 = arith.constant 0 : index
    %65 = vector.load %arg4[%c3_45, %c0_46, %c0_47] : memref<9x16x16xbf16, #tpu.memory_space<vmem>>, vector<1x16x16xbf16>
    %66 = vector.shape_cast %65 : vector<1x16x16xbf16> to vector<16x16xbf16>
    %67 = vector.extract_strided_slice %49 {offsets = [0, 10], sizes = [16, 90], strides = [1, 1]} : vector<16x120xbf16> to vector<16x90xbf16>
    %cst_48 = arith.constant dense<0.000000e+00> : vector<16x90xf32>
    %68 = tpu.matmul %66, %67, %cst_48 {dimension_numbers = #tpu.dot_dimension_numbers<[1], [0], [0], [1], [0, 0, 1, 1], [], []>} : vector<16x16xbf16>, vector<16x90xbf16>, vector<16x90xf32> -> vector<16x90xf32>
    %69 = arith.addf %64, %68 : vector<16x90xf32>
    %c4_49 = arith.constant 4 : index
    %c0_50 = arith.constant 0 : index
    %c0_51 = arith.constant 0 : index
    %70 = vector.load %arg4[%c4_49, %c0_50, %c0_51] : memref<9x16x16xbf16, #tpu.memory_space<vmem>>, vector<1x16x16xbf16>
    %71 = vector.shape_cast %70 : vector<1x16x16xbf16> to vector<16x16xbf16>
    %72 = vector.extract_strided_slice %49 {offsets = [0, 11], sizes = [16, 90], strides = [1, 1]} : vector<16x120xbf16> to vector<16x90xbf16>
    %cst_52 = arith.constant dense<0.000000e+00> : vector<16x90xf32>
    %73 = tpu.matmul %71, %72, %cst_52 {dimension_numbers = #tpu.dot_dimension_numbers<[1], [0], [0], [1], [0, 0, 1, 1], [], []>} : vector<16x16xbf16>, vector<16x90xbf16>, vector<16x90xf32> -> vector<16x90xf32>
    %74 = arith.addf %69, %73 : vector<16x90xf32>
    %c5_53 = arith.constant 5 : index
    %c0_54 = arith.constant 0 : index
    %c0_55 = arith.constant 0 : index
    %75 = vector.load %arg4[%c5_53, %c0_54, %c0_55] : memref<9x16x16xbf16, #tpu.memory_space<vmem>>, vector<1x16x16xbf16>
    %76 = vector.shape_cast %75 : vector<1x16x16xbf16> to vector<16x16xbf16>
    %77 = vector.extract_strided_slice %49 {offsets = [0, 12], sizes = [16, 90], strides = [1, 1]} : vector<16x120xbf16> to vector<16x90xbf16>
    %cst_56 = arith.constant dense<0.000000e+00> : vector<16x90xf32>
    %78 = tpu.matmul %76, %77, %cst_56 {dimension_numbers = #tpu.dot_dimension_numbers<[1], [0], [0], [1], [0, 0, 1, 1], [], []>} : vector<16x16xbf16>, vector<16x90xbf16>, vector<16x90xf32> -> vector<16x90xf32>
    %79 = arith.addf %74, %78 : vector<16x90xf32>
    %c6_57 = arith.constant 6 : index
    %c0_58 = arith.constant 0 : index
    %c0_59 = arith.constant 0 : index
    %80 = vector.load %arg4[%c6_57, %c0_58, %c0_59] : memref<9x16x16xbf16, #tpu.memory_space<vmem>>, vector<1x16x16xbf16>
    %81 = vector.shape_cast %80 : vector<1x16x16xbf16> to vector<16x16xbf16>
    %82 = vector.extract_strided_slice %49 {offsets = [0, 20], sizes = [16, 90], strides = [1, 1]} : vector<16x120xbf16> to vector<16x90xbf16>
    %cst_60 = arith.constant dense<0.000000e+00> : vector<16x90xf32>
    %83 = tpu.matmul %81, %82, %cst_60 {dimension_numbers = #tpu.dot_dimension_numbers<[1], [0], [0], [1], [0, 0, 1, 1], [], []>} : vector<16x16xbf16>, vector<16x90xbf16>, vector<16x90xf32> -> vector<16x90xf32>
    %84 = arith.addf %79, %83 : vector<16x90xf32>
    %c7_61 = arith.constant 7 : index
    %c0_62 = arith.constant 0 : index
    %c0_63 = arith.constant 0 : index
    %85 = vector.load %arg4[%c7_61, %c0_62, %c0_63] : memref<9x16x16xbf16, #tpu.memory_space<vmem>>, vector<1x16x16xbf16>
    %86 = vector.shape_cast %85 : vector<1x16x16xbf16> to vector<16x16xbf16>
    %87 = vector.extract_strided_slice %49 {offsets = [0, 21], sizes = [16, 90], strides = [1, 1]} : vector<16x120xbf16> to vector<16x90xbf16>
    %cst_64 = arith.constant dense<0.000000e+00> : vector<16x90xf32>
    %88 = tpu.matmul %86, %87, %cst_64 {dimension_numbers = #tpu.dot_dimension_numbers<[1], [0], [0], [1], [0, 0, 1, 1], [], []>} : vector<16x16xbf16>, vector<16x90xbf16>, vector<16x90xf32> -> vector<16x90xf32>
    %89 = arith.addf %84, %88 : vector<16x90xf32>
    %c8_65 = arith.constant 8 : index
    %c0_66 = arith.constant 0 : index
    %c0_67 = arith.constant 0 : index
    %90 = vector.load %arg4[%c8_65, %c0_66, %c0_67] : memref<9x16x16xbf16, #tpu.memory_space<vmem>>, vector<1x16x16xbf16>
    %91 = vector.shape_cast %90 : vector<1x16x16xbf16> to vector<16x16xbf16>
    %92 = vector.extract_strided_slice %49 {offsets = [0, 22], sizes = [16, 90], strides = [1, 1]} : vector<16x120xbf16> to vector<16x90xbf16>
    %cst_68 = arith.constant dense<0.000000e+00> : vector<16x90xf32>
    %93 = tpu.matmul %91, %92, %cst_68 {dimension_numbers = #tpu.dot_dimension_numbers<[1], [0], [0], [1], [0, 0, 1, 1], [], []>} : vector<16x16xbf16>, vector<16x90xbf16>, vector<16x90xf32> -> vector<16x90xf32>
    %94 = arith.addf %89, %93 : vector<16x90xf32>
    %c0_69 = arith.constant 0 : index
    %c0_70 = arith.constant 0 : index
    %c0_71 = arith.constant 0 : index
    %95 = vector.load %arg5[%c0_69, %c0_70, %c0_71] : memref<1x16x120xbf16, #tpu.memory_space<vmem>>, vector<1x16x120xbf16>
    %96 = vector.shape_cast %95 : vector<1x16x120xbf16> to vector<16x120xbf16>
    %c0_72 = arith.constant 0 : index
    %c0_73 = arith.constant 0 : index
    %c0_74 = arith.constant 0 : index
    %97 = vector.load %arg6[%c0_72, %c0_73, %c0_74] : memref<9x16x16xbf16, #tpu.memory_space<vmem>>, vector<1x16x16xbf16>
    %98 = vector.shape_cast %97 : vector<1x16x16xbf16> to vector<16x16xbf16>
    %99 = vector.extract_strided_slice %96 {offsets = [0, 0], sizes = [16, 90], strides = [1, 1]} : vector<16x120xbf16> to vector<16x90xbf16>
    %cst_75 = arith.constant dense<0.000000e+00> : vector<16x90xf32>
    %100 = tpu.matmul %98, %99, %cst_75 {dimension_numbers = #tpu.dot_dimension_numbers<[1], [0], [0], [1], [0, 0, 1, 1], [], []>} : vector<16x16xbf16>, vector<16x90xbf16>, vector<16x90xf32> -> vector<16x90xf32>
    %101 = arith.addf %94, %100 : vector<16x90xf32>
    %c1_76 = arith.constant 1 : index
    %c0_77 = arith.constant 0 : index
    %c0_78 = arith.constant 0 : index
    %102 = vector.load %arg6[%c1_76, %c0_77, %c0_78] : memref<9x16x16xbf16, #tpu.memory_space<vmem>>, vector<1x16x16xbf16>
    %103 = vector.shape_cast %102 : vector<1x16x16xbf16> to vector<16x16xbf16>
    %104 = vector.extract_strided_slice %96 {offsets = [0, 1], sizes = [16, 90], strides = [1, 1]} : vector<16x120xbf16> to vector<16x90xbf16>
    %cst_79 = arith.constant dense<0.000000e+00> : vector<16x90xf32>
    %105 = tpu.matmul %103, %104, %cst_79 {dimension_numbers = #tpu.dot_dimension_numbers<[1], [0], [0], [1], [0, 0, 1, 1], [], []>} : vector<16x16xbf16>, vector<16x90xbf16>, vector<16x90xf32> -> vector<16x90xf32>
    %106 = arith.addf %101, %105 : vector<16x90xf32>
    %c2_80 = arith.constant 2 : index
    %c0_81 = arith.constant 0 : index
    %c0_82 = arith.constant 0 : index
    %107 = vector.load %arg6[%c2_80, %c0_81, %c0_82] : memref<9x16x16xbf16, #tpu.memory_space<vmem>>, vector<1x16x16xbf16>
    %108 = vector.shape_cast %107 : vector<1x16x16xbf16> to vector<16x16xbf16>
    %109 = vector.extract_strided_slice %96 {offsets = [0, 2], sizes = [16, 90], strides = [1, 1]} : vector<16x120xbf16> to vector<16x90xbf16>
    %cst_83 = arith.constant dense<0.000000e+00> : vector<16x90xf32>
    %110 = tpu.matmul %108, %109, %cst_83 {dimension_numbers = #tpu.dot_dimension_numbers<[1], [0], [0], [1], [0, 0, 1, 1], [], []>} : vector<16x16xbf16>, vector<16x90xbf16>, vector<16x90xf32> -> vector<16x90xf32>
    %111 = arith.addf %106, %110 : vector<16x90xf32>
    %c3_84 = arith.constant 3 : index
    %c0_85 = arith.constant 0 : index
    %c0_86 = arith.constant 0 : index
    %112 = vector.load %arg6[%c3_84, %c0_85, %c0_86] : memref<9x16x16xbf16, #tpu.memory_space<vmem>>, vector<1x16x16xbf16>
    %113 = vector.shape_cast %112 : vector<1x16x16xbf16> to vector<16x16xbf16>
    %114 = vector.extract_strided_slice %96 {offsets = [0, 10], sizes = [16, 90], strides = [1, 1]} : vector<16x120xbf16> to vector<16x90xbf16>
    %cst_87 = arith.constant dense<0.000000e+00> : vector<16x90xf32>
    %115 = tpu.matmul %113, %114, %cst_87 {dimension_numbers = #tpu.dot_dimension_numbers<[1], [0], [0], [1], [0, 0, 1, 1], [], []>} : vector<16x16xbf16>, vector<16x90xbf16>, vector<16x90xf32> -> vector<16x90xf32>
    %116 = arith.addf %111, %115 : vector<16x90xf32>
    %c4_88 = arith.constant 4 : index
    %c0_89 = arith.constant 0 : index
    %c0_90 = arith.constant 0 : index
    %117 = vector.load %arg6[%c4_88, %c0_89, %c0_90] : memref<9x16x16xbf16, #tpu.memory_space<vmem>>, vector<1x16x16xbf16>
    %118 = vector.shape_cast %117 : vector<1x16x16xbf16> to vector<16x16xbf16>
    %119 = vector.extract_strided_slice %96 {offsets = [0, 11], sizes = [16, 90], strides = [1, 1]} : vector<16x120xbf16> to vector<16x90xbf16>
    %cst_91 = arith.constant dense<0.000000e+00> : vector<16x90xf32>
    %120 = tpu.matmul %118, %119, %cst_91 {dimension_numbers = #tpu.dot_dimension_numbers<[1], [0], [0], [1], [0, 0, 1, 1], [], []>} : vector<16x16xbf16>, vector<16x90xbf16>, vector<16x90xf32> -> vector<16x90xf32>
    %121 = arith.addf %116, %120 : vector<16x90xf32>
    %c5_92 = arith.constant 5 : index
    %c0_93 = arith.constant 0 : index
    %c0_94 = arith.constant 0 : index
    %122 = vector.load %arg6[%c5_92, %c0_93, %c0_94] : memref<9x16x16xbf16, #tpu.memory_space<vmem>>, vector<1x16x16xbf16>
    %123 = vector.shape_cast %122 : vector<1x16x16xbf16> to vector<16x16xbf16>
    %124 = vector.extract_strided_slice %96 {offsets = [0, 12], sizes = [16, 90], strides = [1, 1]} : vector<16x120xbf16> to vector<16x90xbf16>
    %cst_95 = arith.constant dense<0.000000e+00> : vector<16x90xf32>
    %125 = tpu.matmul %123, %124, %cst_95 {dimension_numbers = #tpu.dot_dimension_numbers<[1], [0], [0], [1], [0, 0, 1, 1], [], []>} : vector<16x16xbf16>, vector<16x90xbf16>, vector<16x90xf32> -> vector<16x90xf32>
    %126 = arith.addf %121, %125 : vector<16x90xf32>
    %c6_96 = arith.constant 6 : index
    %c0_97 = arith.constant 0 : index
    %c0_98 = arith.constant 0 : index
    %127 = vector.load %arg6[%c6_96, %c0_97, %c0_98] : memref<9x16x16xbf16, #tpu.memory_space<vmem>>, vector<1x16x16xbf16>
    %128 = vector.shape_cast %127 : vector<1x16x16xbf16> to vector<16x16xbf16>
    %129 = vector.extract_strided_slice %96 {offsets = [0, 20], sizes = [16, 90], strides = [1, 1]} : vector<16x120xbf16> to vector<16x90xbf16>
    %cst_99 = arith.constant dense<0.000000e+00> : vector<16x90xf32>
    %130 = tpu.matmul %128, %129, %cst_99 {dimension_numbers = #tpu.dot_dimension_numbers<[1], [0], [0], [1], [0, 0, 1, 1], [], []>} : vector<16x16xbf16>, vector<16x90xbf16>, vector<16x90xf32> -> vector<16x90xf32>
    %131 = arith.addf %126, %130 : vector<16x90xf32>
    %c7_100 = arith.constant 7 : index
    %c0_101 = arith.constant 0 : index
    %c0_102 = arith.constant 0 : index
    %132 = vector.load %arg6[%c7_100, %c0_101, %c0_102] : memref<9x16x16xbf16, #tpu.memory_space<vmem>>, vector<1x16x16xbf16>
    %133 = vector.shape_cast %132 : vector<1x16x16xbf16> to vector<16x16xbf16>
    %134 = vector.extract_strided_slice %96 {offsets = [0, 21], sizes = [16, 90], strides = [1, 1]} : vector<16x120xbf16> to vector<16x90xbf16>
    %cst_103 = arith.constant dense<0.000000e+00> : vector<16x90xf32>
    %135 = tpu.matmul %133, %134, %cst_103 {dimension_numbers = #tpu.dot_dimension_numbers<[1], [0], [0], [1], [0, 0, 1, 1], [], []>} : vector<16x16xbf16>, vector<16x90xbf16>, vector<16x90xf32> -> vector<16x90xf32>
    %136 = arith.addf %131, %135 : vector<16x90xf32>
    %c8_104 = arith.constant 8 : index
    %c0_105 = arith.constant 0 : index
    %c0_106 = arith.constant 0 : index
    %137 = vector.load %arg6[%c8_104, %c0_105, %c0_106] : memref<9x16x16xbf16, #tpu.memory_space<vmem>>, vector<1x16x16xbf16>
    %138 = vector.shape_cast %137 : vector<1x16x16xbf16> to vector<16x16xbf16>
    %139 = vector.extract_strided_slice %96 {offsets = [0, 22], sizes = [16, 90], strides = [1, 1]} : vector<16x120xbf16> to vector<16x90xbf16>
    %cst_107 = arith.constant dense<0.000000e+00> : vector<16x90xf32>
    %140 = tpu.matmul %138, %139, %cst_107 {dimension_numbers = #tpu.dot_dimension_numbers<[1], [0], [0], [1], [0, 0, 1, 1], [], []>} : vector<16x16xbf16>, vector<16x90xbf16>, vector<16x90xf32> -> vector<16x90xf32>
    %141 = arith.addf %136, %140 : vector<16x90xf32>
    %c0_108 = arith.constant 0 : index
    %c0_109 = arith.constant 0 : index
    %142 = vector.load %arg7[%c0_108, %c0_109] : memref<16x1xf32, #tpu.memory_space<vmem>>, vector<16x1xf32>
    %143 = vector.broadcast %142 : vector<16x1xf32> to vector<16x90xf32>
    %144 = arith.addf %141, %143 : vector<16x90xf32>
    %cst_110 = arith.constant 0.000000e+00 : f32
    %145 = vector.broadcast %cst_110 : f32 to vector<16x90xf32>
    %146 = arith.maximumf %144, %145 : vector<16x90xf32>
    %147 = arith.truncf %146 : vector<16x90xf32> to vector<16x90xbf16>
    %c0_111 = arith.constant 0 : index
    %c0_112 = arith.constant 0 : index
    %c0_113 = arith.constant 0 : index
    %148 = vector.load %arg8[%c0_111, %c0_112, %c0_113] : memref<1x16x90xbf16, #tpu.memory_space<vmem>>, vector<1x16x90xbf16>
    %149 = vector.shape_cast %148 : vector<1x16x90xbf16> to vector<16x90xbf16>
    %150 = vector.shape_cast %147 : vector<16x90xbf16> to vector<1x16x90xbf16>
    tpu.vector_store %arg8[%c0_111, %c0_112, %c0_113], %150 {strides = array<i32>} : memref<1x16x90xbf16, #tpu.memory_space<vmem>>, vector<1x16x90xbf16>,
    return
  }
  func.func @transform_0(%arg0: i32) -> (i32, i32, i32) {
    %c0_i32 = arith.constant 0 : i32
    %c0_i32_0 = arith.constant 0 : i32
    %c0_i32_1 = arith.constant 0 : i32
    return %arg0, %c0_i32, %c0_i32_0 : i32, i32, i32
  }
  func.func @transform_1(%arg0: i32) -> (i32, i32, i32) {
    %c0_i32 = arith.constant 0 : i32
    %c0_i32_0 = arith.constant 0 : i32
    %c0_i32_1 = arith.constant 0 : i32
    %c0_i32_2 = arith.constant 0 : i32
    return %c0_i32, %c0_i32_0, %c0_i32_1 : i32, i32, i32
  }
  func.func @transform_2(%arg0: i32) -> (i32, i32, i32) {
    %c0_i32 = arith.constant 0 : i32
    %c0_i32_0 = arith.constant 0 : i32
    %c0_i32_1 = arith.constant 0 : i32
    return %arg0, %c0_i32, %c0_i32_0 : i32, i32, i32
  }
  func.func @transform_3(%arg0: i32) -> (i32, i32, i32) {
    %c0_i32 = arith.constant 0 : i32
    %c0_i32_0 = arith.constant 0 : i32
    %c0_i32_1 = arith.constant 0 : i32
    %c0_i32_2 = arith.constant 0 : i32
    return %c0_i32, %c0_i32_0, %c0_i32_1 : i32, i32, i32
  }
  func.func @transform_4(%arg0: i32) -> (i32, i32, i32) {
    %c0_i32 = arith.constant 0 : i32
    %c0_i32_0 = arith.constant 0 : i32
    %c0_i32_1 = arith.constant 0 : i32
    return %arg0, %c0_i32, %c0_i32_0 : i32, i32, i32
  }
  func.func @transform_5(%arg0: i32) -> (i32, i32, i32) {
    %c0_i32 = arith.constant 0 : i32
    %c0_i32_0 = arith.constant 0 : i32
    %c0_i32_1 = arith.constant 0 : i32
    %c0_i32_2 = arith.constant 0 : i32
    return %c0_i32, %c0_i32_0, %c0_i32_1 : i32, i32, i32
  }
  func.func @transform_6(%arg0: i32) -> (i32, i32) {
    %c0_i32 = arith.constant 0 : i32
    %c0_i32_0 = arith.constant 0 : i32
    %c0_i32_1 = arith.constant 0 : i32
    return %c0_i32, %c0_i32_0 : i32, i32
  }
  func.func @transform_7(%arg0: i32) -> (i32, i32, i32) {
    %c0_i32 = arith.constant 0 : i32
    %c0_i32_0 = arith.constant 0 : i32
    %c0_i32_1 = arith.constant 0 : i32
    return %arg0, %c0_i32, %c0_i32_0 : i32, i32, i32
  }
}

module attributes {stable_mosaic.version = 11 : i64} {
  func.func @_fused_conv_kernel(%arg0: i32, %arg1: memref<1x16x360xbf16, #tpu.memory_space<vmem>>, %arg2: memref<9x16x16xbf16, #tpu.memory_space<vmem>>, %arg3: memref<1x16x360xbf16, #tpu.memory_space<vmem>>, %arg4: memref<9x16x16xbf16, #tpu.memory_space<vmem>>, %arg5: memref<16x1xf32, #tpu.memory_space<vmem>>, %arg6: memref<1x16x306xbf16, #tpu.memory_space<vmem>>) attributes {dimension_semantics = [#tpu.dimension_semantics<parallel>], iteration_bounds = array<i64: 2>, scalar_prefetch = 0 : i64, scratch_operands = 0 : i64, tpu.core_type = #tpu.core_type<tc>, window_params = [{transform_indices = @transform_0, window_bounds = array<i64: 1, 16, 360>}, {pipeline_mode = #tpu.pipeline_mode<synchronous>, transform_indices = @transform_1, window_bounds = array<i64: 9, 16, 16>}, {transform_indices = @transform_2, window_bounds = array<i64: 1, 16, 360>}, {pipeline_mode = #tpu.pipeline_mode<synchronous>, transform_indices = @transform_3, window_bounds = array<i64: 9, 16, 16>}, {pipeline_mode = #tpu.pipeline_mode<synchronous>, transform_indices = @transform_4, window_bounds = array<i64: 16, 1>}, {transform_indices = @transform_5, window_bounds = array<i64: 1, 16, 306>}]} {
    %cst = arith.constant 0.000000e+00 : f32
    %0 = vector.broadcast %cst : f32 to vector<16x306xf32>
    %c0 = arith.constant 0 : index
    %c0_0 = arith.constant 0 : index
    %c0_1 = arith.constant 0 : index
    %1 = vector.load %arg1[%c0, %c0_0, %c0_1] : memref<1x16x360xbf16, #tpu.memory_space<vmem>>, vector<1x16x360xbf16>
    %2 = vector.shape_cast %1 : vector<1x16x360xbf16> to vector<16x360xbf16>
    %c0_2 = arith.constant 0 : index
    %c0_3 = arith.constant 0 : index
    %c0_4 = arith.constant 0 : index
    %3 = vector.load %arg2[%c0_2, %c0_3, %c0_4] : memref<9x16x16xbf16, #tpu.memory_space<vmem>>, vector<1x16x16xbf16>
    %4 = vector.shape_cast %3 : vector<1x16x16xbf16> to vector<16x16xbf16>
    %5 = vector.extract_strided_slice %2 {offsets = [0, 0], sizes = [16, 306], strides = [1, 1]} : vector<16x360xbf16> to vector<16x306xbf16>
    %cst_5 = arith.constant dense<0.000000e+00> : vector<16x306xf32>
    %6 = tpu.matmul %4, %5, %cst_5 {dimension_numbers = #tpu.dot_dimension_numbers<[1], [0], [0], [1], [0, 0, 1, 1], [], []>} : vector<16x16xbf16>, vector<16x306xbf16>, vector<16x306xf32> -> vector<16x306xf32>
    %7 = arith.addf %0, %6 : vector<16x306xf32>
    %c1 = arith.constant 1 : index
    %c0_6 = arith.constant 0 : index
    %c0_7 = arith.constant 0 : index
    %8 = vector.load %arg2[%c1, %c0_6, %c0_7] : memref<9x16x16xbf16, #tpu.memory_space<vmem>>, vector<1x16x16xbf16>
    %9 = vector.shape_cast %8 : vector<1x16x16xbf16> to vector<16x16xbf16>
    %10 = vector.extract_strided_slice %2 {offsets = [0, 1], sizes = [16, 306], strides = [1, 1]} : vector<16x360xbf16> to vector<16x306xbf16>
    %cst_8 = arith.constant dense<0.000000e+00> : vector<16x306xf32>
    %11 = tpu.matmul %9, %10, %cst_8 {dimension_numbers = #tpu.dot_dimension_numbers<[1], [0], [0], [1], [0, 0, 1, 1], [], []>} : vector<16x16xbf16>, vector<16x306xbf16>, vector<16x306xf32> -> vector<16x306xf32>
    %12 = arith.addf %7, %11 : vector<16x306xf32>
    %c2 = arith.constant 2 : index
    %c0_9 = arith.constant 0 : index
    %c0_10 = arith.constant 0 : index
    %13 = vector.load %arg2[%c2, %c0_9, %c0_10] : memref<9x16x16xbf16, #tpu.memory_space<vmem>>, vector<1x16x16xbf16>
    %14 = vector.shape_cast %13 : vector<1x16x16xbf16> to vector<16x16xbf16>
    %15 = vector.extract_strided_slice %2 {offsets = [0, 2], sizes = [16, 306], strides = [1, 1]} : vector<16x360xbf16> to vector<16x306xbf16>
    %cst_11 = arith.constant dense<0.000000e+00> : vector<16x306xf32>
    %16 = tpu.matmul %14, %15, %cst_11 {dimension_numbers = #tpu.dot_dimension_numbers<[1], [0], [0], [1], [0, 0, 1, 1], [], []>} : vector<16x16xbf16>, vector<16x306xbf16>, vector<16x306xf32> -> vector<16x306xf32>
    %17 = arith.addf %12, %16 : vector<16x306xf32>
    %c3 = arith.constant 3 : index
    %c0_12 = arith.constant 0 : index
    %c0_13 = arith.constant 0 : index
    %18 = vector.load %arg2[%c3, %c0_12, %c0_13] : memref<9x16x16xbf16, #tpu.memory_space<vmem>>, vector<1x16x16xbf16>
    %19 = vector.shape_cast %18 : vector<1x16x16xbf16> to vector<16x16xbf16>
    %20 = vector.extract_strided_slice %2 {offsets = [0, 18], sizes = [16, 306], strides = [1, 1]} : vector<16x360xbf16> to vector<16x306xbf16>
    %cst_14 = arith.constant dense<0.000000e+00> : vector<16x306xf32>
    %21 = tpu.matmul %19, %20, %cst_14 {dimension_numbers = #tpu.dot_dimension_numbers<[1], [0], [0], [1], [0, 0, 1, 1], [], []>} : vector<16x16xbf16>, vector<16x306xbf16>, vector<16x306xf32> -> vector<16x306xf32>
    %22 = arith.addf %17, %21 : vector<16x306xf32>
    %c4 = arith.constant 4 : index
    %c0_15 = arith.constant 0 : index
    %c0_16 = arith.constant 0 : index
    %23 = vector.load %arg2[%c4, %c0_15, %c0_16] : memref<9x16x16xbf16, #tpu.memory_space<vmem>>, vector<1x16x16xbf16>
    %24 = vector.shape_cast %23 : vector<1x16x16xbf16> to vector<16x16xbf16>
    %25 = vector.extract_strided_slice %2 {offsets = [0, 19], sizes = [16, 306], strides = [1, 1]} : vector<16x360xbf16> to vector<16x306xbf16>
    %cst_17 = arith.constant dense<0.000000e+00> : vector<16x306xf32>
    %26 = tpu.matmul %24, %25, %cst_17 {dimension_numbers = #tpu.dot_dimension_numbers<[1], [0], [0], [1], [0, 0, 1, 1], [], []>} : vector<16x16xbf16>, vector<16x306xbf16>, vector<16x306xf32> -> vector<16x306xf32>
    %27 = arith.addf %22, %26 : vector<16x306xf32>
    %c5 = arith.constant 5 : index
    %c0_18 = arith.constant 0 : index
    %c0_19 = arith.constant 0 : index
    %28 = vector.load %arg2[%c5, %c0_18, %c0_19] : memref<9x16x16xbf16, #tpu.memory_space<vmem>>, vector<1x16x16xbf16>
    %29 = vector.shape_cast %28 : vector<1x16x16xbf16> to vector<16x16xbf16>
    %30 = vector.extract_strided_slice %2 {offsets = [0, 20], sizes = [16, 306], strides = [1, 1]} : vector<16x360xbf16> to vector<16x306xbf16>
    %cst_20 = arith.constant dense<0.000000e+00> : vector<16x306xf32>
    %31 = tpu.matmul %29, %30, %cst_20 {dimension_numbers = #tpu.dot_dimension_numbers<[1], [0], [0], [1], [0, 0, 1, 1], [], []>} : vector<16x16xbf16>, vector<16x306xbf16>, vector<16x306xf32> -> vector<16x306xf32>
    %32 = arith.addf %27, %31 : vector<16x306xf32>
    %c6 = arith.constant 6 : index
    %c0_21 = arith.constant 0 : index
    %c0_22 = arith.constant 0 : index
    %33 = vector.load %arg2[%c6, %c0_21, %c0_22] : memref<9x16x16xbf16, #tpu.memory_space<vmem>>, vector<1x16x16xbf16>
    %34 = vector.shape_cast %33 : vector<1x16x16xbf16> to vector<16x16xbf16>
    %35 = vector.extract_strided_slice %2 {offsets = [0, 36], sizes = [16, 306], strides = [1, 1]} : vector<16x360xbf16> to vector<16x306xbf16>
    %cst_23 = arith.constant dense<0.000000e+00> : vector<16x306xf32>
    %36 = tpu.matmul %34, %35, %cst_23 {dimension_numbers = #tpu.dot_dimension_numbers<[1], [0], [0], [1], [0, 0, 1, 1], [], []>} : vector<16x16xbf16>, vector<16x306xbf16>, vector<16x306xf32> -> vector<16x306xf32>
    %37 = arith.addf %32, %36 : vector<16x306xf32>
    %c7 = arith.constant 7 : index
    %c0_24 = arith.constant 0 : index
    %c0_25 = arith.constant 0 : index
    %38 = vector.load %arg2[%c7, %c0_24, %c0_25] : memref<9x16x16xbf16, #tpu.memory_space<vmem>>, vector<1x16x16xbf16>
    %39 = vector.shape_cast %38 : vector<1x16x16xbf16> to vector<16x16xbf16>
    %40 = vector.extract_strided_slice %2 {offsets = [0, 37], sizes = [16, 306], strides = [1, 1]} : vector<16x360xbf16> to vector<16x306xbf16>
    %cst_26 = arith.constant dense<0.000000e+00> : vector<16x306xf32>
    %41 = tpu.matmul %39, %40, %cst_26 {dimension_numbers = #tpu.dot_dimension_numbers<[1], [0], [0], [1], [0, 0, 1, 1], [], []>} : vector<16x16xbf16>, vector<16x306xbf16>, vector<16x306xf32> -> vector<16x306xf32>
    %42 = arith.addf %37, %41 : vector<16x306xf32>
    %c8 = arith.constant 8 : index
    %c0_27 = arith.constant 0 : index
    %c0_28 = arith.constant 0 : index
    %43 = vector.load %arg2[%c8, %c0_27, %c0_28] : memref<9x16x16xbf16, #tpu.memory_space<vmem>>, vector<1x16x16xbf16>
    %44 = vector.shape_cast %43 : vector<1x16x16xbf16> to vector<16x16xbf16>
    %45 = vector.extract_strided_slice %2 {offsets = [0, 38], sizes = [16, 306], strides = [1, 1]} : vector<16x360xbf16> to vector<16x306xbf16>
    %cst_29 = arith.constant dense<0.000000e+00> : vector<16x306xf32>
    %46 = tpu.matmul %44, %45, %cst_29 {dimension_numbers = #tpu.dot_dimension_numbers<[1], [0], [0], [1], [0, 0, 1, 1], [], []>} : vector<16x16xbf16>, vector<16x306xbf16>, vector<16x306xf32> -> vector<16x306xf32>
    %47 = arith.addf %42, %46 : vector<16x306xf32>
    %c0_30 = arith.constant 0 : index
    %c0_31 = arith.constant 0 : index
    %c0_32 = arith.constant 0 : index
    %48 = vector.load %arg3[%c0_30, %c0_31, %c0_32] : memref<1x16x360xbf16, #tpu.memory_space<vmem>>, vector<1x16x360xbf16>
    %49 = vector.shape_cast %48 : vector<1x16x360xbf16> to vector<16x360xbf16>
    %c0_33 = arith.constant 0 : index
    %c0_34 = arith.constant 0 : index
    %c0_35 = arith.constant 0 : index
    %50 = vector.load %arg4[%c0_33, %c0_34, %c0_35] : memref<9x16x16xbf16, #tpu.memory_space<vmem>>, vector<1x16x16xbf16>
    %51 = vector.shape_cast %50 : vector<1x16x16xbf16> to vector<16x16xbf16>
    %52 = vector.extract_strided_slice %49 {offsets = [0, 0], sizes = [16, 306], strides = [1, 1]} : vector<16x360xbf16> to vector<16x306xbf16>
    %cst_36 = arith.constant dense<0.000000e+00> : vector<16x306xf32>
    %53 = tpu.matmul %51, %52, %cst_36 {dimension_numbers = #tpu.dot_dimension_numbers<[1], [0], [0], [1], [0, 0, 1, 1], [], []>} : vector<16x16xbf16>, vector<16x306xbf16>, vector<16x306xf32> -> vector<16x306xf32>
    %54 = arith.addf %47, %53 : vector<16x306xf32>
    %c1_37 = arith.constant 1 : index
    %c0_38 = arith.constant 0 : index
    %c0_39 = arith.constant 0 : index
    %55 = vector.load %arg4[%c1_37, %c0_38, %c0_39] : memref<9x16x16xbf16, #tpu.memory_space<vmem>>, vector<1x16x16xbf16>
    %56 = vector.shape_cast %55 : vector<1x16x16xbf16> to vector<16x16xbf16>
    %57 = vector.extract_strided_slice %49 {offsets = [0, 1], sizes = [16, 306], strides = [1, 1]} : vector<16x360xbf16> to vector<16x306xbf16>
    %cst_40 = arith.constant dense<0.000000e+00> : vector<16x306xf32>
    %58 = tpu.matmul %56, %57, %cst_40 {dimension_numbers = #tpu.dot_dimension_numbers<[1], [0], [0], [1], [0, 0, 1, 1], [], []>} : vector<16x16xbf16>, vector<16x306xbf16>, vector<16x306xf32> -> vector<16x306xf32>
    %59 = arith.addf %54, %58 : vector<16x306xf32>
    %c2_41 = arith.constant 2 : index
    %c0_42 = arith.constant 0 : index
    %c0_43 = arith.constant 0 : index
    %60 = vector.load %arg4[%c2_41, %c0_42, %c0_43] : memref<9x16x16xbf16, #tpu.memory_space<vmem>>, vector<1x16x16xbf16>
    %61 = vector.shape_cast %60 : vector<1x16x16xbf16> to vector<16x16xbf16>
    %62 = vector.extract_strided_slice %49 {offsets = [0, 2], sizes = [16, 306], strides = [1, 1]} : vector<16x360xbf16> to vector<16x306xbf16>
    %cst_44 = arith.constant dense<0.000000e+00> : vector<16x306xf32>
    %63 = tpu.matmul %61, %62, %cst_44 {dimension_numbers = #tpu.dot_dimension_numbers<[1], [0], [0], [1], [0, 0, 1, 1], [], []>} : vector<16x16xbf16>, vector<16x306xbf16>, vector<16x306xf32> -> vector<16x306xf32>
    %64 = arith.addf %59, %63 : vector<16x306xf32>
    %c3_45 = arith.constant 3 : index
    %c0_46 = arith.constant 0 : index
    %c0_47 = arith.constant 0 : index
    %65 = vector.load %arg4[%c3_45, %c0_46, %c0_47] : memref<9x16x16xbf16, #tpu.memory_space<vmem>>, vector<1x16x16xbf16>
    %66 = vector.shape_cast %65 : vector<1x16x16xbf16> to vector<16x16xbf16>
    %67 = vector.extract_strided_slice %49 {offsets = [0, 18], sizes = [16, 306], strides = [1, 1]} : vector<16x360xbf16> to vector<16x306xbf16>
    %cst_48 = arith.constant dense<0.000000e+00> : vector<16x306xf32>
    %68 = tpu.matmul %66, %67, %cst_48 {dimension_numbers = #tpu.dot_dimension_numbers<[1], [0], [0], [1], [0, 0, 1, 1], [], []>} : vector<16x16xbf16>, vector<16x306xbf16>, vector<16x306xf32> -> vector<16x306xf32>
    %69 = arith.addf %64, %68 : vector<16x306xf32>
    %c4_49 = arith.constant 4 : index
    %c0_50 = arith.constant 0 : index
    %c0_51 = arith.constant 0 : index
    %70 = vector.load %arg4[%c4_49, %c0_50, %c0_51] : memref<9x16x16xbf16, #tpu.memory_space<vmem>>, vector<1x16x16xbf16>
    %71 = vector.shape_cast %70 : vector<1x16x16xbf16> to vector<16x16xbf16>
    %72 = vector.extract_strided_slice %49 {offsets = [0, 19], sizes = [16, 306], strides = [1, 1]} : vector<16x360xbf16> to vector<16x306xbf16>
    %cst_52 = arith.constant dense<0.000000e+00> : vector<16x306xf32>
    %73 = tpu.matmul %71, %72, %cst_52 {dimension_numbers = #tpu.dot_dimension_numbers<[1], [0], [0], [1], [0, 0, 1, 1], [], []>} : vector<16x16xbf16>, vector<16x306xbf16>, vector<16x306xf32> -> vector<16x306xf32>
    %74 = arith.addf %69, %73 : vector<16x306xf32>
    %c5_53 = arith.constant 5 : index
    %c0_54 = arith.constant 0 : index
    %c0_55 = arith.constant 0 : index
    %75 = vector.load %arg4[%c5_53, %c0_54, %c0_55] : memref<9x16x16xbf16, #tpu.memory_space<vmem>>, vector<1x16x16xbf16>
    %76 = vector.shape_cast %75 : vector<1x16x16xbf16> to vector<16x16xbf16>
    %77 = vector.extract_strided_slice %49 {offsets = [0, 20], sizes = [16, 306], strides = [1, 1]} : vector<16x360xbf16> to vector<16x306xbf16>
    %cst_56 = arith.constant dense<0.000000e+00> : vector<16x306xf32>
    %78 = tpu.matmul %76, %77, %cst_56 {dimension_numbers = #tpu.dot_dimension_numbers<[1], [0], [0], [1], [0, 0, 1, 1], [], []>} : vector<16x16xbf16>, vector<16x306xbf16>, vector<16x306xf32> -> vector<16x306xf32>
    %79 = arith.addf %74, %78 : vector<16x306xf32>
    %c6_57 = arith.constant 6 : index
    %c0_58 = arith.constant 0 : index
    %c0_59 = arith.constant 0 : index
    %80 = vector.load %arg4[%c6_57, %c0_58, %c0_59] : memref<9x16x16xbf16, #tpu.memory_space<vmem>>, vector<1x16x16xbf16>
    %81 = vector.shape_cast %80 : vector<1x16x16xbf16> to vector<16x16xbf16>
    %82 = vector.extract_strided_slice %49 {offsets = [0, 36], sizes = [16, 306], strides = [1, 1]} : vector<16x360xbf16> to vector<16x306xbf16>
    %cst_60 = arith.constant dense<0.000000e+00> : vector<16x306xf32>
    %83 = tpu.matmul %81, %82, %cst_60 {dimension_numbers = #tpu.dot_dimension_numbers<[1], [0], [0], [1], [0, 0, 1, 1], [], []>} : vector<16x16xbf16>, vector<16x306xbf16>, vector<16x306xf32> -> vector<16x306xf32>
    %84 = arith.addf %79, %83 : vector<16x306xf32>
    %c7_61 = arith.constant 7 : index
    %c0_62 = arith.constant 0 : index
    %c0_63 = arith.constant 0 : index
    %85 = vector.load %arg4[%c7_61, %c0_62, %c0_63] : memref<9x16x16xbf16, #tpu.memory_space<vmem>>, vector<1x16x16xbf16>
    %86 = vector.shape_cast %85 : vector<1x16x16xbf16> to vector<16x16xbf16>
    %87 = vector.extract_strided_slice %49 {offsets = [0, 37], sizes = [16, 306], strides = [1, 1]} : vector<16x360xbf16> to vector<16x306xbf16>
    %cst_64 = arith.constant dense<0.000000e+00> : vector<16x306xf32>
    %88 = tpu.matmul %86, %87, %cst_64 {dimension_numbers = #tpu.dot_dimension_numbers<[1], [0], [0], [1], [0, 0, 1, 1], [], []>} : vector<16x16xbf16>, vector<16x306xbf16>, vector<16x306xf32> -> vector<16x306xf32>
    %89 = arith.addf %84, %88 : vector<16x306xf32>
    %c8_65 = arith.constant 8 : index
    %c0_66 = arith.constant 0 : index
    %c0_67 = arith.constant 0 : index
    %90 = vector.load %arg4[%c8_65, %c0_66, %c0_67] : memref<9x16x16xbf16, #tpu.memory_space<vmem>>, vector<1x16x16xbf16>
    %91 = vector.shape_cast %90 : vector<1x16x16xbf16> to vector<16x16xbf16>
    %92 = vector.extract_strided_slice %49 {offsets = [0, 38], sizes = [16, 306], strides = [1, 1]} : vector<16x360xbf16> to vector<16x306xbf16>
    %cst_68 = arith.constant dense<0.000000e+00> : vector<16x306xf32>
    %93 = tpu.matmul %91, %92, %cst_68 {dimension_numbers = #tpu.dot_dimension_numbers<[1], [0], [0], [1], [0, 0, 1, 1], [], []>} : vector<16x16xbf16>, vector<16x306xbf16>, vector<16x306xf32> -> vector<16x306xf32>
    %94 = arith.addf %89, %93 : vector<16x306xf32>
    %c0_69 = arith.constant 0 : index
    %c0_70 = arith.constant 0 : index
    %95 = vector.load %arg5[%c0_69, %c0_70] : memref<16x1xf32, #tpu.memory_space<vmem>>, vector<16x1xf32>
    %96 = vector.broadcast %95 : vector<16x1xf32> to vector<16x306xf32>
    %97 = arith.addf %94, %96 : vector<16x306xf32>
    %cst_71 = arith.constant 0.000000e+00 : f32
    %98 = vector.broadcast %cst_71 : f32 to vector<16x306xf32>
    %99 = arith.maximumf %97, %98 : vector<16x306xf32>
    %100 = arith.truncf %99 : vector<16x306xf32> to vector<16x306xbf16>
    %c0_72 = arith.constant 0 : index
    %c0_73 = arith.constant 0 : index
    %c0_74 = arith.constant 0 : index
    %101 = vector.load %arg6[%c0_72, %c0_73, %c0_74] : memref<1x16x306xbf16, #tpu.memory_space<vmem>>, vector<1x16x306xbf16>
    %102 = vector.shape_cast %101 : vector<1x16x306xbf16> to vector<16x306xbf16>
    %103 = vector.shape_cast %100 : vector<16x306xbf16> to vector<1x16x306xbf16>
    tpu.vector_store %arg6[%c0_72, %c0_73, %c0_74], %103 {strides = array<i32>} : memref<1x16x306xbf16, #tpu.memory_space<vmem>>, vector<1x16x306xbf16>,
    return
  }
  func.func @transform_0(%arg0: i32) -> (i32, i32, i32) {
    %c0_i32 = arith.constant 0 : i32
    %c0_i32_0 = arith.constant 0 : i32
    %c0_i32_1 = arith.constant 0 : i32
    return %arg0, %c0_i32, %c0_i32_0 : i32, i32, i32
  }
  func.func @transform_1(%arg0: i32) -> (i32, i32, i32) {
    %c0_i32 = arith.constant 0 : i32
    %c0_i32_0 = arith.constant 0 : i32
    %c0_i32_1 = arith.constant 0 : i32
    %c0_i32_2 = arith.constant 0 : i32
    return %c0_i32, %c0_i32_0, %c0_i32_1 : i32, i32, i32
  }
  func.func @transform_2(%arg0: i32) -> (i32, i32, i32) {
    %c0_i32 = arith.constant 0 : i32
    %c0_i32_0 = arith.constant 0 : i32
    %c0_i32_1 = arith.constant 0 : i32
    return %arg0, %c0_i32, %c0_i32_0 : i32, i32, i32
  }
  func.func @transform_3(%arg0: i32) -> (i32, i32, i32) {
    %c0_i32 = arith.constant 0 : i32
    %c0_i32_0 = arith.constant 0 : i32
    %c0_i32_1 = arith.constant 0 : i32
    %c0_i32_2 = arith.constant 0 : i32
    return %c0_i32, %c0_i32_0, %c0_i32_1 : i32, i32, i32
  }
  func.func @transform_4(%arg0: i32) -> (i32, i32) {
    %c0_i32 = arith.constant 0 : i32
    %c0_i32_0 = arith.constant 0 : i32
    %c0_i32_1 = arith.constant 0 : i32
    return %c0_i32, %c0_i32_0 : i32, i32
  }
  func.func @transform_5(%arg0: i32) -> (i32, i32, i32) {
    %c0_i32 = arith.constant 0 : i32
    %c0_i32_0 = arith.constant 0 : i32
    %c0_i32_1 = arith.constant 0 : i32
    return %arg0, %c0_i32, %c0_i32_0 : i32, i32, i32
  }
}

module attributes {stable_mosaic.version = 11 : i64} {
  func.func @_fused_conv_kernel(%arg0: i32, %arg1: memref<1x16x120xbf16, #tpu.memory_space<vmem>>, %arg2: memref<9x16x16xbf16, #tpu.memory_space<vmem>>, %arg3: memref<1x32x120xbf16, #tpu.memory_space<vmem>>, %arg4: memref<1x16x32xbf16, #tpu.memory_space<vmem>>, %arg5: memref<16x1xf32, #tpu.memory_space<vmem>>, %arg6: memref<1x16x90xf32, #tpu.memory_space<vmem>>) attributes {dimension_semantics = [#tpu.dimension_semantics<parallel>], iteration_bounds = array<i64: 2>, scalar_prefetch = 0 : i64, scratch_operands = 0 : i64, tpu.core_type = #tpu.core_type<tc>, window_params = [{transform_indices = @transform_0, window_bounds = array<i64: 1, 16, 120>}, {pipeline_mode = #tpu.pipeline_mode<synchronous>, transform_indices = @transform_1, window_bounds = array<i64: 9, 16, 16>}, {transform_indices = @transform_2, window_bounds = array<i64: 1, 32, 120>}, {pipeline_mode = #tpu.pipeline_mode<synchronous>, transform_indices = @transform_3, window_bounds = array<i64: 1, 16, 32>}, {pipeline_mode = #tpu.pipeline_mode<synchronous>, transform_indices = @transform_4, window_bounds = array<i64: 16, 1>}, {transform_indices = @transform_5, window_bounds = array<i64: 1, 16, 90>}]} {
    %cst = arith.constant 0.000000e+00 : f32
    %0 = vector.broadcast %cst : f32 to vector<16x90xf32>
    %c0 = arith.constant 0 : index
    %c0_0 = arith.constant 0 : index
    %c0_1 = arith.constant 0 : index
    %1 = vector.load %arg1[%c0, %c0_0, %c0_1] : memref<1x16x120xbf16, #tpu.memory_space<vmem>>, vector<1x16x120xbf16>
    %2 = vector.shape_cast %1 : vector<1x16x120xbf16> to vector<16x120xbf16>
    %c0_2 = arith.constant 0 : index
    %c0_3 = arith.constant 0 : index
    %c0_4 = arith.constant 0 : index
    %3 = vector.load %arg2[%c0_2, %c0_3, %c0_4] : memref<9x16x16xbf16, #tpu.memory_space<vmem>>, vector<1x16x16xbf16>
    %4 = vector.shape_cast %3 : vector<1x16x16xbf16> to vector<16x16xbf16>
    %5 = vector.extract_strided_slice %2 {offsets = [0, 0], sizes = [16, 90], strides = [1, 1]} : vector<16x120xbf16> to vector<16x90xbf16>
    %cst_5 = arith.constant dense<0.000000e+00> : vector<16x90xf32>
    %6 = tpu.matmul %4, %5, %cst_5 {dimension_numbers = #tpu.dot_dimension_numbers<[1], [0], [0], [1], [0, 0, 1, 1], [], []>} : vector<16x16xbf16>, vector<16x90xbf16>, vector<16x90xf32> -> vector<16x90xf32>
    %7 = arith.addf %0, %6 : vector<16x90xf32>
    %c1 = arith.constant 1 : index
    %c0_6 = arith.constant 0 : index
    %c0_7 = arith.constant 0 : index
    %8 = vector.load %arg2[%c1, %c0_6, %c0_7] : memref<9x16x16xbf16, #tpu.memory_space<vmem>>, vector<1x16x16xbf16>
    %9 = vector.shape_cast %8 : vector<1x16x16xbf16> to vector<16x16xbf16>
    %10 = vector.extract_strided_slice %2 {offsets = [0, 1], sizes = [16, 90], strides = [1, 1]} : vector<16x120xbf16> to vector<16x90xbf16>
    %cst_8 = arith.constant dense<0.000000e+00> : vector<16x90xf32>
    %11 = tpu.matmul %9, %10, %cst_8 {dimension_numbers = #tpu.dot_dimension_numbers<[1], [0], [0], [1], [0, 0, 1, 1], [], []>} : vector<16x16xbf16>, vector<16x90xbf16>, vector<16x90xf32> -> vector<16x90xf32>
    %12 = arith.addf %7, %11 : vector<16x90xf32>
    %c2 = arith.constant 2 : index
    %c0_9 = arith.constant 0 : index
    %c0_10 = arith.constant 0 : index
    %13 = vector.load %arg2[%c2, %c0_9, %c0_10] : memref<9x16x16xbf16, #tpu.memory_space<vmem>>, vector<1x16x16xbf16>
    %14 = vector.shape_cast %13 : vector<1x16x16xbf16> to vector<16x16xbf16>
    %15 = vector.extract_strided_slice %2 {offsets = [0, 2], sizes = [16, 90], strides = [1, 1]} : vector<16x120xbf16> to vector<16x90xbf16>
    %cst_11 = arith.constant dense<0.000000e+00> : vector<16x90xf32>
    %16 = tpu.matmul %14, %15, %cst_11 {dimension_numbers = #tpu.dot_dimension_numbers<[1], [0], [0], [1], [0, 0, 1, 1], [], []>} : vector<16x16xbf16>, vector<16x90xbf16>, vector<16x90xf32> -> vector<16x90xf32>
    %17 = arith.addf %12, %16 : vector<16x90xf32>
    %c3 = arith.constant 3 : index
    %c0_12 = arith.constant 0 : index
    %c0_13 = arith.constant 0 : index
    %18 = vector.load %arg2[%c3, %c0_12, %c0_13] : memref<9x16x16xbf16, #tpu.memory_space<vmem>>, vector<1x16x16xbf16>
    %19 = vector.shape_cast %18 : vector<1x16x16xbf16> to vector<16x16xbf16>
    %20 = vector.extract_strided_slice %2 {offsets = [0, 10], sizes = [16, 90], strides = [1, 1]} : vector<16x120xbf16> to vector<16x90xbf16>
    %cst_14 = arith.constant dense<0.000000e+00> : vector<16x90xf32>
    %21 = tpu.matmul %19, %20, %cst_14 {dimension_numbers = #tpu.dot_dimension_numbers<[1], [0], [0], [1], [0, 0, 1, 1], [], []>} : vector<16x16xbf16>, vector<16x90xbf16>, vector<16x90xf32> -> vector<16x90xf32>
    %22 = arith.addf %17, %21 : vector<16x90xf32>
    %c4 = arith.constant 4 : index
    %c0_15 = arith.constant 0 : index
    %c0_16 = arith.constant 0 : index
    %23 = vector.load %arg2[%c4, %c0_15, %c0_16] : memref<9x16x16xbf16, #tpu.memory_space<vmem>>, vector<1x16x16xbf16>
    %24 = vector.shape_cast %23 : vector<1x16x16xbf16> to vector<16x16xbf16>
    %25 = vector.extract_strided_slice %2 {offsets = [0, 11], sizes = [16, 90], strides = [1, 1]} : vector<16x120xbf16> to vector<16x90xbf16>
    %cst_17 = arith.constant dense<0.000000e+00> : vector<16x90xf32>
    %26 = tpu.matmul %24, %25, %cst_17 {dimension_numbers = #tpu.dot_dimension_numbers<[1], [0], [0], [1], [0, 0, 1, 1], [], []>} : vector<16x16xbf16>, vector<16x90xbf16>, vector<16x90xf32> -> vector<16x90xf32>
    %27 = arith.addf %22, %26 : vector<16x90xf32>
    %c5 = arith.constant 5 : index
    %c0_18 = arith.constant 0 : index
    %c0_19 = arith.constant 0 : index
    %28 = vector.load %arg2[%c5, %c0_18, %c0_19] : memref<9x16x16xbf16, #tpu.memory_space<vmem>>, vector<1x16x16xbf16>
    %29 = vector.shape_cast %28 : vector<1x16x16xbf16> to vector<16x16xbf16>
    %30 = vector.extract_strided_slice %2 {offsets = [0, 12], sizes = [16, 90], strides = [1, 1]} : vector<16x120xbf16> to vector<16x90xbf16>
    %cst_20 = arith.constant dense<0.000000e+00> : vector<16x90xf32>
    %31 = tpu.matmul %29, %30, %cst_20 {dimension_numbers = #tpu.dot_dimension_numbers<[1], [0], [0], [1], [0, 0, 1, 1], [], []>} : vector<16x16xbf16>, vector<16x90xbf16>, vector<16x90xf32> -> vector<16x90xf32>
    %32 = arith.addf %27, %31 : vector<16x90xf32>
    %c6 = arith.constant 6 : index
    %c0_21 = arith.constant 0 : index
    %c0_22 = arith.constant 0 : index
    %33 = vector.load %arg2[%c6, %c0_21, %c0_22] : memref<9x16x16xbf16, #tpu.memory_space<vmem>>, vector<1x16x16xbf16>
    %34 = vector.shape_cast %33 : vector<1x16x16xbf16> to vector<16x16xbf16>
    %35 = vector.extract_strided_slice %2 {offsets = [0, 20], sizes = [16, 90], strides = [1, 1]} : vector<16x120xbf16> to vector<16x90xbf16>
    %cst_23 = arith.constant dense<0.000000e+00> : vector<16x90xf32>
    %36 = tpu.matmul %34, %35, %cst_23 {dimension_numbers = #tpu.dot_dimension_numbers<[1], [0], [0], [1], [0, 0, 1, 1], [], []>} : vector<16x16xbf16>, vector<16x90xbf16>, vector<16x90xf32> -> vector<16x90xf32>
    %37 = arith.addf %32, %36 : vector<16x90xf32>
    %c7 = arith.constant 7 : index
    %c0_24 = arith.constant 0 : index
    %c0_25 = arith.constant 0 : index
    %38 = vector.load %arg2[%c7, %c0_24, %c0_25] : memref<9x16x16xbf16, #tpu.memory_space<vmem>>, vector<1x16x16xbf16>
    %39 = vector.shape_cast %38 : vector<1x16x16xbf16> to vector<16x16xbf16>
    %40 = vector.extract_strided_slice %2 {offsets = [0, 21], sizes = [16, 90], strides = [1, 1]} : vector<16x120xbf16> to vector<16x90xbf16>
    %cst_26 = arith.constant dense<0.000000e+00> : vector<16x90xf32>
    %41 = tpu.matmul %39, %40, %cst_26 {dimension_numbers = #tpu.dot_dimension_numbers<[1], [0], [0], [1], [0, 0, 1, 1], [], []>} : vector<16x16xbf16>, vector<16x90xbf16>, vector<16x90xf32> -> vector<16x90xf32>
    %42 = arith.addf %37, %41 : vector<16x90xf32>
    %c8 = arith.constant 8 : index
    %c0_27 = arith.constant 0 : index
    %c0_28 = arith.constant 0 : index
    %43 = vector.load %arg2[%c8, %c0_27, %c0_28] : memref<9x16x16xbf16, #tpu.memory_space<vmem>>, vector<1x16x16xbf16>
    %44 = vector.shape_cast %43 : vector<1x16x16xbf16> to vector<16x16xbf16>
    %45 = vector.extract_strided_slice %2 {offsets = [0, 22], sizes = [16, 90], strides = [1, 1]} : vector<16x120xbf16> to vector<16x90xbf16>
    %cst_29 = arith.constant dense<0.000000e+00> : vector<16x90xf32>
    %46 = tpu.matmul %44, %45, %cst_29 {dimension_numbers = #tpu.dot_dimension_numbers<[1], [0], [0], [1], [0, 0, 1, 1], [], []>} : vector<16x16xbf16>, vector<16x90xbf16>, vector<16x90xf32> -> vector<16x90xf32>
    %47 = arith.addf %42, %46 : vector<16x90xf32>
    %c0_30 = arith.constant 0 : index
    %c0_31 = arith.constant 0 : index
    %c0_32 = arith.constant 0 : index
    %48 = vector.load %arg3[%c0_30, %c0_31, %c0_32] : memref<1x32x120xbf16, #tpu.memory_space<vmem>>, vector<1x32x120xbf16>
    %49 = vector.shape_cast %48 : vector<1x32x120xbf16> to vector<32x120xbf16>
    %c0_33 = arith.constant 0 : index
    %c0_34 = arith.constant 0 : index
    %c0_35 = arith.constant 0 : index
    %50 = vector.load %arg4[%c0_33, %c0_34, %c0_35] : memref<1x16x32xbf16, #tpu.memory_space<vmem>>, vector<1x16x32xbf16>
    %51 = vector.shape_cast %50 : vector<1x16x32xbf16> to vector<16x32xbf16>
    %52 = vector.extract_strided_slice %49 {offsets = [0, 11], sizes = [32, 90], strides = [1, 1]} : vector<32x120xbf16> to vector<32x90xbf16>
    %cst_36 = arith.constant dense<0.000000e+00> : vector<16x90xf32>
    %53 = tpu.matmul %51, %52, %cst_36 {dimension_numbers = #tpu.dot_dimension_numbers<[1], [0], [0], [1], [0, 0, 1, 1], [], []>} : vector<16x32xbf16>, vector<32x90xbf16>, vector<16x90xf32> -> vector<16x90xf32>
    %54 = arith.addf %47, %53 : vector<16x90xf32>
    %c0_37 = arith.constant 0 : index
    %c0_38 = arith.constant 0 : index
    %55 = vector.load %arg5[%c0_37, %c0_38] : memref<16x1xf32, #tpu.memory_space<vmem>>, vector<16x1xf32>
    %56 = vector.broadcast %55 : vector<16x1xf32> to vector<16x90xf32>
    %57 = arith.addf %54, %56 : vector<16x90xf32>
    %cst_39 = arith.constant 0.000000e+00 : f32
    %58 = vector.broadcast %cst_39 : f32 to vector<16x90xf32>
    %59 = arith.maximumf %57, %58 : vector<16x90xf32>
    %c0_40 = arith.constant 0 : index
    %c0_41 = arith.constant 0 : index
    %c0_42 = arith.constant 0 : index
    %60 = vector.load %arg6[%c0_40, %c0_41, %c0_42] : memref<1x16x90xf32, #tpu.memory_space<vmem>>, vector<1x16x90xf32>
    %61 = vector.shape_cast %60 : vector<1x16x90xf32> to vector<16x90xf32>
    %62 = vector.shape_cast %59 : vector<16x90xf32> to vector<1x16x90xf32>
    tpu.vector_store %arg6[%c0_40, %c0_41, %c0_42], %62 {strides = array<i32>} : memref<1x16x90xf32, #tpu.memory_space<vmem>>, vector<1x16x90xf32>,
    return
  }
  func.func @transform_0(%arg0: i32) -> (i32, i32, i32) {
    %c0_i32 = arith.constant 0 : i32
    %c0_i32_0 = arith.constant 0 : i32
    %c0_i32_1 = arith.constant 0 : i32
    return %arg0, %c0_i32, %c0_i32_0 : i32, i32, i32
  }
  func.func @transform_1(%arg0: i32) -> (i32, i32, i32) {
    %c0_i32 = arith.constant 0 : i32
    %c0_i32_0 = arith.constant 0 : i32
    %c0_i32_1 = arith.constant 0 : i32
    %c0_i32_2 = arith.constant 0 : i32
    return %c0_i32, %c0_i32_0, %c0_i32_1 : i32, i32, i32
  }
  func.func @transform_2(%arg0: i32) -> (i32, i32, i32) {
    %c0_i32 = arith.constant 0 : i32
    %c0_i32_0 = arith.constant 0 : i32
    %c0_i32_1 = arith.constant 0 : i32
    return %arg0, %c0_i32, %c0_i32_0 : i32, i32, i32
  }
  func.func @transform_3(%arg0: i32) -> (i32, i32, i32) {
    %c0_i32 = arith.constant 0 : i32
    %c0_i32_0 = arith.constant 0 : i32
    %c0_i32_1 = arith.constant 0 : i32
    %c0_i32_2 = arith.constant 0 : i32
    return %c0_i32, %c0_i32_0, %c0_i32_1 : i32, i32, i32
  }
  func.func @transform_4(%arg0: i32) -> (i32, i32) {
    %c0_i32 = arith.constant 0 : i32
    %c0_i32_0 = arith.constant 0 : i32
    %c0_i32_1 = arith.constant 0 : i32
    return %c0_i32, %c0_i32_0 : i32, i32
  }
  func.func @transform_5(%arg0: i32) -> (i32, i32, i32) {
    %c0_i32 = arith.constant 0 : i32
    %c0_i32_0 = arith.constant 0 : i32
    %c0_i32_1 = arith.constant 0 : i32
    return %arg0, %c0_i32, %c0_i32_0 : i32, i32, i32
  }
}

</mosaic_0001>

<llo_original>
// kernel: conv_3nv1_forward.10
$region0: #{conv_3nv1_forward.10}
  #allocation0 [shape = 'u32[]', space=smem, size = 0x4, offset = 0x4, fixed_abs, tag = 'smem constant byte address 0x4 - core index']
  #allocation1 [shape = 'u32[144,128]{1,0:T(1,128)}', space=vmem, size = 0x12000, scoped, tag = 'internal scratch']
  %s0 = inlined_call_operand.vmem [shape: bf16[2,64,48], index: 0, kind: input, shape index: {}]
  %s1 = inlined_call_operand.vmem [shape: bf16[9,16,64], index: 1, kind: input, shape index: {}]
  %s2 = inlined_call_operand.vmem [shape: f32[16,1], index: 2, kind: input, shape index: {}]
  %s3 = inlined_call_operand.vmem [shape: bf16[2,16,30], index: 3, kind: output, shape index: {}]
  %s4 = sld [smem:[#allocation0]]
  $region45: #{conv_3nv1_forward.10} parent=0
    _
  %s6 = ssub.s32 1, %s4
  %s7 = scalar_select 0, %s6, %s4
  loop: start=0, step=1, limit=4
  $region2: #{conv_3nv1_forward.10} parent=0 // loop_pre_header
    _
  $region3: #{conv_3nv1_forward.10} parent=0 // loop_header
    %s9 = sphi 0, %s13
    %p10 = scmp.ge.s32.totalorder %s9, 4
    %s19 = sphi 0, %s21
    %s22 = sphi 0, %s19
    %s23 = sphi 0, %s22
    %s39 = sphi 0, %s23
    %s43 = sphi 0, %s43
    %s45 = sphi 0, %s43
    %s46 = sphi 0, %s45
    %s60 = sphi 0, %s46
    %s64 = sphi 0, %s64
    %s66 = sphi 0, %s64
    %s67 = sphi 0, %s66
    %s81 = sphi 0, %s67
    %s87 = sphi 0, %s89
    %s90 = sphi 0, %s87
    %s91 = sphi 0, %s90
    %s107 = sphi 0, %s91
  $region4: #{conv_3nv1_forward.10} parent=0 // loop_header_branch
    %12 = sbr.rel (%p10) target = $region8
  $region5: #{conv_3nv1_forward.10} parent=0 // loop_body
    %s14 = ssub.s32 %s9, 1
    %s15 = ssub.s32 %s9, 2
    %s16 = sadd.s32 %s9, 1
    %s17 = ssub.s32 %s9, %s16
    %p18 = scmp.eq.s32.totalorder %s17, 0
    %s20 = sadd.s32 %s19, 1
    %s21 = scalar_select %p18, %s19, %s20
    %p24 = pneg %p18
    %p25 = scmp.eq.s32.totalorder %s9, 1
    %p26 = por %p24, %p25
    %p27 = scmp.ne.s32.totalorder %s19, %s22
    %p28 = scmp.eq.s32.totalorder %s9, 0
    %p29 = por %p27, %p28
    %p30 = scmp.ne.s32.totalorder %s19, %s22
    %p31 = scmp.eq.s32.totalorder %s14, 1
    %p32 = por %p30, %p31
    %p33 = scmp.ne.s32.totalorder %s22, %s23
    %p34 = scmp.eq.s32.totalorder %s14, 0
    %p35 = por %p33, %p34
    %p36 = scmp.ne.s32.totalorder %s22, %s23
    %p37 = scmp.eq.s32.totalorder %s15, 1
    %p38 = por %p36, %p37
    %p40 = scmp.ne.s32.totalorder %s23, %s39
    %p41 = scmp.eq.s32.totalorder %s15, 0
    %p42 = por %p40, %p41
    %s44 = sadd.s32 %s43, 1
    %p47 = scmp.eq.s32.totalorder %s9, 1
    %p48 = scmp.ne.s32.totalorder %s43, %s45
    %p49 = scmp.eq.s32.totalorder %s9, 0
    %p50 = por %p48, %p49
    %p51 = scmp.ne.s32.totalorder %s43, %s45
    %p52 = scmp.eq.s32.totalorder %s14, 1
    %p53 = por %p51, %p52
    %p54 = scmp.ne.s32.totalorder %s45, %s46
    %p55 = scmp.eq.s32.totalorder %s14, 0
    %p56 = por %p54, %p55
    %p57 = scmp.ne.s32.totalorder %s45, %s46
    %p58 = scmp.eq.s32.totalorder %s15, 1
    %p59 = por %p57, %p58
    %p61 = scmp.ne.s32.totalorder %s46, %s60
    %p62 = scmp.eq.s32.totalorder %s15, 0
    %p63 = por %p61, %p62
    %s65 = sadd.s32 %s64, 1
    %p68 = scmp.eq.s32.totalorder %s9, 1
    %p69 = scmp.ne.s32.totalorder %s64, %s66
    %p70 = scmp.eq.s32.totalorder %s9, 0
    %p71 = por %p69, %p70
    %p72 = scmp.ne.s32.totalorder %s64, %s66
    %p73 = scmp.eq.s32.totalorder %s14, 1
    %p74 = por %p72, %p73
    %p75 = scmp.ne.s32.totalorder %s66, %s67
    %p76 = scmp.eq.s32.totalorder %s14, 0
    %p77 = por %p75, %p76
    %p78 = scmp.ne.s32.totalorder %s66, %s67
    %p79 = scmp.eq.s32.totalorder %s15, 1
    %p80 = por %p78, %p79
    %p82 = scmp.ne.s32.totalorder %s67, %s81
    %p83 = scmp.eq.s32.totalorder %s15, 0
    %p84 = por %p82, %p83
    %s85 = ssub.s32 %s9, %s16
    %p86 = scmp.eq.s32.totalorder %s85, 0
    %s88 = sadd.s32 %s87, 1
    %s89 = scalar_select %p86, %s87, %s88
    %p92 = pneg %p86
    %p93 = scmp.eq.s32.totalorder %s9, 1
    %p94 = por %p92, %p93
    %p95 = scmp.ne.s32.totalorder %s87, %s90
    %p96 = scmp.eq.s32.totalorder %s9, 0
    %p97 = por %p95, %p96
    %p98 = scmp.ne.s32.totalorder %s87, %s90
    %p99 = scmp.eq.s32.totalorder %s14, 1
    %p100 = por %p98, %p99
    %p101 = scmp.ne.s32.totalorder %s90, %s91
    %p102 = scmp.eq.s32.totalorder %s14, 0
    %p103 = por %p101, %p102
    %p104 = scmp.ne.s32.totalorder %s90, %s91
    %p105 = scmp.eq.s32.totalorder %s15, 1
    %p106 = por %p104, %p105
    %p108 = scmp.ne.s32.totalorder %s91, %s107
    %p109 = scmp.eq.s32.totalorder %s15, 0
    %p110 = por %p108, %p109
    %p111 = scmp.le.s32.totalorder 1, %s9
    %p112 = scmp.lt.s32.totalorder %s9, 3
    %p113 = pnand %p111, %p112
    %p114 = pneg %p113
    // Predicated region
    $region9: #{conv_3nv1_forward.10} parent=5 // pred_check
      _
    $region10: #{conv_3nv1_forward.10} parent=5 // pred_check_branch
      %116 = sbr.rel (%p113) target = $region12
    $region11: #{conv_3nv1_forward.10} parent=5 // pred_region
      %s117 = ssub.s32 %s9, 1
      // Predicated region
      $region13: #{conv_3nv1_forward.10} parent=11 // pred_check
        %p118 = pneg %p56
      $region14: #{conv_3nv1_forward.10} parent=11 // pred_check_branch
        %120 = sbr.rel (%p118) target = $region16
      $region15: #{conv_3nv1_forward.10} parent=11 // pred_region
        _
      $region16: #{conv_3nv1_forward.10} parent=11 // pred_fallthru
        _
      // Predicated region
      $region17: #{conv_3nv1_forward.10} parent=11 // pred_check
        %p121 = pneg %p77
      $region18: #{conv_3nv1_forward.10} parent=11 // pred_check_branch
        %123 = sbr.rel (%p121) target = $region20
      $region19: #{conv_3nv1_forward.10} parent=11 // pred_region
        _
      $region20: #{conv_3nv1_forward.10} parent=11 // pred_fallthru
        _
    $region12: #{conv_3nv1_forward.10} parent=5 // pred_fallthru
      _
    %p124 = scmp.lt.s32.totalorder %s9, 2
    // Predicated region
    $region21: #{conv_3nv1_forward.10} parent=5 // pred_check
      %p125 = pneg %p124
    $region22: #{conv_3nv1_forward.10} parent=5 // pred_check_branch
      %127 = sbr.rel (%p125) target = $region24
    $region23: #{conv_3nv1_forward.10} parent=5 // pred_region
      // Predicated region
      $region25: #{conv_3nv1_forward.10} parent=23 // pred_check
        %p128 = pneg %p29
      $region26: #{conv_3nv1_forward.10} parent=23 // pred_check_branch
        %130 = sbr.rel (%p128) target = $region28
      $region27: #{conv_3nv1_forward.10} parent=23 // pred_region
        %p131 = scmp.lt.s32.totalorder %s9, 1
        %s132 = scalar_select %p131, %s9, 1
        %s133 = smul.addr %s132, 8
        %s134 = smul.addr %s133, 4
        %s135 = scalar_lea.vmem %s0, %s134
      $region28: #{conv_3nv1_forward.10} parent=23 // pred_fallthru
        _
    $region24: #{conv_3nv1_forward.10} parent=5 // pred_fallthru
      _
    %p136 = scmp.le.s32.totalorder 1, %s9
    %p137 = scmp.lt.s32.totalorder %s9, 3
    %p138 = pnand %p136, %p137
    %p139 = pneg %p138
    // Predicated region
    $region29: #{conv_3nv1_forward.10} parent=5 // pred_check
      _
    $region30: #{conv_3nv1_forward.10} parent=5 // pred_check_branch
      %141 = sbr.rel (%p138) target = $region32
    $region31: #{conv_3nv1_forward.10} parent=5 // pred_region
      %s142 = ssub.s32 %s9, 1
      %p143 = scmp.lt.s32.totalorder %s14, 1
      %s144 = scalar_select %p143, %s14, 1
      %s145 = smul.addr %s144, 8
      %s146 = smul.addr %s145, 4
      %s147 = scalar_lea.vmem %s0, %s146
      %p148 = pneg %p35
      %p149 = pneg %p32
      %p150 = pneg %p56
      %p151 = pneg %p53
      %p152 = pneg %p77
      %p153 = pneg %p74
      %p154 = pneg %p103
      %p155 = pneg %p100
      %p156 = scmp.lt.s32.totalorder %s14, 1
      %s157 = scalar_select %p156, %s14, 1
      %s158 = smul.addr %s157, 2
      %s159 = smul.addr %s158, 4
      %s160 = scalar_lea.vmem %s3, %s159
      %p161 = scmp.lt.s32.totalorder %s14, 1
      %s162 = scalar_select %p161, %s14, 1
      %s163 = smul.addr %s162, 8
      %s164 = smul.addr %s163, 4
      %s165 = scalar_lea.vmem %s0, %s164
      %p166 = scmp.lt.s32.totalorder %s14, 1
      %s167 = scalar_select %p166, %s14, 1
      %s168 = smul.addr %s167, 2
      %s169 = smul.addr %s168, 4
      %s170 = scalar_lea.vmem %s3, %s169
      %v172 = vld [vmem:[%s165] sm:$0xf]
      %v173 = vld [vmem:[%s165 + $0x4] sm:$0xf]
      %v174 = vld [vmem:[%s165 + $0x8] sm:$0xf]
      %v175 = vld [vmem:[%s165 + $0xc] sm:$0xf]
      %v176 = vld [vmem:[%s165 + $0x10] sm:$0xf]
      %v177 = vld [vmem:[%s165 + $0x14] sm:$0xf]
      %v178 = vld [vmem:[%s165 + $0x18] sm:$0xf]
      %v179 = vld [vmem:[%s165 + $0x1c] sm:$0xf]
      %v180 = vld [vmem:[%s1] sm:$0xf]
      %v181 = vld [vmem:[%s1 + $0x4] sm:$0xf]
      %s182 = scalar_lea.vmem %s1, 8
      %v183 = vld [vmem:[%s182] sm:$0xf]
      %v184 = vld [vmem:[%s182 + $0x4] sm:$0xf]
      %v187 = vunpack.c.l.b16 %v183
      %v188 = vunpack.c.l.b16 %v184
      %v189 = vpack.c.b16 %v188, %v187
      %v198 = vunpack.c.l.b16 %v172
      %v199 = vunpack.c.l.b16 %v173
      %v200 = vunpack.c.l.b16 %v174
      %v201 = vunpack.c.l.b16 %v175
      %v202 = vunpack.c.l.b16 %v176
      %v203 = vunpack.c.l.b16 %v177
      %v204 = vunpack.c.l.b16 %v178
      %v205 = vunpack.c.l.b16 %v179
      %v206 = vpack.c.b16 %v199, %v198
      %v207 = vpack.c.b16 %v201, %v200
      %v208 = vpack.c.b16 %v203, %v202
      %v209 = vpack.c.b16 %v205, %v204
      %210 = vrot.lane.b32.xlu0 %v206, 127
      %v211 = vpop.permute.xlu0 %210
      %212 = vrot.lane.b32.xlu0 %v207, 127
      %v213 = vpop.permute.xlu0 %212
      %214 = vrot.lane.b32.xlu0 %v208, 127
      %v215 = vpop.permute.xlu0 %214
      %216 = vrot.lane.b32.xlu0 %v209, 127
      %v217 = vpop.permute.xlu0 %216
      %vm222 = vcmask 523264
      %v224 = vsel %vm222, %v189, 0
      %226 = vmatprep.subr.bf16.mxu0 0
      %227 = vmatpush1.bf16.msra.mxu0 0
      %228 = vmatprep.subr.bf16.mxu0 0
      %229 = vmatpush1.bf16.msra.mxu0 0
      %230 = vmatprep.subr.bf16.mxu0 0
      %231 = vmatpush1.bf16.msra.mxu0 0
      %232 = vmatprep.subr.bf16.mxu0 0
      %233 = vmatpush1.bf16.msra.mxu0 0
      %234 = vmatprep.subr.bf16.mxu0 0
      %235 = vmatpush1.bf16.msra.mxu0 %v217
      %236 = vmatprep.subr.bf16.mxu0 0
      %237 = vmatpush1.bf16.msra.mxu0 %v215
      %238 = vmatprep.subr.bf16.mxu0 0
      %239 = vmatpush1.bf16.msra.mxu0 %v213
      %240 = vmatprep.subr.bf16.mxu0 0
      %241 = vmatpush1.bf16.msra.mxu0 %v211
      %242 = vmatprep.subr.bf16.mxu0 0
      %243 = vmatpush2.bf16.msra.mxu0 0
      %244 = vmatprep.subr.bf16.mxu0 0
      %245 = vmatpush2.bf16.msra.mxu0 0
      %246 = vmatprep.subr.bf16.mxu0 0
      %247 = vmatpush2.bf16.msra.mxu0 0
      %248 = vmatprep.subr.bf16.mxu0 0
      %249 = vmatpush2.bf16.msra.mxu0 0
      %250 = vmatprep.subr.bf16.mxu0 0
      %251 = vmatpush2.bf16.msra.mxu0 0
      %252 = vmatprep.subr.bf16.mxu0 0
      %253 = vmatpush2.bf16.msra.mxu0 0
      %254 = vmatprep.subr.bf16.mxu0 0
      %255 = vmatpush2.bf16.msra.mxu0 0
      %256 = vmatprep.subr.bf16.mxu0 0
      %257 = vmatpush2.bf16.msra.mxu0 0
      %258 = vmatprep.mubr.bf16.mxu0 0
      %259 = vmatmul.mubr.bf16.gmra.mxu0 %v224
      %v260 = vpop.f32.mrf.mxu0
      %v261 = vadd.f32 0.0, %v260
      %v262 = vpop.f32.mrf.mxu0
      %v263 = vpop.f32.mrf.mxu0
      %v264 = vadd.f32 0.0, %v263
      %v265 = vpop.f32.mrf.mxu0
      %266 = vdwg.mxu0
      %v269 = vunpack.c.l.b16 %v180
      %v270 = vunpack.c.l.b16 %v181
      %v271 = vpack.c.b16 %v270, %v269
      %v277 = vsel %vm222, %v271, 0
      %279 = vmatprep.subr.bf16.mxu0 0
      %280 = vmatpush1.bf16.msra.mxu0 0
      %281 = vmatprep.subr.bf16.mxu0 0
      %282 = vmatpush1.bf16.msra.mxu0 0
      %283 = vmatprep.subr.bf16.mxu0 0
      %284 = vmatpush1.bf16.msra.mxu0 0
      %285 = vmatprep.subr.bf16.mxu0 0
      %286 = vmatpush1.bf16.msra.mxu0 0
      %287 = vmatprep.subr.bf16.mxu0 0
      %288 = vmatpush1.bf16.msra.mxu0 %v209
      %289 = vmatprep.subr.bf16.mxu0 0
      %290 = vmatpush1.bf16.msra.mxu0 %v208
      %291 = vmatprep.subr.bf16.mxu0 0
      %292 = vmatpush1.bf16.msra.mxu0 %v207
      %293 = vmatprep.subr.bf16.mxu0 0
      %294 = vmatpush1.bf16.msra.mxu0 %v206
      %295 = vmatprep.subr.bf16.mxu0 0
      %296 = vmatpush2.bf16.msra.mxu0 0
      %297 = vmatprep.subr.bf16.mxu0 0
      %298 = vmatpush2.bf16.msra.mxu0 0
      %299 = vmatprep.subr.bf16.mxu0 0
      %300 = vmatpush2.bf16.msra.mxu0 0
      %301 = vmatprep.subr.bf16.mxu0 0
      %302 = vmatpush2.bf16.msra.mxu0 0
      %303 = vmatprep.subr.bf16.mxu0 0
      %304 = vmatpush2.bf16.msra.mxu0 0
      %305 = vmatprep.subr.bf16.mxu0 0
      %306 = vmatpush2.bf16.msra.mxu0 0
      %307 = vmatprep.subr.bf16.mxu0 0
      %308 = vmatpush2.bf16.msra.mxu0 0
      %309 = vmatprep.subr.bf16.mxu0 0
      %310 = vmatpush2.bf16.msra.mxu0 0
      %311 = vmatprep.mubr.bf16.mxu0 0
      %312 = vmatmul.mubr.bf16.gmra.mxu0 %v277
      %v313 = vpop.f32.mrf.mxu0
      %v314 = vadd.f32 %v261, %v313
      %v315 = vpop.f32.mrf.mxu0
      %v316 = vpop.f32.mrf.mxu0
      %v317 = vadd.f32 %v264, %v316
      %v318 = vpop.f32.mrf.mxu0
      %319 = vdwg.mxu0
      %s320 = scalar_lea.vmem %s1, 16
      %v321 = vld [vmem:[%s320] sm:$0xf]
      %v322 = vld [vmem:[%s320 + $0x4] sm:$0xf]
      %v325 = vunpack.c.l.b16 %v321
      %v326 = vunpack.c.l.b16 %v322
      %v327 = vpack.c.b16 %v326, %v325
      %328 = vrot.lane.b32.xlu0 %v206, 126
      %v329 = vpop.permute.xlu0 %328
      %330 = vrot.lane.b32.xlu0 %v207, 126
      %v331 = vpop.permute.xlu0 %330
      %332 = vrot.lane.b32.xlu0 %v208, 126
      %v333 = vpop.permute.xlu0 %332
      %334 = vrot.lane.b32.xlu0 %v209, 126
      %v335 = vpop.permute.xlu0 %334
      %v341 = vsel %vm222, %v327, 0
      %343 = vmatprep.subr.bf16.mxu0 0
      %344 = vmatpush1.bf16.msra.mxu0 0
      %345 = vmatprep.subr.bf16.mxu0 0
      %346 = vmatpush1.bf16.msra.mxu0 0
      %347 = vmatprep.subr.bf16.mxu0 0
      %348 = vmatpush1.bf16.msra.mxu0 0
      %349 = vmatprep.subr.bf16.mxu0 0
      %350 = vmatpush1.bf16.msra.mxu0 0
      %351 = vmatprep.subr.bf16.mxu0 0
      %352 = vmatpush1.bf16.msra.mxu0 %v335
      %353 = vmatprep.subr.bf16.mxu0 0
      %354 = vmatpush1.bf16.msra.mxu0 %v333
      %355 = vmatprep.subr.bf16.mxu0 0
      %356 = vmatpush1.bf16.msra.mxu0 %v331
      %357 = vmatprep.subr.bf16.mxu0 0
      %358 = vmatpush1.bf16.msra.mxu0 %v329
      %359 = vmatprep.subr.bf16.mxu0 0
      %360 = vmatpush2.bf16.msra.mxu0 0
      %361 = vmatprep.subr.bf16.mxu0 0
      %362 = vmatpush2.bf16.msra.mxu0 0
      %363 = vmatprep.subr.bf16.mxu0 0
      %364 = vmatpush2.bf16.msra.mxu0 0
      %365 = vmatprep.subr.bf16.mxu0 0
      %366 = vmatpush2.bf16.msra.mxu0 0
      %367 = vmatprep.subr.bf16.mxu0 0
      %368 = vmatpush2.bf16.msra.mxu0 0
      %369 = vmatprep.subr.bf16.mxu0 0
      %370 = vmatpush2.bf16.msra.mxu0 0
      %371 = vmatprep.subr.bf16.mxu0 0
      %372 = vmatpush2.bf16.msra.mxu0 0
      %373 = vmatprep.subr.bf16.mxu0 0
      %374 = vmatpush2.bf16.msra.mxu0 0
      %375 = vmatprep.mubr.bf16.mxu0 0
      %376 = vmatmul.mubr.bf16.gmra.mxu0 %v341
      %v377 = vpop.f32.mrf.mxu0
      %v378 = vadd.f32 0.0, %v377
      %v379 = vpop.f32.mrf.mxu0
      %v380 = vpop.f32.mrf.mxu0
      %v381 = vadd.f32 0.0, %v380
      %v382 = vpop.f32.mrf.mxu0
      %383 = vdwg.mxu0
      %v384 = vadd.f32 %v314, %v378
      %v385 = vadd.f32 %v317, %v381
      %s386 = scalar_lea.vmem %s1, 24
      %v387 = vld [vmem:[%s386] sm:$0xf]
      %v388 = vld [vmem:[%s386 + $0x4] sm:$0xf]
      %v391 = vunpack.c.l.b16 %v387
      %v392 = vunpack.c.l.b16 %v388
      %v393 = vpack.c.b16 %v392, %v391
      %394 = vrot.lane.b32.xlu0 %v206, 122
      %v395 = vpop.permute.xlu0 %394
      %396 = vrot.lane.b32.xlu0 %v207, 122
      %v397 = vpop.permute.xlu0 %396
      %398 = vrot.lane.b32.xlu0 %v208, 122
      %v399 = vpop.permute.xlu0 %398
      %400 = vrot.lane.b32.xlu0 %v209, 122
      %v401 = vpop.permute.xlu0 %400
      %v407 = vsel %vm222, %v393, 0
      %409 = vmatprep.subr.bf16.mxu0 0
      %410 = vmatpush1.bf16.msra.mxu0 0
      %411 = vmatprep.subr.bf16.mxu0 0
      %412 = vmatpush1.bf16.msra.mxu0 0
      %413 = vmatprep.subr.bf16.mxu0 0
      %414 = vmatpush1.bf16.msra.mxu0 0
      %415 = vmatprep.subr.bf16.mxu0 0
      %416 = vmatpush1.bf16.msra.mxu0 0
      %417 = vmatprep.subr.bf16.mxu0 0
      %418 = vmatpush1.bf16.msra.mxu0 %v401
      %419 = vmatprep.subr.bf16.mxu0 0
      %420 = vmatpush1.bf16.msra.mxu0 %v399
      %421 = vmatprep.subr.bf16.mxu0 0
      %422 = vmatpush1.bf16.msra.mxu0 %v397
      %423 = vmatprep.subr.bf16.mxu0 0
      %424 = vmatpush1.bf16.msra.mxu0 %v395
      %425 = vmatprep.subr.bf16.mxu0 0
      %426 = vmatpush2.bf16.msra.mxu0 0
      %427 = vmatprep.subr.bf16.mxu0 0
      %428 = vmatpush2.bf16.msra.mxu0 0
      %429 = vmatprep.subr.bf16.mxu0 0
      %430 = vmatpush2.bf16.msra.mxu0 0
      %431 = vmatprep.subr.bf16.mxu0 0
      %432 = vmatpush2.bf16.msra.mxu0 0
      %433 = vmatprep.subr.bf16.mxu0 0
      %434 = vmatpush2.bf16.msra.mxu0 0
      %435 = vmatprep.subr.bf16.mxu0 0
      %436 = vmatpush2.bf16.msra.mxu0 0
      %437 = vmatprep.subr.bf16.mxu0 0
      %438 = vmatpush2.bf16.msra.mxu0 0
      %439 = vmatprep.subr.bf16.mxu0 0
      %440 = vmatpush2.bf16.msra.mxu0 0
      %441 = vmatprep.mubr.bf16.mxu0 0
      %442 = vmatmul.mubr.bf16.gmra.mxu0 %v407
      %v443 = vpop.f32.mrf.mxu0
      %v444 = vadd.f32 0.0, %v443
      %v445 = vpop.f32.mrf.mxu0
      %v446 = vpop.f32.mrf.mxu0
      %v447 = vadd.f32 0.0, %v446
      %v448 = vpop.f32.mrf.mxu0
      %449 = vdwg.mxu0
      %v450 = vadd.f32 %v384, %v444
      %v451 = vadd.f32 %v385, %v447
      %s452 = scalar_lea.vmem %s1, 32
      %v453 = vld [vmem:[%s452] sm:$0xf]
      %v454 = vld [vmem:[%s452 + $0x4] sm:$0xf]
      %v457 = vunpack.c.l.b16 %v453
      %v458 = vunpack.c.l.b16 %v454
      %v459 = vpack.c.b16 %v458, %v457
      %460 = vrot.lane.b32.xlu0 %v206, 121
      %v461 = vpop.permute.xlu0 %460
      %462 = vrot.lane.b32.xlu0 %v207, 121
      %v463 = vpop.permute.xlu0 %462
      %464 = vrot.lane.b32.xlu0 %v208, 121
      %v465 = vpop.permute.xlu0 %464
      %466 = vrot.lane.b32.xlu0 %v209, 121
      %v467 = vpop.permute.xlu0 %466
      %v473 = vsel %vm222, %v459, 0
      %475 = vmatprep.subr.bf16.mxu0 0
      %476 = vmatpush1.bf16.msra.mxu0 0
      %477 = vmatprep.subr.bf16.mxu0 0
      %478 = vmatpush1.bf16.msra.mxu0 0
      %479 = vmatprep.subr.bf16.mxu0 0
      %480 = vmatpush1.bf16.msra.mxu0 0
      %481 = vmatprep.subr.bf16.mxu0 0
      %482 = vmatpush1.bf16.msra.mxu0 0
      %483 = vmatprep.subr.bf16.mxu0 0
      %484 = vmatpush1.bf16.msra.mxu0 %v467
      %485 = vmatprep.subr.bf16.mxu0 0
      %486 = vmatpush1.bf16.msra.mxu0 %v465
      %487 = vmatprep.subr.bf16.mxu0 0
      %488 = vmatpush1.bf16.msra.mxu0 %v463
      %489 = vmatprep.subr.bf16.mxu0 0
      %490 = vmatpush1.bf16.msra.mxu0 %v461
      %491 = vmatprep.subr.bf16.mxu0 0
      %492 = vmatpush2.bf16.msra.mxu0 0
      %493 = vmatprep.subr.bf16.mxu0 0
      %494 = vmatpush2.bf16.msra.mxu0 0
      %495 = vmatprep.subr.bf16.mxu0 0
      %496 = vmatpush2.bf16.msra.mxu0 0
      %497 = vmatprep.subr.bf16.mxu0 0
      %498 = vmatpush2.bf16.msra.mxu0 0
      %499 = vmatprep.subr.bf16.mxu0 0
      %500 = vmatpush2.bf16.msra.mxu0 0
      %501 = vmatprep.subr.bf16.mxu0 0
      %502 = vmatpush2.bf16.msra.mxu0 0
      %503 = vmatprep.subr.bf16.mxu0 0
      %504 = vmatpush2.bf16.msra.mxu0 0
      %505 = vmatprep.subr.bf16.mxu0 0
      %506 = vmatpush2.bf16.msra.mxu0 0
      %507 = vmatprep.mubr.bf16.mxu0 0
      %508 = vmatmul.mubr.bf16.gmra.mxu0 %v473
      %v509 = vpop.f32.mrf.mxu0
      %v510 = vadd.f32 0.0, %v509
      %v511 = vpop.f32.mrf.mxu0
      %v512 = vpop.f32.mrf.mxu0
      %v513 = vadd.f32 0.0, %v512
      %v514 = vpop.f32.mrf.mxu0
      %515 = vdwg.mxu0
      %v516 = vadd.f32 %v450, %v510
      %v517 = vadd.f32 %v451, %v513
      %s518 = scalar_lea.vmem %s1, 40
      %v519 = vld [vmem:[%s518] sm:$0xf]
      %v520 = vld [vmem:[%s518 + $0x4] sm:$0xf]
      %v523 = vunpack.c.l.b16 %v519
      %v524 = vunpack.c.l.b16 %v520
      %v525 = vpack.c.b16 %v524, %v523
      %526 = vrot.lane.b32.xlu0 %v206, 120
      %v527 = vpop.permute.xlu0 %526
      %528 = vrot.lane.b32.xlu0 %v207, 120
      %v529 = vpop.permute.xlu0 %528
      %530 = vrot.lane.b32.xlu0 %v208, 120
      %v531 = vpop.permute.xlu0 %530
      %532 = vrot.lane.b32.xlu0 %v209, 120
      %v533 = vpop.permute.xlu0 %532
      %v539 = vsel %vm222, %v525, 0
      %541 = vmatprep.subr.bf16.mxu0 0
      %542 = vmatpush1.bf16.msra.mxu0 0
      %543 = vmatprep.subr.bf16.mxu0 0
      %544 = vmatpush1.bf16.msra.mxu0 0
      %545 = vmatprep.subr.bf16.mxu0 0
      %546 = vmatpush1.bf16.msra.mxu0 0
      %547 = vmatprep.subr.bf16.mxu0 0
      %548 = vmatpush1.bf16.msra.mxu0 0
      %549 = vmatprep.subr.bf16.mxu0 0
      %550 = vmatpush1.bf16.msra.mxu0 %v533
      %551 = vmatprep.subr.bf16.mxu0 0
      %552 = vmatpush1.bf16.msra.mxu0 %v531
      %553 = vmatprep.subr.bf16.mxu0 0
      %554 = vmatpush1.bf16.msra.mxu0 %v529
      %555 = vmatprep.subr.bf16.mxu0 0
      %556 = vmatpush1.bf16.msra.mxu0 %v527
      %557 = vmatprep.subr.bf16.mxu0 0
      %558 = vmatpush2.bf16.msra.mxu0 0
      %559 = vmatprep.subr.bf16.mxu0 0
      %560 = vmatpush2.bf16.msra.mxu0 0
      %561 = vmatprep.subr.bf16.mxu0 0
      %562 = vmatpush2.bf16.msra.mxu0 0
      %563 = vmatprep.subr.bf16.mxu0 0
      %564 = vmatpush2.bf16.msra.mxu0 0
      %565 = vmatprep.subr.bf16.mxu0 0
      %566 = vmatpush2.bf16.msra.mxu0 0
      %567 = vmatprep.subr.bf16.mxu0 0
      %568 = vmatpush2.bf16.msra.mxu0 0
      %569 = vmatprep.subr.bf16.mxu0 0
      %570 = vmatpush2.bf16.msra.mxu0 0
      %571 = vmatprep.subr.bf16.mxu0 0
      %572 = vmatpush2.bf16.msra.mxu0 0
      %573 = vmatprep.mubr.bf16.mxu0 0
      %574 = vmatmul.mubr.bf16.gmra.mxu0 %v539
      %v575 = vpop.f32.mrf.mxu0
      %v576 = vadd.f32 0.0, %v575
      %v577 = vpop.f32.mrf.mxu0
      %v578 = vpop.f32.mrf.mxu0
      %v579 = vadd.f32 0.0, %v578
      %v580 = vpop.f32.mrf.mxu0
      %581 = vdwg.mxu0
      %v582 = vadd.f32 %v516, %v576
      %v583 = vadd.f32 %v517, %v579
      %s584 = scalar_lea.vmem %s1, 48
      %v585 = vld [vmem:[%s584] sm:$0xf]
      %v586 = vld [vmem:[%s584 + $0x4] sm:$0xf]
      %v589 = vunpack.c.l.b16 %v585
      %v590 = vunpack.c.l.b16 %v586
      %v591 = vpack.c.b16 %v590, %v589
      %592 = vrot.lane.b32.xlu0 %v206, 116
      %v593 = vpop.permute.xlu0 %592
      %594 = vrot.lane.b32.xlu0 %v207, 116
      %v595 = vpop.permute.xlu0 %594
      %596 = vrot.lane.b32.xlu0 %v208, 116
      %v597 = vpop.permute.xlu0 %596
      %598 = vrot.lane.b32.xlu0 %v209, 116
      %v599 = vpop.permute.xlu0 %598
      %v605 = vsel %vm222, %v591, 0
      %607 = vmatprep.subr.bf16.mxu0 0
      %608 = vmatpush1.bf16.msra.mxu0 0
      %609 = vmatprep.subr.bf16.mxu0 0
      %610 = vmatpush1.bf16.msra.mxu0 0
      %611 = vmatprep.subr.bf16.mxu0 0
      %612 = vmatpush1.bf16.msra.mxu0 0
      %613 = vmatprep.subr.bf16.mxu0 0
      %614 = vmatpush1.bf16.msra.mxu0 0
      %615 = vmatprep.subr.bf16.mxu0 0
      %616 = vmatpush1.bf16.msra.mxu0 %v599
      %617 = vmatprep.subr.bf16.mxu0 0
      %618 = vmatpush1.bf16.msra.mxu0 %v597
      %619 = vmatprep.subr.bf16.mxu0 0
      %620 = vmatpush1.bf16.msra.mxu0 %v595
      %621 = vmatprep.subr.bf16.mxu0 0
      %622 = vmatpush1.bf16.msra.mxu0 %v593
      %623 = vmatprep.subr.bf16.mxu0 0
      %624 = vmatpush2.bf16.msra.mxu0 0
      %625 = vmatprep.subr.bf16.mxu0 0
      %626 = vmatpush2.bf16.msra.mxu0 0
      %627 = vmatprep.subr.bf16.mxu0 0
      %628 = vmatpush2.bf16.msra.mxu0 0
      %629 = vmatprep.subr.bf16.mxu0 0
      %630 = vmatpush2.bf16.msra.mxu0 0
      %631 = vmatprep.subr.bf16.mxu0 0
      %632 = vmatpush2.bf16.msra.mxu0 0
      %633 = vmatprep.subr.bf16.mxu0 0
      %634 = vmatpush2.bf16.msra.mxu0 0
      %635 = vmatprep.subr.bf16.mxu0 0
      %636 = vmatpush2.bf16.msra.mxu0 0
      %637 = vmatprep.subr.bf16.mxu0 0
      %638 = vmatpush2.bf16.msra.mxu0 0
      %639 = vmatprep.mubr.bf16.mxu0 0
      %640 = vmatmul.mubr.bf16.gmra.mxu0 %v605
      %v641 = vpop.f32.mrf.mxu0
      %v642 = vadd.f32 0.0, %v641
      %v643 = vpop.f32.mrf.mxu0
      %v644 = vpop.f32.mrf.mxu0
      %v645 = vadd.f32 0.0, %v644
      %v646 = vpop.f32.mrf.mxu0
      %647 = vdwg.mxu0
      %v648 = vadd.f32 %v582, %v642
      %v649 = vadd.f32 %v583, %v645
      %s650 = scalar_lea.vmem %s1, 56
      %v651 = vld [vmem:[%s650] sm:$0xf]
      %v652 = vld [vmem:[%s650 + $0x4] sm:$0xf]
      %v655 = vunpack.c.l.b16 %v651
      %v656 = vunpack.c.l.b16 %v652
      %v657 = vpack.c.b16 %v656, %v655
      %658 = vrot.lane.b32.xlu0 %v206, 115
      %v659 = vpop.permute.xlu0 %658
      %660 = vrot.lane.b32.xlu0 %v207, 115
      %v661 = vpop.permute.xlu0 %660
      %662 = vrot.lane.b32.xlu0 %v208, 115
      %v663 = vpop.permute.xlu0 %662
      %664 = vrot.lane.b32.xlu0 %v209, 115
      %v665 = vpop.permute.xlu0 %664
      %v671 = vsel %vm222, %v657, 0
      %673 = vmatprep.subr.bf16.mxu0 0
      %674 = vmatpush1.bf16.msra.mxu0 0
      %675 = vmatprep.subr.bf16.mxu0 0
      %676 = vmatpush1.bf16.msra.mxu0 0
      %677 = vmatprep.subr.bf16.mxu0 0
      %678 = vmatpush1.bf16.msra.mxu0 0
      %679 = vmatprep.subr.bf16.mxu0 0
      %680 = vmatpush1.bf16.msra.mxu0 0
      %681 = vmatprep.subr.bf16.mxu0 0
      %682 = vmatpush1.bf16.msra.mxu0 %v665
      %683 = vmatprep.subr.bf16.mxu0 0
      %684 = vmatpush1.bf16.msra.mxu0 %v663
      %685 = vmatprep.subr.bf16.mxu0 0
      %686 = vmatpush1.bf16.msra.mxu0 %v661
      %687 = vmatprep.subr.bf16.mxu0 0
      %688 = vmatpush1.bf16.msra.mxu0 %v659
      %689 = vmatprep.subr.bf16.mxu0 0
      %690 = vmatpush2.bf16.msra.mxu0 0
      %691 = vmatprep.subr.bf16.mxu0 0
      %692 = vmatpush2.bf16.msra.mxu0 0
      %693 = vmatprep.subr.bf16.mxu0 0
      %694 = vmatpush2.bf16.msra.mxu0 0
      %695 = vmatprep.subr.bf16.mxu0 0
      %696 = vmatpush2.bf16.msra.mxu0 0
      %697 = vmatprep.subr.bf16.mxu0 0
      %698 = vmatpush2.bf16.msra.mxu0 0
      %699 = vmatprep.subr.bf16.mxu0 0
      %700 = vmatpush2.bf16.msra.mxu0 0
      %701 = vmatprep.subr.bf16.mxu0 0
      %702 = vmatpush2.bf16.msra.mxu0 0
      %703 = vmatprep.subr.bf16.mxu0 0
      %704 = vmatpush2.bf16.msra.mxu0 0
      %705 = vmatprep.mubr.bf16.mxu0 0
      %706 = vmatmul.mubr.bf16.gmra.mxu0 %v671
      %v707 = vpop.f32.mrf.mxu0
      %v708 = vadd.f32 0.0, %v707
      %v709 = vpop.f32.mrf.mxu0
      %v710 = vpop.f32.mrf.mxu0
      %v711 = vadd.f32 0.0, %v710
      %v712 = vpop.f32.mrf.mxu0
      %713 = vdwg.mxu0
      %v714 = vadd.f32 %v648, %v708
      %v715 = vadd.f32 %v649, %v711
      %s716 = scalar_lea.vmem %s1, 64
      %v717 = vld [vmem:[%s716] sm:$0xf]
      %v718 = vld [vmem:[%s716 + $0x4] sm:$0xf]
      %v721 = vunpack.c.l.b16 %v717
      %v722 = vunpack.c.l.b16 %v718
      %v723 = vpack.c.b16 %v722, %v721
      %724 = vrot.lane.b32.xlu0 %v206, 114
      %v725 = vpop.permute.xlu0 %724
      %726 = vrot.lane.b32.xlu0 %v207, 114
      %v727 = vpop.permute.xlu0 %726
      %728 = vrot.lane.b32.xlu0 %v208, 114
      %v729 = vpop.permute.xlu0 %728
      %730 = vrot.lane.b32.xlu0 %v209, 114
      %v731 = vpop.permute.xlu0 %730
      %v737 = vsel %vm222, %v723, 0
      %739 = vmatprep.subr.bf16.mxu0 0
      %740 = vmatpush1.bf16.msra.mxu0 0
      %741 = vmatprep.subr.bf16.mxu0 0
      %742 = vmatpush1.bf16.msra.mxu0 0
      %743 = vmatprep.subr.bf16.mxu0 0
      %744 = vmatpush1.bf16.msra.mxu0 0
      %745 = vmatprep.subr.bf16.mxu0 0
      %746 = vmatpush1.bf16.msra.mxu0 0
      %747 = vmatprep.subr.bf16.mxu0 0
      %748 = vmatpush1.bf16.msra.mxu0 %v731
      %749 = vmatprep.subr.bf16.mxu0 0
      %750 = vmatpush1.bf16.msra.mxu0 %v729
      %751 = vmatprep.subr.bf16.mxu0 0
      %752 = vmatpush1.bf16.msra.mxu0 %v727
      %753 = vmatprep.subr.bf16.mxu0 0
      %754 = vmatpush1.bf16.msra.mxu0 %v725
      %755 = vmatprep.subr.bf16.mxu0 0
      %756 = vmatpush2.bf16.msra.mxu0 0
      %757 = vmatprep.subr.bf16.mxu0 0
      %758 = vmatpush2.bf16.msra.mxu0 0
      %759 = vmatprep.subr.bf16.mxu0 0
      %760 = vmatpush2.bf16.msra.mxu0 0
      %761 = vmatprep.subr.bf16.mxu0 0
      %762 = vmatpush2.bf16.msra.mxu0 0
      %763 = vmatprep.subr.bf16.mxu0 0
      %764 = vmatpush2.bf16.msra.mxu0 0
      %765 = vmatprep.subr.bf16.mxu0 0
      %766 = vmatpush2.bf16.msra.mxu0 0
      %767 = vmatprep.subr.bf16.mxu0 0
      %768 = vmatpush2.bf16.msra.mxu0 0
      %769 = vmatprep.subr.bf16.mxu0 0
      %770 = vmatpush2.bf16.msra.mxu0 0
      %771 = vmatprep.mubr.bf16.mxu0 0
      %772 = vmatmul.mubr.bf16.gmra.mxu0 %v737
      %v773 = vpop.f32.mrf.mxu0
      %v774 = vadd.f32 0.0, %v773
      %v775 = vpop.f32.mrf.mxu0
      %v776 = vpop.f32.mrf.mxu0
      %v777 = vadd.f32 0.0, %v776
      %v778 = vpop.f32.mrf.mxu0
      %779 = vdwg.mxu0
      %v780 = vadd.f32 %v714, %v774
      %v781 = vadd.f32 %v715, %v777
      %v782 = vld [vmem:[%s2] sm:$0xff]
      %v783 = vld [vmem:[%s2 + $0x8] sm:$0xff]
      %785 = vset.pattern.permute.xlu0 0
      %786 = vperm.xlu0 %785, %v782
      %v787 = vpop.permute.xlu0 %786
      %790 = vset.pattern.permute.xlu0 0
      %791 = vperm.xlu0 %790, %v783
      %v792 = vpop.permute.xlu0 %791
      %v794 = vadd.f32 %v780, %v787
      %v795 = vadd.f32 %v781, %v792
      %v796 = vmax.f32 %v794, 0.0
      %v797 = vmax.f32 %v795, 0.0
      %v798 = vpack.c.bf16 %v797, %v796
      %v800 = vunpack.c.l.b16 %v798
      %v801 = vunpack.c.h.b16 %v798
      %v802 = vpack.c.b16 %v800, %v800
      %v803 = vpack.c.b16 %v801, %v801
      %vm806 = vcmask 240640
      %807 = vst.msk [vmem:[%s170] sm:$0xf] %vm806, %v802
      %808 = vst.msk [vmem:[%s170 + $0x4] sm:$0xf] %vm806, %v803
      %p809 = scmp.lt.s32.totalorder %s14, 1
      %s810 = scalar_select %p809, %s14, 1
      %s811 = smul.addr %s810, 2
      %s812 = smul.addr %s811, 4
      %s813 = scalar_lea.vmem %s3, %s812
      // Predicated region
      $region33: #{conv_3nv1_forward.10} parent=31 // pred_check
        %p814 = pneg %p100
      $region34: #{conv_3nv1_forward.10} parent=31 // pred_check_branch
        %816 = sbr.rel (%p814) target = $region36
      $region35: #{conv_3nv1_forward.10} parent=31 // pred_region
        _
      $region36: #{conv_3nv1_forward.10} parent=31 // pred_fallthru
        _
    $region32: #{conv_3nv1_forward.10} parent=5 // pred_fallthru
      _
    %p817 = scmp.le.s32.totalorder 2, %s9
    // Predicated region
    $region37: #{conv_3nv1_forward.10} parent=5 // pred_check
      %p818 = pneg %p817
    $region38: #{conv_3nv1_forward.10} parent=5 // pred_check_branch
      %820 = sbr.rel (%p818) target = $region40
    $region39: #{conv_3nv1_forward.10} parent=5 // pred_region
      %s821 = ssub.s32 %s9, 2
      // Predicated region
      $region41: #{conv_3nv1_forward.10} parent=39 // pred_check
        %p822 = pneg %p106
      $region42: #{conv_3nv1_forward.10} parent=39 // pred_check_branch
        %824 = sbr.rel (%p822) target = $region44
      $region43: #{conv_3nv1_forward.10} parent=39 // pred_region
        %p825 = scmp.lt.s32.totalorder %s15, 1
        %s826 = scalar_select %p825, %s15, 1
        %s827 = smul.addr %s826, 2
        %s828 = smul.addr %s827, 4
        %s829 = scalar_lea.vmem %s3, %s828
      $region44: #{conv_3nv1_forward.10} parent=39 // pred_fallthru
        _
    $region40: #{conv_3nv1_forward.10} parent=5 // pred_fallthru
      _
  $region6: #{conv_3nv1_forward.10} parent=0 // loop_footer
    %s13 = sadd.s32 1, %s9
  $region7: #{conv_3nv1_forward.10} parent=0 // loop_footer_branch
    %8 = sbr.rel target = $region3
  $region8: #{conv_3nv1_forward.10} parent=0 // loop_exit
    _

// kernel: conv_3nv1_forward.9
$region0: #{conv_3nv1_forward.9}
  #allocation0 [shape = 'u32[]', space=smem, size = 0x4, offset = 0x4, fixed_abs, tag = 'smem constant byte address 0x4 - core index']
  #allocation1 [shape = 'u32[144,128]{1,0:T(1,128)}', space=vmem, size = 0x12000, scoped, tag = 'internal scratch']
  %s0 = inlined_call_operand.vmem [shape: bf16[2,32,120], index: 0, kind: input, shape index: {}]
  %s1 = inlined_call_operand.vmem [shape: bf16[9,16,32], index: 1, kind: input, shape index: {}]
  %s2 = inlined_call_operand.vmem [shape: f32[16,1], index: 2, kind: input, shape index: {}]
  %s3 = inlined_call_operand.vmem [shape: bf16[2,16,90], index: 3, kind: output, shape index: {}]
  %s4 = sld [smem:[#allocation0]]
  $region45: #{conv_3nv1_forward.9} parent=0
    _
  %s6 = ssub.s32 1, %s4
  %s7 = scalar_select 0, %s6, %s4
  loop: start=0, step=1, limit=4
  $region2: #{conv_3nv1_forward.9} parent=0 // loop_pre_header
    _
  $region3: #{conv_3nv1_forward.9} parent=0 // loop_header
    %s9 = sphi 0, %s13
    %p10 = scmp.ge.s32.totalorder %s9, 4
    %s19 = sphi 0, %s21
    %s22 = sphi 0, %s19
    %s23 = sphi 0, %s22
    %s39 = sphi 0, %s23
    %s43 = sphi 0, %s43
    %s45 = sphi 0, %s43
    %s46 = sphi 0, %s45
    %s60 = sphi 0, %s46
    %s64 = sphi 0, %s64
    %s66 = sphi 0, %s64
    %s67 = sphi 0, %s66
    %s81 = sphi 0, %s67
    %s87 = sphi 0, %s89
    %s90 = sphi 0, %s87
    %s91 = sphi 0, %s90
    %s107 = sphi 0, %s91
  $region4: #{conv_3nv1_forward.9} parent=0 // loop_header_branch
    %12 = sbr.rel (%p10) target = $region8
  $region5: #{conv_3nv1_forward.9} parent=0 // loop_body
    %s14 = ssub.s32 %s9, 1
    %s15 = ssub.s32 %s9, 2
    %s16 = sadd.s32 %s9, 1
    %s17 = ssub.s32 %s9, %s16
    %p18 = scmp.eq.s32.totalorder %s17, 0
    %s20 = sadd.s32 %s19, 1
    %s21 = scalar_select %p18, %s19, %s20
    %p24 = pneg %p18
    %p25 = scmp.eq.s32.totalorder %s9, 1
    %p26 = por %p24, %p25
    %p27 = scmp.ne.s32.totalorder %s19, %s22
    %p28 = scmp.eq.s32.totalorder %s9, 0
    %p29 = por %p27, %p28
    %p30 = scmp.ne.s32.totalorder %s19, %s22
    %p31 = scmp.eq.s32.totalorder %s14, 1
    %p32 = por %p30, %p31
    %p33 = scmp.ne.s32.totalorder %s22, %s23
    %p34 = scmp.eq.s32.totalorder %s14, 0
    %p35 = por %p33, %p34
    %p36 = scmp.ne.s32.totalorder %s22, %s23
    %p37 = scmp.eq.s32.totalorder %s15, 1
    %p38 = por %p36, %p37
    %p40 = scmp.ne.s32.totalorder %s23, %s39
    %p41 = scmp.eq.s32.totalorder %s15, 0
    %p42 = por %p40, %p41
    %s44 = sadd.s32 %s43, 1
    %p47 = scmp.eq.s32.totalorder %s9, 1
    %p48 = scmp.ne.s32.totalorder %s43, %s45
    %p49 = scmp.eq.s32.totalorder %s9, 0
    %p50 = por %p48, %p49
    %p51 = scmp.ne.s32.totalorder %s43, %s45
    %p52 = scmp.eq.s32.totalorder %s14, 1
    %p53 = por %p51, %p52
    %p54 = scmp.ne.s32.totalorder %s45, %s46
    %p55 = scmp.eq.s32.totalorder %s14, 0
    %p56 = por %p54, %p55
    %p57 = scmp.ne.s32.totalorder %s45, %s46
    %p58 = scmp.eq.s32.totalorder %s15, 1
    %p59 = por %p57, %p58
    %p61 = scmp.ne.s32.totalorder %s46, %s60
    %p62 = scmp.eq.s32.totalorder %s15, 0
    %p63 = por %p61, %p62
    %s65 = sadd.s32 %s64, 1
    %p68 = scmp.eq.s32.totalorder %s9, 1
    %p69 = scmp.ne.s32.totalorder %s64, %s66
    %p70 = scmp.eq.s32.totalorder %s9, 0
    %p71 = por %p69, %p70
    %p72 = scmp.ne.s32.totalorder %s64, %s66
    %p73 = scmp.eq.s32.totalorder %s14, 1
    %p74 = por %p72, %p73
    %p75 = scmp.ne.s32.totalorder %s66, %s67
    %p76 = scmp.eq.s32.totalorder %s14, 0
    %p77 = por %p75, %p76
    %p78 = scmp.ne.s32.totalorder %s66, %s67
    %p79 = scmp.eq.s32.totalorder %s15, 1
    %p80 = por %p78, %p79
    %p82 = scmp.ne.s32.totalorder %s67, %s81
    %p83 = scmp.eq.s32.totalorder %s15, 0
    %p84 = por %p82, %p83
    %s85 = ssub.s32 %s9, %s16
    %p86 = scmp.eq.s32.totalorder %s85, 0
    %s88 = sadd.s32 %s87, 1
    %s89 = scalar_select %p86, %s87, %s88
    %p92 = pneg %p86
    %p93 = scmp.eq.s32.totalorder %s9, 1
    %p94 = por %p92, %p93
    %p95 = scmp.ne.s32.totalorder %s87, %s90
    %p96 = scmp.eq.s32.totalorder %s9, 0
    %p97 = por %p95, %p96
    %p98 = scmp.ne.s32.totalorder %s87, %s90
    %p99 = scmp.eq.s32.totalorder %s14, 1
    %p100 = por %p98, %p99
    %p101 = scmp.ne.s32.totalorder %s90, %s91
    %p102 = scmp.eq.s32.totalorder %s14, 0
    %p103 = por %p101, %p102
    %p104 = scmp.ne.s32.totalorder %s90, %s91
    %p105 = scmp.eq.s32.totalorder %s15, 1
    %p106 = por %p104, %p105
    %p108 = scmp.ne.s32.totalorder %s91, %s107
    %p109 = scmp.eq.s32.totalorder %s15, 0
    %p110 = por %p108, %p109
    %p111 = scmp.le.s32.totalorder 1, %s9
    %p112 = scmp.lt.s32.totalorder %s9, 3
    %p113 = pnand %p111, %p112
    %p114 = pneg %p113
    // Predicated region
    $region9: #{conv_3nv1_forward.9} parent=5 // pred_check
      _
    $region10: #{conv_3nv1_forward.9} parent=5 // pred_check_branch
      %116 = sbr.rel (%p113) target = $region12
    $region11: #{conv_3nv1_forward.9} parent=5 // pred_region
      %s117 = ssub.s32 %s9, 1
      // Predicated region
      $region13: #{conv_3nv1_forward.9} parent=11 // pred_check
        %p118 = pneg %p56
      $region14: #{conv_3nv1_forward.9} parent=11 // pred_check_branch
        %120 = sbr.rel (%p118) target = $region16
      $region15: #{conv_3nv1_forward.9} parent=11 // pred_region
        _
      $region16: #{conv_3nv1_forward.9} parent=11 // pred_fallthru
        _
      // Predicated region
      $region17: #{conv_3nv1_forward.9} parent=11 // pred_check
        %p121 = pneg %p77
      $region18: #{conv_3nv1_forward.9} parent=11 // pred_check_branch
        %123 = sbr.rel (%p121) target = $region20
      $region19: #{conv_3nv1_forward.9} parent=11 // pred_region
        _
      $region20: #{conv_3nv1_forward.9} parent=11 // pred_fallthru
        _
    $region12: #{conv_3nv1_forward.9} parent=5 // pred_fallthru
      _
    %p124 = scmp.lt.s32.totalorder %s9, 2
    // Predicated region
    $region21: #{conv_3nv1_forward.9} parent=5 // pred_check
      %p125 = pneg %p124
    $region22: #{conv_3nv1_forward.9} parent=5 // pred_check_branch
      %127 = sbr.rel (%p125) target = $region24
    $region23: #{conv_3nv1_forward.9} parent=5 // pred_region
      // Predicated region
      $region25: #{conv_3nv1_forward.9} parent=23 // pred_check
        %p128 = pneg %p29
      $region26: #{conv_3nv1_forward.9} parent=23 // pred_check_branch
        %130 = sbr.rel (%p128) target = $region28
      $region27: #{conv_3nv1_forward.9} parent=23 // pred_region
        %p131 = scmp.lt.s32.totalorder %s9, 1
        %s132 = scalar_select %p131, %s9, 1
        %s133 = smul.addr %s132, 4
        %s134 = smul.addr %s133, 4
        %s135 = scalar_lea.vmem %s0, %s134
      $region28: #{conv_3nv1_forward.9} parent=23 // pred_fallthru
        _
    $region24: #{conv_3nv1_forward.9} parent=5 // pred_fallthru
      _
    %p136 = scmp.le.s32.totalorder 1, %s9
    %p137 = scmp.lt.s32.totalorder %s9, 3
    %p138 = pnand %p136, %p137
    %p139 = pneg %p138
    // Predicated region
    $region29: #{conv_3nv1_forward.9} parent=5 // pred_check
      _
    $region30: #{conv_3nv1_forward.9} parent=5 // pred_check_branch
      %141 = sbr.rel (%p138) target = $region32
    $region31: #{conv_3nv1_forward.9} parent=5 // pred_region
      %s142 = ssub.s32 %s9, 1
      %p143 = scmp.lt.s32.totalorder %s14, 1
      %s144 = scalar_select %p143, %s14, 1
      %s145 = smul.addr %s144, 4
      %s146 = smul.addr %s145, 4
      %s147 = scalar_lea.vmem %s0, %s146
      %p148 = pneg %p35
      %p149 = pneg %p32
      %p150 = pneg %p56
      %p151 = pneg %p53
      %p152 = pneg %p77
      %p153 = pneg %p74
      %p154 = pneg %p103
      %p155 = pneg %p100
      %p156 = scmp.lt.s32.totalorder %s14, 1
      %s157 = scalar_select %p156, %s14, 1
      %s158 = smul.addr %s157, 2
      %s159 = smul.addr %s158, 4
      %s160 = scalar_lea.vmem %s3, %s159
      %p161 = scmp.lt.s32.totalorder %s14, 1
      %s162 = scalar_select %p161, %s14, 1
      %s163 = smul.addr %s162, 4
      %s164 = smul.addr %s163, 4
      %s165 = scalar_lea.vmem %s0, %s164
      %p166 = scmp.lt.s32.totalorder %s14, 1
      %s167 = scalar_select %p166, %s14, 1
      %s168 = smul.addr %s167, 2
      %s169 = smul.addr %s168, 4
      %s170 = scalar_lea.vmem %s3, %s169
      %v172 = vld [vmem:[%s165] sm:$0xf]
      %v173 = vld [vmem:[%s165 + $0x4] sm:$0xf]
      %v174 = vld [vmem:[%s165 + $0x8] sm:$0xf]
      %v175 = vld [vmem:[%s165 + $0xc] sm:$0xf]
      %v176 = vld [vmem:[%s1] sm:$0xf]
      %v177 = vld [vmem:[%s1 + $0x4] sm:$0xf]
      %s178 = scalar_lea.vmem %s1, 8
      %v179 = vld [vmem:[%s178] sm:$0xf]
      %v180 = vld [vmem:[%s178 + $0x4] sm:$0xf]
      %v183 = vunpack.c.l.b16 %v179
      %v184 = vunpack.c.l.b16 %v180
      %v185 = vpack.c.b16 %v184, %v183
      %v190 = vunpack.c.l.b16 %v172
      %v191 = vunpack.c.l.b16 %v173
      %v192 = vunpack.c.l.b16 %v174
      %v193 = vunpack.c.l.b16 %v175
      %v194 = vpack.c.b16 %v191, %v190
      %v195 = vpack.c.b16 %v193, %v192
      %196 = vrot.lane.b32.xlu0 %v194, 127
      %v197 = vpop.permute.xlu0 %196
      %198 = vrot.lane.b32.xlu0 %v195, 127
      %v199 = vpop.permute.xlu0 %198
      %vm202 = vcmask 261120
      %v204 = vsel %vm202, %v185, 0
      %206 = vmatprep.subr.bf16.mxu0 0
      %207 = vmatpush1.bf16.msra.mxu0 0
      %208 = vmatprep.subr.bf16.mxu0 0
      %209 = vmatpush1.bf16.msra.mxu0 0
      %210 = vmatprep.subr.bf16.mxu0 0
      %211 = vmatpush1.bf16.msra.mxu0 0
      %212 = vmatprep.subr.bf16.mxu0 0
      %213 = vmatpush1.bf16.msra.mxu0 0
      %214 = vmatprep.subr.bf16.mxu0 0
      %215 = vmatpush1.bf16.msra.mxu0 0
      %216 = vmatprep.subr.bf16.mxu0 0
      %217 = vmatpush1.bf16.msra.mxu0 0
      %218 = vmatprep.subr.bf16.mxu0 0
      %219 = vmatpush1.bf16.msra.mxu0 %v199
      %220 = vmatprep.subr.bf16.mxu0 0
      %221 = vmatpush1.bf16.msra.mxu0 %v197
      %222 = vmatprep.subr.bf16.mxu0 0
      %223 = vmatpush2.bf16.msra.mxu0 0
      %224 = vmatprep.subr.bf16.mxu0 0
      %225 = vmatpush2.bf16.msra.mxu0 0
      %226 = vmatprep.subr.bf16.mxu0 0
      %227 = vmatpush2.bf16.msra.mxu0 0
      %228 = vmatprep.subr.bf16.mxu0 0
      %229 = vmatpush2.bf16.msra.mxu0 0
      %230 = vmatprep.subr.bf16.mxu0 0
      %231 = vmatpush2.bf16.msra.mxu0 0
      %232 = vmatprep.subr.bf16.mxu0 0
      %233 = vmatpush2.bf16.msra.mxu0 0
      %234 = vmatprep.subr.bf16.mxu0 0
      %235 = vmatpush2.bf16.msra.mxu0 0
      %236 = vmatprep.subr.bf16.mxu0 0
      %237 = vmatpush2.bf16.msra.mxu0 0
      %238 = vmatprep.mubr.bf16.mxu0 0
      %239 = vmatmul.mubr.bf16.gmra.mxu0 %v204
      %v240 = vpop.f32.mrf.mxu0
      %v241 = vadd.f32 0.0, %v240
      %v242 = vpop.f32.mrf.mxu0
      %v243 = vpop.f32.mrf.mxu0
      %v244 = vadd.f32 0.0, %v243
      %v245 = vpop.f32.mrf.mxu0
      %246 = vdwg.mxu0
      %v249 = vunpack.c.l.b16 %v176
      %v250 = vunpack.c.l.b16 %v177
      %v251 = vpack.c.b16 %v250, %v249
      %v255 = vsel %vm202, %v251, 0
      %257 = vmatprep.subr.bf16.mxu0 0
      %258 = vmatpush1.bf16.msra.mxu0 0
      %259 = vmatprep.subr.bf16.mxu0 0
      %260 = vmatpush1.bf16.msra.mxu0 0
      %261 = vmatprep.subr.bf16.mxu0 0
      %262 = vmatpush1.bf16.msra.mxu0 0
      %263 = vmatprep.subr.bf16.mxu0 0
      %264 = vmatpush1.bf16.msra.mxu0 0
      %265 = vmatprep.subr.bf16.mxu0 0
      %266 = vmatpush1.bf16.msra.mxu0 0
      %267 = vmatprep.subr.bf16.mxu0 0
      %268 = vmatpush1.bf16.msra.mxu0 0
      %269 = vmatprep.subr.bf16.mxu0 0
      %270 = vmatpush1.bf16.msra.mxu0 %v195
      %271 = vmatprep.subr.bf16.mxu0 0
      %272 = vmatpush1.bf16.msra.mxu0 %v194
      %273 = vmatprep.subr.bf16.mxu0 0
      %274 = vmatpush2.bf16.msra.mxu0 0
      %275 = vmatprep.subr.bf16.mxu0 0
      %276 = vmatpush2.bf16.msra.mxu0 0
      %277 = vmatprep.subr.bf16.mxu0 0
      %278 = vmatpush2.bf16.msra.mxu0 0
      %279 = vmatprep.subr.bf16.mxu0 0
      %280 = vmatpush2.bf16.msra.mxu0 0
      %281 = vmatprep.subr.bf16.mxu0 0
      %282 = vmatpush2.bf16.msra.mxu0 0
      %283 = vmatprep.subr.bf16.mxu0 0
      %284 = vmatpush2.bf16.msra.mxu0 0
      %285 = vmatprep.subr.bf16.mxu0 0
      %286 = vmatpush2.bf16.msra.mxu0 0
      %287 = vmatprep.subr.bf16.mxu0 0
      %288 = vmatpush2.bf16.msra.mxu0 0
      %289 = vmatprep.mubr.bf16.mxu0 0
      %290 = vmatmul.mubr.bf16.gmra.mxu0 %v255
      %v291 = vpop.f32.mrf.mxu0
      %v292 = vadd.f32 %v241, %v291
      %v293 = vpop.f32.mrf.mxu0
      %v294 = vpop.f32.mrf.mxu0
      %v295 = vadd.f32 %v244, %v294
      %v296 = vpop.f32.mrf.mxu0
      %297 = vdwg.mxu0
      %s298 = scalar_lea.vmem %s1, 16
      %v299 = vld [vmem:[%s298] sm:$0xf]
      %v300 = vld [vmem:[%s298 + $0x4] sm:$0xf]
      %v303 = vunpack.c.l.b16 %v299
      %v304 = vunpack.c.l.b16 %v300
      %v305 = vpack.c.b16 %v304, %v303
      %306 = vrot.lane.b32.xlu0 %v194, 126
      %v307 = vpop.permute.xlu0 %306
      %308 = vrot.lane.b32.xlu0 %v195, 126
      %v309 = vpop.permute.xlu0 %308
      %v313 = vsel %vm202, %v305, 0
      %315 = vmatprep.subr.bf16.mxu0 0
      %316 = vmatpush1.bf16.msra.mxu0 0
      %317 = vmatprep.subr.bf16.mxu0 0
      %318 = vmatpush1.bf16.msra.mxu0 0
      %319 = vmatprep.subr.bf16.mxu0 0
      %320 = vmatpush1.bf16.msra.mxu0 0
      %321 = vmatprep.subr.bf16.mxu0 0
      %322 = vmatpush1.bf16.msra.mxu0 0
      %323 = vmatprep.subr.bf16.mxu0 0
      %324 = vmatpush1.bf16.msra.mxu0 0
      %325 = vmatprep.subr.bf16.mxu0 0
      %326 = vmatpush1.bf16.msra.mxu0 0
      %327 = vmatprep.subr.bf16.mxu0 0
      %328 = vmatpush1.bf16.msra.mxu0 %v309
      %329 = vmatprep.subr.bf16.mxu0 0
      %330 = vmatpush1.bf16.msra.mxu0 %v307
      %331 = vmatprep.subr.bf16.mxu0 0
      %332 = vmatpush2.bf16.msra.mxu0 0
      %333 = vmatprep.subr.bf16.mxu0 0
      %334 = vmatpush2.bf16.msra.mxu0 0
      %335 = vmatprep.subr.bf16.mxu0 0
      %336 = vmatpush2.bf16.msra.mxu0 0
      %337 = vmatprep.subr.bf16.mxu0 0
      %338 = vmatpush2.bf16.msra.mxu0 0
      %339 = vmatprep.subr.bf16.mxu0 0
      %340 = vmatpush2.bf16.msra.mxu0 0
      %341 = vmatprep.subr.bf16.mxu0 0
      %342 = vmatpush2.bf16.msra.mxu0 0
      %343 = vmatprep.subr.bf16.mxu0 0
      %344 = vmatpush2.bf16.msra.mxu0 0
      %345 = vmatprep.subr.bf16.mxu0 0
      %346 = vmatpush2.bf16.msra.mxu0 0
      %347 = vmatprep.mubr.bf16.mxu0 0
      %348 = vmatmul.mubr.bf16.gmra.mxu0 %v313
      %v349 = vpop.f32.mrf.mxu0
      %v350 = vadd.f32 0.0, %v349
      %v351 = vpop.f32.mrf.mxu0
      %v352 = vpop.f32.mrf.mxu0
      %v353 = vadd.f32 0.0, %v352
      %v354 = vpop.f32.mrf.mxu0
      %355 = vdwg.mxu0
      %v356 = vadd.f32 %v292, %v350
      %v357 = vadd.f32 %v295, %v353
      %s358 = scalar_lea.vmem %s1, 24
      %v359 = vld [vmem:[%s358] sm:$0xf]
      %v360 = vld [vmem:[%s358 + $0x4] sm:$0xf]
      %v363 = vunpack.c.l.b16 %v359
      %v364 = vunpack.c.l.b16 %v360
      %v365 = vpack.c.b16 %v364, %v363
      %366 = vrot.lane.b32.xlu0 %v194, 118
      %v367 = vpop.permute.xlu0 %366
      %368 = vrot.lane.b32.xlu0 %v195, 118
      %v369 = vpop.permute.xlu0 %368
      %v373 = vsel %vm202, %v365, 0
      %375 = vmatprep.subr.bf16.mxu0 0
      %376 = vmatpush1.bf16.msra.mxu0 0
      %377 = vmatprep.subr.bf16.mxu0 0
      %378 = vmatpush1.bf16.msra.mxu0 0
      %379 = vmatprep.subr.bf16.mxu0 0
      %380 = vmatpush1.bf16.msra.mxu0 0
      %381 = vmatprep.subr.bf16.mxu0 0
      %382 = vmatpush1.bf16.msra.mxu0 0
      %383 = vmatprep.subr.bf16.mxu0 0
      %384 = vmatpush1.bf16.msra.mxu0 0
      %385 = vmatprep.subr.bf16.mxu0 0
      %386 = vmatpush1.bf16.msra.mxu0 0
      %387 = vmatprep.subr.bf16.mxu0 0
      %388 = vmatpush1.bf16.msra.mxu0 %v369
      %389 = vmatprep.subr.bf16.mxu0 0
      %390 = vmatpush1.bf16.msra.mxu0 %v367
      %391 = vmatprep.subr.bf16.mxu0 0
      %392 = vmatpush2.bf16.msra.mxu0 0
      %393 = vmatprep.subr.bf16.mxu0 0
      %394 = vmatpush2.bf16.msra.mxu0 0
      %395 = vmatprep.subr.bf16.mxu0 0
      %396 = vmatpush2.bf16.msra.mxu0 0
      %397 = vmatprep.subr.bf16.mxu0 0
      %398 = vmatpush2.bf16.msra.mxu0 0
      %399 = vmatprep.subr.bf16.mxu0 0
      %400 = vmatpush2.bf16.msra.mxu0 0
      %401 = vmatprep.subr.bf16.mxu0 0
      %402 = vmatpush2.bf16.msra.mxu0 0
      %403 = vmatprep.subr.bf16.mxu0 0
      %404 = vmatpush2.bf16.msra.mxu0 0
      %405 = vmatprep.subr.bf16.mxu0 0
      %406 = vmatpush2.bf16.msra.mxu0 0
      %407 = vmatprep.mubr.bf16.mxu0 0
      %408 = vmatmul.mubr.bf16.gmra.mxu0 %v373
      %v409 = vpop.f32.mrf.mxu0
      %v410 = vadd.f32 0.0, %v409
      %v411 = vpop.f32.mrf.mxu0
      %v412 = vpop.f32.mrf.mxu0
      %v413 = vadd.f32 0.0, %v412
      %v414 = vpop.f32.mrf.mxu0
      %415 = vdwg.mxu0
      %v416 = vadd.f32 %v356, %v410
      %v417 = vadd.f32 %v357, %v413
      %s418 = scalar_lea.vmem %s1, 32
      %v419 = vld [vmem:[%s418] sm:$0xf]
      %v420 = vld [vmem:[%s418 + $0x4] sm:$0xf]
      %v423 = vunpack.c.l.b16 %v419
      %v424 = vunpack.c.l.b16 %v420
      %v425 = vpack.c.b16 %v424, %v423
      %426 = vrot.lane.b32.xlu0 %v194, 117
      %v427 = vpop.permute.xlu0 %426
      %428 = vrot.lane.b32.xlu0 %v195, 117
      %v429 = vpop.permute.xlu0 %428
      %v433 = vsel %vm202, %v425, 0
      %435 = vmatprep.subr.bf16.mxu0 0
      %436 = vmatpush1.bf16.msra.mxu0 0
      %437 = vmatprep.subr.bf16.mxu0 0
      %438 = vmatpush1.bf16.msra.mxu0 0
      %439 = vmatprep.subr.bf16.mxu0 0
      %440 = vmatpush1.bf16.msra.mxu0 0
      %441 = vmatprep.subr.bf16.mxu0 0
      %442 = vmatpush1.bf16.msra.mxu0 0
      %443 = vmatprep.subr.bf16.mxu0 0
      %444 = vmatpush1.bf16.msra.mxu0 0
      %445 = vmatprep.subr.bf16.mxu0 0
      %446 = vmatpush1.bf16.msra.mxu0 0
      %447 = vmatprep.subr.bf16.mxu0 0
      %448 = vmatpush1.bf16.msra.mxu0 %v429
      %449 = vmatprep.subr.bf16.mxu0 0
      %450 = vmatpush1.bf16.msra.mxu0 %v427
      %451 = vmatprep.subr.bf16.mxu0 0
      %452 = vmatpush2.bf16.msra.mxu0 0
      %453 = vmatprep.subr.bf16.mxu0 0
      %454 = vmatpush2.bf16.msra.mxu0 0
      %455 = vmatprep.subr.bf16.mxu0 0
      %456 = vmatpush2.bf16.msra.mxu0 0
      %457 = vmatprep.subr.bf16.mxu0 0
      %458 = vmatpush2.bf16.msra.mxu0 0
      %459 = vmatprep.subr.bf16.mxu0 0
      %460 = vmatpush2.bf16.msra.mxu0 0
      %461 = vmatprep.subr.bf16.mxu0 0
      %462 = vmatpush2.bf16.msra.mxu0 0
      %463 = vmatprep.subr.bf16.mxu0 0
      %464 = vmatpush2.bf16.msra.mxu0 0
      %465 = vmatprep.subr.bf16.mxu0 0
      %466 = vmatpush2.bf16.msra.mxu0 0
      %467 = vmatprep.mubr.bf16.mxu0 0
      %468 = vmatmul.mubr.bf16.gmra.mxu0 %v433
      %v469 = vpop.f32.mrf.mxu0
      %v470 = vadd.f32 0.0, %v469
      %v471 = vpop.f32.mrf.mxu0
      %v472 = vpop.f32.mrf.mxu0
      %v473 = vadd.f32 0.0, %v472
      %v474 = vpop.f32.mrf.mxu0
      %475 = vdwg.mxu0
      %v476 = vadd.f32 %v416, %v470
      %v477 = vadd.f32 %v417, %v473
      %s478 = scalar_lea.vmem %s1, 40
      %v479 = vld [vmem:[%s478] sm:$0xf]
      %v480 = vld [vmem:[%s478 + $0x4] sm:$0xf]
      %v483 = vunpack.c.l.b16 %v479
      %v484 = vunpack.c.l.b16 %v480
      %v485 = vpack.c.b16 %v484, %v483
      %486 = vrot.lane.b32.xlu0 %v194, 116
      %v487 = vpop.permute.xlu0 %486
      %488 = vrot.lane.b32.xlu0 %v195, 116
      %v489 = vpop.permute.xlu0 %488
      %v493 = vsel %vm202, %v485, 0
      %495 = vmatprep.subr.bf16.mxu0 0
      %496 = vmatpush1.bf16.msra.mxu0 0
      %497 = vmatprep.subr.bf16.mxu0 0
      %498 = vmatpush1.bf16.msra.mxu0 0
      %499 = vmatprep.subr.bf16.mxu0 0
      %500 = vmatpush1.bf16.msra.mxu0 0
      %501 = vmatprep.subr.bf16.mxu0 0
      %502 = vmatpush1.bf16.msra.mxu0 0
      %503 = vmatprep.subr.bf16.mxu0 0
      %504 = vmatpush1.bf16.msra.mxu0 0
      %505 = vmatprep.subr.bf16.mxu0 0
      %506 = vmatpush1.bf16.msra.mxu0 0
      %507 = vmatprep.subr.bf16.mxu0 0
      %508 = vmatpush1.bf16.msra.mxu0 %v489
      %509 = vmatprep.subr.bf16.mxu0 0
      %510 = vmatpush1.bf16.msra.mxu0 %v487
      %511 = vmatprep.subr.bf16.mxu0 0
      %512 = vmatpush2.bf16.msra.mxu0 0
      %513 = vmatprep.subr.bf16.mxu0 0
      %514 = vmatpush2.bf16.msra.mxu0 0
      %515 = vmatprep.subr.bf16.mxu0 0
      %516 = vmatpush2.bf16.msra.mxu0 0
      %517 = vmatprep.subr.bf16.mxu0 0
      %518 = vmatpush2.bf16.msra.mxu0 0
      %519 = vmatprep.subr.bf16.mxu0 0
      %520 = vmatpush2.bf16.msra.mxu0 0
      %521 = vmatprep.subr.bf16.mxu0 0
      %522 = vmatpush2.bf16.msra.mxu0 0
      %523 = vmatprep.subr.bf16.mxu0 0
      %524 = vmatpush2.bf16.msra.mxu0 0
      %525 = vmatprep.subr.bf16.mxu0 0
      %526 = vmatpush2.bf16.msra.mxu0 0
      %527 = vmatprep.mubr.bf16.mxu0 0
      %528 = vmatmul.mubr.bf16.gmra.mxu0 %v493
      %v529 = vpop.f32.mrf.mxu0
      %v530 = vadd.f32 0.0, %v529
      %v531 = vpop.f32.mrf.mxu0
      %v532 = vpop.f32.mrf.mxu0
      %v533 = vadd.f32 0.0, %v532
      %v534 = vpop.f32.mrf.mxu0
      %535 = vdwg.mxu0
      %v536 = vadd.f32 %v476, %v530
      %v537 = vadd.f32 %v477, %v533
      %s538 = scalar_lea.vmem %s1, 48
      %v539 = vld [vmem:[%s538] sm:$0xf]
      %v540 = vld [vmem:[%s538 + $0x4] sm:$0xf]
      %v543 = vunpack.c.l.b16 %v539
      %v544 = vunpack.c.l.b16 %v540
      %v545 = vpack.c.b16 %v544, %v543
      %546 = vrot.lane.b32.xlu0 %v194, 108
      %v547 = vpop.permute.xlu0 %546
      %548 = vrot.lane.b32.xlu0 %v195, 108
      %v549 = vpop.permute.xlu0 %548
      %v553 = vsel %vm202, %v545, 0
      %555 = vmatprep.subr.bf16.mxu0 0
      %556 = vmatpush1.bf16.msra.mxu0 0
      %557 = vmatprep.subr.bf16.mxu0 0
      %558 = vmatpush1.bf16.msra.mxu0 0
      %559 = vmatprep.subr.bf16.mxu0 0
      %560 = vmatpush1.bf16.msra.mxu0 0
      %561 = vmatprep.subr.bf16.mxu0 0
      %562 = vmatpush1.bf16.msra.mxu0 0
      %563 = vmatprep.subr.bf16.mxu0 0
      %564 = vmatpush1.bf16.msra.mxu0 0
      %565 = vmatprep.subr.bf16.mxu0 0
      %566 = vmatpush1.bf16.msra.mxu0 0
      %567 = vmatprep.subr.bf16.mxu0 0
      %568 = vmatpush1.bf16.msra.mxu0 %v549
      %569 = vmatprep.subr.bf16.mxu0 0
      %570 = vmatpush1.bf16.msra.mxu0 %v547
      %571 = vmatprep.subr.bf16.mxu0 0
      %572 = vmatpush2.bf16.msra.mxu0 0
      %573 = vmatprep.subr.bf16.mxu0 0
      %574 = vmatpush2.bf16.msra.mxu0 0
      %575 = vmatprep.subr.bf16.mxu0 0
      %576 = vmatpush2.bf16.msra.mxu0 0
      %577 = vmatprep.subr.bf16.mxu0 0
      %578 = vmatpush2.bf16.msra.mxu0 0
      %579 = vmatprep.subr.bf16.mxu0 0
      %580 = vmatpush2.bf16.msra.mxu0 0
      %581 = vmatprep.subr.bf16.mxu0 0
      %582 = vmatpush2.bf16.msra.mxu0 0
      %583 = vmatprep.subr.bf16.mxu0 0
      %584 = vmatpush2.bf16.msra.mxu0 0
      %585 = vmatprep.subr.bf16.mxu0 0
      %586 = vmatpush2.bf16.msra.mxu0 0
      %587 = vmatprep.mubr.bf16.mxu0 0
      %588 = vmatmul.mubr.bf16.gmra.mxu0 %v553
      %v589 = vpop.f32.mrf.mxu0
      %v590 = vadd.f32 0.0, %v589
      %v591 = vpop.f32.mrf.mxu0
      %v592 = vpop.f32.mrf.mxu0
      %v593 = vadd.f32 0.0, %v592
      %v594 = vpop.f32.mrf.mxu0
      %595 = vdwg.mxu0
      %v596 = vadd.f32 %v536, %v590
      %v597 = vadd.f32 %v537, %v593
      %s598 = scalar_lea.vmem %s1, 56
      %v599 = vld [vmem:[%s598] sm:$0xf]
      %v600 = vld [vmem:[%s598 + $0x4] sm:$0xf]
      %v603 = vunpack.c.l.b16 %v599
      %v604 = vunpack.c.l.b16 %v600
      %v605 = vpack.c.b16 %v604, %v603
      %606 = vrot.lane.b32.xlu0 %v194, 107
      %v607 = vpop.permute.xlu0 %606
      %608 = vrot.lane.b32.xlu0 %v195, 107
      %v609 = vpop.permute.xlu0 %608
      %v613 = vsel %vm202, %v605, 0
      %615 = vmatprep.subr.bf16.mxu0 0
      %616 = vmatpush1.bf16.msra.mxu0 0
      %617 = vmatprep.subr.bf16.mxu0 0
      %618 = vmatpush1.bf16.msra.mxu0 0
      %619 = vmatprep.subr.bf16.mxu0 0
      %620 = vmatpush1.bf16.msra.mxu0 0
      %621 = vmatprep.subr.bf16.mxu0 0
      %622 = vmatpush1.bf16.msra.mxu0 0
      %623 = vmatprep.subr.bf16.mxu0 0
      %624 = vmatpush1.bf16.msra.mxu0 0
      %625 = vmatprep.subr.bf16.mxu0 0
      %626 = vmatpush1.bf16.msra.mxu0 0
      %627 = vmatprep.subr.bf16.mxu0 0
      %628 = vmatpush1.bf16.msra.mxu0 %v609
      %629 = vmatprep.subr.bf16.mxu0 0
      %630 = vmatpush1.bf16.msra.mxu0 %v607
      %631 = vmatprep.subr.bf16.mxu0 0
      %632 = vmatpush2.bf16.msra.mxu0 0
      %633 = vmatprep.subr.bf16.mxu0 0
      %634 = vmatpush2.bf16.msra.mxu0 0
      %635 = vmatprep.subr.bf16.mxu0 0
      %636 = vmatpush2.bf16.msra.mxu0 0
      %637 = vmatprep.subr.bf16.mxu0 0
      %638 = vmatpush2.bf16.msra.mxu0 0
      %639 = vmatprep.subr.bf16.mxu0 0
      %640 = vmatpush2.bf16.msra.mxu0 0
      %641 = vmatprep.subr.bf16.mxu0 0
      %642 = vmatpush2.bf16.msra.mxu0 0
      %643 = vmatprep.subr.bf16.mxu0 0
      %644 = vmatpush2.bf16.msra.mxu0 0
      %645 = vmatprep.subr.bf16.mxu0 0
      %646 = vmatpush2.bf16.msra.mxu0 0
      %647 = vmatprep.mubr.bf16.mxu0 0
      %648 = vmatmul.mubr.bf16.gmra.mxu0 %v613
      %v649 = vpop.f32.mrf.mxu0
      %v650 = vadd.f32 0.0, %v649
      %v651 = vpop.f32.mrf.mxu0
      %v652 = vpop.f32.mrf.mxu0
      %v653 = vadd.f32 0.0, %v652
      %v654 = vpop.f32.mrf.mxu0
      %655 = vdwg.mxu0
      %v656 = vadd.f32 %v596, %v650
      %v657 = vadd.f32 %v597, %v653
      %s658 = scalar_lea.vmem %s1, 64
      %v659 = vld [vmem:[%s658] sm:$0xf]
      %v660 = vld [vmem:[%s658 + $0x4] sm:$0xf]
      %v663 = vunpack.c.l.b16 %v659
      %v664 = vunpack.c.l.b16 %v660
      %v665 = vpack.c.b16 %v664, %v663
      %666 = vrot.lane.b32.xlu0 %v194, 106
      %v667 = vpop.permute.xlu0 %666
      %668 = vrot.lane.b32.xlu0 %v195, 106
      %v669 = vpop.permute.xlu0 %668
      %v673 = vsel %vm202, %v665, 0
      %675 = vmatprep.subr.bf16.mxu0 0
      %676 = vmatpush1.bf16.msra.mxu0 0
      %677 = vmatprep.subr.bf16.mxu0 0
      %678 = vmatpush1.bf16.msra.mxu0 0
      %679 = vmatprep.subr.bf16.mxu0 0
      %680 = vmatpush1.bf16.msra.mxu0 0
      %681 = vmatprep.subr.bf16.mxu0 0
      %682 = vmatpush1.bf16.msra.mxu0 0
      %683 = vmatprep.subr.bf16.mxu0 0
      %684 = vmatpush1.bf16.msra.mxu0 0
      %685 = vmatprep.subr.bf16.mxu0 0
      %686 = vmatpush1.bf16.msra.mxu0 0
      %687 = vmatprep.subr.bf16.mxu0 0
      %688 = vmatpush1.bf16.msra.mxu0 %v669
      %689 = vmatprep.subr.bf16.mxu0 0
      %690 = vmatpush1.bf16.msra.mxu0 %v667
      %691 = vmatprep.subr.bf16.mxu0 0
      %692 = vmatpush2.bf16.msra.mxu0 0
      %693 = vmatprep.subr.bf16.mxu0 0
      %694 = vmatpush2.bf16.msra.mxu0 0
      %695 = vmatprep.subr.bf16.mxu0 0
      %696 = vmatpush2.bf16.msra.mxu0 0
      %697 = vmatprep.subr.bf16.mxu0 0
      %698 = vmatpush2.bf16.msra.mxu0 0
      %699 = vmatprep.subr.bf16.mxu0 0
      %700 = vmatpush2.bf16.msra.mxu0 0
      %701 = vmatprep.subr.bf16.mxu0 0
      %702 = vmatpush2.bf16.msra.mxu0 0
      %703 = vmatprep.subr.bf16.mxu0 0
      %704 = vmatpush2.bf16.msra.mxu0 0
      %705 = vmatprep.subr.bf16.mxu0 0
      %706 = vmatpush2.bf16.msra.mxu0 0
      %707 = vmatprep.mubr.bf16.mxu0 0
      %708 = vmatmul.mubr.bf16.gmra.mxu0 %v673
      %v709 = vpop.f32.mrf.mxu0
      %v710 = vadd.f32 0.0, %v709
      %v711 = vpop.f32.mrf.mxu0
      %v712 = vpop.f32.mrf.mxu0
      %v713 = vadd.f32 0.0, %v712
      %v714 = vpop.f32.mrf.mxu0
      %715 = vdwg.mxu0
      %v716 = vadd.f32 %v656, %v710
      %v717 = vadd.f32 %v657, %v713
      %v718 = vld [vmem:[%s2] sm:$0xff]
      %v719 = vld [vmem:[%s2 + $0x8] sm:$0xff]
      %721 = vset.pattern.permute.xlu0 0
      %722 = vperm.xlu0 %721, %v718
      %v723 = vpop.permute.xlu0 %722
      %726 = vset.pattern.permute.xlu0 0
      %727 = vperm.xlu0 %726, %v719
      %v728 = vpop.permute.xlu0 %727
      %v730 = vadd.f32 %v716, %v723
      %v731 = vadd.f32 %v717, %v728
      %v732 = vmax.f32 %v730, 0.0
      %v733 = vmax.f32 %v731, 0.0
      %v734 = vpack.c.bf16 %v733, %v732
      %v736 = vunpack.c.l.b16 %v734
      %v737 = vunpack.c.h.b16 %v734
      %v738 = vpack.c.b16 %v736, %v736
      %v739 = vpack.c.b16 %v737, %v737
      %vm742 = vcmask 732160
      %743 = vst.msk [vmem:[%s170] sm:$0xf] %vm742, %v738
      %744 = vst.msk [vmem:[%s170 + $0x4] sm:$0xf] %vm742, %v739
      %p745 = scmp.lt.s32.totalorder %s14, 1
      %s746 = scalar_select %p745, %s14, 1
      %s747 = smul.addr %s746, 2
      %s748 = smul.addr %s747, 4
      %s749 = scalar_lea.vmem %s3, %s748
      // Predicated region
      $region33: #{conv_3nv1_forward.9} parent=31 // pred_check
        %p750 = pneg %p100
      $region34: #{conv_3nv1_forward.9} parent=31 // pred_check_branch
        %752 = sbr.rel (%p750) target = $region36
      $region35: #{conv_3nv1_forward.9} parent=31 // pred_region
        _
      $region36: #{conv_3nv1_forward.9} parent=31 // pred_fallthru
        _
    $region32: #{conv_3nv1_forward.9} parent=5 // pred_fallthru
      _
    %p753 = scmp.le.s32.totalorder 2, %s9
    // Predicated region
    $region37: #{conv_3nv1_forward.9} parent=5 // pred_check
      %p754 = pneg %p753
    $region38: #{conv_3nv1_forward.9} parent=5 // pred_check_branch
      %756 = sbr.rel (%p754) target = $region40
    $region39: #{conv_3nv1_forward.9} parent=5 // pred_region
      %s757 = ssub.s32 %s9, 2
      // Predicated region
      $region41: #{conv_3nv1_forward.9} parent=39 // pred_check
        %p758 = pneg %p106
      $region42: #{conv_3nv1_forward.9} parent=39 // pred_check_branch
        %760 = sbr.rel (%p758) target = $region44
      $region43: #{conv_3nv1_forward.9} parent=39 // pred_region
        %p761 = scmp.lt.s32.totalorder %s15, 1
        %s762 = scalar_select %p761, %s15, 1
        %s763 = smul.addr %s762, 2
        %s764 = smul.addr %s763, 4
        %s765 = scalar_lea.vmem %s3, %s764
      $region44: #{conv_3nv1_forward.9} parent=39 // pred_fallthru
        _
    $region40: #{conv_3nv1_forward.9} parent=5 // pred_fallthru
      _
  $region6: #{conv_3nv1_forward.9} parent=0 // loop_footer
    %s13 = sadd.s32 1, %s9
  $region7: #{conv_3nv1_forward.9} parent=0 // loop_footer_branch
    %8 = sbr.rel target = $region3
  $region8: #{conv_3nv1_forward.9} parent=0 // loop_exit
    _

// kernel: conv_3nv1_forward.13
$region0: #{conv_3nv1_forward.13}
  #allocation0 [shape = 'u32[]', space=smem, size = 0x4, offset = 0x4, fixed_abs, tag = 'smem constant byte address 0x4 - core index']
  #allocation1 [shape = 'u32[144,128]{1,0:T(1,128)}', space=vmem, size = 0x12000, scoped, tag = 'internal scratch']
  %s0 = inlined_call_operand.vmem [shape: bf16[2,16,48], index: 0, kind: input, shape index: {}]
  %s1 = inlined_call_operand.vmem [shape: bf16[9,16,16], index: 1, kind: input, shape index: {}]
  %s2 = inlined_call_operand.vmem [shape: bf16[2,16,48], index: 2, kind: input, shape index: {}]
  %s3 = inlined_call_operand.vmem [shape: bf16[9,16,16], index: 3, kind: input, shape index: {}]
  %s4 = inlined_call_operand.vmem [shape: f32[16,1], index: 4, kind: input, shape index: {}]
  %s5 = inlined_call_operand.vmem [shape: bf16[2,16,30], index: 5, kind: output, shape index: {}]
  %s6 = sld [smem:[#allocation0]]
  $region53: #{conv_3nv1_forward.13} parent=0
    _
  %s8 = ssub.s32 1, %s6
  %s9 = scalar_select 0, %s8, %s6
  loop: start=0, step=1, limit=4
  $region2: #{conv_3nv1_forward.13} parent=0 // loop_pre_header
    _
  $region3: #{conv_3nv1_forward.13} parent=0 // loop_header
    %s11 = sphi 0, %s15
    %p12 = scmp.ge.s32.totalorder %s11, 4
    %s21 = sphi 0, %s23
    %s24 = sphi 0, %s21
    %s25 = sphi 0, %s24
    %s41 = sphi 0, %s25
    %s45 = sphi 0, %s45
    %s47 = sphi 0, %s45
    %s48 = sphi 0, %s47
    %s62 = sphi 0, %s48
    %s68 = sphi 0, %s70
    %s71 = sphi 0, %s68
    %s72 = sphi 0, %s71
    %s88 = sphi 0, %s72
    %s92 = sphi 0, %s92
    %s94 = sphi 0, %s92
    %s95 = sphi 0, %s94
    %s109 = sphi 0, %s95
    %s113 = sphi 0, %s113
    %s115 = sphi 0, %s113
    %s116 = sphi 0, %s115
    %s130 = sphi 0, %s116
    %s136 = sphi 0, %s138
    %s139 = sphi 0, %s136
    %s140 = sphi 0, %s139
    %s156 = sphi 0, %s140
  $region4: #{conv_3nv1_forward.13} parent=0 // loop_header_branch
    %14 = sbr.rel (%p12) target = $region8
  $region5: #{conv_3nv1_forward.13} parent=0 // loop_body
    %s16 = ssub.s32 %s11, 1
    %s17 = ssub.s32 %s11, 2
    %s18 = sadd.s32 %s11, 1
    %s19 = ssub.s32 %s11, %s18
    %p20 = scmp.eq.s32.totalorder %s19, 0
    %s22 = sadd.s32 %s21, 1
    %s23 = scalar_select %p20, %s21, %s22
    %p26 = pneg %p20
    %p27 = scmp.eq.s32.totalorder %s11, 1
    %p28 = por %p26, %p27
    %p29 = scmp.ne.s32.totalorder %s21, %s24
    %p30 = scmp.eq.s32.totalorder %s11, 0
    %p31 = por %p29, %p30
    %p32 = scmp.ne.s32.totalorder %s21, %s24
    %p33 = scmp.eq.s32.totalorder %s16, 1
    %p34 = por %p32, %p33
    %p35 = scmp.ne.s32.totalorder %s24, %s25
    %p36 = scmp.eq.s32.totalorder %s16, 0
    %p37 = por %p35, %p36
    %p38 = scmp.ne.s32.totalorder %s24, %s25
    %p39 = scmp.eq.s32.totalorder %s17, 1
    %p40 = por %p38, %p39
    %p42 = scmp.ne.s32.totalorder %s25, %s41
    %p43 = scmp.eq.s32.totalorder %s17, 0
    %p44 = por %p42, %p43
    %s46 = sadd.s32 %s45, 1
    %p49 = scmp.eq.s32.totalorder %s11, 1
    %p50 = scmp.ne.s32.totalorder %s45, %s47
    %p51 = scmp.eq.s32.totalorder %s11, 0
    %p52 = por %p50, %p51
    %p53 = scmp.ne.s32.totalorder %s45, %s47
    %p54 = scmp.eq.s32.totalorder %s16, 1
    %p55 = por %p53, %p54
    %p56 = scmp.ne.s32.totalorder %s47, %s48
    %p57 = scmp.eq.s32.totalorder %s16, 0
    %p58 = por %p56, %p57
    %p59 = scmp.ne.s32.totalorder %s47, %s48
    %p60 = scmp.eq.s32.totalorder %s17, 1
    %p61 = por %p59, %p60
    %p63 = scmp.ne.s32.totalorder %s48, %s62
    %p64 = scmp.eq.s32.totalorder %s17, 0
    %p65 = por %p63, %p64
    %s66 = ssub.s32 %s11, %s18
    %p67 = scmp.eq.s32.totalorder %s66, 0
    %s69 = sadd.s32 %s68, 1
    %s70 = scalar_select %p67, %s68, %s69
    %p73 = pneg %p67
    %p74 = scmp.eq.s32.totalorder %s11, 1
    %p75 = por %p73, %p74
    %p76 = scmp.ne.s32.totalorder %s68, %s71
    %p77 = scmp.eq.s32.totalorder %s11, 0
    %p78 = por %p76, %p77
    %p79 = scmp.ne.s32.totalorder %s68, %s71
    %p80 = scmp.eq.s32.totalorder %s16, 1
    %p81 = por %p79, %p80
    %p82 = scmp.ne.s32.totalorder %s71, %s72
    %p83 = scmp.eq.s32.totalorder %s16, 0
    %p84 = por %p82, %p83
    %p85 = scmp.ne.s32.totalorder %s71, %s72
    %p86 = scmp.eq.s32.totalorder %s17, 1
    %p87 = por %p85, %p86
    %p89 = scmp.ne.s32.totalorder %s72, %s88
    %p90 = scmp.eq.s32.totalorder %s17, 0
    %p91 = por %p89, %p90
    %s93 = sadd.s32 %s92, 1
    %p96 = scmp.eq.s32.totalorder %s11, 1
    %p97 = scmp.ne.s32.totalorder %s92, %s94
    %p98 = scmp.eq.s32.totalorder %s11, 0
    %p99 = por %p97, %p98
    %p100 = scmp.ne.s32.totalorder %s92, %s94
    %p101 = scmp.eq.s32.totalorder %s16, 1
    %p102 = por %p100, %p101
    %p103 = scmp.ne.s32.totalorder %s94, %s95
    %p104 = scmp.eq.s32.totalorder %s16, 0
    %p105 = por %p103, %p104
    %p106 = scmp.ne.s32.totalorder %s94, %s95
    %p107 = scmp.eq.s32.totalorder %s17, 1
    %p108 = por %p106, %p107
    %p110 = scmp.ne.s32.totalorder %s95, %s109
    %p111 = scmp.eq.s32.totalorder %s17, 0
    %p112 = por %p110, %p111
    %s114 = sadd.s32 %s113, 1
    %p117 = scmp.eq.s32.totalorder %s11, 1
    %p118 = scmp.ne.s32.totalorder %s113, %s115
    %p119 = scmp.eq.s32.totalorder %s11, 0
    %p120 = por %p118, %p119
    %p121 = scmp.ne.s32.totalorder %s113, %s115
    %p122 = scmp.eq.s32.totalorder %s16, 1
    %p123 = por %p121, %p122
    %p124 = scmp.ne.s32.totalorder %s115, %s116
    %p125 = scmp.eq.s32.totalorder %s16, 0
    %p126 = por %p124, %p125
    %p127 = scmp.ne.s32.totalorder %s115, %s116
    %p128 = scmp.eq.s32.totalorder %s17, 1
    %p129 = por %p127, %p128
    %p131 = scmp.ne.s32.totalorder %s116, %s130
    %p132 = scmp.eq.s32.totalorder %s17, 0
    %p133 = por %p131, %p132
    %s134 = ssub.s32 %s11, %s18
    %p135 = scmp.eq.s32.totalorder %s134, 0
    %s137 = sadd.s32 %s136, 1
    %s138 = scalar_select %p135, %s136, %s137
    %p141 = pneg %p135
    %p142 = scmp.eq.s32.totalorder %s11, 1
    %p143 = por %p141, %p142
    %p144 = scmp.ne.s32.totalorder %s136, %s139
    %p145 = scmp.eq.s32.totalorder %s11, 0
    %p146 = por %p144, %p145
    %p147 = scmp.ne.s32.totalorder %s136, %s139
    %p148 = scmp.eq.s32.totalorder %s16, 1
    %p149 = por %p147, %p148
    %p150 = scmp.ne.s32.totalorder %s139, %s140
    %p151 = scmp.eq.s32.totalorder %s16, 0
    %p152 = por %p150, %p151
    %p153 = scmp.ne.s32.totalorder %s139, %s140
    %p154 = scmp.eq.s32.totalorder %s17, 1
    %p155 = por %p153, %p154
    %p157 = scmp.ne.s32.totalorder %s140, %s156
    %p158 = scmp.eq.s32.totalorder %s17, 0
    %p159 = por %p157, %p158
    %p160 = scmp.le.s32.totalorder 1, %s11
    %p161 = scmp.lt.s32.totalorder %s11, 3
    %p162 = pnand %p160, %p161
    %p163 = pneg %p162
    // Predicated region
    $region9: #{conv_3nv1_forward.13} parent=5 // pred_check
      _
    $region10: #{conv_3nv1_forward.13} parent=5 // pred_check_branch
      %165 = sbr.rel (%p162) target = $region12
    $region11: #{conv_3nv1_forward.13} parent=5 // pred_region
      %s166 = ssub.s32 %s11, 1
      // Predicated region
      $region13: #{conv_3nv1_forward.13} parent=11 // pred_check
        %p167 = pneg %p58
      $region14: #{conv_3nv1_forward.13} parent=11 // pred_check_branch
        %169 = sbr.rel (%p167) target = $region16
      $region15: #{conv_3nv1_forward.13} parent=11 // pred_region
        _
      $region16: #{conv_3nv1_forward.13} parent=11 // pred_fallthru
        _
      // Predicated region
      $region17: #{conv_3nv1_forward.13} parent=11 // pred_check
        %p170 = pneg %p105
      $region18: #{conv_3nv1_forward.13} parent=11 // pred_check_branch
        %172 = sbr.rel (%p170) target = $region20
      $region19: #{conv_3nv1_forward.13} parent=11 // pred_region
        _
      $region20: #{conv_3nv1_forward.13} parent=11 // pred_fallthru
        _
      // Predicated region
      $region21: #{conv_3nv1_forward.13} parent=11 // pred_check
        %p173 = pneg %p126
      $region22: #{conv_3nv1_forward.13} parent=11 // pred_check_branch
        %175 = sbr.rel (%p173) target = $region24
      $region23: #{conv_3nv1_forward.13} parent=11 // pred_region
        _
      $region24: #{conv_3nv1_forward.13} parent=11 // pred_fallthru
        _
    $region12: #{conv_3nv1_forward.13} parent=5 // pred_fallthru
      _
    %p176 = scmp.lt.s32.totalorder %s11, 2
    // Predicated region
    $region25: #{conv_3nv1_forward.13} parent=5 // pred_check
      %p177 = pneg %p176
    $region26: #{conv_3nv1_forward.13} parent=5 // pred_check_branch
      %179 = sbr.rel (%p177) target = $region28
    $region27: #{conv_3nv1_forward.13} parent=5 // pred_region
      // Predicated region
      $region29: #{conv_3nv1_forward.13} parent=27 // pred_check
        %p180 = pneg %p31
      $region30: #{conv_3nv1_forward.13} parent=27 // pred_check_branch
        %182 = sbr.rel (%p180) target = $region32
      $region31: #{conv_3nv1_forward.13} parent=27 // pred_region
        %p183 = scmp.lt.s32.totalorder %s11, 1
        %s184 = scalar_select %p183, %s11, 1
        %s185 = smul.addr %s184, 2
        %s186 = smul.addr %s185, 4
        %s187 = scalar_lea.vmem %s0, %s186
      $region32: #{conv_3nv1_forward.13} parent=27 // pred_fallthru
        _
      // Predicated region
      $region33: #{conv_3nv1_forward.13} parent=27 // pred_check
        %p188 = pneg %p78
      $region34: #{conv_3nv1_forward.13} parent=27 // pred_check_branch
        %190 = sbr.rel (%p188) target = $region36
      $region35: #{conv_3nv1_forward.13} parent=27 // pred_region
        %p191 = scmp.lt.s32.totalorder %s11, 1
        %s192 = scalar_select %p191, %s11, 1
        %s193 = smul.addr %s192, 2
        %s194 = smul.addr %s193, 4
        %s195 = scalar_lea.vmem %s2, %s194
      $region36: #{conv_3nv1_forward.13} parent=27 // pred_fallthru
        _
    $region28: #{conv_3nv1_forward.13} parent=5 // pred_fallthru
      _
    %p196 = scmp.le.s32.totalorder 1, %s11
    %p197 = scmp.lt.s32.totalorder %s11, 3
    %p198 = pnand %p196, %p197
    %p199 = pneg %p198
    // Predicated region
    $region37: #{conv_3nv1_forward.13} parent=5 // pred_check
      _
    $region38: #{conv_3nv1_forward.13} parent=5 // pred_check_branch
      %201 = sbr.rel (%p198) target = $region40
    $region39: #{conv_3nv1_forward.13} parent=5 // pred_region
      %s202 = ssub.s32 %s11, 1
      %p203 = scmp.lt.s32.totalorder %s16, 1
      %s204 = scalar_select %p203, %s16, 1
      %s205 = smul.addr %s204, 2
      %s206 = smul.addr %s205, 4
      %s207 = scalar_lea.vmem %s0, %s206
      %p208 = pneg %p37
      %p209 = pneg %p34
      %p210 = pneg %p58
      %p211 = pneg %p55
      %p212 = scmp.lt.s32.totalorder %s16, 1
      %s213 = scalar_select %p212, %s16, 1
      %s214 = smul.addr %s213, 2
      %s215 = smul.addr %s214, 4
      %s216 = scalar_lea.vmem %s2, %s215
      %p217 = pneg %p84
      %p218 = pneg %p81
      %p219 = pneg %p105
      %p220 = pneg %p102
      %p221 = pneg %p126
      %p222 = pneg %p123
      %p223 = pneg %p152
      %p224 = pneg %p149
      %p225 = scmp.lt.s32.totalorder %s16, 1
      %s226 = scalar_select %p225, %s16, 1
      %s227 = smul.addr %s226, 2
      %s228 = smul.addr %s227, 4
      %s229 = scalar_lea.vmem %s5, %s228
      %p230 = scmp.lt.s32.totalorder %s16, 1
      %s231 = scalar_select %p230, %s16, 1
      %s232 = smul.addr %s231, 2
      %s233 = smul.addr %s232, 4
      %s234 = scalar_lea.vmem %s0, %s233
      %p235 = scmp.lt.s32.totalorder %s16, 1
      %s236 = scalar_select %p235, %s16, 1
      %s237 = smul.addr %s236, 2
      %s238 = smul.addr %s237, 4
      %s239 = scalar_lea.vmem %s2, %s238
      %p240 = scmp.lt.s32.totalorder %s16, 1
      %s241 = scalar_select %p240, %s16, 1
      %s242 = smul.addr %s241, 2
      %s243 = smul.addr %s242, 4
      %s244 = scalar_lea.vmem %s5, %s243
      %v246 = vld [vmem:[%s234] sm:$0xf]
      %v247 = vld [vmem:[%s234 + $0x4] sm:$0xf]
      %v248 = vld [vmem:[%s1] sm:$0xf]
      %v249 = vld [vmem:[%s1 + $0x4] sm:$0xf]
      %s250 = scalar_lea.vmem %s1, 8
      %v251 = vld [vmem:[%s250] sm:$0xf]
      %v252 = vld [vmem:[%s250 + $0x4] sm:$0xf]
      %v255 = vunpack.c.l.b16 %v251
      %v256 = vunpack.c.l.b16 %v252
      %v257 = vpack.c.b16 %v256, %v255
      %v260 = vunpack.c.l.b16 %v246
      %v261 = vunpack.c.l.b16 %v247
      %v262 = vpack.c.b16 %v261, %v260
      %263 = vrot.lane.b32.xlu0 %v262, 127
      %v264 = vpop.permute.xlu0 %263
      %vm266 = vcmask 130048
      %v268 = vsel %vm266, %v257, 0
      %270 = vmatprep.subr.bf16.mxu0 0
      %271 = vmatpush1.bf16.msra.mxu0 0
      %272 = vmatprep.subr.bf16.mxu0 0
      %273 = vmatpush1.bf16.msra.mxu0 0
      %274 = vmatprep.subr.bf16.mxu0 0
      %275 = vmatpush1.bf16.msra.mxu0 0
      %276 = vmatprep.subr.bf16.mxu0 0
      %277 = vmatpush1.bf16.msra.mxu0 0
      %278 = vmatprep.subr.bf16.mxu0 0
      %279 = vmatpush1.bf16.msra.mxu0 0
      %280 = vmatprep.subr.bf16.mxu0 0
      %281 = vmatpush1.bf16.msra.mxu0 0
      %282 = vmatprep.subr.bf16.mxu0 0
      %283 = vmatpush1.bf16.msra.mxu0 0
      %284 = vmatprep.subr.bf16.mxu0 0
      %285 = vmatpush1.bf16.msra.mxu0 %v264
      %286 = vmatprep.subr.bf16.mxu0 0
      %287 = vmatpush2.bf16.msra.mxu0 0
      %288 = vmatprep.subr.bf16.mxu0 0
      %289 = vmatpush2.bf16.msra.mxu0 0
      %290 = vmatprep.subr.bf16.mxu0 0
      %291 = vmatpush2.bf16.msra.mxu0 0
      %292 = vmatprep.subr.bf16.mxu0 0
      %293 = vmatpush2.bf16.msra.mxu0 0
      %294 = vmatprep.subr.bf16.mxu0 0
      %295 = vmatpush2.bf16.msra.mxu0 0
      %296 = vmatprep.subr.bf16.mxu0 0
      %297 = vmatpush2.bf16.msra.mxu0 0
      %298 = vmatprep.subr.bf16.mxu0 0
      %299 = vmatpush2.bf16.msra.mxu0 0
      %300 = vmatprep.subr.bf16.mxu0 0
      %301 = vmatpush2.bf16.msra.mxu0 0
      %302 = vmatprep.mubr.bf16.mxu0 0
      %303 = vmatmul.mubr.bf16.gmra.mxu0 %v268
      %v304 = vpop.f32.mrf.mxu0
      %v305 = vadd.f32 0.0, %v304
      %v306 = vpop.f32.mrf.mxu0
      %v307 = vpop.f32.mrf.mxu0
      %v308 = vadd.f32 0.0, %v307
      %v309 = vpop.f32.mrf.mxu0
      %310 = vdwg.mxu0
      %v313 = vunpack.c.l.b16 %v248
      %v314 = vunpack.c.l.b16 %v249
      %v315 = vpack.c.b16 %v314, %v313
      %v318 = vsel %vm266, %v315, 0
      %320 = vmatprep.subr.bf16.mxu0 0
      %321 = vmatpush1.bf16.msra.mxu0 0
      %322 = vmatprep.subr.bf16.mxu0 0
      %323 = vmatpush1.bf16.msra.mxu0 0
      %324 = vmatprep.subr.bf16.mxu0 0
      %325 = vmatpush1.bf16.msra.mxu0 0
      %326 = vmatprep.subr.bf16.mxu0 0
      %327 = vmatpush1.bf16.msra.mxu0 0
      %328 = vmatprep.subr.bf16.mxu0 0
      %329 = vmatpush1.bf16.msra.mxu0 0
      %330 = vmatprep.subr.bf16.mxu0 0
      %331 = vmatpush1.bf16.msra.mxu0 0
      %332 = vmatprep.subr.bf16.mxu0 0
      %333 = vmatpush1.bf16.msra.mxu0 0
      %334 = vmatprep.subr.bf16.mxu0 0
      %335 = vmatpush1.bf16.msra.mxu0 %v262
      %336 = vmatprep.subr.bf16.mxu0 0
      %337 = vmatpush2.bf16.msra.mxu0 0
      %338 = vmatprep.subr.bf16.mxu0 0
      %339 = vmatpush2.bf16.msra.mxu0 0
      %340 = vmatprep.subr.bf16.mxu0 0
      %341 = vmatpush2.bf16.msra.mxu0 0
      %342 = vmatprep.subr.bf16.mxu0 0
      %343 = vmatpush2.bf16.msra.mxu0 0
      %344 = vmatprep.subr.bf16.mxu0 0
      %345 = vmatpush2.bf16.msra.mxu0 0
      %346 = vmatprep.subr.bf16.mxu0 0
      %347 = vmatpush2.bf16.msra.mxu0 0
      %348 = vmatprep.subr.bf16.mxu0 0
      %349 = vmatpush2.bf16.msra.mxu0 0
      %350 = vmatprep.subr.bf16.mxu0 0
      %351 = vmatpush2.bf16.msra.mxu0 0
      %352 = vmatprep.mubr.bf16.mxu0 0
      %353 = vmatmul.mubr.bf16.gmra.mxu0 %v318
      %v354 = vpop.f32.mrf.mxu0
      %v355 = vadd.f32 %v305, %v354
      %v356 = vpop.f32.mrf.mxu0
      %v357 = vpop.f32.mrf.mxu0
      %v358 = vadd.f32 %v308, %v357
      %v359 = vpop.f32.mrf.mxu0
      %360 = vdwg.mxu0
      %s361 = scalar_lea.vmem %s1, 16
      %v362 = vld [vmem:[%s361] sm:$0xf]
      %v363 = vld [vmem:[%s361 + $0x4] sm:$0xf]
      %v366 = vunpack.c.l.b16 %v362
      %v367 = vunpack.c.l.b16 %v363
      %v368 = vpack.c.b16 %v367, %v366
      %369 = vrot.lane.b32.xlu0 %v262, 126
      %v370 = vpop.permute.xlu0 %369
      %v373 = vsel %vm266, %v368, 0
      %375 = vmatprep.subr.bf16.mxu0 0
      %376 = vmatpush1.bf16.msra.mxu0 0
      %377 = vmatprep.subr.bf16.mxu0 0
      %378 = vmatpush1.bf16.msra.mxu0 0
      %379 = vmatprep.subr.bf16.mxu0 0
      %380 = vmatpush1.bf16.msra.mxu0 0
      %381 = vmatprep.subr.bf16.mxu0 0
      %382 = vmatpush1.bf16.msra.mxu0 0
      %383 = vmatprep.subr.bf16.mxu0 0
      %384 = vmatpush1.bf16.msra.mxu0 0
      %385 = vmatprep.subr.bf16.mxu0 0
      %386 = vmatpush1.bf16.msra.mxu0 0
      %387 = vmatprep.subr.bf16.mxu0 0
      %388 = vmatpush1.bf16.msra.mxu0 0
      %389 = vmatprep.subr.bf16.mxu0 0
      %390 = vmatpush1.bf16.msra.mxu0 %v370
      %391 = vmatprep.subr.bf16.mxu0 0
      %392 = vmatpush2.bf16.msra.mxu0 0
      %393 = vmatprep.subr.bf16.mxu0 0
      %394 = vmatpush2.bf16.msra.mxu0 0
      %395 = vmatprep.subr.bf16.mxu0 0
      %396 = vmatpush2.bf16.msra.mxu0 0
      %397 = vmatprep.subr.bf16.mxu0 0
      %398 = vmatpush2.bf16.msra.mxu0 0
      %399 = vmatprep.subr.bf16.mxu0 0
      %400 = vmatpush2.bf16.msra.mxu0 0
      %401 = vmatprep.subr.bf16.mxu0 0
      %402 = vmatpush2.bf16.msra.mxu0 0
      %403 = vmatprep.subr.bf16.mxu0 0
      %404 = vmatpush2.bf16.msra.mxu0 0
      %405 = vmatprep.subr.bf16.mxu0 0
      %406 = vmatpush2.bf16.msra.mxu0 0
      %407 = vmatprep.mubr.bf16.mxu0 0
      %408 = vmatmul.mubr.bf16.gmra.mxu0 %v373
      %v409 = vpop.f32.mrf.mxu0
      %v410 = vadd.f32 0.0, %v409
      %v411 = vpop.f32.mrf.mxu0
      %v412 = vpop.f32.mrf.mxu0
      %v413 = vadd.f32 0.0, %v412
      %v414 = vpop.f32.mrf.mxu0
      %415 = vdwg.mxu0
      %v416 = vadd.f32 %v355, %v410
      %v417 = vadd.f32 %v358, %v413
      %s418 = scalar_lea.vmem %s1, 24
      %v419 = vld [vmem:[%s418] sm:$0xf]
      %v420 = vld [vmem:[%s418 + $0x4] sm:$0xf]
      %v423 = vunpack.c.l.b16 %v419
      %v424 = vunpack.c.l.b16 %v420
      %v425 = vpack.c.b16 %v424, %v423
      %426 = vrot.lane.b32.xlu0 %v262, 122
      %v427 = vpop.permute.xlu0 %426
      %v430 = vsel %vm266, %v425, 0
      %432 = vmatprep.subr.bf16.mxu0 0
      %433 = vmatpush1.bf16.msra.mxu0 0
      %434 = vmatprep.subr.bf16.mxu0 0
      %435 = vmatpush1.bf16.msra.mxu0 0
      %436 = vmatprep.subr.bf16.mxu0 0
      %437 = vmatpush1.bf16.msra.mxu0 0
      %438 = vmatprep.subr.bf16.mxu0 0
      %439 = vmatpush1.bf16.msra.mxu0 0
      %440 = vmatprep.subr.bf16.mxu0 0
      %441 = vmatpush1.bf16.msra.mxu0 0
      %442 = vmatprep.subr.bf16.mxu0 0
      %443 = vmatpush1.bf16.msra.mxu0 0
      %444 = vmatprep.subr.bf16.mxu0 0
      %445 = vmatpush1.bf16.msra.mxu0 0
      %446 = vmatprep.subr.bf16.mxu0 0
      %447 = vmatpush1.bf16.msra.mxu0 %v427
      %448 = vmatprep.subr.bf16.mxu0 0
      %449 = vmatpush2.bf16.msra.mxu0 0
      %450 = vmatprep.subr.bf16.mxu0 0
      %451 = vmatpush2.bf16.msra.mxu0 0
      %452 = vmatprep.subr.bf16.mxu0 0
      %453 = vmatpush2.bf16.msra.mxu0 0
      %454 = vmatprep.subr.bf16.mxu0 0
      %455 = vmatpush2.bf16.msra.mxu0 0
      %456 = vmatprep.subr.bf16.mxu0 0
      %457 = vmatpush2.bf16.msra.mxu0 0
      %458 = vmatprep.subr.bf16.mxu0 0
      %459 = vmatpush2.bf16.msra.mxu0 0
      %460 = vmatprep.subr.bf16.mxu0 0
      %461 = vmatpush2.bf16.msra.mxu0 0
      %462 = vmatprep.subr.bf16.mxu0 0
      %463 = vmatpush2.bf16.msra.mxu0 0
      %464 = vmatprep.mubr.bf16.mxu0 0
      %465 = vmatmul.mubr.bf16.gmra.mxu0 %v430
      %v466 = vpop.f32.mrf.mxu0
      %v467 = vadd.f32 0.0, %v466
      %v468 = vpop.f32.mrf.mxu0
      %v469 = vpop.f32.mrf.mxu0
      %v470 = vadd.f32 0.0, %v469
      %v471 = vpop.f32.mrf.mxu0
      %472 = vdwg.mxu0
      %v473 = vadd.f32 %v416, %v467
      %v474 = vadd.f32 %v417, %v470
      %s475 = scalar_lea.vmem %s1, 32
      %v476 = vld [vmem:[%s475] sm:$0xf]
      %v477 = vld [vmem:[%s475 + $0x4] sm:$0xf]
      %v480 = vunpack.c.l.b16 %v476
      %v481 = vunpack.c.l.b16 %v477
      %v482 = vpack.c.b16 %v481, %v480
      %483 = vrot.lane.b32.xlu0 %v262, 121
      %v484 = vpop.permute.xlu0 %483
      %v487 = vsel %vm266, %v482, 0
      %489 = vmatprep.subr.bf16.mxu0 0
      %490 = vmatpush1.bf16.msra.mxu0 0
      %491 = vmatprep.subr.bf16.mxu0 0
      %492 = vmatpush1.bf16.msra.mxu0 0
      %493 = vmatprep.subr.bf16.mxu0 0
      %494 = vmatpush1.bf16.msra.mxu0 0
      %495 = vmatprep.subr.bf16.mxu0 0
      %496 = vmatpush1.bf16.msra.mxu0 0
      %497 = vmatprep.subr.bf16.mxu0 0
      %498 = vmatpush1.bf16.msra.mxu0 0
      %499 = vmatprep.subr.bf16.mxu0 0
      %500 = vmatpush1.bf16.msra.mxu0 0
      %501 = vmatprep.subr.bf16.mxu0 0
      %502 = vmatpush1.bf16.msra.mxu0 0
      %503 = vmatprep.subr.bf16.mxu0 0
      %504 = vmatpush1.bf16.msra.mxu0 %v484
      %505 = vmatprep.subr.bf16.mxu0 0
      %506 = vmatpush2.bf16.msra.mxu0 0
      %507 = vmatprep.subr.bf16.mxu0 0
      %508 = vmatpush2.bf16.msra.mxu0 0
      %509 = vmatprep.subr.bf16.mxu0 0
      %510 = vmatpush2.bf16.msra.mxu0 0
      %511 = vmatprep.subr.bf16.mxu0 0
      %512 = vmatpush2.bf16.msra.mxu0 0
      %513 = vmatprep.subr.bf16.mxu0 0
      %514 = vmatpush2.bf16.msra.mxu0 0
      %515 = vmatprep.subr.bf16.mxu0 0
      %516 = vmatpush2.bf16.msra.mxu0 0
      %517 = vmatprep.subr.bf16.mxu0 0
      %518 = vmatpush2.bf16.msra.mxu0 0
      %519 = vmatprep.subr.bf16.mxu0 0
      %520 = vmatpush2.bf16.msra.mxu0 0
      %521 = vmatprep.mubr.bf16.mxu0 0
      %522 = vmatmul.mubr.bf16.gmra.mxu0 %v487
      %v523 = vpop.f32.mrf.mxu0
      %v524 = vadd.f32 0.0, %v523
      %v525 = vpop.f32.mrf.mxu0
      %v526 = vpop.f32.mrf.mxu0
      %v527 = vadd.f32 0.0, %v526
      %v528 = vpop.f32.mrf.mxu0
      %529 = vdwg.mxu0
      %v530 = vadd.f32 %v473, %v524
      %v531 = vadd.f32 %v474, %v527
      %s532 = scalar_lea.vmem %s1, 40
      %v533 = vld [vmem:[%s532] sm:$0xf]
      %v534 = vld [vmem:[%s532 + $0x4] sm:$0xf]
      %v537 = vunpack.c.l.b16 %v533
      %v538 = vunpack.c.l.b16 %v534
      %v539 = vpack.c.b16 %v538, %v537
      %540 = vrot.lane.b32.xlu0 %v262, 120
      %v541 = vpop.permute.xlu0 %540
      %v544 = vsel %vm266, %v539, 0
      %546 = vmatprep.subr.bf16.mxu0 0
      %547 = vmatpush1.bf16.msra.mxu0 0
      %548 = vmatprep.subr.bf16.mxu0 0
      %549 = vmatpush1.bf16.msra.mxu0 0
      %550 = vmatprep.subr.bf16.mxu0 0
      %551 = vmatpush1.bf16.msra.mxu0 0
      %552 = vmatprep.subr.bf16.mxu0 0
      %553 = vmatpush1.bf16.msra.mxu0 0
      %554 = vmatprep.subr.bf16.mxu0 0
      %555 = vmatpush1.bf16.msra.mxu0 0
      %556 = vmatprep.subr.bf16.mxu0 0
      %557 = vmatpush1.bf16.msra.mxu0 0
      %558 = vmatprep.subr.bf16.mxu0 0
      %559 = vmatpush1.bf16.msra.mxu0 0
      %560 = vmatprep.subr.bf16.mxu0 0
      %561 = vmatpush1.bf16.msra.mxu0 %v541
      %562 = vmatprep.subr.bf16.mxu0 0
      %563 = vmatpush2.bf16.msra.mxu0 0
      %564 = vmatprep.subr.bf16.mxu0 0
      %565 = vmatpush2.bf16.msra.mxu0 0
      %566 = vmatprep.subr.bf16.mxu0 0
      %567 = vmatpush2.bf16.msra.mxu0 0
      %568 = vmatprep.subr.bf16.mxu0 0
      %569 = vmatpush2.bf16.msra.mxu0 0
      %570 = vmatprep.subr.bf16.mxu0 0
      %571 = vmatpush2.bf16.msra.mxu0 0
      %572 = vmatprep.subr.bf16.mxu0 0
      %573 = vmatpush2.bf16.msra.mxu0 0
      %574 = vmatprep.subr.bf16.mxu0 0
      %575 = vmatpush2.bf16.msra.mxu0 0
      %576 = vmatprep.subr.bf16.mxu0 0
      %577 = vmatpush2.bf16.msra.mxu0 0
      %578 = vmatprep.mubr.bf16.mxu0 0
      %579 = vmatmul.mubr.bf16.gmra.mxu0 %v544
      %v580 = vpop.f32.mrf.mxu0
      %v581 = vadd.f32 0.0, %v580
      %v582 = vpop.f32.mrf.mxu0
      %v583 = vpop.f32.mrf.mxu0
      %v584 = vadd.f32 0.0, %v583
      %v585 = vpop.f32.mrf.mxu0
      %586 = vdwg.mxu0
      %v587 = vadd.f32 %v530, %v581
      %v588 = vadd.f32 %v531, %v584
      %s589 = scalar_lea.vmem %s1, 48
      %v590 = vld [vmem:[%s589] sm:$0xf]
      %v591 = vld [vmem:[%s589 + $0x4] sm:$0xf]
      %v594 = vunpack.c.l.b16 %v590
      %v595 = vunpack.c.l.b16 %v591
      %v596 = vpack.c.b16 %v595, %v594
      %597 = vrot.lane.b32.xlu0 %v262, 116
      %v598 = vpop.permute.xlu0 %597
      %v601 = vsel %vm266, %v596, 0
      %603 = vmatprep.subr.bf16.mxu0 0
      %604 = vmatpush1.bf16.msra.mxu0 0
      %605 = vmatprep.subr.bf16.mxu0 0
      %606 = vmatpush1.bf16.msra.mxu0 0
      %607 = vmatprep.subr.bf16.mxu0 0
      %608 = vmatpush1.bf16.msra.mxu0 0
      %609 = vmatprep.subr.bf16.mxu0 0
      %610 = vmatpush1.bf16.msra.mxu0 0
      %611 = vmatprep.subr.bf16.mxu0 0
      %612 = vmatpush1.bf16.msra.mxu0 0
      %613 = vmatprep.subr.bf16.mxu0 0
      %614 = vmatpush1.bf16.msra.mxu0 0
      %615 = vmatprep.subr.bf16.mxu0 0
      %616 = vmatpush1.bf16.msra.mxu0 0
      %617 = vmatprep.subr.bf16.mxu0 0
      %618 = vmatpush1.bf16.msra.mxu0 %v598
      %619 = vmatprep.subr.bf16.mxu0 0
      %620 = vmatpush2.bf16.msra.mxu0 0
      %621 = vmatprep.subr.bf16.mxu0 0
      %622 = vmatpush2.bf16.msra.mxu0 0
      %623 = vmatprep.subr.bf16.mxu0 0
      %624 = vmatpush2.bf16.msra.mxu0 0
      %625 = vmatprep.subr.bf16.mxu0 0
      %626 = vmatpush2.bf16.msra.mxu0 0
      %627 = vmatprep.subr.bf16.mxu0 0
      %628 = vmatpush2.bf16.msra.mxu0 0
      %629 = vmatprep.subr.bf16.mxu0 0
      %630 = vmatpush2.bf16.msra.mxu0 0
      %631 = vmatprep.subr.bf16.mxu0 0
      %632 = vmatpush2.bf16.msra.mxu0 0
      %633 = vmatprep.subr.bf16.mxu0 0
      %634 = vmatpush2.bf16.msra.mxu0 0
      %635 = vmatprep.mubr.bf16.mxu0 0
      %636 = vmatmul.mubr.bf16.gmra.mxu0 %v601
      %v637 = vpop.f32.mrf.mxu0
      %v638 = vadd.f32 0.0, %v637
      %v639 = vpop.f32.mrf.mxu0
      %v640 = vpop.f32.mrf.mxu0
      %v641 = vadd.f32 0.0, %v640
      %v642 = vpop.f32.mrf.mxu0
      %643 = vdwg.mxu0
      %v644 = vadd.f32 %v587, %v638
      %v645 = vadd.f32 %v588, %v641
      %s646 = scalar_lea.vmem %s1, 56
      %v647 = vld [vmem:[%s646] sm:$0xf]
      %v648 = vld [vmem:[%s646 + $0x4] sm:$0xf]
      %v651 = vunpack.c.l.b16 %v647
      %v652 = vunpack.c.l.b16 %v648
      %v653 = vpack.c.b16 %v652, %v651
      %654 = vrot.lane.b32.xlu0 %v262, 115
      %v655 = vpop.permute.xlu0 %654
      %v658 = vsel %vm266, %v653, 0
      %660 = vmatprep.subr.bf16.mxu0 0
      %661 = vmatpush1.bf16.msra.mxu0 0
      %662 = vmatprep.subr.bf16.mxu0 0
      %663 = vmatpush1.bf16.msra.mxu0 0
      %664 = vmatprep.subr.bf16.mxu0 0
      %665 = vmatpush1.bf16.msra.mxu0 0
      %666 = vmatprep.subr.bf16.mxu0 0
      %667 = vmatpush1.bf16.msra.mxu0 0
      %668 = vmatprep.subr.bf16.mxu0 0
      %669 = vmatpush1.bf16.msra.mxu0 0
      %670 = vmatprep.subr.bf16.mxu0 0
      %671 = vmatpush1.bf16.msra.mxu0 0
      %672 = vmatprep.subr.bf16.mxu0 0
      %673 = vmatpush1.bf16.msra.mxu0 0
      %674 = vmatprep.subr.bf16.mxu0 0
      %675 = vmatpush1.bf16.msra.mxu0 %v655
      %676 = vmatprep.subr.bf16.mxu0 0
      %677 = vmatpush2.bf16.msra.mxu0 0
      %678 = vmatprep.subr.bf16.mxu0 0
      %679 = vmatpush2.bf16.msra.mxu0 0
      %680 = vmatprep.subr.bf16.mxu0 0
      %681 = vmatpush2.bf16.msra.mxu0 0
      %682 = vmatprep.subr.bf16.mxu0 0
      %683 = vmatpush2.bf16.msra.mxu0 0
      %684 = vmatprep.subr.bf16.mxu0 0
      %685 = vmatpush2.bf16.msra.mxu0 0
      %686 = vmatprep.subr.bf16.mxu0 0
      %687 = vmatpush2.bf16.msra.mxu0 0
      %688 = vmatprep.subr.bf16.mxu0 0
      %689 = vmatpush2.bf16.msra.mxu0 0
      %690 = vmatprep.subr.bf16.mxu0 0
      %691 = vmatpush2.bf16.msra.mxu0 0
      %692 = vmatprep.mubr.bf16.mxu0 0
      %693 = vmatmul.mubr.bf16.gmra.mxu0 %v658
      %v694 = vpop.f32.mrf.mxu0
      %v695 = vadd.f32 0.0, %v694
      %v696 = vpop.f32.mrf.mxu0
      %v697 = vpop.f32.mrf.mxu0
      %v698 = vadd.f32 0.0, %v697
      %v699 = vpop.f32.mrf.mxu0
      %700 = vdwg.mxu0
      %v701 = vadd.f32 %v644, %v695
      %v702 = vadd.f32 %v645, %v698
      %s703 = scalar_lea.vmem %s1, 64
      %v704 = vld [vmem:[%s703] sm:$0xf]
      %v705 = vld [vmem:[%s703 + $0x4] sm:$0xf]
      %v708 = vunpack.c.l.b16 %v704
      %v709 = vunpack.c.l.b16 %v705
      %v710 = vpack.c.b16 %v709, %v708
      %711 = vrot.lane.b32.xlu0 %v262, 114
      %v712 = vpop.permute.xlu0 %711
      %v715 = vsel %vm266, %v710, 0
      %717 = vmatprep.subr.bf16.mxu0 0
      %718 = vmatpush1.bf16.msra.mxu0 0
      %719 = vmatprep.subr.bf16.mxu0 0
      %720 = vmatpush1.bf16.msra.mxu0 0
      %721 = vmatprep.subr.bf16.mxu0 0
      %722 = vmatpush1.bf16.msra.mxu0 0
      %723 = vmatprep.subr.bf16.mxu0 0
      %724 = vmatpush1.bf16.msra.mxu0 0
      %725 = vmatprep.subr.bf16.mxu0 0
      %726 = vmatpush1.bf16.msra.mxu0 0
      %727 = vmatprep.subr.bf16.mxu0 0
      %728 = vmatpush1.bf16.msra.mxu0 0
      %729 = vmatprep.subr.bf16.mxu0 0
      %730 = vmatpush1.bf16.msra.mxu0 0
      %731 = vmatprep.subr.bf16.mxu0 0
      %732 = vmatpush1.bf16.msra.mxu0 %v712
      %733 = vmatprep.subr.bf16.mxu0 0
      %734 = vmatpush2.bf16.msra.mxu0 0
      %735 = vmatprep.subr.bf16.mxu0 0
      %736 = vmatpush2.bf16.msra.mxu0 0
      %737 = vmatprep.subr.bf16.mxu0 0
      %738 = vmatpush2.bf16.msra.mxu0 0
      %739 = vmatprep.subr.bf16.mxu0 0
      %740 = vmatpush2.bf16.msra.mxu0 0
      %741 = vmatprep.subr.bf16.mxu0 0
      %742 = vmatpush2.bf16.msra.mxu0 0
      %743 = vmatprep.subr.bf16.mxu0 0
      %744 = vmatpush2.bf16.msra.mxu0 0
      %745 = vmatprep.subr.bf16.mxu0 0
      %746 = vmatpush2.bf16.msra.mxu0 0
      %747 = vmatprep.subr.bf16.mxu0 0
      %748 = vmatpush2.bf16.msra.mxu0 0
      %749 = vmatprep.mubr.bf16.mxu0 0
      %750 = vmatmul.mubr.bf16.gmra.mxu0 %v715
      %v751 = vpop.f32.mrf.mxu0
      %v752 = vadd.f32 0.0, %v751
      %v753 = vpop.f32.mrf.mxu0
      %v754 = vpop.f32.mrf.mxu0
      %v755 = vadd.f32 0.0, %v754
      %v756 = vpop.f32.mrf.mxu0
      %757 = vdwg.mxu0
      %v758 = vadd.f32 %v701, %v752
      %v759 = vadd.f32 %v702, %v755
      %v760 = vld [vmem:[%s239] sm:$0xf]
      %v761 = vld [vmem:[%s239 + $0x4] sm:$0xf]
      %v762 = vld [vmem:[%s3] sm:$0xf]
      %v763 = vld [vmem:[%s3 + $0x4] sm:$0xf]
      %v766 = vunpack.c.l.b16 %v762
      %v767 = vunpack.c.l.b16 %v763
      %v768 = vpack.c.b16 %v767, %v766
      %v771 = vunpack.c.l.b16 %v760
      %v772 = vunpack.c.l.b16 %v761
      %v773 = vpack.c.b16 %v772, %v771
      %v776 = vsel %vm266, %v768, 0
      %778 = vmatprep.subr.bf16.mxu0 0
      %779 = vmatpush1.bf16.msra.mxu0 0
      %780 = vmatprep.subr.bf16.mxu0 0
      %781 = vmatpush1.bf16.msra.mxu0 0
      %782 = vmatprep.subr.bf16.mxu0 0
      %783 = vmatpush1.bf16.msra.mxu0 0
      %784 = vmatprep.subr.bf16.mxu0 0
      %785 = vmatpush1.bf16.msra.mxu0 0
      %786 = vmatprep.subr.bf16.mxu0 0
      %787 = vmatpush1.bf16.msra.mxu0 0
      %788 = vmatprep.subr.bf16.mxu0 0
      %789 = vmatpush1.bf16.msra.mxu0 0
      %790 = vmatprep.subr.bf16.mxu0 0
      %791 = vmatpush1.bf16.msra.mxu0 0
      %792 = vmatprep.subr.bf16.mxu0 0
      %793 = vmatpush1.bf16.msra.mxu0 %v773
      %794 = vmatprep.subr.bf16.mxu0 0
      %795 = vmatpush2.bf16.msra.mxu0 0
      %796 = vmatprep.subr.bf16.mxu0 0
      %797 = vmatpush2.bf16.msra.mxu0 0
      %798 = vmatprep.subr.bf16.mxu0 0
      %799 = vmatpush2.bf16.msra.mxu0 0
      %800 = vmatprep.subr.bf16.mxu0 0
      %801 = vmatpush2.bf16.msra.mxu0 0
      %802 = vmatprep.subr.bf16.mxu0 0
      %803 = vmatpush2.bf16.msra.mxu0 0
      %804 = vmatprep.subr.bf16.mxu0 0
      %805 = vmatpush2.bf16.msra.mxu0 0
      %806 = vmatprep.subr.bf16.mxu0 0
      %807 = vmatpush2.bf16.msra.mxu0 0
      %808 = vmatprep.subr.bf16.mxu0 0
      %809 = vmatpush2.bf16.msra.mxu0 0
      %810 = vmatprep.mubr.bf16.mxu0 0
      %811 = vmatmul.mubr.bf16.gmra.mxu0 %v776
      %v812 = vpop.f32.mrf.mxu0
      %v813 = vadd.f32 0.0, %v812
      %v814 = vpop.f32.mrf.mxu0
      %v815 = vpop.f32.mrf.mxu0
      %v816 = vadd.f32 0.0, %v815
      %v817 = vpop.f32.mrf.mxu0
      %818 = vdwg.mxu0
      %v819 = vadd.f32 %v758, %v813
      %v820 = vadd.f32 %v759, %v816
      %s821 = scalar_lea.vmem %s3, 8
      %v822 = vld [vmem:[%s821] sm:$0xf]
      %v823 = vld [vmem:[%s821 + $0x4] sm:$0xf]
      %v826 = vunpack.c.l.b16 %v822
      %v827 = vunpack.c.l.b16 %v823
      %v828 = vpack.c.b16 %v827, %v826
      %829 = vrot.lane.b32.xlu0 %v773, 127
      %v830 = vpop.permute.xlu0 %829
      %v833 = vsel %vm266, %v828, 0
      %835 = vmatprep.subr.bf16.mxu0 0
      %836 = vmatpush1.bf16.msra.mxu0 0
      %837 = vmatprep.subr.bf16.mxu0 0
      %838 = vmatpush1.bf16.msra.mxu0 0
      %839 = vmatprep.subr.bf16.mxu0 0
      %840 = vmatpush1.bf16.msra.mxu0 0
      %841 = vmatprep.subr.bf16.mxu0 0
      %842 = vmatpush1.bf16.msra.mxu0 0
      %843 = vmatprep.subr.bf16.mxu0 0
      %844 = vmatpush1.bf16.msra.mxu0 0
      %845 = vmatprep.subr.bf16.mxu0 0
      %846 = vmatpush1.bf16.msra.mxu0 0
      %847 = vmatprep.subr.bf16.mxu0 0
      %848 = vmatpush1.bf16.msra.mxu0 0
      %849 = vmatprep.subr.bf16.mxu0 0
      %850 = vmatpush1.bf16.msra.mxu0 %v830
      %851 = vmatprep.subr.bf16.mxu0 0
      %852 = vmatpush2.bf16.msra.mxu0 0
      %853 = vmatprep.subr.bf16.mxu0 0
      %854 = vmatpush2.bf16.msra.mxu0 0
      %855 = vmatprep.subr.bf16.mxu0 0
      %856 = vmatpush2.bf16.msra.mxu0 0
      %857 = vmatprep.subr.bf16.mxu0 0
      %858 = vmatpush2.bf16.msra.mxu0 0
      %859 = vmatprep.subr.bf16.mxu0 0
      %860 = vmatpush2.bf16.msra.mxu0 0
      %861 = vmatprep.subr.bf16.mxu0 0
      %862 = vmatpush2.bf16.msra.mxu0 0
      %863 = vmatprep.subr.bf16.mxu0 0
      %864 = vmatpush2.bf16.msra.mxu0 0
      %865 = vmatprep.subr.bf16.mxu0 0
      %866 = vmatpush2.bf16.msra.mxu0 0
      %867 = vmatprep.mubr.bf16.mxu0 0
      %868 = vmatmul.mubr.bf16.gmra.mxu0 %v833
      %v869 = vpop.f32.mrf.mxu0
      %v870 = vadd.f32 0.0, %v869
      %v871 = vpop.f32.mrf.mxu0
      %v872 = vpop.f32.mrf.mxu0
      %v873 = vadd.f32 0.0, %v872
      %v874 = vpop.f32.mrf.mxu0
      %875 = vdwg.mxu0
      %v876 = vadd.f32 %v819, %v870
      %v877 = vadd.f32 %v820, %v873
      %s878 = scalar_lea.vmem %s3, 16
      %v879 = vld [vmem:[%s878] sm:$0xf]
      %v880 = vld [vmem:[%s878 + $0x4] sm:$0xf]
      %v883 = vunpack.c.l.b16 %v879
      %v884 = vunpack.c.l.b16 %v880
      %v885 = vpack.c.b16 %v884, %v883
      %886 = vrot.lane.b32.xlu0 %v773, 126
      %v887 = vpop.permute.xlu0 %886
      %v890 = vsel %vm266, %v885, 0
      %892 = vmatprep.subr.bf16.mxu0 0
      %893 = vmatpush1.bf16.msra.mxu0 0
      %894 = vmatprep.subr.bf16.mxu0 0
      %895 = vmatpush1.bf16.msra.mxu0 0
      %896 = vmatprep.subr.bf16.mxu0 0
      %897 = vmatpush1.bf16.msra.mxu0 0
      %898 = vmatprep.subr.bf16.mxu0 0
      %899 = vmatpush1.bf16.msra.mxu0 0
      %900 = vmatprep.subr.bf16.mxu0 0
      %901 = vmatpush1.bf16.msra.mxu0 0
      %902 = vmatprep.subr.bf16.mxu0 0
      %903 = vmatpush1.bf16.msra.mxu0 0
      %904 = vmatprep.subr.bf16.mxu0 0
      %905 = vmatpush1.bf16.msra.mxu0 0
      %906 = vmatprep.subr.bf16.mxu0 0
      %907 = vmatpush1.bf16.msra.mxu0 %v887
      %908 = vmatprep.subr.bf16.mxu0 0
      %909 = vmatpush2.bf16.msra.mxu0 0
      %910 = vmatprep.subr.bf16.mxu0 0
      %911 = vmatpush2.bf16.msra.mxu0 0
      %912 = vmatprep.subr.bf16.mxu0 0
      %913 = vmatpush2.bf16.msra.mxu0 0
      %914 = vmatprep.subr.bf16.mxu0 0
      %915 = vmatpush2.bf16.msra.mxu0 0
      %916 = vmatprep.subr.bf16.mxu0 0
      %917 = vmatpush2.bf16.msra.mxu0 0
      %918 = vmatprep.subr.bf16.mxu0 0
      %919 = vmatpush2.bf16.msra.mxu0 0
      %920 = vmatprep.subr.bf16.mxu0 0
      %921 = vmatpush2.bf16.msra.mxu0 0
      %922 = vmatprep.subr.bf16.mxu0 0
      %923 = vmatpush2.bf16.msra.mxu0 0
      %924 = vmatprep.mubr.bf16.mxu0 0
      %925 = vmatmul.mubr.bf16.gmra.mxu0 %v890
      %v926 = vpop.f32.mrf.mxu0
      %v927 = vadd.f32 0.0, %v926
      %v928 = vpop.f32.mrf.mxu0
      %v929 = vpop.f32.mrf.mxu0
      %v930 = vadd.f32 0.0, %v929
      %v931 = vpop.f32.mrf.mxu0
      %932 = vdwg.mxu0
      %v933 = vadd.f32 %v876, %v927
      %v934 = vadd.f32 %v877, %v930
      %s935 = scalar_lea.vmem %s3, 24
      %v936 = vld [vmem:[%s935] sm:$0xf]
      %v937 = vld [vmem:[%s935 + $0x4] sm:$0xf]
      %v940 = vunpack.c.l.b16 %v936
      %v941 = vunpack.c.l.b16 %v937
      %v942 = vpack.c.b16 %v941, %v940
      %943 = vrot.lane.b32.xlu0 %v773, 122
      %v944 = vpop.permute.xlu0 %943
      %v947 = vsel %vm266, %v942, 0
      %949 = vmatprep.subr.bf16.mxu0 0
      %950 = vmatpush1.bf16.msra.mxu0 0
      %951 = vmatprep.subr.bf16.mxu0 0
      %952 = vmatpush1.bf16.msra.mxu0 0
      %953 = vmatprep.subr.bf16.mxu0 0
      %954 = vmatpush1.bf16.msra.mxu0 0
      %955 = vmatprep.subr.bf16.mxu0 0
      %956 = vmatpush1.bf16.msra.mxu0 0
      %957 = vmatprep.subr.bf16.mxu0 0
      %958 = vmatpush1.bf16.msra.mxu0 0
      %959 = vmatprep.subr.bf16.mxu0 0
      %960 = vmatpush1.bf16.msra.mxu0 0
      %961 = vmatprep.subr.bf16.mxu0 0
      %962 = vmatpush1.bf16.msra.mxu0 0
      %963 = vmatprep.subr.bf16.mxu0 0
      %964 = vmatpush1.bf16.msra.mxu0 %v944
      %965 = vmatprep.subr.bf16.mxu0 0
      %966 = vmatpush2.bf16.msra.mxu0 0
      %967 = vmatprep.subr.bf16.mxu0 0
      %968 = vmatpush2.bf16.msra.mxu0 0
      %969 = vmatprep.subr.bf16.mxu0 0
      %970 = vmatpush2.bf16.msra.mxu0 0
      %971 = vmatprep.subr.bf16.mxu0 0
      %972 = vmatpush2.bf16.msra.mxu0 0
      %973 = vmatprep.subr.bf16.mxu0 0
      %974 = vmatpush2.bf16.msra.mxu0 0
      %975 = vmatprep.subr.bf16.mxu0 0
      %976 = vmatpush2.bf16.msra.mxu0 0
      %977 = vmatprep.subr.bf16.mxu0 0
      %978 = vmatpush2.bf16.msra.mxu0 0
      %979 = vmatprep.subr.bf16.mxu0 0
      %980 = vmatpush2.bf16.msra.mxu0 0
      %981 = vmatprep.mubr.bf16.mxu0 0
      %982 = vmatmul.mubr.bf16.gmra.mxu0 %v947
      %v983 = vpop.f32.mrf.mxu0
      %v984 = vadd.f32 0.0, %v983
      %v985 = vpop.f32.mrf.mxu0
      %v986 = vpop.f32.mrf.mxu0
      %v987 = vadd.f32 0.0, %v986
      %v988 = vpop.f32.mrf.mxu0
      %989 = vdwg.mxu0
      %v990 = vadd.f32 %v933, %v984
      %v991 = vadd.f32 %v934, %v987
      %s992 = scalar_lea.vmem %s3, 32
      %v993 = vld [vmem:[%s992] sm:$0xf]
      %v994 = vld [vmem:[%s992 + $0x4] sm:$0xf]
      %v997 = vunpack.c.l.b16 %v993
      %v998 = vunpack.c.l.b16 %v994
      %v999 = vpack.c.b16 %v998, %v997
      %1000 = vrot.lane.b32.xlu0 %v773, 121
      %v1001 = vpop.permute.xlu0 %1000
      %v1004 = vsel %vm266, %v999, 0
      %1006 = vmatprep.subr.bf16.mxu0 0
      %1007 = vmatpush1.bf16.msra.mxu0 0
      %1008 = vmatprep.subr.bf16.mxu0 0
      %1009 = vmatpush1.bf16.msra.mxu0 0
      %1010 = vmatprep.subr.bf16.mxu0 0
      %1011 = vmatpush1.bf16.msra.mxu0 0
      %1012 = vmatprep.subr.bf16.mxu0 0
      %1013 = vmatpush1.bf16.msra.mxu0 0
      %1014 = vmatprep.subr.bf16.mxu0 0
      %1015 = vmatpush1.bf16.msra.mxu0 0
      %1016 = vmatprep.subr.bf16.mxu0 0
      %1017 = vmatpush1.bf16.msra.mxu0 0
      %1018 = vmatprep.subr.bf16.mxu0 0
      %1019 = vmatpush1.bf16.msra.mxu0 0
      %1020 = vmatprep.subr.bf16.mxu0 0
      %1021 = vmatpush1.bf16.msra.mxu0 %v1001
      %1022 = vmatprep.subr.bf16.mxu0 0
      %1023 = vmatpush2.bf16.msra.mxu0 0
      %1024 = vmatprep.subr.bf16.mxu0 0
      %1025 = vmatpush2.bf16.msra.mxu0 0
      %1026 = vmatprep.subr.bf16.mxu0 0
      %1027 = vmatpush2.bf16.msra.mxu0 0
      %1028 = vmatprep.subr.bf16.mxu0 0
      %1029 = vmatpush2.bf16.msra.mxu0 0
      %1030 = vmatprep.subr.bf16.mxu0 0
      %1031 = vmatpush2.bf16.msra.mxu0 0
      %1032 = vmatprep.subr.bf16.mxu0 0
      %1033 = vmatpush2.bf16.msra.mxu0 0
      %1034 = vmatprep.subr.bf16.mxu0 0
      %1035 = vmatpush2.bf16.msra.mxu0 0
      %1036 = vmatprep.subr.bf16.mxu0 0
      %1037 = vmatpush2.bf16.msra.mxu0 0
      %1038 = vmatprep.mubr.bf16.mxu0 0
      %1039 = vmatmul.mubr.bf16.gmra.mxu0 %v1004
      %v1040 = vpop.f32.mrf.mxu0
      %v1041 = vadd.f32 0.0, %v1040
      %v1042 = vpop.f32.mrf.mxu0
      %v1043 = vpop.f32.mrf.mxu0
      %v1044 = vadd.f32 0.0, %v1043
      %v1045 = vpop.f32.mrf.mxu0
      %1046 = vdwg.mxu0
      %v1047 = vadd.f32 %v990, %v1041
      %v1048 = vadd.f32 %v991, %v1044
      %s1049 = scalar_lea.vmem %s3, 40
      %v1050 = vld [vmem:[%s1049] sm:$0xf]
      %v1051 = vld [vmem:[%s1049 + $0x4] sm:$0xf]
      %v1054 = vunpack.c.l.b16 %v1050
      %v1055 = vunpack.c.l.b16 %v1051
      %v1056 = vpack.c.b16 %v1055, %v1054
      %1057 = vrot.lane.b32.xlu0 %v773, 120
      %v1058 = vpop.permute.xlu0 %1057
      %v1061 = vsel %vm266, %v1056, 0
      %1063 = vmatprep.subr.bf16.mxu0 0
      %1064 = vmatpush1.bf16.msra.mxu0 0
      %1065 = vmatprep.subr.bf16.mxu0 0
      %1066 = vmatpush1.bf16.msra.mxu0 0
      %1067 = vmatprep.subr.bf16.mxu0 0
      %1068 = vmatpush1.bf16.msra.mxu0 0
      %1069 = vmatprep.subr.bf16.mxu0 0
      %1070 = vmatpush1.bf16.msra.mxu0 0
      %1071 = vmatprep.subr.bf16.mxu0 0
      %1072 = vmatpush1.bf16.msra.mxu0 0
      %1073 = vmatprep.subr.bf16.mxu0 0
      %1074 = vmatpush1.bf16.msra.mxu0 0
      %1075 = vmatprep.subr.bf16.mxu0 0
      %1076 = vmatpush1.bf16.msra.mxu0 0
      %1077 = vmatprep.subr.bf16.mxu0 0
      %1078 = vmatpush1.bf16.msra.mxu0 %v1058
      %1079 = vmatprep.subr.bf16.mxu0 0
      %1080 = vmatpush2.bf16.msra.mxu0 0
      %1081 = vmatprep.subr.bf16.mxu0 0
      %1082 = vmatpush2.bf16.msra.mxu0 0
      %1083 = vmatprep.subr.bf16.mxu0 0
      %1084 = vmatpush2.bf16.msra.mxu0 0
      %1085 = vmatprep.subr.bf16.mxu0 0
      %1086 = vmatpush2.bf16.msra.mxu0 0
      %1087 = vmatprep.subr.bf16.mxu0 0
      %1088 = vmatpush2.bf16.msra.mxu0 0
      %1089 = vmatprep.subr.bf16.mxu0 0
      %1090 = vmatpush2.bf16.msra.mxu0 0
      %1091 = vmatprep.subr.bf16.mxu0 0
      %1092 = vmatpush2.bf16.msra.mxu0 0
      %1093 = vmatprep.subr.bf16.mxu0 0
      %1094 = vmatpush2.bf16.msra.mxu0 0
      %1095 = vmatprep.mubr.bf16.mxu0 0
      %1096 = vmatmul.mubr.bf16.gmra.mxu0 %v1061
      %v1097 = vpop.f32.mrf.mxu0
      %v1098 = vadd.f32 0.0, %v1097
      %v1099 = vpop.f32.mrf.mxu0
      %v1100 = vpop.f32.mrf.mxu0
      %v1101 = vadd.f32 0.0, %v1100
      %v1102 = vpop.f32.mrf.mxu0
      %1103 = vdwg.mxu0
      %v1104 = vadd.f32 %v1047, %v1098
      %v1105 = vadd.f32 %v1048, %v1101
      %s1106 = scalar_lea.vmem %s3, 48
      %v1107 = vld [vmem:[%s1106] sm:$0xf]
      %v1108 = vld [vmem:[%s1106 + $0x4] sm:$0xf]
      %v1111 = vunpack.c.l.b16 %v1107
      %v1112 = vunpack.c.l.b16 %v1108
      %v1113 = vpack.c.b16 %v1112, %v1111
      %1114 = vrot.lane.b32.xlu0 %v773, 116
      %v1115 = vpop.permute.xlu0 %1114
      %v1118 = vsel %vm266, %v1113, 0
      %1120 = vmatprep.subr.bf16.mxu0 0
      %1121 = vmatpush1.bf16.msra.mxu0 0
      %1122 = vmatprep.subr.bf16.mxu0 0
      %1123 = vmatpush1.bf16.msra.mxu0 0
      %1124 = vmatprep.subr.bf16.mxu0 0
      %1125 = vmatpush1.bf16.msra.mxu0 0
      %1126 = vmatprep.subr.bf16.mxu0 0
      %1127 = vmatpush1.bf16.msra.mxu0 0
      %1128 = vmatprep.subr.bf16.mxu0 0
      %1129 = vmatpush1.bf16.msra.mxu0 0
      %1130 = vmatprep.subr.bf16.mxu0 0
      %1131 = vmatpush1.bf16.msra.mxu0 0
      %1132 = vmatprep.subr.bf16.mxu0 0
      %1133 = vmatpush1.bf16.msra.mxu0 0
      %1134 = vmatprep.subr.bf16.mxu0 0
      %1135 = vmatpush1.bf16.msra.mxu0 %v1115
      %1136 = vmatprep.subr.bf16.mxu0 0
      %1137 = vmatpush2.bf16.msra.mxu0 0
      %1138 = vmatprep.subr.bf16.mxu0 0
      %1139 = vmatpush2.bf16.msra.mxu0 0
      %1140 = vmatprep.subr.bf16.mxu0 0
      %1141 = vmatpush2.bf16.msra.mxu0 0
      %1142 = vmatprep.subr.bf16.mxu0 0
      %1143 = vmatpush2.bf16.msra.mxu0 0
      %1144 = vmatprep.subr.bf16.mxu0 0
      %1145 = vmatpush2.bf16.msra.mxu0 0
      %1146 = vmatprep.subr.bf16.mxu0 0
      %1147 = vmatpush2.bf16.msra.mxu0 0
      %1148 = vmatprep.subr.bf16.mxu0 0
      %1149 = vmatpush2.bf16.msra.mxu0 0
      %1150 = vmatprep.subr.bf16.mxu0 0
      %1151 = vmatpush2.bf16.msra.mxu0 0
      %1152 = vmatprep.mubr.bf16.mxu0 0
      %1153 = vmatmul.mubr.bf16.gmra.mxu0 %v1118
      %v1154 = vpop.f32.mrf.mxu0
      %v1155 = vadd.f32 0.0, %v1154
      %v1156 = vpop.f32.mrf.mxu0
      %v1157 = vpop.f32.mrf.mxu0
      %v1158 = vadd.f32 0.0, %v1157
      %v1159 = vpop.f32.mrf.mxu0
      %1160 = vdwg.mxu0
      %v1161 = vadd.f32 %v1104, %v1155
      %v1162 = vadd.f32 %v1105, %v1158
      %s1163 = scalar_lea.vmem %s3, 56
      %v1164 = vld [vmem:[%s1163] sm:$0xf]
      %v1165 = vld [vmem:[%s1163 + $0x4] sm:$0xf]
      %v1168 = vunpack.c.l.b16 %v1164
      %v1169 = vunpack.c.l.b16 %v1165
      %v1170 = vpack.c.b16 %v1169, %v1168
      %1171 = vrot.lane.b32.xlu0 %v773, 115
      %v1172 = vpop.permute.xlu0 %1171
      %v1175 = vsel %vm266, %v1170, 0
      %1177 = vmatprep.subr.bf16.mxu0 0
      %1178 = vmatpush1.bf16.msra.mxu0 0
      %1179 = vmatprep.subr.bf16.mxu0 0
      %1180 = vmatpush1.bf16.msra.mxu0 0
      %1181 = vmatprep.subr.bf16.mxu0 0
      %1182 = vmatpush1.bf16.msra.mxu0 0
      %1183 = vmatprep.subr.bf16.mxu0 0
      %1184 = vmatpush1.bf16.msra.mxu0 0
      %1185 = vmatprep.subr.bf16.mxu0 0
      %1186 = vmatpush1.bf16.msra.mxu0 0
      %1187 = vmatprep.subr.bf16.mxu0 0
      %1188 = vmatpush1.bf16.msra.mxu0 0
      %1189 = vmatprep.subr.bf16.mxu0 0
      %1190 = vmatpush1.bf16.msra.mxu0 0
      %1191 = vmatprep.subr.bf16.mxu0 0
      %1192 = vmatpush1.bf16.msra.mxu0 %v1172
      %1193 = vmatprep.subr.bf16.mxu0 0
      %1194 = vmatpush2.bf16.msra.mxu0 0
      %1195 = vmatprep.subr.bf16.mxu0 0
      %1196 = vmatpush2.bf16.msra.mxu0 0
      %1197 = vmatprep.subr.bf16.mxu0 0
      %1198 = vmatpush2.bf16.msra.mxu0 0
      %1199 = vmatprep.subr.bf16.mxu0 0
      %1200 = vmatpush2.bf16.msra.mxu0 0
      %1201 = vmatprep.subr.bf16.mxu0 0
      %1202 = vmatpush2.bf16.msra.mxu0 0
      %1203 = vmatprep.subr.bf16.mxu0 0
      %1204 = vmatpush2.bf16.msra.mxu0 0
      %1205 = vmatprep.subr.bf16.mxu0 0
      %1206 = vmatpush2.bf16.msra.mxu0 0
      %1207 = vmatprep.subr.bf16.mxu0 0
      %1208 = vmatpush2.bf16.msra.mxu0 0
      %1209 = vmatprep.mubr.bf16.mxu0 0
      %1210 = vmatmul.mubr.bf16.gmra.mxu0 %v1175
      %v1211 = vpop.f32.mrf.mxu0
      %v1212 = vadd.f32 0.0, %v1211
      %v1213 = vpop.f32.mrf.mxu0
      %v1214 = vpop.f32.mrf.mxu0
      %v1215 = vadd.f32 0.0, %v1214
      %v1216 = vpop.f32.mrf.mxu0
      %1217 = vdwg.mxu0
      %v1218 = vadd.f32 %v1161, %v1212
      %v1219 = vadd.f32 %v1162, %v1215
      %s1220 = scalar_lea.vmem %s3, 64
      %v1221 = vld [vmem:[%s1220] sm:$0xf]
      %v1222 = vld [vmem:[%s1220 + $0x4] sm:$0xf]
      %v1225 = vunpack.c.l.b16 %v1221
      %v1226 = vunpack.c.l.b16 %v1222
      %v1227 = vpack.c.b16 %v1226, %v1225
      %1228 = vrot.lane.b32.xlu0 %v773, 114
      %v1229 = vpop.permute.xlu0 %1228
      %v1232 = vsel %vm266, %v1227, 0
      %1234 = vmatprep.subr.bf16.mxu0 0
      %1235 = vmatpush1.bf16.msra.mxu0 0
      %1236 = vmatprep.subr.bf16.mxu0 0
      %1237 = vmatpush1.bf16.msra.mxu0 0
      %1238 = vmatprep.subr.bf16.mxu0 0
      %1239 = vmatpush1.bf16.msra.mxu0 0
      %1240 = vmatprep.subr.bf16.mxu0 0
      %1241 = vmatpush1.bf16.msra.mxu0 0
      %1242 = vmatprep.subr.bf16.mxu0 0
      %1243 = vmatpush1.bf16.msra.mxu0 0
      %1244 = vmatprep.subr.bf16.mxu0 0
      %1245 = vmatpush1.bf16.msra.mxu0 0
      %1246 = vmatprep.subr.bf16.mxu0 0
      %1247 = vmatpush1.bf16.msra.mxu0 0
      %1248 = vmatprep.subr.bf16.mxu0 0
      %1249 = vmatpush1.bf16.msra.mxu0 %v1229
      %1250 = vmatprep.subr.bf16.mxu0 0
      %1251 = vmatpush2.bf16.msra.mxu0 0
      %1252 = vmatprep.subr.bf16.mxu0 0
      %1253 = vmatpush2.bf16.msra.mxu0 0
      %1254 = vmatprep.subr.bf16.mxu0 0
      %1255 = vmatpush2.bf16.msra.mxu0 0
      %1256 = vmatprep.subr.bf16.mxu0 0
      %1257 = vmatpush2.bf16.msra.mxu0 0
      %1258 = vmatprep.subr.bf16.mxu0 0
      %1259 = vmatpush2.bf16.msra.mxu0 0
      %1260 = vmatprep.subr.bf16.mxu0 0
      %1261 = vmatpush2.bf16.msra.mxu0 0
      %1262 = vmatprep.subr.bf16.mxu0 0
      %1263 = vmatpush2.bf16.msra.mxu0 0
      %1264 = vmatprep.subr.bf16.mxu0 0
      %1265 = vmatpush2.bf16.msra.mxu0 0
      %1266 = vmatprep.mubr.bf16.mxu0 0
      %1267 = vmatmul.mubr.bf16.gmra.mxu0 %v1232
      %v1268 = vpop.f32.mrf.mxu0
      %v1269 = vadd.f32 0.0, %v1268
      %v1270 = vpop.f32.mrf.mxu0
      %v1271 = vpop.f32.mrf.mxu0
      %v1272 = vadd.f32 0.0, %v1271
      %v1273 = vpop.f32.mrf.mxu0
      %1274 = vdwg.mxu0
      %v1275 = vadd.f32 %v1218, %v1269
      %v1276 = vadd.f32 %v1219, %v1272
      %v1277 = vld [vmem:[%s4] sm:$0xff]
      %v1278 = vld [vmem:[%s4 + $0x8] sm:$0xff]
      %1280 = vset.pattern.permute.xlu0 0
      %1281 = vperm.xlu0 %1280, %v1277
      %v1282 = vpop.permute.xlu0 %1281
      %1285 = vset.pattern.permute.xlu0 0
      %1286 = vperm.xlu0 %1285, %v1278
      %v1287 = vpop.permute.xlu0 %1286
      %v1289 = vadd.f32 %v1275, %v1282
      %v1290 = vadd.f32 %v1276, %v1287
      %v1291 = vmax.f32 %v1289, 0.0
      %v1292 = vmax.f32 %v1290, 0.0
      %v1293 = vpack.c.bf16 %v1292, %v1291
      %v1295 = vunpack.c.l.b16 %v1293
      %v1296 = vunpack.c.h.b16 %v1293
      %v1297 = vpack.c.b16 %v1295, %v1295
      %v1298 = vpack.c.b16 %v1296, %v1296
      %vm1301 = vcmask 240640
      %1302 = vst.msk [vmem:[%s244] sm:$0xf] %vm1301, %v1297
      %1303 = vst.msk [vmem:[%s244 + $0x4] sm:$0xf] %vm1301, %v1298
      %p1304 = scmp.lt.s32.totalorder %s16, 1
      %s1305 = scalar_select %p1304, %s16, 1
      %s1306 = smul.addr %s1305, 2
      %s1307 = smul.addr %s1306, 4
      %s1308 = scalar_lea.vmem %s5, %s1307
      // Predicated region
      $region41: #{conv_3nv1_forward.13} parent=39 // pred_check
        %p1309 = pneg %p149
      $region42: #{conv_3nv1_forward.13} parent=39 // pred_check_branch
        %1311 = sbr.rel (%p1309) target = $region44
      $region43: #{conv_3nv1_forward.13} parent=39 // pred_region
        _
      $region44: #{conv_3nv1_forward.13} parent=39 // pred_fallthru
        _
    $region40: #{conv_3nv1_forward.13} parent=5 // pred_fallthru
      _
    %p1312 = scmp.le.s32.totalorder 2, %s11
    // Predicated region
    $region45: #{conv_3nv1_forward.13} parent=5 // pred_check
      %p1313 = pneg %p1312
    $region46: #{conv_3nv1_forward.13} parent=5 // pred_check_branch
      %1315 = sbr.rel (%p1313) target = $region48
    $region47: #{conv_3nv1_forward.13} parent=5 // pred_region
      %s1316 = ssub.s32 %s11, 2
      // Predicated region
      $region49: #{conv_3nv1_forward.13} parent=47 // pred_check
        %p1317 = pneg %p155
      $region50: #{conv_3nv1_forward.13} parent=47 // pred_check_branch
        %1319 = sbr.rel (%p1317) target = $region52
      $region51: #{conv_3nv1_forward.13} parent=47 // pred_region
        %p1320 = scmp.lt.s32.totalorder %s17, 1
        %s1321 = scalar_select %p1320, %s17, 1
        %s1322 = smul.addr %s1321, 2
        %s1323 = smul.addr %s1322, 4
        %s1324 = scalar_lea.vmem %s5, %s1323
      $region52: #{conv_3nv1_forward.13} parent=47 // pred_fallthru
        _
    $region48: #{conv_3nv1_forward.13} parent=5 // pred_fallthru
      _
  $region6: #{conv_3nv1_forward.13} parent=0 // loop_footer
    %s15 = sadd.s32 1, %s11
  $region7: #{conv_3nv1_forward.13} parent=0 // loop_footer_branch
    %10 = sbr.rel target = $region3
  $region8: #{conv_3nv1_forward.13} parent=0 // loop_exit
    _

// kernel: conv_3nv1_forward.8
$region0: #{conv_3nv1_forward.8}
  #allocation0 [shape = 'u32[]', space=smem, size = 0x4, offset = 0x4, fixed_abs, tag = 'smem constant byte address 0x4 - core index']
  #allocation1 [shape = 'u32[144,128]{1,0:T(1,128)}', space=vmem, size = 0x12000, scoped, tag = 'internal scratch']
  %s0 = inlined_call_operand.vmem [shape: bf16[2,16,360], index: 0, kind: input, shape index: {}]
  %s1 = inlined_call_operand.vmem [shape: bf16[9,16,16], index: 1, kind: input, shape index: {}]
  %s2 = inlined_call_operand.vmem [shape: f32[16,1], index: 2, kind: input, shape index: {}]
  %s3 = inlined_call_operand.vmem [shape: bf16[2,16,306], index: 3, kind: output, shape index: {}]
  %s4 = sld [smem:[#allocation0]]
  $region45: #{conv_3nv1_forward.8} parent=0
    _
  %s6 = ssub.s32 1, %s4
  %s7 = scalar_select 0, %s6, %s4
  loop: start=0, step=1, limit=4
  $region2: #{conv_3nv1_forward.8} parent=0 // loop_pre_header
    _
  $region3: #{conv_3nv1_forward.8} parent=0 // loop_header
    %s9 = sphi 0, %s13
    %p10 = scmp.ge.s32.totalorder %s9, 4
    %s19 = sphi 0, %s21
    %s22 = sphi 0, %s19
    %s23 = sphi 0, %s22
    %s39 = sphi 0, %s23
    %s43 = sphi 0, %s43
    %s45 = sphi 0, %s43
    %s46 = sphi 0, %s45
    %s60 = sphi 0, %s46
    %s64 = sphi 0, %s64
    %s66 = sphi 0, %s64
    %s67 = sphi 0, %s66
    %s81 = sphi 0, %s67
    %s87 = sphi 0, %s89
    %s90 = sphi 0, %s87
    %s91 = sphi 0, %s90
    %s107 = sphi 0, %s91
  $region4: #{conv_3nv1_forward.8} parent=0 // loop_header_branch
    %12 = sbr.rel (%p10) target = $region8
  $region5: #{conv_3nv1_forward.8} parent=0 // loop_body
    %s14 = ssub.s32 %s9, 1
    %s15 = ssub.s32 %s9, 2
    %s16 = sadd.s32 %s9, 1
    %s17 = ssub.s32 %s9, %s16
    %p18 = scmp.eq.s32.totalorder %s17, 0
    %s20 = sadd.s32 %s19, 1
    %s21 = scalar_select %p18, %s19, %s20
    %p24 = pneg %p18
    %p25 = scmp.eq.s32.totalorder %s9, 1
    %p26 = por %p24, %p25
    %p27 = scmp.ne.s32.totalorder %s19, %s22
    %p28 = scmp.eq.s32.totalorder %s9, 0
    %p29 = por %p27, %p28
    %p30 = scmp.ne.s32.totalorder %s19, %s22
    %p31 = scmp.eq.s32.totalorder %s14, 1
    %p32 = por %p30, %p31
    %p33 = scmp.ne.s32.totalorder %s22, %s23
    %p34 = scmp.eq.s32.totalorder %s14, 0
    %p35 = por %p33, %p34
    %p36 = scmp.ne.s32.totalorder %s22, %s23
    %p37 = scmp.eq.s32.totalorder %s15, 1
    %p38 = por %p36, %p37
    %p40 = scmp.ne.s32.totalorder %s23, %s39
    %p41 = scmp.eq.s32.totalorder %s15, 0
    %p42 = por %p40, %p41
    %s44 = sadd.s32 %s43, 1
    %p47 = scmp.eq.s32.totalorder %s9, 1
    %p48 = scmp.ne.s32.totalorder %s43, %s45
    %p49 = scmp.eq.s32.totalorder %s9, 0
    %p50 = por %p48, %p49
    %p51 = scmp.ne.s32.totalorder %s43, %s45
    %p52 = scmp.eq.s32.totalorder %s14, 1
    %p53 = por %p51, %p52
    %p54 = scmp.ne.s32.totalorder %s45, %s46
    %p55 = scmp.eq.s32.totalorder %s14, 0
    %p56 = por %p54, %p55
    %p57 = scmp.ne.s32.totalorder %s45, %s46
    %p58 = scmp.eq.s32.totalorder %s15, 1
    %p59 = por %p57, %p58
    %p61 = scmp.ne.s32.totalorder %s46, %s60
    %p62 = scmp.eq.s32.totalorder %s15, 0
    %p63 = por %p61, %p62
    %s65 = sadd.s32 %s64, 1
    %p68 = scmp.eq.s32.totalorder %s9, 1
    %p69 = scmp.ne.s32.totalorder %s64, %s66
    %p70 = scmp.eq.s32.totalorder %s9, 0
    %p71 = por %p69, %p70
    %p72 = scmp.ne.s32.totalorder %s64, %s66
    %p73 = scmp.eq.s32.totalorder %s14, 1
    %p74 = por %p72, %p73
    %p75 = scmp.ne.s32.totalorder %s66, %s67
    %p76 = scmp.eq.s32.totalorder %s14, 0
    %p77 = por %p75, %p76
    %p78 = scmp.ne.s32.totalorder %s66, %s67
    %p79 = scmp.eq.s32.totalorder %s15, 1
    %p80 = por %p78, %p79
    %p82 = scmp.ne.s32.totalorder %s67, %s81
    %p83 = scmp.eq.s32.totalorder %s15, 0
    %p84 = por %p82, %p83
    %s85 = ssub.s32 %s9, %s16
    %p86 = scmp.eq.s32.totalorder %s85, 0
    %s88 = sadd.s32 %s87, 1
    %s89 = scalar_select %p86, %s87, %s88
    %p92 = pneg %p86
    %p93 = scmp.eq.s32.totalorder %s9, 1
    %p94 = por %p92, %p93
    %p95 = scmp.ne.s32.totalorder %s87, %s90
    %p96 = scmp.eq.s32.totalorder %s9, 0
    %p97 = por %p95, %p96
    %p98 = scmp.ne.s32.totalorder %s87, %s90
    %p99 = scmp.eq.s32.totalorder %s14, 1
    %p100 = por %p98, %p99
    %p101 = scmp.ne.s32.totalorder %s90, %s91
    %p102 = scmp.eq.s32.totalorder %s14, 0
    %p103 = por %p101, %p102
    %p104 = scmp.ne.s32.totalorder %s90, %s91
    %p105 = scmp.eq.s32.totalorder %s15, 1
    %p106 = por %p104, %p105
    %p108 = scmp.ne.s32.totalorder %s91, %s107
    %p109 = scmp.eq.s32.totalorder %s15, 0
    %p110 = por %p108, %p109
    %p111 = scmp.le.s32.totalorder 1, %s9
    %p112 = scmp.lt.s32.totalorder %s9, 3
    %p113 = pnand %p111, %p112
    %p114 = pneg %p113
    // Predicated region
    $region9: #{conv_3nv1_forward.8} parent=5 // pred_check
      _
    $region10: #{conv_3nv1_forward.8} parent=5 // pred_check_branch
      %116 = sbr.rel (%p113) target = $region12
    $region11: #{conv_3nv1_forward.8} parent=5 // pred_region
      %s117 = ssub.s32 %s9, 1
      // Predicated region
      $region13: #{conv_3nv1_forward.8} parent=11 // pred_check
        %p118 = pneg %p56
      $region14: #{conv_3nv1_forward.8} parent=11 // pred_check_branch
        %120 = sbr.rel (%p118) target = $region16
      $region15: #{conv_3nv1_forward.8} parent=11 // pred_region
        _
      $region16: #{conv_3nv1_forward.8} parent=11 // pred_fallthru
        _
      // Predicated region
      $region17: #{conv_3nv1_forward.8} parent=11 // pred_check
        %p121 = pneg %p77
      $region18: #{conv_3nv1_forward.8} parent=11 // pred_check_branch
        %123 = sbr.rel (%p121) target = $region20
      $region19: #{conv_3nv1_forward.8} parent=11 // pred_region
        _
      $region20: #{conv_3nv1_forward.8} parent=11 // pred_fallthru
        _
    $region12: #{conv_3nv1_forward.8} parent=5 // pred_fallthru
      _
    %p124 = scmp.lt.s32.totalorder %s9, 2
    // Predicated region
    $region21: #{conv_3nv1_forward.8} parent=5 // pred_check
      %p125 = pneg %p124
    $region22: #{conv_3nv1_forward.8} parent=5 // pred_check_branch
      %127 = sbr.rel (%p125) target = $region24
    $region23: #{conv_3nv1_forward.8} parent=5 // pred_region
      // Predicated region
      $region25: #{conv_3nv1_forward.8} parent=23 // pred_check
        %p128 = pneg %p29
      $region26: #{conv_3nv1_forward.8} parent=23 // pred_check_branch
        %130 = sbr.rel (%p128) target = $region28
      $region27: #{conv_3nv1_forward.8} parent=23 // pred_region
        %p131 = scmp.lt.s32.totalorder %s9, 1
        %s132 = scalar_select %p131, %s9, 1
        %s133 = smul.addr %s132, 6
        %s134 = smul.addr %s133, 4
        %s135 = scalar_lea.vmem %s0, %s134
      $region28: #{conv_3nv1_forward.8} parent=23 // pred_fallthru
        _
    $region24: #{conv_3nv1_forward.8} parent=5 // pred_fallthru
      _
    %p136 = scmp.le.s32.totalorder 1, %s9
    %p137 = scmp.lt.s32.totalorder %s9, 3
    %p138 = pnand %p136, %p137
    %p139 = pneg %p138
    // Predicated region
    $region29: #{conv_3nv1_forward.8} parent=5 // pred_check
      _
    $region30: #{conv_3nv1_forward.8} parent=5 // pred_check_branch
      %141 = sbr.rel (%p138) target = $region32
    $region31: #{conv_3nv1_forward.8} parent=5 // pred_region
      %s142 = ssub.s32 %s9, 1
      %p143 = scmp.lt.s32.totalorder %s14, 1
      %s144 = scalar_select %p143, %s14, 1
      %s145 = smul.addr %s144, 6
      %s146 = smul.addr %s145, 4
      %s147 = scalar_lea.vmem %s0, %s146
      %p148 = pneg %p35
      %p149 = pneg %p32
      %p150 = pneg %p56
      %p151 = pneg %p53
      %p152 = pneg %p77
      %p153 = pneg %p74
      %p154 = pneg %p103
      %p155 = pneg %p100
      %p156 = scmp.lt.s32.totalorder %s14, 1
      %s157 = scalar_select %p156, %s14, 1
      %s158 = smul.addr %s157, 6
      %s159 = smul.addr %s158, 4
      %s160 = scalar_lea.vmem %s3, %s159
      %p161 = scmp.lt.s32.totalorder %s14, 1
      %s162 = scalar_select %p161, %s14, 1
      %s163 = smul.addr %s162, 6
      %s164 = smul.addr %s163, 4
      %s165 = scalar_lea.vmem %s0, %s164
      %p166 = scmp.lt.s32.totalorder %s14, 1
      %s167 = scalar_select %p166, %s14, 1
      %s168 = smul.addr %s167, 6
      %s169 = smul.addr %s168, 4
      %s170 = scalar_lea.vmem %s3, %s169
      %v172 = vld [vmem:[%s165] sm:$0xff]
      %v173 = vld [vmem:[%s165 + $0x8] sm:$0xf]
      %v174 = vld [vmem:[%s165 + $0xc] sm:$0xff]
      %v175 = vld [vmem:[%s165 + $0x14] sm:$0xf]
      %v176 = vld [vmem:[%s1] sm:$0xf]
      %v177 = vld [vmem:[%s1 + $0x4] sm:$0xf]
      %s178 = scalar_lea.vmem %s1, 8
      %v179 = vld [vmem:[%s178] sm:$0xf]
      %v180 = vld [vmem:[%s178 + $0x4] sm:$0xf]
      %v183 = vunpack.c.l.b16 %v179
      %v184 = vunpack.c.l.b16 %v180
      %v185 = vpack.c.b16 %v184, %v183
      %v190 = vunpack.c.l.b16 %v172
      %v191 = vunpack.c.h.b16 %v172
      %v192 = vunpack.c.l.b16 %v173
      %v193 = vunpack.c.l.b16 %v174
      %v194 = vunpack.c.h.b16 %v174
      %v195 = vunpack.c.l.b16 %v175
      %v196 = vpack.c.b16 %v193, %v190
      %v197 = vpack.c.b16 %v194, %v191
      %v198 = vpack.c.b16 %v195, %v192
      %199 = vrot.lane.b32.xlu0 %v196, 127
      %v200 = vpop.permute.xlu0 %199
      %201 = vrot.lane.b32.xlu0 %v197, 127
      %v202 = vpop.permute.xlu0 %201
      %203 = vrot.lane.b32.xlu0 %v198, 127
      %v204 = vpop.permute.xlu0 %203
      %vm205 = vcmask 1039360
      %v206 = vsel %vm205, %v200, %v202
      %v207 = vsel %vm205, %v202, %v204
      %vm211 = vcmask 130048
      %v213 = vsel %vm211, %v185, 0
      %215 = vmatprep.subr.bf16.mxu0 0
      %216 = vmatpush1.bf16.msra.mxu0 0
      %217 = vmatprep.subr.bf16.mxu0 0
      %218 = vmatpush1.bf16.msra.mxu0 0
      %219 = vmatprep.subr.bf16.mxu0 0
      %220 = vmatpush1.bf16.msra.mxu0 0
      %221 = vmatprep.subr.bf16.mxu0 0
      %222 = vmatpush1.bf16.msra.mxu0 0
      %223 = vmatprep.subr.bf16.mxu0 0
      %224 = vmatpush1.bf16.msra.mxu0 0
      %225 = vmatprep.subr.bf16.mxu0 0
      %226 = vmatpush1.bf16.msra.mxu0 0
      %227 = vmatprep.subr.bf16.mxu0 0
      %228 = vmatpush1.bf16.msra.mxu0 0
      %229 = vmatprep.subr.bf16.mxu0 %v207
      %230 = vmatpush1.bf16.msra.mxu0 %v206
      %231 = vmatprep.subr.bf16.mxu0 0
      %232 = vmatpush2.bf16.msra.mxu0 0
      %233 = vmatprep.subr.bf16.mxu0 0
      %234 = vmatpush2.bf16.msra.mxu0 0
      %235 = vmatprep.subr.bf16.mxu0 0
      %236 = vmatpush2.bf16.msra.mxu0 0
      %237 = vmatprep.subr.bf16.mxu0 0
      %238 = vmatpush2.bf16.msra.mxu0 0
      %239 = vmatprep.subr.bf16.mxu0 0
      %240 = vmatpush2.bf16.msra.mxu0 0
      %241 = vmatprep.subr.bf16.mxu0 0
      %242 = vmatpush2.bf16.msra.mxu0 0
      %243 = vmatprep.subr.bf16.mxu0 0
      %244 = vmatpush2.bf16.msra.mxu0 0
      %245 = vmatprep.subr.bf16.mxu0 0
      %246 = vmatpush2.bf16.msra.mxu0 0
      %247 = vmatprep.mubr.bf16.mxu0 0
      %248 = vmatmul.mubr.bf16.gmra.mxu0 %v213
      %v249 = vpop.f32.mrf.mxu0
      %v250 = vadd.f32 0.0, %v249
      %v251 = vpop.f32.mrf.mxu0
      %v252 = vadd.f32 0.0, %v251
      %v253 = vpop.f32.mrf.mxu0
      %v254 = vadd.f32 0.0, %v253
      %v255 = vpop.f32.mrf.mxu0
      %v256 = vadd.f32 0.0, %v255
      %257 = vdwg.mxu0
      %258 = vmatprep.subr.bf16.mxu0 0
      %259 = vmatpush1.bf16.msra.mxu0 0
      %260 = vmatprep.subr.bf16.mxu0 0
      %261 = vmatpush1.bf16.msra.mxu0 0
      %262 = vmatprep.subr.bf16.mxu0 0
      %263 = vmatpush1.bf16.msra.mxu0 0
      %264 = vmatprep.subr.bf16.mxu0 0
      %265 = vmatpush1.bf16.msra.mxu0 0
      %266 = vmatprep.subr.bf16.mxu0 0
      %267 = vmatpush1.bf16.msra.mxu0 0
      %268 = vmatprep.subr.bf16.mxu0 0
      %269 = vmatpush1.bf16.msra.mxu0 0
      %270 = vmatprep.subr.bf16.mxu0 0
      %271 = vmatpush1.bf16.msra.mxu0 0
      %272 = vmatprep.subr.bf16.mxu0 0
      %273 = vmatpush1.bf16.msra.mxu0 %v204
      %274 = vmatprep.subr.bf16.mxu0 0
      %275 = vmatpush2.bf16.msra.mxu0 0
      %276 = vmatprep.subr.bf16.mxu0 0
      %277 = vmatpush2.bf16.msra.mxu0 0
      %278 = vmatprep.subr.bf16.mxu0 0
      %279 = vmatpush2.bf16.msra.mxu0 0
      %280 = vmatprep.subr.bf16.mxu0 0
      %281 = vmatpush2.bf16.msra.mxu0 0
      %282 = vmatprep.subr.bf16.mxu0 0
      %283 = vmatpush2.bf16.msra.mxu0 0
      %284 = vmatprep.subr.bf16.mxu0 0
      %285 = vmatpush2.bf16.msra.mxu0 0
      %286 = vmatprep.subr.bf16.mxu0 0
      %287 = vmatpush2.bf16.msra.mxu0 0
      %288 = vmatprep.subr.bf16.mxu0 0
      %289 = vmatpush2.bf16.msra.mxu0 0
      %290 = vmatprep.mubr.bf16.mxu0 0
      %291 = vmatmul.mubr.bf16.gmra.mxu0 %v213
      %v292 = vpop.f32.mrf.mxu0
      %v293 = vadd.f32 0.0, %v292
      %v294 = vpop.f32.mrf.mxu0
      %v295 = vpop.f32.mrf.mxu0
      %v296 = vadd.f32 0.0, %v295
      %v297 = vpop.f32.mrf.mxu0
      %298 = vdwg.mxu0
      %v301 = vunpack.c.l.b16 %v176
      %v302 = vunpack.c.l.b16 %v177
      %v303 = vpack.c.b16 %v302, %v301
      %v308 = vsel %vm211, %v303, 0
      %310 = vmatprep.subr.bf16.mxu0 0
      %311 = vmatpush1.bf16.msra.mxu0 0
      %312 = vmatprep.subr.bf16.mxu0 0
      %313 = vmatpush1.bf16.msra.mxu0 0
      %314 = vmatprep.subr.bf16.mxu0 0
      %315 = vmatpush1.bf16.msra.mxu0 0
      %316 = vmatprep.subr.bf16.mxu0 0
      %317 = vmatpush1.bf16.msra.mxu0 0
      %318 = vmatprep.subr.bf16.mxu0 0
      %319 = vmatpush1.bf16.msra.mxu0 0
      %320 = vmatprep.subr.bf16.mxu0 0
      %321 = vmatpush1.bf16.msra.mxu0 0
      %322 = vmatprep.subr.bf16.mxu0 0
      %323 = vmatpush1.bf16.msra.mxu0 0
      %324 = vmatprep.subr.bf16.mxu0 %v197
      %325 = vmatpush1.bf16.msra.mxu0 %v196
      %326 = vmatprep.subr.bf16.mxu0 0
      %327 = vmatpush2.bf16.msra.mxu0 0
      %328 = vmatprep.subr.bf16.mxu0 0
      %329 = vmatpush2.bf16.msra.mxu0 0
      %330 = vmatprep.subr.bf16.mxu0 0
      %331 = vmatpush2.bf16.msra.mxu0 0
      %332 = vmatprep.subr.bf16.mxu0 0
      %333 = vmatpush2.bf16.msra.mxu0 0
      %334 = vmatprep.subr.bf16.mxu0 0
      %335 = vmatpush2.bf16.msra.mxu0 0
      %336 = vmatprep.subr.bf16.mxu0 0
      %337 = vmatpush2.bf16.msra.mxu0 0
      %338 = vmatprep.subr.bf16.mxu0 0
      %339 = vmatpush2.bf16.msra.mxu0 0
      %340 = vmatprep.subr.bf16.mxu0 0
      %341 = vmatpush2.bf16.msra.mxu0 0
      %342 = vmatprep.mubr.bf16.mxu0 0
      %343 = vmatmul.mubr.bf16.gmra.mxu0 %v308
      %v344 = vpop.f32.mrf.mxu0
      %v345 = vadd.f32 %v250, %v344
      %v346 = vpop.f32.mrf.mxu0
      %v347 = vadd.f32 %v252, %v346
      %v348 = vpop.f32.mrf.mxu0
      %v349 = vadd.f32 %v254, %v348
      %v350 = vpop.f32.mrf.mxu0
      %v351 = vadd.f32 %v256, %v350
      %352 = vdwg.mxu0
      %353 = vmatprep.subr.bf16.mxu0 0
      %354 = vmatpush1.bf16.msra.mxu0 0
      %355 = vmatprep.subr.bf16.mxu0 0
      %356 = vmatpush1.bf16.msra.mxu0 0
      %357 = vmatprep.subr.bf16.mxu0 0
      %358 = vmatpush1.bf16.msra.mxu0 0
      %359 = vmatprep.subr.bf16.mxu0 0
      %360 = vmatpush1.bf16.msra.mxu0 0
      %361 = vmatprep.subr.bf16.mxu0 0
      %362 = vmatpush1.bf16.msra.mxu0 0
      %363 = vmatprep.subr.bf16.mxu0 0
      %364 = vmatpush1.bf16.msra.mxu0 0
      %365 = vmatprep.subr.bf16.mxu0 0
      %366 = vmatpush1.bf16.msra.mxu0 0
      %367 = vmatprep.subr.bf16.mxu0 0
      %368 = vmatpush1.bf16.msra.mxu0 %v198
      %369 = vmatprep.subr.bf16.mxu0 0
      %370 = vmatpush2.bf16.msra.mxu0 0
      %371 = vmatprep.subr.bf16.mxu0 0
      %372 = vmatpush2.bf16.msra.mxu0 0
      %373 = vmatprep.subr.bf16.mxu0 0
      %374 = vmatpush2.bf16.msra.mxu0 0
      %375 = vmatprep.subr.bf16.mxu0 0
      %376 = vmatpush2.bf16.msra.mxu0 0
      %377 = vmatprep.subr.bf16.mxu0 0
      %378 = vmatpush2.bf16.msra.mxu0 0
      %379 = vmatprep.subr.bf16.mxu0 0
      %380 = vmatpush2.bf16.msra.mxu0 0
      %381 = vmatprep.subr.bf16.mxu0 0
      %382 = vmatpush2.bf16.msra.mxu0 0
      %383 = vmatprep.subr.bf16.mxu0 0
      %384 = vmatpush2.bf16.msra.mxu0 0
      %385 = vmatprep.mubr.bf16.mxu0 0
      %386 = vmatmul.mubr.bf16.gmra.mxu0 %v308
      %v387 = vpop.f32.mrf.mxu0
      %v388 = vadd.f32 %v293, %v387
      %v389 = vpop.f32.mrf.mxu0
      %v390 = vpop.f32.mrf.mxu0
      %v391 = vadd.f32 %v296, %v390
      %v392 = vpop.f32.mrf.mxu0
      %393 = vdwg.mxu0
      %s394 = scalar_lea.vmem %s1, 16
      %v395 = vld [vmem:[%s394] sm:$0xf]
      %v396 = vld [vmem:[%s394 + $0x4] sm:$0xf]
      %v399 = vunpack.c.l.b16 %v395
      %v400 = vunpack.c.l.b16 %v396
      %v401 = vpack.c.b16 %v400, %v399
      %402 = vrot.lane.b32.xlu0 %v196, 126
      %v403 = vpop.permute.xlu0 %402
      %404 = vrot.lane.b32.xlu0 %v197, 126
      %v405 = vpop.permute.xlu0 %404
      %406 = vrot.lane.b32.xlu0 %v198, 126
      %v407 = vpop.permute.xlu0 %406
      %vm408 = vcmask 1031168
      %v409 = vsel %vm408, %v403, %v405
      %v410 = vsel %vm408, %v405, %v407
      %v415 = vsel %vm211, %v401, 0
      %417 = vmatprep.subr.bf16.mxu0 0
      %418 = vmatpush1.bf16.msra.mxu0 0
      %419 = vmatprep.subr.bf16.mxu0 0
      %420 = vmatpush1.bf16.msra.mxu0 0
      %421 = vmatprep.subr.bf16.mxu0 0
      %422 = vmatpush1.bf16.msra.mxu0 0
      %423 = vmatprep.subr.bf16.mxu0 0
      %424 = vmatpush1.bf16.msra.mxu0 0
      %425 = vmatprep.subr.bf16.mxu0 0
      %426 = vmatpush1.bf16.msra.mxu0 0
      %427 = vmatprep.subr.bf16.mxu0 0
      %428 = vmatpush1.bf16.msra.mxu0 0
      %429 = vmatprep.subr.bf16.mxu0 0
      %430 = vmatpush1.bf16.msra.mxu0 0
      %431 = vmatprep.subr.bf16.mxu0 %v410
      %432 = vmatpush1.bf16.msra.mxu0 %v409
      %433 = vmatprep.subr.bf16.mxu0 0
      %434 = vmatpush2.bf16.msra.mxu0 0
      %435 = vmatprep.subr.bf16.mxu0 0
      %436 = vmatpush2.bf16.msra.mxu0 0
      %437 = vmatprep.subr.bf16.mxu0 0
      %438 = vmatpush2.bf16.msra.mxu0 0
      %439 = vmatprep.subr.bf16.mxu0 0
      %440 = vmatpush2.bf16.msra.mxu0 0
      %441 = vmatprep.subr.bf16.mxu0 0
      %442 = vmatpush2.bf16.msra.mxu0 0
      %443 = vmatprep.subr.bf16.mxu0 0
      %444 = vmatpush2.bf16.msra.mxu0 0
      %445 = vmatprep.subr.bf16.mxu0 0
      %446 = vmatpush2.bf16.msra.mxu0 0
      %447 = vmatprep.subr.bf16.mxu0 0
      %448 = vmatpush2.bf16.msra.mxu0 0
      %449 = vmatprep.mubr.bf16.mxu0 0
      %450 = vmatmul.mubr.bf16.gmra.mxu0 %v415
      %v451 = vpop.f32.mrf.mxu0
      %v452 = vadd.f32 0.0, %v451
      %v453 = vpop.f32.mrf.mxu0
      %v454 = vadd.f32 0.0, %v453
      %v455 = vpop.f32.mrf.mxu0
      %v456 = vadd.f32 0.0, %v455
      %v457 = vpop.f32.mrf.mxu0
      %v458 = vadd.f32 0.0, %v457
      %459 = vdwg.mxu0
      %460 = vmatprep.subr.bf16.mxu0 0
      %461 = vmatpush1.bf16.msra.mxu0 0
      %462 = vmatprep.subr.bf16.mxu0 0
      %463 = vmatpush1.bf16.msra.mxu0 0
      %464 = vmatprep.subr.bf16.mxu0 0
      %465 = vmatpush1.bf16.msra.mxu0 0
      %466 = vmatprep.subr.bf16.mxu0 0
      %467 = vmatpush1.bf16.msra.mxu0 0
      %468 = vmatprep.subr.bf16.mxu0 0
      %469 = vmatpush1.bf16.msra.mxu0 0
      %470 = vmatprep.subr.bf16.mxu0 0
      %471 = vmatpush1.bf16.msra.mxu0 0
      %472 = vmatprep.subr.bf16.mxu0 0
      %473 = vmatpush1.bf16.msra.mxu0 0
      %474 = vmatprep.subr.bf16.mxu0 0
      %475 = vmatpush1.bf16.msra.mxu0 %v407
      %476 = vmatprep.subr.bf16.mxu0 0
      %477 = vmatpush2.bf16.msra.mxu0 0
      %478 = vmatprep.subr.bf16.mxu0 0
      %479 = vmatpush2.bf16.msra.mxu0 0
      %480 = vmatprep.subr.bf16.mxu0 0
      %481 = vmatpush2.bf16.msra.mxu0 0
      %482 = vmatprep.subr.bf16.mxu0 0
      %483 = vmatpush2.bf16.msra.mxu0 0
      %484 = vmatprep.subr.bf16.mxu0 0
      %485 = vmatpush2.bf16.msra.mxu0 0
      %486 = vmatprep.subr.bf16.mxu0 0
      %487 = vmatpush2.bf16.msra.mxu0 0
      %488 = vmatprep.subr.bf16.mxu0 0
      %489 = vmatpush2.bf16.msra.mxu0 0
      %490 = vmatprep.subr.bf16.mxu0 0
      %491 = vmatpush2.bf16.msra.mxu0 0
      %492 = vmatprep.mubr.bf16.mxu0 0
      %493 = vmatmul.mubr.bf16.gmra.mxu0 %v415
      %v494 = vpop.f32.mrf.mxu0
      %v495 = vadd.f32 0.0, %v494
      %v496 = vpop.f32.mrf.mxu0
      %v497 = vpop.f32.mrf.mxu0
      %v498 = vadd.f32 0.0, %v497
      %v499 = vpop.f32.mrf.mxu0
      %500 = vdwg.mxu0
      %v501 = vadd.f32 %v345, %v452
      %v502 = vadd.f32 %v347, %v454
      %v503 = vadd.f32 %v388, %v495
      %v504 = vadd.f32 %v349, %v456
      %v505 = vadd.f32 %v351, %v458
      %v506 = vadd.f32 %v391, %v498
      %s507 = scalar_lea.vmem %s1, 24
      %v508 = vld [vmem:[%s507] sm:$0xf]
      %v509 = vld [vmem:[%s507 + $0x4] sm:$0xf]
      %v512 = vunpack.c.l.b16 %v508
      %v513 = vunpack.c.l.b16 %v509
      %v514 = vpack.c.b16 %v513, %v512
      %515 = vrot.lane.b32.xlu0 %v196, 110
      %v516 = vpop.permute.xlu0 %515
      %517 = vrot.lane.b32.xlu0 %v197, 110
      %v518 = vpop.permute.xlu0 %517
      %519 = vrot.lane.b32.xlu0 %v198, 110
      %v520 = vpop.permute.xlu0 %519
      %vm521 = vcmask 900096
      %v522 = vsel %vm521, %v516, %v518
      %v523 = vsel %vm521, %v518, %v520
      %v528 = vsel %vm211, %v514, 0
      %530 = vmatprep.subr.bf16.mxu0 0
      %531 = vmatpush1.bf16.msra.mxu0 0
      %532 = vmatprep.subr.bf16.mxu0 0
      %533 = vmatpush1.bf16.msra.mxu0 0
      %534 = vmatprep.subr.bf16.mxu0 0
      %535 = vmatpush1.bf16.msra.mxu0 0
      %536 = vmatprep.subr.bf16.mxu0 0
      %537 = vmatpush1.bf16.msra.mxu0 0
      %538 = vmatprep.subr.bf16.mxu0 0
      %539 = vmatpush1.bf16.msra.mxu0 0
      %540 = vmatprep.subr.bf16.mxu0 0
      %541 = vmatpush1.bf16.msra.mxu0 0
      %542 = vmatprep.subr.bf16.mxu0 0
      %543 = vmatpush1.bf16.msra.mxu0 0
      %544 = vmatprep.subr.bf16.mxu0 %v523
      %545 = vmatpush1.bf16.msra.mxu0 %v522
      %546 = vmatprep.subr.bf16.mxu0 0
      %547 = vmatpush2.bf16.msra.mxu0 0
      %548 = vmatprep.subr.bf16.mxu0 0
      %549 = vmatpush2.bf16.msra.mxu0 0
      %550 = vmatprep.subr.bf16.mxu0 0
      %551 = vmatpush2.bf16.msra.mxu0 0
      %552 = vmatprep.subr.bf16.mxu0 0
      %553 = vmatpush2.bf16.msra.mxu0 0
      %554 = vmatprep.subr.bf16.mxu0 0
      %555 = vmatpush2.bf16.msra.mxu0 0
      %556 = vmatprep.subr.bf16.mxu0 0
      %557 = vmatpush2.bf16.msra.mxu0 0
      %558 = vmatprep.subr.bf16.mxu0 0
      %559 = vmatpush2.bf16.msra.mxu0 0
      %560 = vmatprep.subr.bf16.mxu0 0
      %561 = vmatpush2.bf16.msra.mxu0 0
      %562 = vmatprep.mubr.bf16.mxu0 0
      %563 = vmatmul.mubr.bf16.gmra.mxu0 %v528
      %v564 = vpop.f32.mrf.mxu0
      %v565 = vadd.f32 0.0, %v564
      %v566 = vpop.f32.mrf.mxu0
      %v567 = vadd.f32 0.0, %v566
      %v568 = vpop.f32.mrf.mxu0
      %v569 = vadd.f32 0.0, %v568
      %v570 = vpop.f32.mrf.mxu0
      %v571 = vadd.f32 0.0, %v570
      %572 = vdwg.mxu0
      %573 = vmatprep.subr.bf16.mxu0 0
      %574 = vmatpush1.bf16.msra.mxu0 0
      %575 = vmatprep.subr.bf16.mxu0 0
      %576 = vmatpush1.bf16.msra.mxu0 0
      %577 = vmatprep.subr.bf16.mxu0 0
      %578 = vmatpush1.bf16.msra.mxu0 0
      %579 = vmatprep.subr.bf16.mxu0 0
      %580 = vmatpush1.bf16.msra.mxu0 0
      %581 = vmatprep.subr.bf16.mxu0 0
      %582 = vmatpush1.bf16.msra.mxu0 0
      %583 = vmatprep.subr.bf16.mxu0 0
      %584 = vmatpush1.bf16.msra.mxu0 0
      %585 = vmatprep.subr.bf16.mxu0 0
      %586 = vmatpush1.bf16.msra.mxu0 0
      %587 = vmatprep.subr.bf16.mxu0 0
      %588 = vmatpush1.bf16.msra.mxu0 %v520
      %589 = vmatprep.subr.bf16.mxu0 0
      %590 = vmatpush2.bf16.msra.mxu0 0
      %591 = vmatprep.subr.bf16.mxu0 0
      %592 = vmatpush2.bf16.msra.mxu0 0
      %593 = vmatprep.subr.bf16.mxu0 0
      %594 = vmatpush2.bf16.msra.mxu0 0
      %595 = vmatprep.subr.bf16.mxu0 0
      %596 = vmatpush2.bf16.msra.mxu0 0
      %597 = vmatprep.subr.bf16.mxu0 0
      %598 = vmatpush2.bf16.msra.mxu0 0
      %599 = vmatprep.subr.bf16.mxu0 0
      %600 = vmatpush2.bf16.msra.mxu0 0
      %601 = vmatprep.subr.bf16.mxu0 0
      %602 = vmatpush2.bf16.msra.mxu0 0
      %603 = vmatprep.subr.bf16.mxu0 0
      %604 = vmatpush2.bf16.msra.mxu0 0
      %605 = vmatprep.mubr.bf16.mxu0 0
      %606 = vmatmul.mubr.bf16.gmra.mxu0 %v528
      %v607 = vpop.f32.mrf.mxu0
      %v608 = vadd.f32 0.0, %v607
      %v609 = vpop.f32.mrf.mxu0
      %v610 = vpop.f32.mrf.mxu0
      %v611 = vadd.f32 0.0, %v610
      %v612 = vpop.f32.mrf.mxu0
      %613 = vdwg.mxu0
      %v614 = vadd.f32 %v501, %v565
      %v615 = vadd.f32 %v502, %v567
      %v616 = vadd.f32 %v503, %v608
      %v617 = vadd.f32 %v504, %v569
      %v618 = vadd.f32 %v505, %v571
      %v619 = vadd.f32 %v506, %v611
      %s620 = scalar_lea.vmem %s1, 32
      %v621 = vld [vmem:[%s620] sm:$0xf]
      %v622 = vld [vmem:[%s620 + $0x4] sm:$0xf]
      %v625 = vunpack.c.l.b16 %v621
      %v626 = vunpack.c.l.b16 %v622
      %v627 = vpack.c.b16 %v626, %v625
      %628 = vrot.lane.b32.xlu0 %v196, 109
      %v629 = vpop.permute.xlu0 %628
      %630 = vrot.lane.b32.xlu0 %v197, 109
      %v631 = vpop.permute.xlu0 %630
      %632 = vrot.lane.b32.xlu0 %v198, 109
      %v633 = vpop.permute.xlu0 %632
      %vm634 = vcmask 891904
      %v635 = vsel %vm634, %v629, %v631
      %v636 = vsel %vm634, %v631, %v633
      %v641 = vsel %vm211, %v627, 0
      %643 = vmatprep.subr.bf16.mxu0 0
      %644 = vmatpush1.bf16.msra.mxu0 0
      %645 = vmatprep.subr.bf16.mxu0 0
      %646 = vmatpush1.bf16.msra.mxu0 0
      %647 = vmatprep.subr.bf16.mxu0 0
      %648 = vmatpush1.bf16.msra.mxu0 0
      %649 = vmatprep.subr.bf16.mxu0 0
      %650 = vmatpush1.bf16.msra.mxu0 0
      %651 = vmatprep.subr.bf16.mxu0 0
      %652 = vmatpush1.bf16.msra.mxu0 0
      %653 = vmatprep.subr.bf16.mxu0 0
      %654 = vmatpush1.bf16.msra.mxu0 0
      %655 = vmatprep.subr.bf16.mxu0 0
      %656 = vmatpush1.bf16.msra.mxu0 0
      %657 = vmatprep.subr.bf16.mxu0 %v636
      %658 = vmatpush1.bf16.msra.mxu0 %v635
      %659 = vmatprep.subr.bf16.mxu0 0
      %660 = vmatpush2.bf16.msra.mxu0 0
      %661 = vmatprep.subr.bf16.mxu0 0
      %662 = vmatpush2.bf16.msra.mxu0 0
      %663 = vmatprep.subr.bf16.mxu0 0
      %664 = vmatpush2.bf16.msra.mxu0 0
      %665 = vmatprep.subr.bf16.mxu0 0
      %666 = vmatpush2.bf16.msra.mxu0 0
      %667 = vmatprep.subr.bf16.mxu0 0
      %668 = vmatpush2.bf16.msra.mxu0 0
      %669 = vmatprep.subr.bf16.mxu0 0
      %670 = vmatpush2.bf16.msra.mxu0 0
      %671 = vmatprep.subr.bf16.mxu0 0
      %672 = vmatpush2.bf16.msra.mxu0 0
      %673 = vmatprep.subr.bf16.mxu0 0
      %674 = vmatpush2.bf16.msra.mxu0 0
      %675 = vmatprep.mubr.bf16.mxu0 0
      %676 = vmatmul.mubr.bf16.gmra.mxu0 %v641
      %v677 = vpop.f32.mrf.mxu0
      %v678 = vadd.f32 0.0, %v677
      %v679 = vpop.f32.mrf.mxu0
      %v680 = vadd.f32 0.0, %v679
      %v681 = vpop.f32.mrf.mxu0
      %v682 = vadd.f32 0.0, %v681
      %v683 = vpop.f32.mrf.mxu0
      %v684 = vadd.f32 0.0, %v683
      %685 = vdwg.mxu0
      %686 = vmatprep.subr.bf16.mxu0 0
      %687 = vmatpush1.bf16.msra.mxu0 0
      %688 = vmatprep.subr.bf16.mxu0 0
      %689 = vmatpush1.bf16.msra.mxu0 0
      %690 = vmatprep.subr.bf16.mxu0 0
      %691 = vmatpush1.bf16.msra.mxu0 0
      %692 = vmatprep.subr.bf16.mxu0 0
      %693 = vmatpush1.bf16.msra.mxu0 0
      %694 = vmatprep.subr.bf16.mxu0 0
      %695 = vmatpush1.bf16.msra.mxu0 0
      %696 = vmatprep.subr.bf16.mxu0 0
      %697 = vmatpush1.bf16.msra.mxu0 0
      %698 = vmatprep.subr.bf16.mxu0 0
      %699 = vmatpush1.bf16.msra.mxu0 0
      %700 = vmatprep.subr.bf16.mxu0 0
      %701 = vmatpush1.bf16.msra.mxu0 %v633
      %702 = vmatprep.subr.bf16.mxu0 0
      %703 = vmatpush2.bf16.msra.mxu0 0
      %704 = vmatprep.subr.bf16.mxu0 0
      %705 = vmatpush2.bf16.msra.mxu0 0
      %706 = vmatprep.subr.bf16.mxu0 0
      %707 = vmatpush2.bf16.msra.mxu0 0
      %708 = vmatprep.subr.bf16.mxu0 0
      %709 = vmatpush2.bf16.msra.mxu0 0
      %710 = vmatprep.subr.bf16.mxu0 0
      %711 = vmatpush2.bf16.msra.mxu0 0
      %712 = vmatprep.subr.bf16.mxu0 0
      %713 = vmatpush2.bf16.msra.mxu0 0
      %714 = vmatprep.subr.bf16.mxu0 0
      %715 = vmatpush2.bf16.msra.mxu0 0
      %716 = vmatprep.subr.bf16.mxu0 0
      %717 = vmatpush2.bf16.msra.mxu0 0
      %718 = vmatprep.mubr.bf16.mxu0 0
      %719 = vmatmul.mubr.bf16.gmra.mxu0 %v641
      %v720 = vpop.f32.mrf.mxu0
      %v721 = vadd.f32 0.0, %v720
      %v722 = vpop.f32.mrf.mxu0
      %v723 = vpop.f32.mrf.mxu0
      %v724 = vadd.f32 0.0, %v723
      %v725 = vpop.f32.mrf.mxu0
      %726 = vdwg.mxu0
      %v727 = vadd.f32 %v614, %v678
      %v728 = vadd.f32 %v615, %v680
      %v729 = vadd.f32 %v616, %v721
      %v730 = vadd.f32 %v617, %v682
      %v731 = vadd.f32 %v618, %v684
      %v732 = vadd.f32 %v619, %v724
      %s733 = scalar_lea.vmem %s1, 40
      %v734 = vld [vmem:[%s733] sm:$0xf]
      %v735 = vld [vmem:[%s733 + $0x4] sm:$0xf]
      %v738 = vunpack.c.l.b16 %v734
      %v739 = vunpack.c.l.b16 %v735
      %v740 = vpack.c.b16 %v739, %v738
      %741 = vrot.lane.b32.xlu0 %v196, 108
      %v742 = vpop.permute.xlu0 %741
      %743 = vrot.lane.b32.xlu0 %v197, 108
      %v744 = vpop.permute.xlu0 %743
      %745 = vrot.lane.b32.xlu0 %v198, 108
      %v746 = vpop.permute.xlu0 %745
      %vm747 = vcmask 883712
      %v748 = vsel %vm747, %v742, %v744
      %v749 = vsel %vm747, %v744, %v746
      %v754 = vsel %vm211, %v740, 0
      %756 = vmatprep.subr.bf16.mxu0 0
      %757 = vmatpush1.bf16.msra.mxu0 0
      %758 = vmatprep.subr.bf16.mxu0 0
      %759 = vmatpush1.bf16.msra.mxu0 0
      %760 = vmatprep.subr.bf16.mxu0 0
      %761 = vmatpush1.bf16.msra.mxu0 0
      %762 = vmatprep.subr.bf16.mxu0 0
      %763 = vmatpush1.bf16.msra.mxu0 0
      %764 = vmatprep.subr.bf16.mxu0 0
      %765 = vmatpush1.bf16.msra.mxu0 0
      %766 = vmatprep.subr.bf16.mxu0 0
      %767 = vmatpush1.bf16.msra.mxu0 0
      %768 = vmatprep.subr.bf16.mxu0 0
      %769 = vmatpush1.bf16.msra.mxu0 0
      %770 = vmatprep.subr.bf16.mxu0 %v749
      %771 = vmatpush1.bf16.msra.mxu0 %v748
      %772 = vmatprep.subr.bf16.mxu0 0
      %773 = vmatpush2.bf16.msra.mxu0 0
      %774 = vmatprep.subr.bf16.mxu0 0
      %775 = vmatpush2.bf16.msra.mxu0 0
      %776 = vmatprep.subr.bf16.mxu0 0
      %777 = vmatpush2.bf16.msra.mxu0 0
      %778 = vmatprep.subr.bf16.mxu0 0
      %779 = vmatpush2.bf16.msra.mxu0 0
      %780 = vmatprep.subr.bf16.mxu0 0
      %781 = vmatpush2.bf16.msra.mxu0 0
      %782 = vmatprep.subr.bf16.mxu0 0
      %783 = vmatpush2.bf16.msra.mxu0 0
      %784 = vmatprep.subr.bf16.mxu0 0
      %785 = vmatpush2.bf16.msra.mxu0 0
      %786 = vmatprep.subr.bf16.mxu0 0
      %787 = vmatpush2.bf16.msra.mxu0 0
      %788 = vmatprep.mubr.bf16.mxu0 0
      %789 = vmatmul.mubr.bf16.gmra.mxu0 %v754
      %v790 = vpop.f32.mrf.mxu0
      %v791 = vadd.f32 0.0, %v790
      %v792 = vpop.f32.mrf.mxu0
      %v793 = vadd.f32 0.0, %v792
      %v794 = vpop.f32.mrf.mxu0
      %v795 = vadd.f32 0.0, %v794
      %v796 = vpop.f32.mrf.mxu0
      %v797 = vadd.f32 0.0, %v796
      %798 = vdwg.mxu0
      %799 = vmatprep.subr.bf16.mxu0 0
      %800 = vmatpush1.bf16.msra.mxu0 0
      %801 = vmatprep.subr.bf16.mxu0 0
      %802 = vmatpush1.bf16.msra.mxu0 0
      %803 = vmatprep.subr.bf16.mxu0 0
      %804 = vmatpush1.bf16.msra.mxu0 0
      %805 = vmatprep.subr.bf16.mxu0 0
      %806 = vmatpush1.bf16.msra.mxu0 0
      %807 = vmatprep.subr.bf16.mxu0 0
      %808 = vmatpush1.bf16.msra.mxu0 0
      %809 = vmatprep.subr.bf16.mxu0 0
      %810 = vmatpush1.bf16.msra.mxu0 0
      %811 = vmatprep.subr.bf16.mxu0 0
      %812 = vmatpush1.bf16.msra.mxu0 0
      %813 = vmatprep.subr.bf16.mxu0 0
      %814 = vmatpush1.bf16.msra.mxu0 %v746
      %815 = vmatprep.subr.bf16.mxu0 0
      %816 = vmatpush2.bf16.msra.mxu0 0
      %817 = vmatprep.subr.bf16.mxu0 0
      %818 = vmatpush2.bf16.msra.mxu0 0
      %819 = vmatprep.subr.bf16.mxu0 0
      %820 = vmatpush2.bf16.msra.mxu0 0
      %821 = vmatprep.subr.bf16.mxu0 0
      %822 = vmatpush2.bf16.msra.mxu0 0
      %823 = vmatprep.subr.bf16.mxu0 0
      %824 = vmatpush2.bf16.msra.mxu0 0
      %825 = vmatprep.subr.bf16.mxu0 0
      %826 = vmatpush2.bf16.msra.mxu0 0
      %827 = vmatprep.subr.bf16.mxu0 0
      %828 = vmatpush2.bf16.msra.mxu0 0
      %829 = vmatprep.subr.bf16.mxu0 0
      %830 = vmatpush2.bf16.msra.mxu0 0
      %831 = vmatprep.mubr.bf16.mxu0 0
      %832 = vmatmul.mubr.bf16.gmra.mxu0 %v754
      %v833 = vpop.f32.mrf.mxu0
      %v834 = vadd.f32 0.0, %v833
      %v835 = vpop.f32.mrf.mxu0
      %v836 = vpop.f32.mrf.mxu0
      %v837 = vadd.f32 0.0, %v836
      %v838 = vpop.f32.mrf.mxu0
      %839 = vdwg.mxu0
      %v840 = vadd.f32 %v727, %v791
      %v841 = vadd.f32 %v728, %v793
      %v842 = vadd.f32 %v729, %v834
      %v843 = vadd.f32 %v730, %v795
      %v844 = vadd.f32 %v731, %v797
      %v845 = vadd.f32 %v732, %v837
      %s846 = scalar_lea.vmem %s1, 48
      %v847 = vld [vmem:[%s846] sm:$0xf]
      %v848 = vld [vmem:[%s846 + $0x4] sm:$0xf]
      %v851 = vunpack.c.l.b16 %v847
      %v852 = vunpack.c.l.b16 %v848
      %v853 = vpack.c.b16 %v852, %v851
      %854 = vrot.lane.b32.xlu0 %v196, 92
      %v855 = vpop.permute.xlu0 %854
      %856 = vrot.lane.b32.xlu0 %v197, 92
      %v857 = vpop.permute.xlu0 %856
      %858 = vrot.lane.b32.xlu0 %v198, 92
      %v859 = vpop.permute.xlu0 %858
      %vm860 = vcmask 752640
      %v861 = vsel %vm860, %v855, %v857
      %v862 = vsel %vm860, %v857, %v859
      %v867 = vsel %vm211, %v853, 0
      %869 = vmatprep.subr.bf16.mxu0 0
      %870 = vmatpush1.bf16.msra.mxu0 0
      %871 = vmatprep.subr.bf16.mxu0 0
      %872 = vmatpush1.bf16.msra.mxu0 0
      %873 = vmatprep.subr.bf16.mxu0 0
      %874 = vmatpush1.bf16.msra.mxu0 0
      %875 = vmatprep.subr.bf16.mxu0 0
      %876 = vmatpush1.bf16.msra.mxu0 0
      %877 = vmatprep.subr.bf16.mxu0 0
      %878 = vmatpush1.bf16.msra.mxu0 0
      %879 = vmatprep.subr.bf16.mxu0 0
      %880 = vmatpush1.bf16.msra.mxu0 0
      %881 = vmatprep.subr.bf16.mxu0 0
      %882 = vmatpush1.bf16.msra.mxu0 0
      %883 = vmatprep.subr.bf16.mxu0 %v862
      %884 = vmatpush1.bf16.msra.mxu0 %v861
      %885 = vmatprep.subr.bf16.mxu0 0
      %886 = vmatpush2.bf16.msra.mxu0 0
      %887 = vmatprep.subr.bf16.mxu0 0
      %888 = vmatpush2.bf16.msra.mxu0 0
      %889 = vmatprep.subr.bf16.mxu0 0
      %890 = vmatpush2.bf16.msra.mxu0 0
      %891 = vmatprep.subr.bf16.mxu0 0
      %892 = vmatpush2.bf16.msra.mxu0 0
      %893 = vmatprep.subr.bf16.mxu0 0
      %894 = vmatpush2.bf16.msra.mxu0 0
      %895 = vmatprep.subr.bf16.mxu0 0
      %896 = vmatpush2.bf16.msra.mxu0 0
      %897 = vmatprep.subr.bf16.mxu0 0
      %898 = vmatpush2.bf16.msra.mxu0 0
      %899 = vmatprep.subr.bf16.mxu0 0
      %900 = vmatpush2.bf16.msra.mxu0 0
      %901 = vmatprep.mubr.bf16.mxu0 0
      %902 = vmatmul.mubr.bf16.gmra.mxu0 %v867
      %v903 = vpop.f32.mrf.mxu0
      %v904 = vadd.f32 0.0, %v903
      %v905 = vpop.f32.mrf.mxu0
      %v906 = vadd.f32 0.0, %v905
      %v907 = vpop.f32.mrf.mxu0
      %v908 = vadd.f32 0.0, %v907
      %v909 = vpop.f32.mrf.mxu0
      %v910 = vadd.f32 0.0, %v909
      %911 = vdwg.mxu0
      %912 = vmatprep.subr.bf16.mxu0 0
      %913 = vmatpush1.bf16.msra.mxu0 0
      %914 = vmatprep.subr.bf16.mxu0 0
      %915 = vmatpush1.bf16.msra.mxu0 0
      %916 = vmatprep.subr.bf16.mxu0 0
      %917 = vmatpush1.bf16.msra.mxu0 0
      %918 = vmatprep.subr.bf16.mxu0 0
      %919 = vmatpush1.bf16.msra.mxu0 0
      %920 = vmatprep.subr.bf16.mxu0 0
      %921 = vmatpush1.bf16.msra.mxu0 0
      %922 = vmatprep.subr.bf16.mxu0 0
      %923 = vmatpush1.bf16.msra.mxu0 0
      %924 = vmatprep.subr.bf16.mxu0 0
      %925 = vmatpush1.bf16.msra.mxu0 0
      %926 = vmatprep.subr.bf16.mxu0 0
      %927 = vmatpush1.bf16.msra.mxu0 %v859
      %928 = vmatprep.subr.bf16.mxu0 0
      %929 = vmatpush2.bf16.msra.mxu0 0
      %930 = vmatprep.subr.bf16.mxu0 0
      %931 = vmatpush2.bf16.msra.mxu0 0
      %932 = vmatprep.subr.bf16.mxu0 0
      %933 = vmatpush2.bf16.msra.mxu0 0
      %934 = vmatprep.subr.bf16.mxu0 0
      %935 = vmatpush2.bf16.msra.mxu0 0
      %936 = vmatprep.subr.bf16.mxu0 0
      %937 = vmatpush2.bf16.msra.mxu0 0
      %938 = vmatprep.subr.bf16.mxu0 0
      %939 = vmatpush2.bf16.msra.mxu0 0
      %940 = vmatprep.subr.bf16.mxu0 0
      %941 = vmatpush2.bf16.msra.mxu0 0
      %942 = vmatprep.subr.bf16.mxu0 0
      %943 = vmatpush2.bf16.msra.mxu0 0
      %944 = vmatprep.mubr.bf16.mxu0 0
      %945 = vmatmul.mubr.bf16.gmra.mxu0 %v867
      %v946 = vpop.f32.mrf.mxu0
      %v947 = vadd.f32 0.0, %v946
      %v948 = vpop.f32.mrf.mxu0
      %v949 = vpop.f32.mrf.mxu0
      %v950 = vadd.f32 0.0, %v949
      %v951 = vpop.f32.mrf.mxu0
      %952 = vdwg.mxu0
      %v953 = vadd.f32 %v840, %v904
      %v954 = vadd.f32 %v841, %v906
      %v955 = vadd.f32 %v842, %v947
      %v956 = vadd.f32 %v843, %v908
      %v957 = vadd.f32 %v844, %v910
      %v958 = vadd.f32 %v845, %v950
      %s959 = scalar_lea.vmem %s1, 56
      %v960 = vld [vmem:[%s959] sm:$0xf]
      %v961 = vld [vmem:[%s959 + $0x4] sm:$0xf]
      %v964 = vunpack.c.l.b16 %v960
      %v965 = vunpack.c.l.b16 %v961
      %v966 = vpack.c.b16 %v965, %v964
      %967 = vrot.lane.b32.xlu0 %v196, 91
      %v968 = vpop.permute.xlu0 %967
      %969 = vrot.lane.b32.xlu0 %v197, 91
      %v970 = vpop.permute.xlu0 %969
      %971 = vrot.lane.b32.xlu0 %v198, 91
      %v972 = vpop.permute.xlu0 %971
      %vm973 = vcmask 744448
      %v974 = vsel %vm973, %v968, %v970
      %v975 = vsel %vm973, %v970, %v972
      %v980 = vsel %vm211, %v966, 0
      %982 = vmatprep.subr.bf16.mxu0 0
      %983 = vmatpush1.bf16.msra.mxu0 0
      %984 = vmatprep.subr.bf16.mxu0 0
      %985 = vmatpush1.bf16.msra.mxu0 0
      %986 = vmatprep.subr.bf16.mxu0 0
      %987 = vmatpush1.bf16.msra.mxu0 0
      %988 = vmatprep.subr.bf16.mxu0 0
      %989 = vmatpush1.bf16.msra.mxu0 0
      %990 = vmatprep.subr.bf16.mxu0 0
      %991 = vmatpush1.bf16.msra.mxu0 0
      %992 = vmatprep.subr.bf16.mxu0 0
      %993 = vmatpush1.bf16.msra.mxu0 0
      %994 = vmatprep.subr.bf16.mxu0 0
      %995 = vmatpush1.bf16.msra.mxu0 0
      %996 = vmatprep.subr.bf16.mxu0 %v975
      %997 = vmatpush1.bf16.msra.mxu0 %v974
      %998 = vmatprep.subr.bf16.mxu0 0
      %999 = vmatpush2.bf16.msra.mxu0 0
      %1000 = vmatprep.subr.bf16.mxu0 0
      %1001 = vmatpush2.bf16.msra.mxu0 0
      %1002 = vmatprep.subr.bf16.mxu0 0
      %1003 = vmatpush2.bf16.msra.mxu0 0
      %1004 = vmatprep.subr.bf16.mxu0 0
      %1005 = vmatpush2.bf16.msra.mxu0 0
      %1006 = vmatprep.subr.bf16.mxu0 0
      %1007 = vmatpush2.bf16.msra.mxu0 0
      %1008 = vmatprep.subr.bf16.mxu0 0
      %1009 = vmatpush2.bf16.msra.mxu0 0
      %1010 = vmatprep.subr.bf16.mxu0 0
      %1011 = vmatpush2.bf16.msra.mxu0 0
      %1012 = vmatprep.subr.bf16.mxu0 0
      %1013 = vmatpush2.bf16.msra.mxu0 0
      %1014 = vmatprep.mubr.bf16.mxu0 0
      %1015 = vmatmul.mubr.bf16.gmra.mxu0 %v980
      %v1016 = vpop.f32.mrf.mxu0
      %v1017 = vadd.f32 0.0, %v1016
      %v1018 = vpop.f32.mrf.mxu0
      %v1019 = vadd.f32 0.0, %v1018
      %v1020 = vpop.f32.mrf.mxu0
      %v1021 = vadd.f32 0.0, %v1020
      %v1022 = vpop.f32.mrf.mxu0
      %v1023 = vadd.f32 0.0, %v1022
      %1024 = vdwg.mxu0
      %1025 = vmatprep.subr.bf16.mxu0 0
      %1026 = vmatpush1.bf16.msra.mxu0 0
      %1027 = vmatprep.subr.bf16.mxu0 0
      %1028 = vmatpush1.bf16.msra.mxu0 0
      %1029 = vmatprep.subr.bf16.mxu0 0
      %1030 = vmatpush1.bf16.msra.mxu0 0
      %1031 = vmatprep.subr.bf16.mxu0 0
      %1032 = vmatpush1.bf16.msra.mxu0 0
      %1033 = vmatprep.subr.bf16.mxu0 0
      %1034 = vmatpush1.bf16.msra.mxu0 0
      %1035 = vmatprep.subr.bf16.mxu0 0
      %1036 = vmatpush1.bf16.msra.mxu0 0
      %1037 = vmatprep.subr.bf16.mxu0 0
      %1038 = vmatpush1.bf16.msra.mxu0 0
      %1039 = vmatprep.subr.bf16.mxu0 0
      %1040 = vmatpush1.bf16.msra.mxu0 %v972
      %1041 = vmatprep.subr.bf16.mxu0 0
      %1042 = vmatpush2.bf16.msra.mxu0 0
      %1043 = vmatprep.subr.bf16.mxu0 0
      %1044 = vmatpush2.bf16.msra.mxu0 0
      %1045 = vmatprep.subr.bf16.mxu0 0
      %1046 = vmatpush2.bf16.msra.mxu0 0
      %1047 = vmatprep.subr.bf16.mxu0 0
      %1048 = vmatpush2.bf16.msra.mxu0 0
      %1049 = vmatprep.subr.bf16.mxu0 0
      %1050 = vmatpush2.bf16.msra.mxu0 0
      %1051 = vmatprep.subr.bf16.mxu0 0
      %1052 = vmatpush2.bf16.msra.mxu0 0
      %1053 = vmatprep.subr.bf16.mxu0 0
      %1054 = vmatpush2.bf16.msra.mxu0 0
      %1055 = vmatprep.subr.bf16.mxu0 0
      %1056 = vmatpush2.bf16.msra.mxu0 0
      %1057 = vmatprep.mubr.bf16.mxu0 0
      %1058 = vmatmul.mubr.bf16.gmra.mxu0 %v980
      %v1059 = vpop.f32.mrf.mxu0
      %v1060 = vadd.f32 0.0, %v1059
      %v1061 = vpop.f32.mrf.mxu0
      %v1062 = vpop.f32.mrf.mxu0
      %v1063 = vadd.f32 0.0, %v1062
      %v1064 = vpop.f32.mrf.mxu0
      %1065 = vdwg.mxu0
      %v1066 = vadd.f32 %v953, %v1017
      %v1067 = vadd.f32 %v954, %v1019
      %v1068 = vadd.f32 %v955, %v1060
      %v1069 = vadd.f32 %v956, %v1021
      %v1070 = vadd.f32 %v957, %v1023
      %v1071 = vadd.f32 %v958, %v1063
      %s1072 = scalar_lea.vmem %s1, 64
      %v1073 = vld [vmem:[%s1072] sm:$0xf]
      %v1074 = vld [vmem:[%s1072 + $0x4] sm:$0xf]
      %v1077 = vunpack.c.l.b16 %v1073
      %v1078 = vunpack.c.l.b16 %v1074
      %v1079 = vpack.c.b16 %v1078, %v1077
      %1080 = vrot.lane.b32.xlu0 %v196, 90
      %v1081 = vpop.permute.xlu0 %1080
      %1082 = vrot.lane.b32.xlu0 %v197, 90
      %v1083 = vpop.permute.xlu0 %1082
      %1084 = vrot.lane.b32.xlu0 %v198, 90
      %v1085 = vpop.permute.xlu0 %1084
      %vm1086 = vcmask 736256
      %v1087 = vsel %vm1086, %v1081, %v1083
      %v1088 = vsel %vm1086, %v1083, %v1085
      %v1093 = vsel %vm211, %v1079, 0
      %1095 = vmatprep.subr.bf16.mxu0 0
      %1096 = vmatpush1.bf16.msra.mxu0 0
      %1097 = vmatprep.subr.bf16.mxu0 0
      %1098 = vmatpush1.bf16.msra.mxu0 0
      %1099 = vmatprep.subr.bf16.mxu0 0
      %1100 = vmatpush1.bf16.msra.mxu0 0
      %1101 = vmatprep.subr.bf16.mxu0 0
      %1102 = vmatpush1.bf16.msra.mxu0 0
      %1103 = vmatprep.subr.bf16.mxu0 0
      %1104 = vmatpush1.bf16.msra.mxu0 0
      %1105 = vmatprep.subr.bf16.mxu0 0
      %1106 = vmatpush1.bf16.msra.mxu0 0
      %1107 = vmatprep.subr.bf16.mxu0 0
      %1108 = vmatpush1.bf16.msra.mxu0 0
      %1109 = vmatprep.subr.bf16.mxu0 %v1088
      %1110 = vmatpush1.bf16.msra.mxu0 %v1087
      %1111 = vmatprep.subr.bf16.mxu0 0
      %1112 = vmatpush2.bf16.msra.mxu0 0
      %1113 = vmatprep.subr.bf16.mxu0 0
      %1114 = vmatpush2.bf16.msra.mxu0 0
      %1115 = vmatprep.subr.bf16.mxu0 0
      %1116 = vmatpush2.bf16.msra.mxu0 0
      %1117 = vmatprep.subr.bf16.mxu0 0
      %1118 = vmatpush2.bf16.msra.mxu0 0
      %1119 = vmatprep.subr.bf16.mxu0 0
      %1120 = vmatpush2.bf16.msra.mxu0 0
      %1121 = vmatprep.subr.bf16.mxu0 0
      %1122 = vmatpush2.bf16.msra.mxu0 0
      %1123 = vmatprep.subr.bf16.mxu0 0
      %1124 = vmatpush2.bf16.msra.mxu0 0
      %1125 = vmatprep.subr.bf16.mxu0 0
      %1126 = vmatpush2.bf16.msra.mxu0 0
      %1127 = vmatprep.mubr.bf16.mxu0 0
      %1128 = vmatmul.mubr.bf16.gmra.mxu0 %v1093
      %v1129 = vpop.f32.mrf.mxu0
      %v1130 = vadd.f32 0.0, %v1129
      %v1131 = vpop.f32.mrf.mxu0
      %v1132 = vadd.f32 0.0, %v1131
      %v1133 = vpop.f32.mrf.mxu0
      %v1134 = vadd.f32 0.0, %v1133
      %v1135 = vpop.f32.mrf.mxu0
      %v1136 = vadd.f32 0.0, %v1135
      %1137 = vdwg.mxu0
      %1138 = vmatprep.subr.bf16.mxu0 0
      %1139 = vmatpush1.bf16.msra.mxu0 0
      %1140 = vmatprep.subr.bf16.mxu0 0
      %1141 = vmatpush1.bf16.msra.mxu0 0
      %1142 = vmatprep.subr.bf16.mxu0 0
      %1143 = vmatpush1.bf16.msra.mxu0 0
      %1144 = vmatprep.subr.bf16.mxu0 0
      %1145 = vmatpush1.bf16.msra.mxu0 0
      %1146 = vmatprep.subr.bf16.mxu0 0
      %1147 = vmatpush1.bf16.msra.mxu0 0
      %1148 = vmatprep.subr.bf16.mxu0 0
      %1149 = vmatpush1.bf16.msra.mxu0 0
      %1150 = vmatprep.subr.bf16.mxu0 0
      %1151 = vmatpush1.bf16.msra.mxu0 0
      %1152 = vmatprep.subr.bf16.mxu0 0
      %1153 = vmatpush1.bf16.msra.mxu0 %v1085
      %1154 = vmatprep.subr.bf16.mxu0 0
      %1155 = vmatpush2.bf16.msra.mxu0 0
      %1156 = vmatprep.subr.bf16.mxu0 0
      %1157 = vmatpush2.bf16.msra.mxu0 0
      %1158 = vmatprep.subr.bf16.mxu0 0
      %1159 = vmatpush2.bf16.msra.mxu0 0
      %1160 = vmatprep.subr.bf16.mxu0 0
      %1161 = vmatpush2.bf16.msra.mxu0 0
      %1162 = vmatprep.subr.bf16.mxu0 0
      %1163 = vmatpush2.bf16.msra.mxu0 0
      %1164 = vmatprep.subr.bf16.mxu0 0
      %1165 = vmatpush2.bf16.msra.mxu0 0
      %1166 = vmatprep.subr.bf16.mxu0 0
      %1167 = vmatpush2.bf16.msra.mxu0 0
      %1168 = vmatprep.subr.bf16.mxu0 0
      %1169 = vmatpush2.bf16.msra.mxu0 0
      %1170 = vmatprep.mubr.bf16.mxu0 0
      %1171 = vmatmul.mubr.bf16.gmra.mxu0 %v1093
      %v1172 = vpop.f32.mrf.mxu0
      %v1173 = vadd.f32 0.0, %v1172
      %v1174 = vpop.f32.mrf.mxu0
      %v1175 = vpop.f32.mrf.mxu0
      %v1176 = vadd.f32 0.0, %v1175
      %v1177 = vpop.f32.mrf.mxu0
      %1178 = vdwg.mxu0
      %v1179 = vadd.f32 %v1066, %v1130
      %v1180 = vadd.f32 %v1067, %v1132
      %v1181 = vadd.f32 %v1068, %v1173
      %v1182 = vadd.f32 %v1069, %v1134
      %v1183 = vadd.f32 %v1070, %v1136
      %v1184 = vadd.f32 %v1071, %v1176
      %v1185 = vld [vmem:[%s2] sm:$0xff]
      %v1186 = vld [vmem:[%s2 + $0x8] sm:$0xff]
      %1188 = vset.pattern.permute.xlu0 0
      %1189 = vperm.xlu0 %1188, %v1185
      %v1190 = vpop.permute.xlu0 %1189
      %1193 = vset.pattern.permute.xlu0 0
      %1194 = vperm.xlu0 %1193, %v1186
      %v1195 = vpop.permute.xlu0 %1194
      %v1197 = vadd.f32 %v1179, %v1190
      %v1198 = vadd.f32 %v1180, %v1190
      %v1199 = vadd.f32 %v1181, %v1190
      %v1200 = vadd.f32 %v1182, %v1195
      %v1201 = vadd.f32 %v1183, %v1195
      %v1202 = vadd.f32 %v1184, %v1195
      %v1203 = vmax.f32 %v1197, 0.0
      %v1204 = vmax.f32 %v1198, 0.0
      %v1205 = vmax.f32 %v1199, 0.0
      %v1206 = vmax.f32 %v1200, 0.0
      %v1207 = vmax.f32 %v1201, 0.0
      %v1208 = vmax.f32 %v1202, 0.0
      %v1209 = vpack.c.bf16 %v1206, %v1203
      %v1210 = vpack.c.bf16 %v1207, %v1204
      %v1211 = vpack.c.bf16 %v1208, %v1205
      %v1215 = vunpack.c.l.b16 %v1209
      %v1216 = vunpack.c.l.b16 %v1210
      %v1217 = vunpack.c.l.b16 %v1211
      %v1218 = vunpack.c.h.b16 %v1209
      %v1219 = vunpack.c.h.b16 %v1210
      %v1220 = vunpack.c.h.b16 %v1211
      %v1221 = vpack.c.b16 %v1216, %v1215
      %v1222 = vpack.c.b16 %v1217, %v1217
      %v1223 = vpack.c.b16 %v1219, %v1218
      %v1224 = vpack.c.b16 %v1220, %v1220
      %1229 = vst [vmem:[%s170] sm:$0xff] %v1221
      %vm1230 = vcmask 404480
      %1231 = vst.msk [vmem:[%s170 + $0x8] sm:$0xf] %vm1230, %v1222
      %1232 = vst [vmem:[%s170 + $0xc] sm:$0xff] %v1223
      %1233 = vst.msk [vmem:[%s170 + $0x14] sm:$0xf] %vm1230, %v1224
      %p1234 = scmp.lt.s32.totalorder %s14, 1
      %s1235 = scalar_select %p1234, %s14, 1
      %s1236 = smul.addr %s1235, 6
      %s1237 = smul.addr %s1236, 4
      %s1238 = scalar_lea.vmem %s3, %s1237
      // Predicated region
      $region33: #{conv_3nv1_forward.8} parent=31 // pred_check
        %p1239 = pneg %p100
      $region34: #{conv_3nv1_forward.8} parent=31 // pred_check_branch
        %1241 = sbr.rel (%p1239) target = $region36
      $region35: #{conv_3nv1_forward.8} parent=31 // pred_region
        _
      $region36: #{conv_3nv1_forward.8} parent=31 // pred_fallthru
        _
    $region32: #{conv_3nv1_forward.8} parent=5 // pred_fallthru
      _
    %p1242 = scmp.le.s32.totalorder 2, %s9
    // Predicated region
    $region37: #{conv_3nv1_forward.8} parent=5 // pred_check
      %p1243 = pneg %p1242
    $region38: #{conv_3nv1_forward.8} parent=5 // pred_check_branch
      %1245 = sbr.rel (%p1243) target = $region40
    $region39: #{conv_3nv1_forward.8} parent=5 // pred_region
      %s1246 = ssub.s32 %s9, 2
      // Predicated region
      $region41: #{conv_3nv1_forward.8} parent=39 // pred_check
        %p1247 = pneg %p106
      $region42: #{conv_3nv1_forward.8} parent=39 // pred_check_branch
        %1249 = sbr.rel (%p1247) target = $region44
      $region43: #{conv_3nv1_forward.8} parent=39 // pred_region
        %p1250 = scmp.lt.s32.totalorder %s15, 1
        %s1251 = scalar_select %p1250, %s15, 1
        %s1252 = smul.addr %s1251, 6
        %s1253 = smul.addr %s1252, 4
        %s1254 = scalar_lea.vmem %s3, %s1253
      $region44: #{conv_3nv1_forward.8} parent=39 // pred_fallthru
        _
    $region40: #{conv_3nv1_forward.8} parent=5 // pred_fallthru
      _
  $region6: #{conv_3nv1_forward.8} parent=0 // loop_footer
    %s13 = sadd.s32 1, %s9
  $region7: #{conv_3nv1_forward.8} parent=0 // loop_footer_branch
    %8 = sbr.rel target = $region3
  $region8: #{conv_3nv1_forward.8} parent=0 // loop_exit
    _

// kernel: conv_3nv1_forward.12
$region0: #{conv_3nv1_forward.12}
  #allocation0 [shape = 'u32[]', space=smem, size = 0x4, offset = 0x4, fixed_abs, tag = 'smem constant byte address 0x4 - core index']
  #allocation1 [shape = 'u32[144,128]{1,0:T(1,128)}', space=vmem, size = 0x12000, scoped, tag = 'internal scratch']
  %s0 = inlined_call_operand.vmem [shape: bf16[2,16,120], index: 0, kind: input, shape index: {}]
  %s1 = inlined_call_operand.vmem [shape: bf16[9,16,16], index: 1, kind: input, shape index: {}]
  %s2 = inlined_call_operand.vmem [shape: bf16[2,16,120], index: 2, kind: input, shape index: {}]
  %s3 = inlined_call_operand.vmem [shape: bf16[9,16,16], index: 3, kind: input, shape index: {}]
  %s4 = inlined_call_operand.vmem [shape: bf16[2,16,120], index: 4, kind: input, shape index: {}]
  %s5 = inlined_call_operand.vmem [shape: bf16[9,16,16], index: 5, kind: input, shape index: {}]
  %s6 = inlined_call_operand.vmem [shape: f32[16,1], index: 6, kind: input, shape index: {}]
  %s7 = inlined_call_operand.vmem [shape: bf16[2,16,90], index: 7, kind: output, shape index: {}]
  %s8 = sld [smem:[#allocation0]]
  $region61: #{conv_3nv1_forward.12} parent=0
    _
  %s10 = ssub.s32 1, %s8
  %s11 = scalar_select 0, %s10, %s8
  loop: start=0, step=1, limit=4
  $region2: #{conv_3nv1_forward.12} parent=0 // loop_pre_header
    _
  $region3: #{conv_3nv1_forward.12} parent=0 // loop_header
    %s13 = sphi 0, %s17
    %p14 = scmp.ge.s32.totalorder %s13, 4
    %s23 = sphi 0, %s25
    %s26 = sphi 0, %s23
    %s27 = sphi 0, %s26
    %s43 = sphi 0, %s27
    %s47 = sphi 0, %s47
    %s49 = sphi 0, %s47
    %s50 = sphi 0, %s49
    %s64 = sphi 0, %s50
    %s70 = sphi 0, %s72
    %s73 = sphi 0, %s70
    %s74 = sphi 0, %s73
    %s90 = sphi 0, %s74
    %s94 = sphi 0, %s94
    %s96 = sphi 0, %s94
    %s97 = sphi 0, %s96
    %s111 = sphi 0, %s97
    %s117 = sphi 0, %s119
    %s120 = sphi 0, %s117
    %s121 = sphi 0, %s120
    %s137 = sphi 0, %s121
    %s141 = sphi 0, %s141
    %s143 = sphi 0, %s141
    %s144 = sphi 0, %s143
    %s158 = sphi 0, %s144
    %s162 = sphi 0, %s162
    %s164 = sphi 0, %s162
    %s165 = sphi 0, %s164
    %s179 = sphi 0, %s165
    %s185 = sphi 0, %s187
    %s188 = sphi 0, %s185
    %s189 = sphi 0, %s188
    %s205 = sphi 0, %s189
  $region4: #{conv_3nv1_forward.12} parent=0 // loop_header_branch
    %16 = sbr.rel (%p14) target = $region8
  $region5: #{conv_3nv1_forward.12} parent=0 // loop_body
    %s18 = ssub.s32 %s13, 1
    %s19 = ssub.s32 %s13, 2
    %s20 = sadd.s32 %s13, 1
    %s21 = ssub.s32 %s13, %s20
    %p22 = scmp.eq.s32.totalorder %s21, 0
    %s24 = sadd.s32 %s23, 1
    %s25 = scalar_select %p22, %s23, %s24
    %p28 = pneg %p22
    %p29 = scmp.eq.s32.totalorder %s13, 1
    %p30 = por %p28, %p29
    %p31 = scmp.ne.s32.totalorder %s23, %s26
    %p32 = scmp.eq.s32.totalorder %s13, 0
    %p33 = por %p31, %p32
    %p34 = scmp.ne.s32.totalorder %s23, %s26
    %p35 = scmp.eq.s32.totalorder %s18, 1
    %p36 = por %p34, %p35
    %p37 = scmp.ne.s32.totalorder %s26, %s27
    %p38 = scmp.eq.s32.totalorder %s18, 0
    %p39 = por %p37, %p38
    %p40 = scmp.ne.s32.totalorder %s26, %s27
    %p41 = scmp.eq.s32.totalorder %s19, 1
    %p42 = por %p40, %p41
    %p44 = scmp.ne.s32.totalorder %s27, %s43
    %p45 = scmp.eq.s32.totalorder %s19, 0
    %p46 = por %p44, %p45
    %s48 = sadd.s32 %s47, 1
    %p51 = scmp.eq.s32.totalorder %s13, 1
    %p52 = scmp.ne.s32.totalorder %s47, %s49
    %p53 = scmp.eq.s32.totalorder %s13, 0
    %p54 = por %p52, %p53
    %p55 = scmp.ne.s32.totalorder %s47, %s49
    %p56 = scmp.eq.s32.totalorder %s18, 1
    %p57 = por %p55, %p56
    %p58 = scmp.ne.s32.totalorder %s49, %s50
    %p59 = scmp.eq.s32.totalorder %s18, 0
    %p60 = por %p58, %p59
    %p61 = scmp.ne.s32.totalorder %s49, %s50
    %p62 = scmp.eq.s32.totalorder %s19, 1
    %p63 = por %p61, %p62
    %p65 = scmp.ne.s32.totalorder %s50, %s64
    %p66 = scmp.eq.s32.totalorder %s19, 0
    %p67 = por %p65, %p66
    %s68 = ssub.s32 %s13, %s20
    %p69 = scmp.eq.s32.totalorder %s68, 0
    %s71 = sadd.s32 %s70, 1
    %s72 = scalar_select %p69, %s70, %s71
    %p75 = pneg %p69
    %p76 = scmp.eq.s32.totalorder %s13, 1
    %p77 = por %p75, %p76
    %p78 = scmp.ne.s32.totalorder %s70, %s73
    %p79 = scmp.eq.s32.totalorder %s13, 0
    %p80 = por %p78, %p79
    %p81 = scmp.ne.s32.totalorder %s70, %s73
    %p82 = scmp.eq.s32.totalorder %s18, 1
    %p83 = por %p81, %p82
    %p84 = scmp.ne.s32.totalorder %s73, %s74
    %p85 = scmp.eq.s32.totalorder %s18, 0
    %p86 = por %p84, %p85
    %p87 = scmp.ne.s32.totalorder %s73, %s74
    %p88 = scmp.eq.s32.totalorder %s19, 1
    %p89 = por %p87, %p88
    %p91 = scmp.ne.s32.totalorder %s74, %s90
    %p92 = scmp.eq.s32.totalorder %s19, 0
    %p93 = por %p91, %p92
    %s95 = sadd.s32 %s94, 1
    %p98 = scmp.eq.s32.totalorder %s13, 1
    %p99 = scmp.ne.s32.totalorder %s94, %s96
    %p100 = scmp.eq.s32.totalorder %s13, 0
    %p101 = por %p99, %p100
    %p102 = scmp.ne.s32.totalorder %s94, %s96
    %p103 = scmp.eq.s32.totalorder %s18, 1
    %p104 = por %p102, %p103
    %p105 = scmp.ne.s32.totalorder %s96, %s97
    %p106 = scmp.eq.s32.totalorder %s18, 0
    %p107 = por %p105, %p106
    %p108 = scmp.ne.s32.totalorder %s96, %s97
    %p109 = scmp.eq.s32.totalorder %s19, 1
    %p110 = por %p108, %p109
    %p112 = scmp.ne.s32.totalorder %s97, %s111
    %p113 = scmp.eq.s32.totalorder %s19, 0
    %p114 = por %p112, %p113
    %s115 = ssub.s32 %s13, %s20
    %p116 = scmp.eq.s32.totalorder %s115, 0
    %s118 = sadd.s32 %s117, 1
    %s119 = scalar_select %p116, %s117, %s118
    %p122 = pneg %p116
    %p123 = scmp.eq.s32.totalorder %s13, 1
    %p124 = por %p122, %p123
    %p125 = scmp.ne.s32.totalorder %s117, %s120
    %p126 = scmp.eq.s32.totalorder %s13, 0
    %p127 = por %p125, %p126
    %p128 = scmp.ne.s32.totalorder %s117, %s120
    %p129 = scmp.eq.s32.totalorder %s18, 1
    %p130 = por %p128, %p129
    %p131 = scmp.ne.s32.totalorder %s120, %s121
    %p132 = scmp.eq.s32.totalorder %s18, 0
    %p133 = por %p131, %p132
    %p134 = scmp.ne.s32.totalorder %s120, %s121
    %p135 = scmp.eq.s32.totalorder %s19, 1
    %p136 = por %p134, %p135
    %p138 = scmp.ne.s32.totalorder %s121, %s137
    %p139 = scmp.eq.s32.totalorder %s19, 0
    %p140 = por %p138, %p139
    %s142 = sadd.s32 %s141, 1
    %p145 = scmp.eq.s32.totalorder %s13, 1
    %p146 = scmp.ne.s32.totalorder %s141, %s143
    %p147 = scmp.eq.s32.totalorder %s13, 0
    %p148 = por %p146, %p147
    %p149 = scmp.ne.s32.totalorder %s141, %s143
    %p150 = scmp.eq.s32.totalorder %s18, 1
    %p151 = por %p149, %p150
    %p152 = scmp.ne.s32.totalorder %s143, %s144
    %p153 = scmp.eq.s32.totalorder %s18, 0
    %p154 = por %p152, %p153
    %p155 = scmp.ne.s32.totalorder %s143, %s144
    %p156 = scmp.eq.s32.totalorder %s19, 1
    %p157 = por %p155, %p156
    %p159 = scmp.ne.s32.totalorder %s144, %s158
    %p160 = scmp.eq.s32.totalorder %s19, 0
    %p161 = por %p159, %p160
    %s163 = sadd.s32 %s162, 1
    %p166 = scmp.eq.s32.totalorder %s13, 1
    %p167 = scmp.ne.s32.totalorder %s162, %s164
    %p168 = scmp.eq.s32.totalorder %s13, 0
    %p169 = por %p167, %p168
    %p170 = scmp.ne.s32.totalorder %s162, %s164
    %p171 = scmp.eq.s32.totalorder %s18, 1
    %p172 = por %p170, %p171
    %p173 = scmp.ne.s32.totalorder %s164, %s165
    %p174 = scmp.eq.s32.totalorder %s18, 0
    %p175 = por %p173, %p174
    %p176 = scmp.ne.s32.totalorder %s164, %s165
    %p177 = scmp.eq.s32.totalorder %s19, 1
    %p178 = por %p176, %p177
    %p180 = scmp.ne.s32.totalorder %s165, %s179
    %p181 = scmp.eq.s32.totalorder %s19, 0
    %p182 = por %p180, %p181
    %s183 = ssub.s32 %s13, %s20
    %p184 = scmp.eq.s32.totalorder %s183, 0
    %s186 = sadd.s32 %s185, 1
    %s187 = scalar_select %p184, %s185, %s186
    %p190 = pneg %p184
    %p191 = scmp.eq.s32.totalorder %s13, 1
    %p192 = por %p190, %p191
    %p193 = scmp.ne.s32.totalorder %s185, %s188
    %p194 = scmp.eq.s32.totalorder %s13, 0
    %p195 = por %p193, %p194
    %p196 = scmp.ne.s32.totalorder %s185, %s188
    %p197 = scmp.eq.s32.totalorder %s18, 1
    %p198 = por %p196, %p197
    %p199 = scmp.ne.s32.totalorder %s188, %s189
    %p200 = scmp.eq.s32.totalorder %s18, 0
    %p201 = por %p199, %p200
    %p202 = scmp.ne.s32.totalorder %s188, %s189
    %p203 = scmp.eq.s32.totalorder %s19, 1
    %p204 = por %p202, %p203
    %p206 = scmp.ne.s32.totalorder %s189, %s205
    %p207 = scmp.eq.s32.totalorder %s19, 0
    %p208 = por %p206, %p207
    %p209 = scmp.le.s32.totalorder 1, %s13
    %p210 = scmp.lt.s32.totalorder %s13, 3
    %p211 = pnand %p209, %p210
    %p212 = pneg %p211
    // Predicated region
    $region9: #{conv_3nv1_forward.12} parent=5 // pred_check
      _
    $region10: #{conv_3nv1_forward.12} parent=5 // pred_check_branch
      %214 = sbr.rel (%p211) target = $region12
    $region11: #{conv_3nv1_forward.12} parent=5 // pred_region
      %s215 = ssub.s32 %s13, 1
      // Predicated region
      $region13: #{conv_3nv1_forward.12} parent=11 // pred_check
        %p216 = pneg %p60
      $region14: #{conv_3nv1_forward.12} parent=11 // pred_check_branch
        %218 = sbr.rel (%p216) target = $region16
      $region15: #{conv_3nv1_forward.12} parent=11 // pred_region
        _
      $region16: #{conv_3nv1_forward.12} parent=11 // pred_fallthru
        _
      // Predicated region
      $region17: #{conv_3nv1_forward.12} parent=11 // pred_check
        %p219 = pneg %p107
      $region18: #{conv_3nv1_forward.12} parent=11 // pred_check_branch
        %221 = sbr.rel (%p219) target = $region20
      $region19: #{conv_3nv1_forward.12} parent=11 // pred_region
        _
      $region20: #{conv_3nv1_forward.12} parent=11 // pred_fallthru
        _
      // Predicated region
      $region21: #{conv_3nv1_forward.12} parent=11 // pred_check
        %p222 = pneg %p154
      $region22: #{conv_3nv1_forward.12} parent=11 // pred_check_branch
        %224 = sbr.rel (%p222) target = $region24
      $region23: #{conv_3nv1_forward.12} parent=11 // pred_region
        _
      $region24: #{conv_3nv1_forward.12} parent=11 // pred_fallthru
        _
      // Predicated region
      $region25: #{conv_3nv1_forward.12} parent=11 // pred_check
        %p225 = pneg %p175
      $region26: #{conv_3nv1_forward.12} parent=11 // pred_check_branch
        %227 = sbr.rel (%p225) target = $region28
      $region27: #{conv_3nv1_forward.12} parent=11 // pred_region
        _
      $region28: #{conv_3nv1_forward.12} parent=11 // pred_fallthru
        _
    $region12: #{conv_3nv1_forward.12} parent=5 // pred_fallthru
      _
    %p228 = scmp.lt.s32.totalorder %s13, 2
    // Predicated region
    $region29: #{conv_3nv1_forward.12} parent=5 // pred_check
      %p229 = pneg %p228
    $region30: #{conv_3nv1_forward.12} parent=5 // pred_check_branch
      %231 = sbr.rel (%p229) target = $region32
    $region31: #{conv_3nv1_forward.12} parent=5 // pred_region
      // Predicated region
      $region33: #{conv_3nv1_forward.12} parent=31 // pred_check
        %p232 = pneg %p33
      $region34: #{conv_3nv1_forward.12} parent=31 // pred_check_branch
        %234 = sbr.rel (%p232) target = $region36
      $region35: #{conv_3nv1_forward.12} parent=31 // pred_region
        %p235 = scmp.lt.s32.totalorder %s13, 1
        %s236 = scalar_select %p235, %s13, 1
        %s237 = smul.addr %s236, 2
        %s238 = smul.addr %s237, 4
        %s239 = scalar_lea.vmem %s0, %s238
      $region36: #{conv_3nv1_forward.12} parent=31 // pred_fallthru
        _
      // Predicated region
      $region37: #{conv_3nv1_forward.12} parent=31 // pred_check
        %p240 = pneg %p80
      $region38: #{conv_3nv1_forward.12} parent=31 // pred_check_branch
        %242 = sbr.rel (%p240) target = $region40
      $region39: #{conv_3nv1_forward.12} parent=31 // pred_region
        %p243 = scmp.lt.s32.totalorder %s13, 1
        %s244 = scalar_select %p243, %s13, 1
        %s245 = smul.addr %s244, 2
        %s246 = smul.addr %s245, 4
        %s247 = scalar_lea.vmem %s2, %s246
      $region40: #{conv_3nv1_forward.12} parent=31 // pred_fallthru
        _
      // Predicated region
      $region41: #{conv_3nv1_forward.12} parent=31 // pred_check
        %p248 = pneg %p127
      $region42: #{conv_3nv1_forward.12} parent=31 // pred_check_branch
        %250 = sbr.rel (%p248) target = $region44
      $region43: #{conv_3nv1_forward.12} parent=31 // pred_region
        %p251 = scmp.lt.s32.totalorder %s13, 1
        %s252 = scalar_select %p251, %s13, 1
        %s253 = smul.addr %s252, 2
        %s254 = smul.addr %s253, 4
        %s255 = scalar_lea.vmem %s4, %s254
      $region44: #{conv_3nv1_forward.12} parent=31 // pred_fallthru
        _
    $region32: #{conv_3nv1_forward.12} parent=5 // pred_fallthru
      _
    %p256 = scmp.le.s32.totalorder 1, %s13
    %p257 = scmp.lt.s32.totalorder %s13, 3
    %p258 = pnand %p256, %p257
    %p259 = pneg %p258
    // Predicated region
    $region45: #{conv_3nv1_forward.12} parent=5 // pred_check
      _
    $region46: #{conv_3nv1_forward.12} parent=5 // pred_check_branch
      %261 = sbr.rel (%p258) target = $region48
    $region47: #{conv_3nv1_forward.12} parent=5 // pred_region
      %s262 = ssub.s32 %s13, 1
      %p263 = scmp.lt.s32.totalorder %s18, 1
      %s264 = scalar_select %p263, %s18, 1
      %s265 = smul.addr %s264, 2
      %s266 = smul.addr %s265, 4
      %s267 = scalar_lea.vmem %s0, %s266
      %p268 = pneg %p39
      %p269 = pneg %p36
      %p270 = pneg %p60
      %p271 = pneg %p57
      %p272 = scmp.lt.s32.totalorder %s18, 1
      %s273 = scalar_select %p272, %s18, 1
      %s274 = smul.addr %s273, 2
      %s275 = smul.addr %s274, 4
      %s276 = scalar_lea.vmem %s2, %s275
      %p277 = pneg %p86
      %p278 = pneg %p83
      %p279 = pneg %p107
      %p280 = pneg %p104
      %p281 = scmp.lt.s32.totalorder %s18, 1
      %s282 = scalar_select %p281, %s18, 1
      %s283 = smul.addr %s282, 2
      %s284 = smul.addr %s283, 4
      %s285 = scalar_lea.vmem %s4, %s284
      %p286 = pneg %p133
      %p287 = pneg %p130
      %p288 = pneg %p154
      %p289 = pneg %p151
      %p290 = pneg %p175
      %p291 = pneg %p172
      %p292 = pneg %p201
      %p293 = pneg %p198
      %p294 = scmp.lt.s32.totalorder %s18, 1
      %s295 = scalar_select %p294, %s18, 1
      %s296 = smul.addr %s295, 2
      %s297 = smul.addr %s296, 4
      %s298 = scalar_lea.vmem %s7, %s297
      %p299 = scmp.lt.s32.totalorder %s18, 1
      %s300 = scalar_select %p299, %s18, 1
      %s301 = smul.addr %s300, 2
      %s302 = smul.addr %s301, 4
      %s303 = scalar_lea.vmem %s0, %s302
      %p304 = scmp.lt.s32.totalorder %s18, 1
      %s305 = scalar_select %p304, %s18, 1
      %s306 = smul.addr %s305, 2
      %s307 = smul.addr %s306, 4
      %s308 = scalar_lea.vmem %s2, %s307
      %p309 = scmp.lt.s32.totalorder %s18, 1
      %s310 = scalar_select %p309, %s18, 1
      %s311 = smul.addr %s310, 2
      %s312 = smul.addr %s311, 4
      %s313 = scalar_lea.vmem %s4, %s312
      %p314 = scmp.lt.s32.totalorder %s18, 1
      %s315 = scalar_select %p314, %s18, 1
      %s316 = smul.addr %s315, 2
      %s317 = smul.addr %s316, 4
      %s318 = scalar_lea.vmem %s7, %s317
      %v320 = vld [vmem:[%s303] sm:$0xf]
      %v321 = vld [vmem:[%s303 + $0x4] sm:$0xf]
      %v322 = vld [vmem:[%s1] sm:$0xf]
      %v323 = vld [vmem:[%s1 + $0x4] sm:$0xf]
      %s324 = scalar_lea.vmem %s1, 8
      %v325 = vld [vmem:[%s324] sm:$0xf]
      %v326 = vld [vmem:[%s324 + $0x4] sm:$0xf]
      %v329 = vunpack.c.l.b16 %v325
      %v330 = vunpack.c.l.b16 %v326
      %v331 = vpack.c.b16 %v330, %v329
      %v334 = vunpack.c.l.b16 %v320
      %v335 = vunpack.c.l.b16 %v321
      %v336 = vpack.c.b16 %v335, %v334
      %337 = vrot.lane.b32.xlu0 %v336, 127
      %v338 = vpop.permute.xlu0 %337
      %vm340 = vcmask 130048
      %v342 = vsel %vm340, %v331, 0
      %344 = vmatprep.subr.bf16.mxu0 0
      %345 = vmatpush1.bf16.msra.mxu0 0
      %346 = vmatprep.subr.bf16.mxu0 0
      %347 = vmatpush1.bf16.msra.mxu0 0
      %348 = vmatprep.subr.bf16.mxu0 0
      %349 = vmatpush1.bf16.msra.mxu0 0
      %350 = vmatprep.subr.bf16.mxu0 0
      %351 = vmatpush1.bf16.msra.mxu0 0
      %352 = vmatprep.subr.bf16.mxu0 0
      %353 = vmatpush1.bf16.msra.mxu0 0
      %354 = vmatprep.subr.bf16.mxu0 0
      %355 = vmatpush1.bf16.msra.mxu0 0
      %356 = vmatprep.subr.bf16.mxu0 0
      %357 = vmatpush1.bf16.msra.mxu0 0
      %358 = vmatprep.subr.bf16.mxu0 0
      %359 = vmatpush1.bf16.msra.mxu0 %v338
      %360 = vmatprep.subr.bf16.mxu0 0
      %361 = vmatpush2.bf16.msra.mxu0 0
      %362 = vmatprep.subr.bf16.mxu0 0
      %363 = vmatpush2.bf16.msra.mxu0 0
      %364 = vmatprep.subr.bf16.mxu0 0
      %365 = vmatpush2.bf16.msra.mxu0 0
      %366 = vmatprep.subr.bf16.mxu0 0
      %367 = vmatpush2.bf16.msra.mxu0 0
      %368 = vmatprep.subr.bf16.mxu0 0
      %369 = vmatpush2.bf16.msra.mxu0 0
      %370 = vmatprep.subr.bf16.mxu0 0
      %371 = vmatpush2.bf16.msra.mxu0 0
      %372 = vmatprep.subr.bf16.mxu0 0
      %373 = vmatpush2.bf16.msra.mxu0 0
      %374 = vmatprep.subr.bf16.mxu0 0
      %375 = vmatpush2.bf16.msra.mxu0 0
      %376 = vmatprep.mubr.bf16.mxu0 0
      %377 = vmatmul.mubr.bf16.gmra.mxu0 %v342
      %v378 = vpop.f32.mrf.mxu0
      %v379 = vadd.f32 0.0, %v378
      %v380 = vpop.f32.mrf.mxu0
      %v381 = vpop.f32.mrf.mxu0
      %v382 = vadd.f32 0.0, %v381
      %v383 = vpop.f32.mrf.mxu0
      %384 = vdwg.mxu0
      %v387 = vunpack.c.l.b16 %v322
      %v388 = vunpack.c.l.b16 %v323
      %v389 = vpack.c.b16 %v388, %v387
      %v392 = vsel %vm340, %v389, 0
      %394 = vmatprep.subr.bf16.mxu0 0
      %395 = vmatpush1.bf16.msra.mxu0 0
      %396 = vmatprep.subr.bf16.mxu0 0
      %397 = vmatpush1.bf16.msra.mxu0 0
      %398 = vmatprep.subr.bf16.mxu0 0
      %399 = vmatpush1.bf16.msra.mxu0 0
      %400 = vmatprep.subr.bf16.mxu0 0
      %401 = vmatpush1.bf16.msra.mxu0 0
      %402 = vmatprep.subr.bf16.mxu0 0
      %403 = vmatpush1.bf16.msra.mxu0 0
      %404 = vmatprep.subr.bf16.mxu0 0
      %405 = vmatpush1.bf16.msra.mxu0 0
      %406 = vmatprep.subr.bf16.mxu0 0
      %407 = vmatpush1.bf16.msra.mxu0 0
      %408 = vmatprep.subr.bf16.mxu0 0
      %409 = vmatpush1.bf16.msra.mxu0 %v336
      %410 = vmatprep.subr.bf16.mxu0 0
      %411 = vmatpush2.bf16.msra.mxu0 0
      %412 = vmatprep.subr.bf16.mxu0 0
      %413 = vmatpush2.bf16.msra.mxu0 0
      %414 = vmatprep.subr.bf16.mxu0 0
      %415 = vmatpush2.bf16.msra.mxu0 0
      %416 = vmatprep.subr.bf16.mxu0 0
      %417 = vmatpush2.bf16.msra.mxu0 0
      %418 = vmatprep.subr.bf16.mxu0 0
      %419 = vmatpush2.bf16.msra.mxu0 0
      %420 = vmatprep.subr.bf16.mxu0 0
      %421 = vmatpush2.bf16.msra.mxu0 0
      %422 = vmatprep.subr.bf16.mxu0 0
      %423 = vmatpush2.bf16.msra.mxu0 0
      %424 = vmatprep.subr.bf16.mxu0 0
      %425 = vmatpush2.bf16.msra.mxu0 0
      %426 = vmatprep.mubr.bf16.mxu0 0
      %427 = vmatmul.mubr.bf16.gmra.mxu0 %v392
      %v428 = vpop.f32.mrf.mxu0
      %v429 = vadd.f32 %v379, %v428
      %v430 = vpop.f32.mrf.mxu0
      %v431 = vpop.f32.mrf.mxu0
      %v432 = vadd.f32 %v382, %v431
      %v433 = vpop.f32.mrf.mxu0
      %434 = vdwg.mxu0
      %s435 = scalar_lea.vmem %s1, 16
      %v436 = vld [vmem:[%s435] sm:$0xf]
      %v437 = vld [vmem:[%s435 + $0x4] sm:$0xf]
      %v440 = vunpack.c.l.b16 %v436
      %v441 = vunpack.c.l.b16 %v437
      %v442 = vpack.c.b16 %v441, %v440
      %443 = vrot.lane.b32.xlu0 %v336, 126
      %v444 = vpop.permute.xlu0 %443
      %v447 = vsel %vm340, %v442, 0
      %449 = vmatprep.subr.bf16.mxu0 0
      %450 = vmatpush1.bf16.msra.mxu0 0
      %451 = vmatprep.subr.bf16.mxu0 0
      %452 = vmatpush1.bf16.msra.mxu0 0
      %453 = vmatprep.subr.bf16.mxu0 0
      %454 = vmatpush1.bf16.msra.mxu0 0
      %455 = vmatprep.subr.bf16.mxu0 0
      %456 = vmatpush1.bf16.msra.mxu0 0
      %457 = vmatprep.subr.bf16.mxu0 0
      %458 = vmatpush1.bf16.msra.mxu0 0
      %459 = vmatprep.subr.bf16.mxu0 0
      %460 = vmatpush1.bf16.msra.mxu0 0
      %461 = vmatprep.subr.bf16.mxu0 0
      %462 = vmatpush1.bf16.msra.mxu0 0
      %463 = vmatprep.subr.bf16.mxu0 0
      %464 = vmatpush1.bf16.msra.mxu0 %v444
      %465 = vmatprep.subr.bf16.mxu0 0
      %466 = vmatpush2.bf16.msra.mxu0 0
      %467 = vmatprep.subr.bf16.mxu0 0
      %468 = vmatpush2.bf16.msra.mxu0 0
      %469 = vmatprep.subr.bf16.mxu0 0
      %470 = vmatpush2.bf16.msra.mxu0 0
      %471 = vmatprep.subr.bf16.mxu0 0
      %472 = vmatpush2.bf16.msra.mxu0 0
      %473 = vmatprep.subr.bf16.mxu0 0
      %474 = vmatpush2.bf16.msra.mxu0 0
      %475 = vmatprep.subr.bf16.mxu0 0
      %476 = vmatpush2.bf16.msra.mxu0 0
      %477 = vmatprep.subr.bf16.mxu0 0
      %478 = vmatpush2.bf16.msra.mxu0 0
      %479 = vmatprep.subr.bf16.mxu0 0
      %480 = vmatpush2.bf16.msra.mxu0 0
      %481 = vmatprep.mubr.bf16.mxu0 0
      %482 = vmatmul.mubr.bf16.gmra.mxu0 %v447
      %v483 = vpop.f32.mrf.mxu0
      %v484 = vadd.f32 0.0, %v483
      %v485 = vpop.f32.mrf.mxu0
      %v486 = vpop.f32.mrf.mxu0
      %v487 = vadd.f32 0.0, %v486
      %v488 = vpop.f32.mrf.mxu0
      %489 = vdwg.mxu0
      %v490 = vadd.f32 %v429, %v484
      %v491 = vadd.f32 %v432, %v487
      %s492 = scalar_lea.vmem %s1, 24
      %v493 = vld [vmem:[%s492] sm:$0xf]
      %v494 = vld [vmem:[%s492 + $0x4] sm:$0xf]
      %v497 = vunpack.c.l.b16 %v493
      %v498 = vunpack.c.l.b16 %v494
      %v499 = vpack.c.b16 %v498, %v497
      %500 = vrot.lane.b32.xlu0 %v336, 118
      %v501 = vpop.permute.xlu0 %500
      %v504 = vsel %vm340, %v499, 0
      %506 = vmatprep.subr.bf16.mxu0 0
      %507 = vmatpush1.bf16.msra.mxu0 0
      %508 = vmatprep.subr.bf16.mxu0 0
      %509 = vmatpush1.bf16.msra.mxu0 0
      %510 = vmatprep.subr.bf16.mxu0 0
      %511 = vmatpush1.bf16.msra.mxu0 0
      %512 = vmatprep.subr.bf16.mxu0 0
      %513 = vmatpush1.bf16.msra.mxu0 0
      %514 = vmatprep.subr.bf16.mxu0 0
      %515 = vmatpush1.bf16.msra.mxu0 0
      %516 = vmatprep.subr.bf16.mxu0 0
      %517 = vmatpush1.bf16.msra.mxu0 0
      %518 = vmatprep.subr.bf16.mxu0 0
      %519 = vmatpush1.bf16.msra.mxu0 0
      %520 = vmatprep.subr.bf16.mxu0 0
      %521 = vmatpush1.bf16.msra.mxu0 %v501
      %522 = vmatprep.subr.bf16.mxu0 0
      %523 = vmatpush2.bf16.msra.mxu0 0
      %524 = vmatprep.subr.bf16.mxu0 0
      %525 = vmatpush2.bf16.msra.mxu0 0
      %526 = vmatprep.subr.bf16.mxu0 0
      %527 = vmatpush2.bf16.msra.mxu0 0
      %528 = vmatprep.subr.bf16.mxu0 0
      %529 = vmatpush2.bf16.msra.mxu0 0
      %530 = vmatprep.subr.bf16.mxu0 0
      %531 = vmatpush2.bf16.msra.mxu0 0
      %532 = vmatprep.subr.bf16.mxu0 0
      %533 = vmatpush2.bf16.msra.mxu0 0
      %534 = vmatprep.subr.bf16.mxu0 0
      %535 = vmatpush2.bf16.msra.mxu0 0
      %536 = vmatprep.subr.bf16.mxu0 0
      %537 = vmatpush2.bf16.msra.mxu0 0
      %538 = vmatprep.mubr.bf16.mxu0 0
      %539 = vmatmul.mubr.bf16.gmra.mxu0 %v504
      %v540 = vpop.f32.mrf.mxu0
      %v541 = vadd.f32 0.0, %v540
      %v542 = vpop.f32.mrf.mxu0
      %v543 = vpop.f32.mrf.mxu0
      %v544 = vadd.f32 0.0, %v543
      %v545 = vpop.f32.mrf.mxu0
      %546 = vdwg.mxu0
      %v547 = vadd.f32 %v490, %v541
      %v548 = vadd.f32 %v491, %v544
      %s549 = scalar_lea.vmem %s1, 32
      %v550 = vld [vmem:[%s549] sm:$0xf]
      %v551 = vld [vmem:[%s549 + $0x4] sm:$0xf]
      %v554 = vunpack.c.l.b16 %v550
      %v555 = vunpack.c.l.b16 %v551
      %v556 = vpack.c.b16 %v555, %v554
      %557 = vrot.lane.b32.xlu0 %v336, 117
      %v558 = vpop.permute.xlu0 %557
      %v561 = vsel %vm340, %v556, 0
      %563 = vmatprep.subr.bf16.mxu0 0
      %564 = vmatpush1.bf16.msra.mxu0 0
      %565 = vmatprep.subr.bf16.mxu0 0
      %566 = vmatpush1.bf16.msra.mxu0 0
      %567 = vmatprep.subr.bf16.mxu0 0
      %568 = vmatpush1.bf16.msra.mxu0 0
      %569 = vmatprep.subr.bf16.mxu0 0
      %570 = vmatpush1.bf16.msra.mxu0 0
      %571 = vmatprep.subr.bf16.mxu0 0
      %572 = vmatpush1.bf16.msra.mxu0 0
      %573 = vmatprep.subr.bf16.mxu0 0
      %574 = vmatpush1.bf16.msra.mxu0 0
      %575 = vmatprep.subr.bf16.mxu0 0
      %576 = vmatpush1.bf16.msra.mxu0 0
      %577 = vmatprep.subr.bf16.mxu0 0
      %578 = vmatpush1.bf16.msra.mxu0 %v558
      %579 = vmatprep.subr.bf16.mxu0 0
      %580 = vmatpush2.bf16.msra.mxu0 0
      %581 = vmatprep.subr.bf16.mxu0 0
      %582 = vmatpush2.bf16.msra.mxu0 0
      %583 = vmatprep.subr.bf16.mxu0 0
      %584 = vmatpush2.bf16.msra.mxu0 0
      %585 = vmatprep.subr.bf16.mxu0 0
      %586 = vmatpush2.bf16.msra.mxu0 0
      %587 = vmatprep.subr.bf16.mxu0 0
      %588 = vmatpush2.bf16.msra.mxu0 0
      %589 = vmatprep.subr.bf16.mxu0 0
      %590 = vmatpush2.bf16.msra.mxu0 0
      %591 = vmatprep.subr.bf16.mxu0 0
      %592 = vmatpush2.bf16.msra.mxu0 0
      %593 = vmatprep.subr.bf16.mxu0 0
      %594 = vmatpush2.bf16.msra.mxu0 0
      %595 = vmatprep.mubr.bf16.mxu0 0
      %596 = vmatmul.mubr.bf16.gmra.mxu0 %v561
      %v597 = vpop.f32.mrf.mxu0
      %v598 = vadd.f32 0.0, %v597
      %v599 = vpop.f32.mrf.mxu0
      %v600 = vpop.f32.mrf.mxu0
      %v601 = vadd.f32 0.0, %v600
      %v602 = vpop.f32.mrf.mxu0
      %603 = vdwg.mxu0
      %v604 = vadd.f32 %v547, %v598
      %v605 = vadd.f32 %v548, %v601
      %s606 = scalar_lea.vmem %s1, 40
      %v607 = vld [vmem:[%s606] sm:$0xf]
      %v608 = vld [vmem:[%s606 + $0x4] sm:$0xf]
      %v611 = vunpack.c.l.b16 %v607
      %v612 = vunpack.c.l.b16 %v608
      %v613 = vpack.c.b16 %v612, %v611
      %614 = vrot.lane.b32.xlu0 %v336, 116
      %v615 = vpop.permute.xlu0 %614
      %v618 = vsel %vm340, %v613, 0
      %620 = vmatprep.subr.bf16.mxu0 0
      %621 = vmatpush1.bf16.msra.mxu0 0
      %622 = vmatprep.subr.bf16.mxu0 0
      %623 = vmatpush1.bf16.msra.mxu0 0
      %624 = vmatprep.subr.bf16.mxu0 0
      %625 = vmatpush1.bf16.msra.mxu0 0
      %626 = vmatprep.subr.bf16.mxu0 0
      %627 = vmatpush1.bf16.msra.mxu0 0
      %628 = vmatprep.subr.bf16.mxu0 0
      %629 = vmatpush1.bf16.msra.mxu0 0
      %630 = vmatprep.subr.bf16.mxu0 0
      %631 = vmatpush1.bf16.msra.mxu0 0
      %632 = vmatprep.subr.bf16.mxu0 0
      %633 = vmatpush1.bf16.msra.mxu0 0
      %634 = vmatprep.subr.bf16.mxu0 0
      %635 = vmatpush1.bf16.msra.mxu0 %v615
      %636 = vmatprep.subr.bf16.mxu0 0
      %637 = vmatpush2.bf16.msra.mxu0 0
      %638 = vmatprep.subr.bf16.mxu0 0
      %639 = vmatpush2.bf16.msra.mxu0 0
      %640 = vmatprep.subr.bf16.mxu0 0
      %641 = vmatpush2.bf16.msra.mxu0 0
      %642 = vmatprep.subr.bf16.mxu0 0
      %643 = vmatpush2.bf16.msra.mxu0 0
      %644 = vmatprep.subr.bf16.mxu0 0
      %645 = vmatpush2.bf16.msra.mxu0 0
      %646 = vmatprep.subr.bf16.mxu0 0
      %647 = vmatpush2.bf16.msra.mxu0 0
      %648 = vmatprep.subr.bf16.mxu0 0
      %649 = vmatpush2.bf16.msra.mxu0 0
      %650 = vmatprep.subr.bf16.mxu0 0
      %651 = vmatpush2.bf16.msra.mxu0 0
      %652 = vmatprep.mubr.bf16.mxu0 0
      %653 = vmatmul.mubr.bf16.gmra.mxu0 %v618
      %v654 = vpop.f32.mrf.mxu0
      %v655 = vadd.f32 0.0, %v654
      %v656 = vpop.f32.mrf.mxu0
      %v657 = vpop.f32.mrf.mxu0
      %v658 = vadd.f32 0.0, %v657
      %v659 = vpop.f32.mrf.mxu0
      %660 = vdwg.mxu0
      %v661 = vadd.f32 %v604, %v655
      %v662 = vadd.f32 %v605, %v658
      %s663 = scalar_lea.vmem %s1, 48
      %v664 = vld [vmem:[%s663] sm:$0xf]
      %v665 = vld [vmem:[%s663 + $0x4] sm:$0xf]
      %v668 = vunpack.c.l.b16 %v664
      %v669 = vunpack.c.l.b16 %v665
      %v670 = vpack.c.b16 %v669, %v668
      %671 = vrot.lane.b32.xlu0 %v336, 108
      %v672 = vpop.permute.xlu0 %671
      %v675 = vsel %vm340, %v670, 0
      %677 = vmatprep.subr.bf16.mxu0 0
      %678 = vmatpush1.bf16.msra.mxu0 0
      %679 = vmatprep.subr.bf16.mxu0 0
      %680 = vmatpush1.bf16.msra.mxu0 0
      %681 = vmatprep.subr.bf16.mxu0 0
      %682 = vmatpush1.bf16.msra.mxu0 0
      %683 = vmatprep.subr.bf16.mxu0 0
      %684 = vmatpush1.bf16.msra.mxu0 0
      %685 = vmatprep.subr.bf16.mxu0 0
      %686 = vmatpush1.bf16.msra.mxu0 0
      %687 = vmatprep.subr.bf16.mxu0 0
      %688 = vmatpush1.bf16.msra.mxu0 0
      %689 = vmatprep.subr.bf16.mxu0 0
      %690 = vmatpush1.bf16.msra.mxu0 0
      %691 = vmatprep.subr.bf16.mxu0 0
      %692 = vmatpush1.bf16.msra.mxu0 %v672
      %693 = vmatprep.subr.bf16.mxu0 0
      %694 = vmatpush2.bf16.msra.mxu0 0
      %695 = vmatprep.subr.bf16.mxu0 0
      %696 = vmatpush2.bf16.msra.mxu0 0
      %697 = vmatprep.subr.bf16.mxu0 0
      %698 = vmatpush2.bf16.msra.mxu0 0
      %699 = vmatprep.subr.bf16.mxu0 0
      %700 = vmatpush2.bf16.msra.mxu0 0
      %701 = vmatprep.subr.bf16.mxu0 0
      %702 = vmatpush2.bf16.msra.mxu0 0
      %703 = vmatprep.subr.bf16.mxu0 0
      %704 = vmatpush2.bf16.msra.mxu0 0
      %705 = vmatprep.subr.bf16.mxu0 0
      %706 = vmatpush2.bf16.msra.mxu0 0
      %707 = vmatprep.subr.bf16.mxu0 0
      %708 = vmatpush2.bf16.msra.mxu0 0
      %709 = vmatprep.mubr.bf16.mxu0 0
      %710 = vmatmul.mubr.bf16.gmra.mxu0 %v675
      %v711 = vpop.f32.mrf.mxu0
      %v712 = vadd.f32 0.0, %v711
      %v713 = vpop.f32.mrf.mxu0
      %v714 = vpop.f32.mrf.mxu0
      %v715 = vadd.f32 0.0, %v714
      %v716 = vpop.f32.mrf.mxu0
      %717 = vdwg.mxu0
      %v718 = vadd.f32 %v661, %v712
      %v719 = vadd.f32 %v662, %v715
      %s720 = scalar_lea.vmem %s1, 56
      %v721 = vld [vmem:[%s720] sm:$0xf]
      %v722 = vld [vmem:[%s720 + $0x4] sm:$0xf]
      %v725 = vunpack.c.l.b16 %v721
      %v726 = vunpack.c.l.b16 %v722
      %v727 = vpack.c.b16 %v726, %v725
      %728 = vrot.lane.b32.xlu0 %v336, 107
      %v729 = vpop.permute.xlu0 %728
      %v732 = vsel %vm340, %v727, 0
      %734 = vmatprep.subr.bf16.mxu0 0
      %735 = vmatpush1.bf16.msra.mxu0 0
      %736 = vmatprep.subr.bf16.mxu0 0
      %737 = vmatpush1.bf16.msra.mxu0 0
      %738 = vmatprep.subr.bf16.mxu0 0
      %739 = vmatpush1.bf16.msra.mxu0 0
      %740 = vmatprep.subr.bf16.mxu0 0
      %741 = vmatpush1.bf16.msra.mxu0 0
      %742 = vmatprep.subr.bf16.mxu0 0
      %743 = vmatpush1.bf16.msra.mxu0 0
      %744 = vmatprep.subr.bf16.mxu0 0
      %745 = vmatpush1.bf16.msra.mxu0 0
      %746 = vmatprep.subr.bf16.mxu0 0
      %747 = vmatpush1.bf16.msra.mxu0 0
      %748 = vmatprep.subr.bf16.mxu0 0
      %749 = vmatpush1.bf16.msra.mxu0 %v729
      %750 = vmatprep.subr.bf16.mxu0 0
      %751 = vmatpush2.bf16.msra.mxu0 0
      %752 = vmatprep.subr.bf16.mxu0 0
      %753 = vmatpush2.bf16.msra.mxu0 0
      %754 = vmatprep.subr.bf16.mxu0 0
      %755 = vmatpush2.bf16.msra.mxu0 0
      %756 = vmatprep.subr.bf16.mxu0 0
      %757 = vmatpush2.bf16.msra.mxu0 0
      %758 = vmatprep.subr.bf16.mxu0 0
      %759 = vmatpush2.bf16.msra.mxu0 0
      %760 = vmatprep.subr.bf16.mxu0 0
      %761 = vmatpush2.bf16.msra.mxu0 0
      %762 = vmatprep.subr.bf16.mxu0 0
      %763 = vmatpush2.bf16.msra.mxu0 0
      %764 = vmatprep.subr.bf16.mxu0 0
      %765 = vmatpush2.bf16.msra.mxu0 0
      %766 = vmatprep.mubr.bf16.mxu0 0
      %767 = vmatmul.mubr.bf16.gmra.mxu0 %v732
      %v768 = vpop.f32.mrf.mxu0
      %v769 = vadd.f32 0.0, %v768
      %v770 = vpop.f32.mrf.mxu0
      %v771 = vpop.f32.mrf.mxu0
      %v772 = vadd.f32 0.0, %v771
      %v773 = vpop.f32.mrf.mxu0
      %774 = vdwg.mxu0
      %v775 = vadd.f32 %v718, %v769
      %v776 = vadd.f32 %v719, %v772
      %s777 = scalar_lea.vmem %s1, 64
      %v778 = vld [vmem:[%s777] sm:$0xf]
      %v779 = vld [vmem:[%s777 + $0x4] sm:$0xf]
      %v782 = vunpack.c.l.b16 %v778
      %v783 = vunpack.c.l.b16 %v779
      %v784 = vpack.c.b16 %v783, %v782
      %785 = vrot.lane.b32.xlu0 %v336, 106
      %v786 = vpop.permute.xlu0 %785
      %v789 = vsel %vm340, %v784, 0
      %791 = vmatprep.subr.bf16.mxu0 0
      %792 = vmatpush1.bf16.msra.mxu0 0
      %793 = vmatprep.subr.bf16.mxu0 0
      %794 = vmatpush1.bf16.msra.mxu0 0
      %795 = vmatprep.subr.bf16.mxu0 0
      %796 = vmatpush1.bf16.msra.mxu0 0
      %797 = vmatprep.subr.bf16.mxu0 0
      %798 = vmatpush1.bf16.msra.mxu0 0
      %799 = vmatprep.subr.bf16.mxu0 0
      %800 = vmatpush1.bf16.msra.mxu0 0
      %801 = vmatprep.subr.bf16.mxu0 0
      %802 = vmatpush1.bf16.msra.mxu0 0
      %803 = vmatprep.subr.bf16.mxu0 0
      %804 = vmatpush1.bf16.msra.mxu0 0
      %805 = vmatprep.subr.bf16.mxu0 0
      %806 = vmatpush1.bf16.msra.mxu0 %v786
      %807 = vmatprep.subr.bf16.mxu0 0
      %808 = vmatpush2.bf16.msra.mxu0 0
      %809 = vmatprep.subr.bf16.mxu0 0
      %810 = vmatpush2.bf16.msra.mxu0 0
      %811 = vmatprep.subr.bf16.mxu0 0
      %812 = vmatpush2.bf16.msra.mxu0 0
      %813 = vmatprep.subr.bf16.mxu0 0
      %814 = vmatpush2.bf16.msra.mxu0 0
      %815 = vmatprep.subr.bf16.mxu0 0
      %816 = vmatpush2.bf16.msra.mxu0 0
      %817 = vmatprep.subr.bf16.mxu0 0
      %818 = vmatpush2.bf16.msra.mxu0 0
      %819 = vmatprep.subr.bf16.mxu0 0
      %820 = vmatpush2.bf16.msra.mxu0 0
      %821 = vmatprep.subr.bf16.mxu0 0
      %822 = vmatpush2.bf16.msra.mxu0 0
      %823 = vmatprep.mubr.bf16.mxu0 0
      %824 = vmatmul.mubr.bf16.gmra.mxu0 %v789
      %v825 = vpop.f32.mrf.mxu0
      %v826 = vadd.f32 0.0, %v825
      %v827 = vpop.f32.mrf.mxu0
      %v828 = vpop.f32.mrf.mxu0
      %v829 = vadd.f32 0.0, %v828
      %v830 = vpop.f32.mrf.mxu0
      %831 = vdwg.mxu0
      %v832 = vadd.f32 %v775, %v826
      %v833 = vadd.f32 %v776, %v829
      %v834 = vld [vmem:[%s308] sm:$0xf]
      %v835 = vld [vmem:[%s308 + $0x4] sm:$0xf]
      %v836 = vld [vmem:[%s3] sm:$0xf]
      %v837 = vld [vmem:[%s3 + $0x4] sm:$0xf]
      %v840 = vunpack.c.l.b16 %v836
      %v841 = vunpack.c.l.b16 %v837
      %v842 = vpack.c.b16 %v841, %v840
      %v845 = vunpack.c.l.b16 %v834
      %v846 = vunpack.c.l.b16 %v835
      %v847 = vpack.c.b16 %v846, %v845
      %v850 = vsel %vm340, %v842, 0
      %852 = vmatprep.subr.bf16.mxu0 0
      %853 = vmatpush1.bf16.msra.mxu0 0
      %854 = vmatprep.subr.bf16.mxu0 0
      %855 = vmatpush1.bf16.msra.mxu0 0
      %856 = vmatprep.subr.bf16.mxu0 0
      %857 = vmatpush1.bf16.msra.mxu0 0
      %858 = vmatprep.subr.bf16.mxu0 0
      %859 = vmatpush1.bf16.msra.mxu0 0
      %860 = vmatprep.subr.bf16.mxu0 0
      %861 = vmatpush1.bf16.msra.mxu0 0
      %862 = vmatprep.subr.bf16.mxu0 0
      %863 = vmatpush1.bf16.msra.mxu0 0
      %864 = vmatprep.subr.bf16.mxu0 0
      %865 = vmatpush1.bf16.msra.mxu0 0
      %866 = vmatprep.subr.bf16.mxu0 0
      %867 = vmatpush1.bf16.msra.mxu0 %v847
      %868 = vmatprep.subr.bf16.mxu0 0
      %869 = vmatpush2.bf16.msra.mxu0 0
      %870 = vmatprep.subr.bf16.mxu0 0
      %871 = vmatpush2.bf16.msra.mxu0 0
      %872 = vmatprep.subr.bf16.mxu0 0
      %873 = vmatpush2.bf16.msra.mxu0 0
      %874 = vmatprep.subr.bf16.mxu0 0
      %875 = vmatpush2.bf16.msra.mxu0 0
      %876 = vmatprep.subr.bf16.mxu0 0
      %877 = vmatpush2.bf16.msra.mxu0 0
      %878 = vmatprep.subr.bf16.mxu0 0
      %879 = vmatpush2.bf16.msra.mxu0 0
      %880 = vmatprep.subr.bf16.mxu0 0
      %881 = vmatpush2.bf16.msra.mxu0 0
      %882 = vmatprep.subr.bf16.mxu0 0
      %883 = vmatpush2.bf16.msra.mxu0 0
      %884 = vmatprep.mubr.bf16.mxu0 0
      %885 = vmatmul.mubr.bf16.gmra.mxu0 %v850
      %v886 = vpop.f32.mrf.mxu0
      %v887 = vadd.f32 0.0, %v886
      %v888 = vpop.f32.mrf.mxu0
      %v889 = vpop.f32.mrf.mxu0
      %v890 = vadd.f32 0.0, %v889
      %v891 = vpop.f32.mrf.mxu0
      %892 = vdwg.mxu0
      %v893 = vadd.f32 %v832, %v887
      %v894 = vadd.f32 %v833, %v890
      %s895 = scalar_lea.vmem %s3, 8
      %v896 = vld [vmem:[%s895] sm:$0xf]
      %v897 = vld [vmem:[%s895 + $0x4] sm:$0xf]
      %v900 = vunpack.c.l.b16 %v896
      %v901 = vunpack.c.l.b16 %v897
      %v902 = vpack.c.b16 %v901, %v900
      %903 = vrot.lane.b32.xlu0 %v847, 127
      %v904 = vpop.permute.xlu0 %903
      %v907 = vsel %vm340, %v902, 0
      %909 = vmatprep.subr.bf16.mxu0 0
      %910 = vmatpush1.bf16.msra.mxu0 0
      %911 = vmatprep.subr.bf16.mxu0 0
      %912 = vmatpush1.bf16.msra.mxu0 0
      %913 = vmatprep.subr.bf16.mxu0 0
      %914 = vmatpush1.bf16.msra.mxu0 0
      %915 = vmatprep.subr.bf16.mxu0 0
      %916 = vmatpush1.bf16.msra.mxu0 0
      %917 = vmatprep.subr.bf16.mxu0 0
      %918 = vmatpush1.bf16.msra.mxu0 0
      %919 = vmatprep.subr.bf16.mxu0 0
      %920 = vmatpush1.bf16.msra.mxu0 0
      %921 = vmatprep.subr.bf16.mxu0 0
      %922 = vmatpush1.bf16.msra.mxu0 0
      %923 = vmatprep.subr.bf16.mxu0 0
      %924 = vmatpush1.bf16.msra.mxu0 %v904
      %925 = vmatprep.subr.bf16.mxu0 0
      %926 = vmatpush2.bf16.msra.mxu0 0
      %927 = vmatprep.subr.bf16.mxu0 0
      %928 = vmatpush2.bf16.msra.mxu0 0
      %929 = vmatprep.subr.bf16.mxu0 0
      %930 = vmatpush2.bf16.msra.mxu0 0
      %931 = vmatprep.subr.bf16.mxu0 0
      %932 = vmatpush2.bf16.msra.mxu0 0
      %933 = vmatprep.subr.bf16.mxu0 0
      %934 = vmatpush2.bf16.msra.mxu0 0
      %935 = vmatprep.subr.bf16.mxu0 0
      %936 = vmatpush2.bf16.msra.mxu0 0
      %937 = vmatprep.subr.bf16.mxu0 0
      %938 = vmatpush2.bf16.msra.mxu0 0
      %939 = vmatprep.subr.bf16.mxu0 0
      %940 = vmatpush2.bf16.msra.mxu0 0
      %941 = vmatprep.mubr.bf16.mxu0 0
      %942 = vmatmul.mubr.bf16.gmra.mxu0 %v907
      %v943 = vpop.f32.mrf.mxu0
      %v944 = vadd.f32 0.0, %v943
      %v945 = vpop.f32.mrf.mxu0
      %v946 = vpop.f32.mrf.mxu0
      %v947 = vadd.f32 0.0, %v946
      %v948 = vpop.f32.mrf.mxu0
      %949 = vdwg.mxu0
      %v950 = vadd.f32 %v893, %v944
      %v951 = vadd.f32 %v894, %v947
      %s952 = scalar_lea.vmem %s3, 16
      %v953 = vld [vmem:[%s952] sm:$0xf]
      %v954 = vld [vmem:[%s952 + $0x4] sm:$0xf]
      %v957 = vunpack.c.l.b16 %v953
      %v958 = vunpack.c.l.b16 %v954
      %v959 = vpack.c.b16 %v958, %v957
      %960 = vrot.lane.b32.xlu0 %v847, 126
      %v961 = vpop.permute.xlu0 %960
      %v964 = vsel %vm340, %v959, 0
      %966 = vmatprep.subr.bf16.mxu0 0
      %967 = vmatpush1.bf16.msra.mxu0 0
      %968 = vmatprep.subr.bf16.mxu0 0
      %969 = vmatpush1.bf16.msra.mxu0 0
      %970 = vmatprep.subr.bf16.mxu0 0
      %971 = vmatpush1.bf16.msra.mxu0 0
      %972 = vmatprep.subr.bf16.mxu0 0
      %973 = vmatpush1.bf16.msra.mxu0 0
      %974 = vmatprep.subr.bf16.mxu0 0
      %975 = vmatpush1.bf16.msra.mxu0 0
      %976 = vmatprep.subr.bf16.mxu0 0
      %977 = vmatpush1.bf16.msra.mxu0 0
      %978 = vmatprep.subr.bf16.mxu0 0
      %979 = vmatpush1.bf16.msra.mxu0 0
      %980 = vmatprep.subr.bf16.mxu0 0
      %981 = vmatpush1.bf16.msra.mxu0 %v961
      %982 = vmatprep.subr.bf16.mxu0 0
      %983 = vmatpush2.bf16.msra.mxu0 0
      %984 = vmatprep.subr.bf16.mxu0 0
      %985 = vmatpush2.bf16.msra.mxu0 0
      %986 = vmatprep.subr.bf16.mxu0 0
      %987 = vmatpush2.bf16.msra.mxu0 0
      %988 = vmatprep.subr.bf16.mxu0 0
      %989 = vmatpush2.bf16.msra.mxu0 0
      %990 = vmatprep.subr.bf16.mxu0 0
      %991 = vmatpush2.bf16.msra.mxu0 0
      %992 = vmatprep.subr.bf16.mxu0 0
      %993 = vmatpush2.bf16.msra.mxu0 0
      %994 = vmatprep.subr.bf16.mxu0 0
      %995 = vmatpush2.bf16.msra.mxu0 0
      %996 = vmatprep.subr.bf16.mxu0 0
      %997 = vmatpush2.bf16.msra.mxu0 0
      %998 = vmatprep.mubr.bf16.mxu0 0
      %999 = vmatmul.mubr.bf16.gmra.mxu0 %v964
      %v1000 = vpop.f32.mrf.mxu0
      %v1001 = vadd.f32 0.0, %v1000
      %v1002 = vpop.f32.mrf.mxu0
      %v1003 = vpop.f32.mrf.mxu0
      %v1004 = vadd.f32 0.0, %v1003
      %v1005 = vpop.f32.mrf.mxu0
      %1006 = vdwg.mxu0
      %v1007 = vadd.f32 %v950, %v1001
      %v1008 = vadd.f32 %v951, %v1004
      %s1009 = scalar_lea.vmem %s3, 24
      %v1010 = vld [vmem:[%s1009] sm:$0xf]
      %v1011 = vld [vmem:[%s1009 + $0x4] sm:$0xf]
      %v1014 = vunpack.c.l.b16 %v1010
      %v1015 = vunpack.c.l.b16 %v1011
      %v1016 = vpack.c.b16 %v1015, %v1014
      %1017 = vrot.lane.b32.xlu0 %v847, 118
      %v1018 = vpop.permute.xlu0 %1017
      %v1021 = vsel %vm340, %v1016, 0
      %1023 = vmatprep.subr.bf16.mxu0 0
      %1024 = vmatpush1.bf16.msra.mxu0 0
      %1025 = vmatprep.subr.bf16.mxu0 0
      %1026 = vmatpush1.bf16.msra.mxu0 0
      %1027 = vmatprep.subr.bf16.mxu0 0
      %1028 = vmatpush1.bf16.msra.mxu0 0
      %1029 = vmatprep.subr.bf16.mxu0 0
      %1030 = vmatpush1.bf16.msra.mxu0 0
      %1031 = vmatprep.subr.bf16.mxu0 0
      %1032 = vmatpush1.bf16.msra.mxu0 0
      %1033 = vmatprep.subr.bf16.mxu0 0
      %1034 = vmatpush1.bf16.msra.mxu0 0
      %1035 = vmatprep.subr.bf16.mxu0 0
      %1036 = vmatpush1.bf16.msra.mxu0 0
      %1037 = vmatprep.subr.bf16.mxu0 0
      %1038 = vmatpush1.bf16.msra.mxu0 %v1018
      %1039 = vmatprep.subr.bf16.mxu0 0
      %1040 = vmatpush2.bf16.msra.mxu0 0
      %1041 = vmatprep.subr.bf16.mxu0 0
      %1042 = vmatpush2.bf16.msra.mxu0 0
      %1043 = vmatprep.subr.bf16.mxu0 0
      %1044 = vmatpush2.bf16.msra.mxu0 0
      %1045 = vmatprep.subr.bf16.mxu0 0
      %1046 = vmatpush2.bf16.msra.mxu0 0
      %1047 = vmatprep.subr.bf16.mxu0 0
      %1048 = vmatpush2.bf16.msra.mxu0 0
      %1049 = vmatprep.subr.bf16.mxu0 0
      %1050 = vmatpush2.bf16.msra.mxu0 0
      %1051 = vmatprep.subr.bf16.mxu0 0
      %1052 = vmatpush2.bf16.msra.mxu0 0
      %1053 = vmatprep.subr.bf16.mxu0 0
      %1054 = vmatpush2.bf16.msra.mxu0 0
      %1055 = vmatprep.mubr.bf16.mxu0 0
      %1056 = vmatmul.mubr.bf16.gmra.mxu0 %v1021
      %v1057 = vpop.f32.mrf.mxu0
      %v1058 = vadd.f32 0.0, %v1057
      %v1059 = vpop.f32.mrf.mxu0
      %v1060 = vpop.f32.mrf.mxu0
      %v1061 = vadd.f32 0.0, %v1060
      %v1062 = vpop.f32.mrf.mxu0
      %1063 = vdwg.mxu0
      %v1064 = vadd.f32 %v1007, %v1058
      %v1065 = vadd.f32 %v1008, %v1061
      %s1066 = scalar_lea.vmem %s3, 32
      %v1067 = vld [vmem:[%s1066] sm:$0xf]
      %v1068 = vld [vmem:[%s1066 + $0x4] sm:$0xf]
      %v1071 = vunpack.c.l.b16 %v1067
      %v1072 = vunpack.c.l.b16 %v1068
      %v1073 = vpack.c.b16 %v1072, %v1071
      %1074 = vrot.lane.b32.xlu0 %v847, 117
      %v1075 = vpop.permute.xlu0 %1074
      %v1078 = vsel %vm340, %v1073, 0
      %1080 = vmatprep.subr.bf16.mxu0 0
      %1081 = vmatpush1.bf16.msra.mxu0 0
      %1082 = vmatprep.subr.bf16.mxu0 0
      %1083 = vmatpush1.bf16.msra.mxu0 0
      %1084 = vmatprep.subr.bf16.mxu0 0
      %1085 = vmatpush1.bf16.msra.mxu0 0
      %1086 = vmatprep.subr.bf16.mxu0 0
      %1087 = vmatpush1.bf16.msra.mxu0 0
      %1088 = vmatprep.subr.bf16.mxu0 0
      %1089 = vmatpush1.bf16.msra.mxu0 0
      %1090 = vmatprep.subr.bf16.mxu0 0
      %1091 = vmatpush1.bf16.msra.mxu0 0
      %1092 = vmatprep.subr.bf16.mxu0 0
      %1093 = vmatpush1.bf16.msra.mxu0 0
      %1094 = vmatprep.subr.bf16.mxu0 0
      %1095 = vmatpush1.bf16.msra.mxu0 %v1075
      %1096 = vmatprep.subr.bf16.mxu0 0
      %1097 = vmatpush2.bf16.msra.mxu0 0
      %1098 = vmatprep.subr.bf16.mxu0 0
      %1099 = vmatpush2.bf16.msra.mxu0 0
      %1100 = vmatprep.subr.bf16.mxu0 0
      %1101 = vmatpush2.bf16.msra.mxu0 0
      %1102 = vmatprep.subr.bf16.mxu0 0
      %1103 = vmatpush2.bf16.msra.mxu0 0
      %1104 = vmatprep.subr.bf16.mxu0 0
      %1105 = vmatpush2.bf16.msra.mxu0 0
      %1106 = vmatprep.subr.bf16.mxu0 0
      %1107 = vmatpush2.bf16.msra.mxu0 0
      %1108 = vmatprep.subr.bf16.mxu0 0
      %1109 = vmatpush2.bf16.msra.mxu0 0
      %1110 = vmatprep.subr.bf16.mxu0 0
      %1111 = vmatpush2.bf16.msra.mxu0 0
      %1112 = vmatprep.mubr.bf16.mxu0 0
      %1113 = vmatmul.mubr.bf16.gmra.mxu0 %v1078
      %v1114 = vpop.f32.mrf.mxu0
      %v1115 = vadd.f32 0.0, %v1114
      %v1116 = vpop.f32.mrf.mxu0
      %v1117 = vpop.f32.mrf.mxu0
      %v1118 = vadd.f32 0.0, %v1117
      %v1119 = vpop.f32.mrf.mxu0
      %1120 = vdwg.mxu0
      %v1121 = vadd.f32 %v1064, %v1115
      %v1122 = vadd.f32 %v1065, %v1118
      %s1123 = scalar_lea.vmem %s3, 40
      %v1124 = vld [vmem:[%s1123] sm:$0xf]
      %v1125 = vld [vmem:[%s1123 + $0x4] sm:$0xf]
      %v1128 = vunpack.c.l.b16 %v1124
      %v1129 = vunpack.c.l.b16 %v1125
      %v1130 = vpack.c.b16 %v1129, %v1128
      %1131 = vrot.lane.b32.xlu0 %v847, 116
      %v1132 = vpop.permute.xlu0 %1131
      %v1135 = vsel %vm340, %v1130, 0
      %1137 = vmatprep.subr.bf16.mxu0 0
      %1138 = vmatpush1.bf16.msra.mxu0 0
      %1139 = vmatprep.subr.bf16.mxu0 0
      %1140 = vmatpush1.bf16.msra.mxu0 0
      %1141 = vmatprep.subr.bf16.mxu0 0
      %1142 = vmatpush1.bf16.msra.mxu0 0
      %1143 = vmatprep.subr.bf16.mxu0 0
      %1144 = vmatpush1.bf16.msra.mxu0 0
      %1145 = vmatprep.subr.bf16.mxu0 0
      %1146 = vmatpush1.bf16.msra.mxu0 0
      %1147 = vmatprep.subr.bf16.mxu0 0
      %1148 = vmatpush1.bf16.msra.mxu0 0
      %1149 = vmatprep.subr.bf16.mxu0 0
      %1150 = vmatpush1.bf16.msra.mxu0 0
      %1151 = vmatprep.subr.bf16.mxu0 0
      %1152 = vmatpush1.bf16.msra.mxu0 %v1132
      %1153 = vmatprep.subr.bf16.mxu0 0
      %1154 = vmatpush2.bf16.msra.mxu0 0
      %1155 = vmatprep.subr.bf16.mxu0 0
      %1156 = vmatpush2.bf16.msra.mxu0 0
      %1157 = vmatprep.subr.bf16.mxu0 0
      %1158 = vmatpush2.bf16.msra.mxu0 0
      %1159 = vmatprep.subr.bf16.mxu0 0
      %1160 = vmatpush2.bf16.msra.mxu0 0
      %1161 = vmatprep.subr.bf16.mxu0 0
      %1162 = vmatpush2.bf16.msra.mxu0 0
      %1163 = vmatprep.subr.bf16.mxu0 0
      %1164 = vmatpush2.bf16.msra.mxu0 0
      %1165 = vmatprep.subr.bf16.mxu0 0
      %1166 = vmatpush2.bf16.msra.mxu0 0
      %1167 = vmatprep.subr.bf16.mxu0 0
      %1168 = vmatpush2.bf16.msra.mxu0 0
      %1169 = vmatprep.mubr.bf16.mxu0 0
      %1170 = vmatmul.mubr.bf16.gmra.mxu0 %v1135
      %v1171 = vpop.f32.mrf.mxu0
      %v1172 = vadd.f32 0.0, %v1171
      %v1173 = vpop.f32.mrf.mxu0
      %v1174 = vpop.f32.mrf.mxu0
      %v1175 = vadd.f32 0.0, %v1174
      %v1176 = vpop.f32.mrf.mxu0
      %1177 = vdwg.mxu0
      %v1178 = vadd.f32 %v1121, %v1172
      %v1179 = vadd.f32 %v1122, %v1175
      %s1180 = scalar_lea.vmem %s3, 48
      %v1181 = vld [vmem:[%s1180] sm:$0xf]
      %v1182 = vld [vmem:[%s1180 + $0x4] sm:$0xf]
      %v1185 = vunpack.c.l.b16 %v1181
      %v1186 = vunpack.c.l.b16 %v1182
      %v1187 = vpack.c.b16 %v1186, %v1185
      %1188 = vrot.lane.b32.xlu0 %v847, 108
      %v1189 = vpop.permute.xlu0 %1188
      %v1192 = vsel %vm340, %v1187, 0
      %1194 = vmatprep.subr.bf16.mxu0 0
      %1195 = vmatpush1.bf16.msra.mxu0 0
      %1196 = vmatprep.subr.bf16.mxu0 0
      %1197 = vmatpush1.bf16.msra.mxu0 0
      %1198 = vmatprep.subr.bf16.mxu0 0
      %1199 = vmatpush1.bf16.msra.mxu0 0
      %1200 = vmatprep.subr.bf16.mxu0 0
      %1201 = vmatpush1.bf16.msra.mxu0 0
      %1202 = vmatprep.subr.bf16.mxu0 0
      %1203 = vmatpush1.bf16.msra.mxu0 0
      %1204 = vmatprep.subr.bf16.mxu0 0
      %1205 = vmatpush1.bf16.msra.mxu0 0
      %1206 = vmatprep.subr.bf16.mxu0 0
      %1207 = vmatpush1.bf16.msra.mxu0 0
      %1208 = vmatprep.subr.bf16.mxu0 0
      %1209 = vmatpush1.bf16.msra.mxu0 %v1189
      %1210 = vmatprep.subr.bf16.mxu0 0
      %1211 = vmatpush2.bf16.msra.mxu0 0
      %1212 = vmatprep.subr.bf16.mxu0 0
      %1213 = vmatpush2.bf16.msra.mxu0 0
      %1214 = vmatprep.subr.bf16.mxu0 0
      %1215 = vmatpush2.bf16.msra.mxu0 0
      %1216 = vmatprep.subr.bf16.mxu0 0
      %1217 = vmatpush2.bf16.msra.mxu0 0
      %1218 = vmatprep.subr.bf16.mxu0 0
      %1219 = vmatpush2.bf16.msra.mxu0 0
      %1220 = vmatprep.subr.bf16.mxu0 0
      %1221 = vmatpush2.bf16.msra.mxu0 0
      %1222 = vmatprep.subr.bf16.mxu0 0
      %1223 = vmatpush2.bf16.msra.mxu0 0
      %1224 = vmatprep.subr.bf16.mxu0 0
      %1225 = vmatpush2.bf16.msra.mxu0 0
      %1226 = vmatprep.mubr.bf16.mxu0 0
      %1227 = vmatmul.mubr.bf16.gmra.mxu0 %v1192
      %v1228 = vpop.f32.mrf.mxu0
      %v1229 = vadd.f32 0.0, %v1228
      %v1230 = vpop.f32.mrf.mxu0
      %v1231 = vpop.f32.mrf.mxu0
      %v1232 = vadd.f32 0.0, %v1231
      %v1233 = vpop.f32.mrf.mxu0
      %1234 = vdwg.mxu0
      %v1235 = vadd.f32 %v1178, %v1229
      %v1236 = vadd.f32 %v1179, %v1232
      %s1237 = scalar_lea.vmem %s3, 56
      %v1238 = vld [vmem:[%s1237] sm:$0xf]
      %v1239 = vld [vmem:[%s1237 + $0x4] sm:$0xf]
      %v1242 = vunpack.c.l.b16 %v1238
      %v1243 = vunpack.c.l.b16 %v1239
      %v1244 = vpack.c.b16 %v1243, %v1242
      %1245 = vrot.lane.b32.xlu0 %v847, 107
      %v1246 = vpop.permute.xlu0 %1245
      %v1249 = vsel %vm340, %v1244, 0
      %1251 = vmatprep.subr.bf16.mxu0 0
      %1252 = vmatpush1.bf16.msra.mxu0 0
      %1253 = vmatprep.subr.bf16.mxu0 0
      %1254 = vmatpush1.bf16.msra.mxu0 0
      %1255 = vmatprep.subr.bf16.mxu0 0
      %1256 = vmatpush1.bf16.msra.mxu0 0
      %1257 = vmatprep.subr.bf16.mxu0 0
      %1258 = vmatpush1.bf16.msra.mxu0 0
      %1259 = vmatprep.subr.bf16.mxu0 0
      %1260 = vmatpush1.bf16.msra.mxu0 0
      %1261 = vmatprep.subr.bf16.mxu0 0
      %1262 = vmatpush1.bf16.msra.mxu0 0
      %1263 = vmatprep.subr.bf16.mxu0 0
      %1264 = vmatpush1.bf16.msra.mxu0 0
      %1265 = vmatprep.subr.bf16.mxu0 0
      %1266 = vmatpush1.bf16.msra.mxu0 %v1246
      %1267 = vmatprep.subr.bf16.mxu0 0
      %1268 = vmatpush2.bf16.msra.mxu0 0
      %1269 = vmatprep.subr.bf16.mxu0 0
      %1270 = vmatpush2.bf16.msra.mxu0 0
      %1271 = vmatprep.subr.bf16.mxu0 0
      %1272 = vmatpush2.bf16.msra.mxu0 0
      %1273 = vmatprep.subr.bf16.mxu0 0
      %1274 = vmatpush2.bf16.msra.mxu0 0
      %1275 = vmatprep.subr.bf16.mxu0 0
      %1276 = vmatpush2.bf16.msra.mxu0 0
      %1277 = vmatprep.subr.bf16.mxu0 0
      %1278 = vmatpush2.bf16.msra.mxu0 0
      %1279 = vmatprep.subr.bf16.mxu0 0
      %1280 = vmatpush2.bf16.msra.mxu0 0
      %1281 = vmatprep.subr.bf16.mxu0 0
      %1282 = vmatpush2.bf16.msra.mxu0 0
      %1283 = vmatprep.mubr.bf16.mxu0 0
      %1284 = vmatmul.mubr.bf16.gmra.mxu0 %v1249
      %v1285 = vpop.f32.mrf.mxu0
      %v1286 = vadd.f32 0.0, %v1285
      %v1287 = vpop.f32.mrf.mxu0
      %v1288 = vpop.f32.mrf.mxu0
      %v1289 = vadd.f32 0.0, %v1288
      %v1290 = vpop.f32.mrf.mxu0
      %1291 = vdwg.mxu0
      %v1292 = vadd.f32 %v1235, %v1286
      %v1293 = vadd.f32 %v1236, %v1289
      %s1294 = scalar_lea.vmem %s3, 64
      %v1295 = vld [vmem:[%s1294] sm:$0xf]
      %v1296 = vld [vmem:[%s1294 + $0x4] sm:$0xf]
      %v1299 = vunpack.c.l.b16 %v1295
      %v1300 = vunpack.c.l.b16 %v1296
      %v1301 = vpack.c.b16 %v1300, %v1299
      %1302 = vrot.lane.b32.xlu0 %v847, 106
      %v1303 = vpop.permute.xlu0 %1302
      %v1306 = vsel %vm340, %v1301, 0
      %1308 = vmatprep.subr.bf16.mxu0 0
      %1309 = vmatpush1.bf16.msra.mxu0 0
      %1310 = vmatprep.subr.bf16.mxu0 0
      %1311 = vmatpush1.bf16.msra.mxu0 0
      %1312 = vmatprep.subr.bf16.mxu0 0
      %1313 = vmatpush1.bf16.msra.mxu0 0
      %1314 = vmatprep.subr.bf16.mxu0 0
      %1315 = vmatpush1.bf16.msra.mxu0 0
      %1316 = vmatprep.subr.bf16.mxu0 0
      %1317 = vmatpush1.bf16.msra.mxu0 0
      %1318 = vmatprep.subr.bf16.mxu0 0
      %1319 = vmatpush1.bf16.msra.mxu0 0
      %1320 = vmatprep.subr.bf16.mxu0 0
      %1321 = vmatpush1.bf16.msra.mxu0 0
      %1322 = vmatprep.subr.bf16.mxu0 0
      %1323 = vmatpush1.bf16.msra.mxu0 %v1303
      %1324 = vmatprep.subr.bf16.mxu0 0
      %1325 = vmatpush2.bf16.msra.mxu0 0
      %1326 = vmatprep.subr.bf16.mxu0 0
      %1327 = vmatpush2.bf16.msra.mxu0 0
      %1328 = vmatprep.subr.bf16.mxu0 0
      %1329 = vmatpush2.bf16.msra.mxu0 0
      %1330 = vmatprep.subr.bf16.mxu0 0
      %1331 = vmatpush2.bf16.msra.mxu0 0
      %1332 = vmatprep.subr.bf16.mxu0 0
      %1333 = vmatpush2.bf16.msra.mxu0 0
      %1334 = vmatprep.subr.bf16.mxu0 0
      %1335 = vmatpush2.bf16.msra.mxu0 0
      %1336 = vmatprep.subr.bf16.mxu0 0
      %1337 = vmatpush2.bf16.msra.mxu0 0
      %1338 = vmatprep.subr.bf16.mxu0 0
      %1339 = vmatpush2.bf16.msra.mxu0 0
      %1340 = vmatprep.mubr.bf16.mxu0 0
      %1341 = vmatmul.mubr.bf16.gmra.mxu0 %v1306
      %v1342 = vpop.f32.mrf.mxu0
      %v1343 = vadd.f32 0.0, %v1342
      %v1344 = vpop.f32.mrf.mxu0
      %v1345 = vpop.f32.mrf.mxu0
      %v1346 = vadd.f32 0.0, %v1345
      %v1347 = vpop.f32.mrf.mxu0
      %1348 = vdwg.mxu0
      %v1349 = vadd.f32 %v1292, %v1343
      %v1350 = vadd.f32 %v1293, %v1346
      %v1351 = vld [vmem:[%s313] sm:$0xf]
      %v1352 = vld [vmem:[%s313 + $0x4] sm:$0xf]
      %v1353 = vld [vmem:[%s5] sm:$0xf]
      %v1354 = vld [vmem:[%s5 + $0x4] sm:$0xf]
      %v1357 = vunpack.c.l.b16 %v1353
      %v1358 = vunpack.c.l.b16 %v1354
      %v1359 = vpack.c.b16 %v1358, %v1357
      %v1362 = vunpack.c.l.b16 %v1351
      %v1363 = vunpack.c.l.b16 %v1352
      %v1364 = vpack.c.b16 %v1363, %v1362
      %v1367 = vsel %vm340, %v1359, 0
      %1369 = vmatprep.subr.bf16.mxu0 0
      %1370 = vmatpush1.bf16.msra.mxu0 0
      %1371 = vmatprep.subr.bf16.mxu0 0
      %1372 = vmatpush1.bf16.msra.mxu0 0
      %1373 = vmatprep.subr.bf16.mxu0 0
      %1374 = vmatpush1.bf16.msra.mxu0 0
      %1375 = vmatprep.subr.bf16.mxu0 0
      %1376 = vmatpush1.bf16.msra.mxu0 0
      %1377 = vmatprep.subr.bf16.mxu0 0
      %1378 = vmatpush1.bf16.msra.mxu0 0
      %1379 = vmatprep.subr.bf16.mxu0 0
      %1380 = vmatpush1.bf16.msra.mxu0 0
      %1381 = vmatprep.subr.bf16.mxu0 0
      %1382 = vmatpush1.bf16.msra.mxu0 0
      %1383 = vmatprep.subr.bf16.mxu0 0
      %1384 = vmatpush1.bf16.msra.mxu0 %v1364
      %1385 = vmatprep.subr.bf16.mxu0 0
      %1386 = vmatpush2.bf16.msra.mxu0 0
      %1387 = vmatprep.subr.bf16.mxu0 0
      %1388 = vmatpush2.bf16.msra.mxu0 0
      %1389 = vmatprep.subr.bf16.mxu0 0
      %1390 = vmatpush2.bf16.msra.mxu0 0
      %1391 = vmatprep.subr.bf16.mxu0 0
      %1392 = vmatpush2.bf16.msra.mxu0 0
      %1393 = vmatprep.subr.bf16.mxu0 0
      %1394 = vmatpush2.bf16.msra.mxu0 0
      %1395 = vmatprep.subr.bf16.mxu0 0
      %1396 = vmatpush2.bf16.msra.mxu0 0
      %1397 = vmatprep.subr.bf16.mxu0 0
      %1398 = vmatpush2.bf16.msra.mxu0 0
      %1399 = vmatprep.subr.bf16.mxu0 0
      %1400 = vmatpush2.bf16.msra.mxu0 0
      %1401 = vmatprep.mubr.bf16.mxu0 0
      %1402 = vmatmul.mubr.bf16.gmra.mxu0 %v1367
      %v1403 = vpop.f32.mrf.mxu0
      %v1404 = vadd.f32 0.0, %v1403
      %v1405 = vpop.f32.mrf.mxu0
      %v1406 = vpop.f32.mrf.mxu0
      %v1407 = vadd.f32 0.0, %v1406
      %v1408 = vpop.f32.mrf.mxu0
      %1409 = vdwg.mxu0
      %v1410 = vadd.f32 %v1349, %v1404
      %v1411 = vadd.f32 %v1350, %v1407
      %s1412 = scalar_lea.vmem %s5, 8
      %v1413 = vld [vmem:[%s1412] sm:$0xf]
      %v1414 = vld [vmem:[%s1412 + $0x4] sm:$0xf]
      %v1417 = vunpack.c.l.b16 %v1413
      %v1418 = vunpack.c.l.b16 %v1414
      %v1419 = vpack.c.b16 %v1418, %v1417
      %1420 = vrot.lane.b32.xlu0 %v1364, 127
      %v1421 = vpop.permute.xlu0 %1420
      %v1424 = vsel %vm340, %v1419, 0
      %1426 = vmatprep.subr.bf16.mxu0 0
      %1427 = vmatpush1.bf16.msra.mxu0 0
      %1428 = vmatprep.subr.bf16.mxu0 0
      %1429 = vmatpush1.bf16.msra.mxu0 0
      %1430 = vmatprep.subr.bf16.mxu0 0
      %1431 = vmatpush1.bf16.msra.mxu0 0
      %1432 = vmatprep.subr.bf16.mxu0 0
      %1433 = vmatpush1.bf16.msra.mxu0 0
      %1434 = vmatprep.subr.bf16.mxu0 0
      %1435 = vmatpush1.bf16.msra.mxu0 0
      %1436 = vmatprep.subr.bf16.mxu0 0
      %1437 = vmatpush1.bf16.msra.mxu0 0
      %1438 = vmatprep.subr.bf16.mxu0 0
      %1439 = vmatpush1.bf16.msra.mxu0 0
      %1440 = vmatprep.subr.bf16.mxu0 0
      %1441 = vmatpush1.bf16.msra.mxu0 %v1421
      %1442 = vmatprep.subr.bf16.mxu0 0
      %1443 = vmatpush2.bf16.msra.mxu0 0
      %1444 = vmatprep.subr.bf16.mxu0 0
      %1445 = vmatpush2.bf16.msra.mxu0 0
      %1446 = vmatprep.subr.bf16.mxu0 0
      %1447 = vmatpush2.bf16.msra.mxu0 0
      %1448 = vmatprep.subr.bf16.mxu0 0
      %1449 = vmatpush2.bf16.msra.mxu0 0
      %1450 = vmatprep.subr.bf16.mxu0 0
      %1451 = vmatpush2.bf16.msra.mxu0 0
      %1452 = vmatprep.subr.bf16.mxu0 0
      %1453 = vmatpush2.bf16.msra.mxu0 0
      %1454 = vmatprep.subr.bf16.mxu0 0
      %1455 = vmatpush2.bf16.msra.mxu0 0
      %1456 = vmatprep.subr.bf16.mxu0 0
      %1457 = vmatpush2.bf16.msra.mxu0 0
      %1458 = vmatprep.mubr.bf16.mxu0 0
      %1459 = vmatmul.mubr.bf16.gmra.mxu0 %v1424
      %v1460 = vpop.f32.mrf.mxu0
      %v1461 = vadd.f32 0.0, %v1460
      %v1462 = vpop.f32.mrf.mxu0
      %v1463 = vpop.f32.mrf.mxu0
      %v1464 = vadd.f32 0.0, %v1463
      %v1465 = vpop.f32.mrf.mxu0
      %1466 = vdwg.mxu0
      %v1467 = vadd.f32 %v1410, %v1461
      %v1468 = vadd.f32 %v1411, %v1464
      %s1469 = scalar_lea.vmem %s5, 16
      %v1470 = vld [vmem:[%s1469] sm:$0xf]
      %v1471 = vld [vmem:[%s1469 + $0x4] sm:$0xf]
      %v1474 = vunpack.c.l.b16 %v1470
      %v1475 = vunpack.c.l.b16 %v1471
      %v1476 = vpack.c.b16 %v1475, %v1474
      %1477 = vrot.lane.b32.xlu0 %v1364, 126
      %v1478 = vpop.permute.xlu0 %1477
      %v1481 = vsel %vm340, %v1476, 0
      %1483 = vmatprep.subr.bf16.mxu0 0
      %1484 = vmatpush1.bf16.msra.mxu0 0
      %1485 = vmatprep.subr.bf16.mxu0 0
      %1486 = vmatpush1.bf16.msra.mxu0 0
      %1487 = vmatprep.subr.bf16.mxu0 0
      %1488 = vmatpush1.bf16.msra.mxu0 0
      %1489 = vmatprep.subr.bf16.mxu0 0
      %1490 = vmatpush1.bf16.msra.mxu0 0
      %1491 = vmatprep.subr.bf16.mxu0 0
      %1492 = vmatpush1.bf16.msra.mxu0 0
      %1493 = vmatprep.subr.bf16.mxu0 0
      %1494 = vmatpush1.bf16.msra.mxu0 0
      %1495 = vmatprep.subr.bf16.mxu0 0
      %1496 = vmatpush1.bf16.msra.mxu0 0
      %1497 = vmatprep.subr.bf16.mxu0 0
      %1498 = vmatpush1.bf16.msra.mxu0 %v1478
      %1499 = vmatprep.subr.bf16.mxu0 0
      %1500 = vmatpush2.bf16.msra.mxu0 0
      %1501 = vmatprep.subr.bf16.mxu0 0
      %1502 = vmatpush2.bf16.msra.mxu0 0
      %1503 = vmatprep.subr.bf16.mxu0 0
      %1504 = vmatpush2.bf16.msra.mxu0 0
      %1505 = vmatprep.subr.bf16.mxu0 0
      %1506 = vmatpush2.bf16.msra.mxu0 0
      %1507 = vmatprep.subr.bf16.mxu0 0
      %1508 = vmatpush2.bf16.msra.mxu0 0
      %1509 = vmatprep.subr.bf16.mxu0 0
      %1510 = vmatpush2.bf16.msra.mxu0 0
      %1511 = vmatprep.subr.bf16.mxu0 0
      %1512 = vmatpush2.bf16.msra.mxu0 0
      %1513 = vmatprep.subr.bf16.mxu0 0
      %1514 = vmatpush2.bf16.msra.mxu0 0
      %1515 = vmatprep.mubr.bf16.mxu0 0
      %1516 = vmatmul.mubr.bf16.gmra.mxu0 %v1481
      %v1517 = vpop.f32.mrf.mxu0
      %v1518 = vadd.f32 0.0, %v1517
      %v1519 = vpop.f32.mrf.mxu0
      %v1520 = vpop.f32.mrf.mxu0
      %v1521 = vadd.f32 0.0, %v1520
      %v1522 = vpop.f32.mrf.mxu0
      %1523 = vdwg.mxu0
      %v1524 = vadd.f32 %v1467, %v1518
      %v1525 = vadd.f32 %v1468, %v1521
      %s1526 = scalar_lea.vmem %s5, 24
      %v1527 = vld [vmem:[%s1526] sm:$0xf]
      %v1528 = vld [vmem:[%s1526 + $0x4] sm:$0xf]
      %v1531 = vunpack.c.l.b16 %v1527
      %v1532 = vunpack.c.l.b16 %v1528
      %v1533 = vpack.c.b16 %v1532, %v1531
      %1534 = vrot.lane.b32.xlu0 %v1364, 118
      %v1535 = vpop.permute.xlu0 %1534
      %v1538 = vsel %vm340, %v1533, 0
      %1540 = vmatprep.subr.bf16.mxu0 0
      %1541 = vmatpush1.bf16.msra.mxu0 0
      %1542 = vmatprep.subr.bf16.mxu0 0
      %1543 = vmatpush1.bf16.msra.mxu0 0
      %1544 = vmatprep.subr.bf16.mxu0 0
      %1545 = vmatpush1.bf16.msra.mxu0 0
      %1546 = vmatprep.subr.bf16.mxu0 0
      %1547 = vmatpush1.bf16.msra.mxu0 0
      %1548 = vmatprep.subr.bf16.mxu0 0
      %1549 = vmatpush1.bf16.msra.mxu0 0
      %1550 = vmatprep.subr.bf16.mxu0 0
      %1551 = vmatpush1.bf16.msra.mxu0 0
      %1552 = vmatprep.subr.bf16.mxu0 0
      %1553 = vmatpush1.bf16.msra.mxu0 0
      %1554 = vmatprep.subr.bf16.mxu0 0
      %1555 = vmatpush1.bf16.msra.mxu0 %v1535
      %1556 = vmatprep.subr.bf16.mxu0 0
      %1557 = vmatpush2.bf16.msra.mxu0 0
      %1558 = vmatprep.subr.bf16.mxu0 0
      %1559 = vmatpush2.bf16.msra.mxu0 0
      %1560 = vmatprep.subr.bf16.mxu0 0
      %1561 = vmatpush2.bf16.msra.mxu0 0
      %1562 = vmatprep.subr.bf16.mxu0 0
      %1563 = vmatpush2.bf16.msra.mxu0 0
      %1564 = vmatprep.subr.bf16.mxu0 0
      %1565 = vmatpush2.bf16.msra.mxu0 0
      %1566 = vmatprep.subr.bf16.mxu0 0
      %1567 = vmatpush2.bf16.msra.mxu0 0
      %1568 = vmatprep.subr.bf16.mxu0 0
      %1569 = vmatpush2.bf16.msra.mxu0 0
      %1570 = vmatprep.subr.bf16.mxu0 0
      %1571 = vmatpush2.bf16.msra.mxu0 0
      %1572 = vmatprep.mubr.bf16.mxu0 0
      %1573 = vmatmul.mubr.bf16.gmra.mxu0 %v1538
      %v1574 = vpop.f32.mrf.mxu0
      %v1575 = vadd.f32 0.0, %v1574
      %v1576 = vpop.f32.mrf.mxu0
      %v1577 = vpop.f32.mrf.mxu0
      %v1578 = vadd.f32 0.0, %v1577
      %v1579 = vpop.f32.mrf.mxu0
      %1580 = vdwg.mxu0
      %v1581 = vadd.f32 %v1524, %v1575
      %v1582 = vadd.f32 %v1525, %v1578
      %s1583 = scalar_lea.vmem %s5, 32
      %v1584 = vld [vmem:[%s1583] sm:$0xf]
      %v1585 = vld [vmem:[%s1583 + $0x4] sm:$0xf]
      %v1588 = vunpack.c.l.b16 %v1584
      %v1589 = vunpack.c.l.b16 %v1585
      %v1590 = vpack.c.b16 %v1589, %v1588
      %1591 = vrot.lane.b32.xlu0 %v1364, 117
      %v1592 = vpop.permute.xlu0 %1591
      %v1595 = vsel %vm340, %v1590, 0
      %1597 = vmatprep.subr.bf16.mxu0 0
      %1598 = vmatpush1.bf16.msra.mxu0 0
      %1599 = vmatprep.subr.bf16.mxu0 0
      %1600 = vmatpush1.bf16.msra.mxu0 0
      %1601 = vmatprep.subr.bf16.mxu0 0
      %1602 = vmatpush1.bf16.msra.mxu0 0
      %1603 = vmatprep.subr.bf16.mxu0 0
      %1604 = vmatpush1.bf16.msra.mxu0 0
      %1605 = vmatprep.subr.bf16.mxu0 0
      %1606 = vmatpush1.bf16.msra.mxu0 0
      %1607 = vmatprep.subr.bf16.mxu0 0
      %1608 = vmatpush1.bf16.msra.mxu0 0
      %1609 = vmatprep.subr.bf16.mxu0 0
      %1610 = vmatpush1.bf16.msra.mxu0 0
      %1611 = vmatprep.subr.bf16.mxu0 0
      %1612 = vmatpush1.bf16.msra.mxu0 %v1592
      %1613 = vmatprep.subr.bf16.mxu0 0
      %1614 = vmatpush2.bf16.msra.mxu0 0
      %1615 = vmatprep.subr.bf16.mxu0 0
      %1616 = vmatpush2.bf16.msra.mxu0 0
      %1617 = vmatprep.subr.bf16.mxu0 0
      %1618 = vmatpush2.bf16.msra.mxu0 0
      %1619 = vmatprep.subr.bf16.mxu0 0
      %1620 = vmatpush2.bf16.msra.mxu0 0
      %1621 = vmatprep.subr.bf16.mxu0 0
      %1622 = vmatpush2.bf16.msra.mxu0 0
      %1623 = vmatprep.subr.bf16.mxu0 0
      %1624 = vmatpush2.bf16.msra.mxu0 0
      %1625 = vmatprep.subr.bf16.mxu0 0
      %1626 = vmatpush2.bf16.msra.mxu0 0
      %1627 = vmatprep.subr.bf16.mxu0 0
      %1628 = vmatpush2.bf16.msra.mxu0 0
      %1629 = vmatprep.mubr.bf16.mxu0 0
      %1630 = vmatmul.mubr.bf16.gmra.mxu0 %v1595
      %v1631 = vpop.f32.mrf.mxu0
      %v1632 = vadd.f32 0.0, %v1631
      %v1633 = vpop.f32.mrf.mxu0
      %v1634 = vpop.f32.mrf.mxu0
      %v1635 = vadd.f32 0.0, %v1634
      %v1636 = vpop.f32.mrf.mxu0
      %1637 = vdwg.mxu0
      %v1638 = vadd.f32 %v1581, %v1632
      %v1639 = vadd.f32 %v1582, %v1635
      %s1640 = scalar_lea.vmem %s5, 40
      %v1641 = vld [vmem:[%s1640] sm:$0xf]
      %v1642 = vld [vmem:[%s1640 + $0x4] sm:$0xf]
      %v1645 = vunpack.c.l.b16 %v1641
      %v1646 = vunpack.c.l.b16 %v1642
      %v1647 = vpack.c.b16 %v1646, %v1645
      %1648 = vrot.lane.b32.xlu0 %v1364, 116
      %v1649 = vpop.permute.xlu0 %1648
      %v1652 = vsel %vm340, %v1647, 0
      %1654 = vmatprep.subr.bf16.mxu0 0
      %1655 = vmatpush1.bf16.msra.mxu0 0
      %1656 = vmatprep.subr.bf16.mxu0 0
      %1657 = vmatpush1.bf16.msra.mxu0 0
      %1658 = vmatprep.subr.bf16.mxu0 0
      %1659 = vmatpush1.bf16.msra.mxu0 0
      %1660 = vmatprep.subr.bf16.mxu0 0
      %1661 = vmatpush1.bf16.msra.mxu0 0
      %1662 = vmatprep.subr.bf16.mxu0 0
      %1663 = vmatpush1.bf16.msra.mxu0 0
      %1664 = vmatprep.subr.bf16.mxu0 0
      %1665 = vmatpush1.bf16.msra.mxu0 0
      %1666 = vmatprep.subr.bf16.mxu0 0
      %1667 = vmatpush1.bf16.msra.mxu0 0
      %1668 = vmatprep.subr.bf16.mxu0 0
      %1669 = vmatpush1.bf16.msra.mxu0 %v1649
      %1670 = vmatprep.subr.bf16.mxu0 0
      %1671 = vmatpush2.bf16.msra.mxu0 0
      %1672 = vmatprep.subr.bf16.mxu0 0
      %1673 = vmatpush2.bf16.msra.mxu0 0
      %1674 = vmatprep.subr.bf16.mxu0 0
      %1675 = vmatpush2.bf16.msra.mxu0 0
      %1676 = vmatprep.subr.bf16.mxu0 0
      %1677 = vmatpush2.bf16.msra.mxu0 0
      %1678 = vmatprep.subr.bf16.mxu0 0
      %1679 = vmatpush2.bf16.msra.mxu0 0
      %1680 = vmatprep.subr.bf16.mxu0 0
      %1681 = vmatpush2.bf16.msra.mxu0 0
      %1682 = vmatprep.subr.bf16.mxu0 0
      %1683 = vmatpush2.bf16.msra.mxu0 0
      %1684 = vmatprep.subr.bf16.mxu0 0
      %1685 = vmatpush2.bf16.msra.mxu0 0
      %1686 = vmatprep.mubr.bf16.mxu0 0
      %1687 = vmatmul.mubr.bf16.gmra.mxu0 %v1652
      %v1688 = vpop.f32.mrf.mxu0
      %v1689 = vadd.f32 0.0, %v1688
      %v1690 = vpop.f32.mrf.mxu0
      %v1691 = vpop.f32.mrf.mxu0
      %v1692 = vadd.f32 0.0, %v1691
      %v1693 = vpop.f32.mrf.mxu0
      %1694 = vdwg.mxu0
      %v1695 = vadd.f32 %v1638, %v1689
      %v1696 = vadd.f32 %v1639, %v1692
      %s1697 = scalar_lea.vmem %s5, 48
      %v1698 = vld [vmem:[%s1697] sm:$0xf]
      %v1699 = vld [vmem:[%s1697 + $0x4] sm:$0xf]
      %v1702 = vunpack.c.l.b16 %v1698
      %v1703 = vunpack.c.l.b16 %v1699
      %v1704 = vpack.c.b16 %v1703, %v1702
      %1705 = vrot.lane.b32.xlu0 %v1364, 108
      %v1706 = vpop.permute.xlu0 %1705
      %v1709 = vsel %vm340, %v1704, 0
      %1711 = vmatprep.subr.bf16.mxu0 0
      %1712 = vmatpush1.bf16.msra.mxu0 0
      %1713 = vmatprep.subr.bf16.mxu0 0
      %1714 = vmatpush1.bf16.msra.mxu0 0
      %1715 = vmatprep.subr.bf16.mxu0 0
      %1716 = vmatpush1.bf16.msra.mxu0 0
      %1717 = vmatprep.subr.bf16.mxu0 0
      %1718 = vmatpush1.bf16.msra.mxu0 0
      %1719 = vmatprep.subr.bf16.mxu0 0
      %1720 = vmatpush1.bf16.msra.mxu0 0
      %1721 = vmatprep.subr.bf16.mxu0 0
      %1722 = vmatpush1.bf16.msra.mxu0 0
      %1723 = vmatprep.subr.bf16.mxu0 0
      %1724 = vmatpush1.bf16.msra.mxu0 0
      %1725 = vmatprep.subr.bf16.mxu0 0
      %1726 = vmatpush1.bf16.msra.mxu0 %v1706
      %1727 = vmatprep.subr.bf16.mxu0 0
      %1728 = vmatpush2.bf16.msra.mxu0 0
      %1729 = vmatprep.subr.bf16.mxu0 0
      %1730 = vmatpush2.bf16.msra.mxu0 0
      %1731 = vmatprep.subr.bf16.mxu0 0
      %1732 = vmatpush2.bf16.msra.mxu0 0
      %1733 = vmatprep.subr.bf16.mxu0 0
      %1734 = vmatpush2.bf16.msra.mxu0 0
      %1735 = vmatprep.subr.bf16.mxu0 0
      %1736 = vmatpush2.bf16.msra.mxu0 0
      %1737 = vmatprep.subr.bf16.mxu0 0
      %1738 = vmatpush2.bf16.msra.mxu0 0
      %1739 = vmatprep.subr.bf16.mxu0 0
      %1740 = vmatpush2.bf16.msra.mxu0 0
      %1741 = vmatprep.subr.bf16.mxu0 0
      %1742 = vmatpush2.bf16.msra.mxu0 0
      %1743 = vmatprep.mubr.bf16.mxu0 0
      %1744 = vmatmul.mubr.bf16.gmra.mxu0 %v1709
      %v1745 = vpop.f32.mrf.mxu0
      %v1746 = vadd.f32 0.0, %v1745
      %v1747 = vpop.f32.mrf.mxu0
      %v1748 = vpop.f32.mrf.mxu0
      %v1749 = vadd.f32 0.0, %v1748
      %v1750 = vpop.f32.mrf.mxu0
      %1751 = vdwg.mxu0
      %v1752 = vadd.f32 %v1695, %v1746
      %v1753 = vadd.f32 %v1696, %v1749
      %s1754 = scalar_lea.vmem %s5, 56
      %v1755 = vld [vmem:[%s1754] sm:$0xf]
      %v1756 = vld [vmem:[%s1754 + $0x4] sm:$0xf]
      %v1759 = vunpack.c.l.b16 %v1755
      %v1760 = vunpack.c.l.b16 %v1756
      %v1761 = vpack.c.b16 %v1760, %v1759
      %1762 = vrot.lane.b32.xlu0 %v1364, 107
      %v1763 = vpop.permute.xlu0 %1762
      %v1766 = vsel %vm340, %v1761, 0
      %1768 = vmatprep.subr.bf16.mxu0 0
      %1769 = vmatpush1.bf16.msra.mxu0 0
      %1770 = vmatprep.subr.bf16.mxu0 0
      %1771 = vmatpush1.bf16.msra.mxu0 0
      %1772 = vmatprep.subr.bf16.mxu0 0
      %1773 = vmatpush1.bf16.msra.mxu0 0
      %1774 = vmatprep.subr.bf16.mxu0 0
      %1775 = vmatpush1.bf16.msra.mxu0 0
      %1776 = vmatprep.subr.bf16.mxu0 0
      %1777 = vmatpush1.bf16.msra.mxu0 0
      %1778 = vmatprep.subr.bf16.mxu0 0
      %1779 = vmatpush1.bf16.msra.mxu0 0
      %1780 = vmatprep.subr.bf16.mxu0 0
      %1781 = vmatpush1.bf16.msra.mxu0 0
      %1782 = vmatprep.subr.bf16.mxu0 0
      %1783 = vmatpush1.bf16.msra.mxu0 %v1763
      %1784 = vmatprep.subr.bf16.mxu0 0
      %1785 = vmatpush2.bf16.msra.mxu0 0
      %1786 = vmatprep.subr.bf16.mxu0 0
      %1787 = vmatpush2.bf16.msra.mxu0 0
      %1788 = vmatprep.subr.bf16.mxu0 0
      %1789 = vmatpush2.bf16.msra.mxu0 0
      %1790 = vmatprep.subr.bf16.mxu0 0
      %1791 = vmatpush2.bf16.msra.mxu0 0
      %1792 = vmatprep.subr.bf16.mxu0 0
      %1793 = vmatpush2.bf16.msra.mxu0 0
      %1794 = vmatprep.subr.bf16.mxu0 0
      %1795 = vmatpush2.bf16.msra.mxu0 0
      %1796 = vmatprep.subr.bf16.mxu0 0
      %1797 = vmatpush2.bf16.msra.mxu0 0
      %1798 = vmatprep.subr.bf16.mxu0 0
      %1799 = vmatpush2.bf16.msra.mxu0 0
      %1800 = vmatprep.mubr.bf16.mxu0 0
      %1801 = vmatmul.mubr.bf16.gmra.mxu0 %v1766
      %v1802 = vpop.f32.mrf.mxu0
      %v1803 = vadd.f32 0.0, %v1802
      %v1804 = vpop.f32.mrf.mxu0
      %v1805 = vpop.f32.mrf.mxu0
      %v1806 = vadd.f32 0.0, %v1805
      %v1807 = vpop.f32.mrf.mxu0
      %1808 = vdwg.mxu0
      %v1809 = vadd.f32 %v1752, %v1803
      %v1810 = vadd.f32 %v1753, %v1806
      %s1811 = scalar_lea.vmem %s5, 64
      %v1812 = vld [vmem:[%s1811] sm:$0xf]
      %v1813 = vld [vmem:[%s1811 + $0x4] sm:$0xf]
      %v1816 = vunpack.c.l.b16 %v1812
      %v1817 = vunpack.c.l.b16 %v1813
      %v1818 = vpack.c.b16 %v1817, %v1816
      %1819 = vrot.lane.b32.xlu0 %v1364, 106
      %v1820 = vpop.permute.xlu0 %1819
      %v1823 = vsel %vm340, %v1818, 0
      %1825 = vmatprep.subr.bf16.mxu0 0
      %1826 = vmatpush1.bf16.msra.mxu0 0
      %1827 = vmatprep.subr.bf16.mxu0 0
      %1828 = vmatpush1.bf16.msra.mxu0 0
      %1829 = vmatprep.subr.bf16.mxu0 0
      %1830 = vmatpush1.bf16.msra.mxu0 0
      %1831 = vmatprep.subr.bf16.mxu0 0
      %1832 = vmatpush1.bf16.msra.mxu0 0
      %1833 = vmatprep.subr.bf16.mxu0 0
      %1834 = vmatpush1.bf16.msra.mxu0 0
      %1835 = vmatprep.subr.bf16.mxu0 0
      %1836 = vmatpush1.bf16.msra.mxu0 0
      %1837 = vmatprep.subr.bf16.mxu0 0
      %1838 = vmatpush1.bf16.msra.mxu0 0
      %1839 = vmatprep.subr.bf16.mxu0 0
      %1840 = vmatpush1.bf16.msra.mxu0 %v1820
      %1841 = vmatprep.subr.bf16.mxu0 0
      %1842 = vmatpush2.bf16.msra.mxu0 0
      %1843 = vmatprep.subr.bf16.mxu0 0
      %1844 = vmatpush2.bf16.msra.mxu0 0
      %1845 = vmatprep.subr.bf16.mxu0 0
      %1846 = vmatpush2.bf16.msra.mxu0 0
      %1847 = vmatprep.subr.bf16.mxu0 0
      %1848 = vmatpush2.bf16.msra.mxu0 0
      %1849 = vmatprep.subr.bf16.mxu0 0
      %1850 = vmatpush2.bf16.msra.mxu0 0
      %1851 = vmatprep.subr.bf16.mxu0 0
      %1852 = vmatpush2.bf16.msra.mxu0 0
      %1853 = vmatprep.subr.bf16.mxu0 0
      %1854 = vmatpush2.bf16.msra.mxu0 0
      %1855 = vmatprep.subr.bf16.mxu0 0
      %1856 = vmatpush2.bf16.msra.mxu0 0
      %1857 = vmatprep.mubr.bf16.mxu0 0
      %1858 = vmatmul.mubr.bf16.gmra.mxu0 %v1823
      %v1859 = vpop.f32.mrf.mxu0
      %v1860 = vadd.f32 0.0, %v1859
      %v1861 = vpop.f32.mrf.mxu0
      %v1862 = vpop.f32.mrf.mxu0
      %v1863 = vadd.f32 0.0, %v1862
      %v1864 = vpop.f32.mrf.mxu0
      %1865 = vdwg.mxu0
      %v1866 = vadd.f32 %v1809, %v1860
      %v1867 = vadd.f32 %v1810, %v1863
      %v1868 = vld [vmem:[%s6] sm:$0xff]
      %v1869 = vld [vmem:[%s6 + $0x8] sm:$0xff]
      %1871 = vset.pattern.permute.xlu0 0
      %1872 = vperm.xlu0 %1871, %v1868
      %v1873 = vpop.permute.xlu0 %1872
      %1876 = vset.pattern.permute.xlu0 0
      %1877 = vperm.xlu0 %1876, %v1869
      %v1878 = vpop.permute.xlu0 %1877
      %v1880 = vadd.f32 %v1866, %v1873
      %v1881 = vadd.f32 %v1867, %v1878
      %v1882 = vmax.f32 %v1880, 0.0
      %v1883 = vmax.f32 %v1881, 0.0
      %v1884 = vpack.c.bf16 %v1883, %v1882
      %v1886 = vunpack.c.l.b16 %v1884
      %v1887 = vunpack.c.h.b16 %v1884
      %v1888 = vpack.c.b16 %v1886, %v1886
      %v1889 = vpack.c.b16 %v1887, %v1887
      %vm1892 = vcmask 732160
      %1893 = vst.msk [vmem:[%s318] sm:$0xf] %vm1892, %v1888
      %1894 = vst.msk [vmem:[%s318 + $0x4] sm:$0xf] %vm1892, %v1889
      %p1895 = scmp.lt.s32.totalorder %s18, 1
      %s1896 = scalar_select %p1895, %s18, 1
      %s1897 = smul.addr %s1896, 2
      %s1898 = smul.addr %s1897, 4
      %s1899 = scalar_lea.vmem %s7, %s1898
      // Predicated region
      $region49: #{conv_3nv1_forward.12} parent=47 // pred_check
        %p1900 = pneg %p198
      $region50: #{conv_3nv1_forward.12} parent=47 // pred_check_branch
        %1902 = sbr.rel (%p1900) target = $region52
      $region51: #{conv_3nv1_forward.12} parent=47 // pred_region
        _
      $region52: #{conv_3nv1_forward.12} parent=47 // pred_fallthru
        _
    $region48: #{conv_3nv1_forward.12} parent=5 // pred_fallthru
      _
    %p1903 = scmp.le.s32.totalorder 2, %s13
    // Predicated region
    $region53: #{conv_3nv1_forward.12} parent=5 // pred_check
      %p1904 = pneg %p1903
    $region54: #{conv_3nv1_forward.12} parent=5 // pred_check_branch
      %1906 = sbr.rel (%p1904) target = $region56
    $region55: #{conv_3nv1_forward.12} parent=5 // pred_region
      %s1907 = ssub.s32 %s13, 2
      // Predicated region
      $region57: #{conv_3nv1_forward.12} parent=55 // pred_check
        %p1908 = pneg %p204
      $region58: #{conv_3nv1_forward.12} parent=55 // pred_check_branch
        %1910 = sbr.rel (%p1908) target = $region60
      $region59: #{conv_3nv1_forward.12} parent=55 // pred_region
        %p1911 = scmp.lt.s32.totalorder %s19, 1
        %s1912 = scalar_select %p1911, %s19, 1
        %s1913 = smul.addr %s1912, 2
        %s1914 = smul.addr %s1913, 4
        %s1915 = scalar_lea.vmem %s7, %s1914
      $region60: #{conv_3nv1_forward.12} parent=55 // pred_fallthru
        _
    $region56: #{conv_3nv1_forward.12} parent=5 // pred_fallthru
      _
  $region6: #{conv_3nv1_forward.12} parent=0 // loop_footer
    %s17 = sadd.s32 1, %s13
  $region7: #{conv_3nv1_forward.12} parent=0 // loop_footer_branch
    %12 = sbr.rel target = $region3
  $region8: #{conv_3nv1_forward.12} parent=0 // loop_exit
    _

// kernel: conv_3nv1_forward.11
$region0: #{conv_3nv1_forward.11}
  #allocation0 [shape = 'u32[]', space=smem, size = 0x4, offset = 0x4, fixed_abs, tag = 'smem constant byte address 0x4 - core index']
  #allocation1 [shape = 'u32[144,128]{1,0:T(1,128)}', space=vmem, size = 0x12000, scoped, tag = 'internal scratch']
  %s0 = inlined_call_operand.vmem [shape: bf16[2,16,360], index: 0, kind: input, shape index: {}]
  %s1 = inlined_call_operand.vmem [shape: bf16[9,16,16], index: 1, kind: input, shape index: {}]
  %s2 = inlined_call_operand.vmem [shape: bf16[2,16,360], index: 2, kind: input, shape index: {}]
  %s3 = inlined_call_operand.vmem [shape: bf16[9,16,16], index: 3, kind: input, shape index: {}]
  %s4 = inlined_call_operand.vmem [shape: f32[16,1], index: 4, kind: input, shape index: {}]
  %s5 = inlined_call_operand.vmem [shape: bf16[2,16,306], index: 5, kind: output, shape index: {}]
  %s6 = sld [smem:[#allocation0]]
  $region53: #{conv_3nv1_forward.11} parent=0
    _
  %s8 = ssub.s32 1, %s6
  %s9 = scalar_select 0, %s8, %s6
  loop: start=0, step=1, limit=4
  $region2: #{conv_3nv1_forward.11} parent=0 // loop_pre_header
    _
  $region3: #{conv_3nv1_forward.11} parent=0 // loop_header
    %s11 = sphi 0, %s15
    %p12 = scmp.ge.s32.totalorder %s11, 4
    %s21 = sphi 0, %s23
    %s24 = sphi 0, %s21
    %s25 = sphi 0, %s24
    %s41 = sphi 0, %s25
    %s45 = sphi 0, %s45
    %s47 = sphi 0, %s45
    %s48 = sphi 0, %s47
    %s62 = sphi 0, %s48
    %s68 = sphi 0, %s70
    %s71 = sphi 0, %s68
    %s72 = sphi 0, %s71
    %s88 = sphi 0, %s72
    %s92 = sphi 0, %s92
    %s94 = sphi 0, %s92
    %s95 = sphi 0, %s94
    %s109 = sphi 0, %s95
    %s113 = sphi 0, %s113
    %s115 = sphi 0, %s113
    %s116 = sphi 0, %s115
    %s130 = sphi 0, %s116
    %s136 = sphi 0, %s138
    %s139 = sphi 0, %s136
    %s140 = sphi 0, %s139
    %s156 = sphi 0, %s140
  $region4: #{conv_3nv1_forward.11} parent=0 // loop_header_branch
    %14 = sbr.rel (%p12) target = $region8
  $region5: #{conv_3nv1_forward.11} parent=0 // loop_body
    %s16 = ssub.s32 %s11, 1
    %s17 = ssub.s32 %s11, 2
    %s18 = sadd.s32 %s11, 1
    %s19 = ssub.s32 %s11, %s18
    %p20 = scmp.eq.s32.totalorder %s19, 0
    %s22 = sadd.s32 %s21, 1
    %s23 = scalar_select %p20, %s21, %s22
    %p26 = pneg %p20
    %p27 = scmp.eq.s32.totalorder %s11, 1
    %p28 = por %p26, %p27
    %p29 = scmp.ne.s32.totalorder %s21, %s24
    %p30 = scmp.eq.s32.totalorder %s11, 0
    %p31 = por %p29, %p30
    %p32 = scmp.ne.s32.totalorder %s21, %s24
    %p33 = scmp.eq.s32.totalorder %s16, 1
    %p34 = por %p32, %p33
    %p35 = scmp.ne.s32.totalorder %s24, %s25
    %p36 = scmp.eq.s32.totalorder %s16, 0
    %p37 = por %p35, %p36
    %p38 = scmp.ne.s32.totalorder %s24, %s25
    %p39 = scmp.eq.s32.totalorder %s17, 1
    %p40 = por %p38, %p39
    %p42 = scmp.ne.s32.totalorder %s25, %s41
    %p43 = scmp.eq.s32.totalorder %s17, 0
    %p44 = por %p42, %p43
    %s46 = sadd.s32 %s45, 1
    %p49 = scmp.eq.s32.totalorder %s11, 1
    %p50 = scmp.ne.s32.totalorder %s45, %s47
    %p51 = scmp.eq.s32.totalorder %s11, 0
    %p52 = por %p50, %p51
    %p53 = scmp.ne.s32.totalorder %s45, %s47
    %p54 = scmp.eq.s32.totalorder %s16, 1
    %p55 = por %p53, %p54
    %p56 = scmp.ne.s32.totalorder %s47, %s48
    %p57 = scmp.eq.s32.totalorder %s16, 0
    %p58 = por %p56, %p57
    %p59 = scmp.ne.s32.totalorder %s47, %s48
    %p60 = scmp.eq.s32.totalorder %s17, 1
    %p61 = por %p59, %p60
    %p63 = scmp.ne.s32.totalorder %s48, %s62
    %p64 = scmp.eq.s32.totalorder %s17, 0
    %p65 = por %p63, %p64
    %s66 = ssub.s32 %s11, %s18
    %p67 = scmp.eq.s32.totalorder %s66, 0
    %s69 = sadd.s32 %s68, 1
    %s70 = scalar_select %p67, %s68, %s69
    %p73 = pneg %p67
    %p74 = scmp.eq.s32.totalorder %s11, 1
    %p75 = por %p73, %p74
    %p76 = scmp.ne.s32.totalorder %s68, %s71
    %p77 = scmp.eq.s32.totalorder %s11, 0
    %p78 = por %p76, %p77
    %p79 = scmp.ne.s32.totalorder %s68, %s71
    %p80 = scmp.eq.s32.totalorder %s16, 1
    %p81 = por %p79, %p80
    %p82 = scmp.ne.s32.totalorder %s71, %s72
    %p83 = scmp.eq.s32.totalorder %s16, 0
    %p84 = por %p82, %p83
    %p85 = scmp.ne.s32.totalorder %s71, %s72
    %p86 = scmp.eq.s32.totalorder %s17, 1
    %p87 = por %p85, %p86
    %p89 = scmp.ne.s32.totalorder %s72, %s88
    %p90 = scmp.eq.s32.totalorder %s17, 0
    %p91 = por %p89, %p90
    %s93 = sadd.s32 %s92, 1
    %p96 = scmp.eq.s32.totalorder %s11, 1
    %p97 = scmp.ne.s32.totalorder %s92, %s94
    %p98 = scmp.eq.s32.totalorder %s11, 0
    %p99 = por %p97, %p98
    %p100 = scmp.ne.s32.totalorder %s92, %s94
    %p101 = scmp.eq.s32.totalorder %s16, 1
    %p102 = por %p100, %p101
    %p103 = scmp.ne.s32.totalorder %s94, %s95
    %p104 = scmp.eq.s32.totalorder %s16, 0
    %p105 = por %p103, %p104
    %p106 = scmp.ne.s32.totalorder %s94, %s95
    %p107 = scmp.eq.s32.totalorder %s17, 1
    %p108 = por %p106, %p107
    %p110 = scmp.ne.s32.totalorder %s95, %s109
    %p111 = scmp.eq.s32.totalorder %s17, 0
    %p112 = por %p110, %p111
    %s114 = sadd.s32 %s113, 1
    %p117 = scmp.eq.s32.totalorder %s11, 1
    %p118 = scmp.ne.s32.totalorder %s113, %s115
    %p119 = scmp.eq.s32.totalorder %s11, 0
    %p120 = por %p118, %p119
    %p121 = scmp.ne.s32.totalorder %s113, %s115
    %p122 = scmp.eq.s32.totalorder %s16, 1
    %p123 = por %p121, %p122
    %p124 = scmp.ne.s32.totalorder %s115, %s116
    %p125 = scmp.eq.s32.totalorder %s16, 0
    %p126 = por %p124, %p125
    %p127 = scmp.ne.s32.totalorder %s115, %s116
    %p128 = scmp.eq.s32.totalorder %s17, 1
    %p129 = por %p127, %p128
    %p131 = scmp.ne.s32.totalorder %s116, %s130
    %p132 = scmp.eq.s32.totalorder %s17, 0
    %p133 = por %p131, %p132
    %s134 = ssub.s32 %s11, %s18
    %p135 = scmp.eq.s32.totalorder %s134, 0
    %s137 = sadd.s32 %s136, 1
    %s138 = scalar_select %p135, %s136, %s137
    %p141 = pneg %p135
    %p142 = scmp.eq.s32.totalorder %s11, 1
    %p143 = por %p141, %p142
    %p144 = scmp.ne.s32.totalorder %s136, %s139
    %p145 = scmp.eq.s32.totalorder %s11, 0
    %p146 = por %p144, %p145
    %p147 = scmp.ne.s32.totalorder %s136, %s139
    %p148 = scmp.eq.s32.totalorder %s16, 1
    %p149 = por %p147, %p148
    %p150 = scmp.ne.s32.totalorder %s139, %s140
    %p151 = scmp.eq.s32.totalorder %s16, 0
    %p152 = por %p150, %p151
    %p153 = scmp.ne.s32.totalorder %s139, %s140
    %p154 = scmp.eq.s32.totalorder %s17, 1
    %p155 = por %p153, %p154
    %p157 = scmp.ne.s32.totalorder %s140, %s156
    %p158 = scmp.eq.s32.totalorder %s17, 0
    %p159 = por %p157, %p158
    %p160 = scmp.le.s32.totalorder 1, %s11
    %p161 = scmp.lt.s32.totalorder %s11, 3
    %p162 = pnand %p160, %p161
    %p163 = pneg %p162
    // Predicated region
    $region9: #{conv_3nv1_forward.11} parent=5 // pred_check
      _
    $region10: #{conv_3nv1_forward.11} parent=5 // pred_check_branch
      %165 = sbr.rel (%p162) target = $region12
    $region11: #{conv_3nv1_forward.11} parent=5 // pred_region
      %s166 = ssub.s32 %s11, 1
      // Predicated region
      $region13: #{conv_3nv1_forward.11} parent=11 // pred_check
        %p167 = pneg %p58
      $region14: #{conv_3nv1_forward.11} parent=11 // pred_check_branch
        %169 = sbr.rel (%p167) target = $region16
      $region15: #{conv_3nv1_forward.11} parent=11 // pred_region
        _
      $region16: #{conv_3nv1_forward.11} parent=11 // pred_fallthru
        _
      // Predicated region
      $region17: #{conv_3nv1_forward.11} parent=11 // pred_check
        %p170 = pneg %p105
      $region18: #{conv_3nv1_forward.11} parent=11 // pred_check_branch
        %172 = sbr.rel (%p170) target = $region20
      $region19: #{conv_3nv1_forward.11} parent=11 // pred_region
        _
      $region20: #{conv_3nv1_forward.11} parent=11 // pred_fallthru
        _
      // Predicated region
      $region21: #{conv_3nv1_forward.11} parent=11 // pred_check
        %p173 = pneg %p126
      $region22: #{conv_3nv1_forward.11} parent=11 // pred_check_branch
        %175 = sbr.rel (%p173) target = $region24
      $region23: #{conv_3nv1_forward.11} parent=11 // pred_region
        _
      $region24: #{conv_3nv1_forward.11} parent=11 // pred_fallthru
        _
    $region12: #{conv_3nv1_forward.11} parent=5 // pred_fallthru
      _
    %p176 = scmp.lt.s32.totalorder %s11, 2
    // Predicated region
    $region25: #{conv_3nv1_forward.11} parent=5 // pred_check
      %p177 = pneg %p176
    $region26: #{conv_3nv1_forward.11} parent=5 // pred_check_branch
      %179 = sbr.rel (%p177) target = $region28
    $region27: #{conv_3nv1_forward.11} parent=5 // pred_region
      // Predicated region
      $region29: #{conv_3nv1_forward.11} parent=27 // pred_check
        %p180 = pneg %p31
      $region30: #{conv_3nv1_forward.11} parent=27 // pred_check_branch
        %182 = sbr.rel (%p180) target = $region32
      $region31: #{conv_3nv1_forward.11} parent=27 // pred_region
        %p183 = scmp.lt.s32.totalorder %s11, 1
        %s184 = scalar_select %p183, %s11, 1
        %s185 = smul.addr %s184, 6
        %s186 = smul.addr %s185, 4
        %s187 = scalar_lea.vmem %s0, %s186
      $region32: #{conv_3nv1_forward.11} parent=27 // pred_fallthru
        _
      // Predicated region
      $region33: #{conv_3nv1_forward.11} parent=27 // pred_check
        %p188 = pneg %p78
      $region34: #{conv_3nv1_forward.11} parent=27 // pred_check_branch
        %190 = sbr.rel (%p188) target = $region36
      $region35: #{conv_3nv1_forward.11} parent=27 // pred_region
        %p191 = scmp.lt.s32.totalorder %s11, 1
        %s192 = scalar_select %p191, %s11, 1
        %s193 = smul.addr %s192, 6
        %s194 = smul.addr %s193, 4
        %s195 = scalar_lea.vmem %s2, %s194
      $region36: #{conv_3nv1_forward.11} parent=27 // pred_fallthru
        _
    $region28: #{conv_3nv1_forward.11} parent=5 // pred_fallthru
      _
    %p196 = scmp.le.s32.totalorder 1, %s11
    %p197 = scmp.lt.s32.totalorder %s11, 3
    %p198 = pnand %p196, %p197
    %p199 = pneg %p198
    // Predicated region
    $region37: #{conv_3nv1_forward.11} parent=5 // pred_check
      _
    $region38: #{conv_3nv1_forward.11} parent=5 // pred_check_branch
      %201 = sbr.rel (%p198) target = $region40
    $region39: #{conv_3nv1_forward.11} parent=5 // pred_region
      %s202 = ssub.s32 %s11, 1
      %p203 = scmp.lt.s32.totalorder %s16, 1
      %s204 = scalar_select %p203, %s16, 1
      %s205 = smul.addr %s204, 6
      %s206 = smul.addr %s205, 4
      %s207 = scalar_lea.vmem %s0, %s206
      %p208 = pneg %p37
      %p209 = pneg %p34
      %p210 = pneg %p58
      %p211 = pneg %p55
      %p212 = scmp.lt.s32.totalorder %s16, 1
      %s213 = scalar_select %p212, %s16, 1
      %s214 = smul.addr %s213, 6
      %s215 = smul.addr %s214, 4
      %s216 = scalar_lea.vmem %s2, %s215
      %p217 = pneg %p84
      %p218 = pneg %p81
      %p219 = pneg %p105
      %p220 = pneg %p102
      %p221 = pneg %p126
      %p222 = pneg %p123
      %p223 = pneg %p152
      %p224 = pneg %p149
      %p225 = scmp.lt.s32.totalorder %s16, 1
      %s226 = scalar_select %p225, %s16, 1
      %s227 = smul.addr %s226, 6
      %s228 = smul.addr %s227, 4
      %s229 = scalar_lea.vmem %s5, %s228
      %p230 = scmp.lt.s32.totalorder %s16, 1
      %s231 = scalar_select %p230, %s16, 1
      %s232 = smul.addr %s231, 6
      %s233 = smul.addr %s232, 4
      %s234 = scalar_lea.vmem %s0, %s233
      %p235 = scmp.lt.s32.totalorder %s16, 1
      %s236 = scalar_select %p235, %s16, 1
      %s237 = smul.addr %s236, 6
      %s238 = smul.addr %s237, 4
      %s239 = scalar_lea.vmem %s2, %s238
      %p240 = scmp.lt.s32.totalorder %s16, 1
      %s241 = scalar_select %p240, %s16, 1
      %s242 = smul.addr %s241, 6
      %s243 = smul.addr %s242, 4
      %s244 = scalar_lea.vmem %s5, %s243
      %v246 = vld [vmem:[%s234] sm:$0xff]
      %v247 = vld [vmem:[%s234 + $0x8] sm:$0xf]
      %v248 = vld [vmem:[%s234 + $0xc] sm:$0xff]
      %v249 = vld [vmem:[%s234 + $0x14] sm:$0xf]
      %v250 = vld [vmem:[%s1] sm:$0xf]
      %v251 = vld [vmem:[%s1 + $0x4] sm:$0xf]
      %s252 = scalar_lea.vmem %s1, 8
      %v253 = vld [vmem:[%s252] sm:$0xf]
      %v254 = vld [vmem:[%s252 + $0x4] sm:$0xf]
      %v257 = vunpack.c.l.b16 %v253
      %v258 = vunpack.c.l.b16 %v254
      %v259 = vpack.c.b16 %v258, %v257
      %v264 = vunpack.c.l.b16 %v246
      %v265 = vunpack.c.h.b16 %v246
      %v266 = vunpack.c.l.b16 %v247
      %v267 = vunpack.c.l.b16 %v248
      %v268 = vunpack.c.h.b16 %v248
      %v269 = vunpack.c.l.b16 %v249
      %v270 = vpack.c.b16 %v267, %v264
      %v271 = vpack.c.b16 %v268, %v265
      %v272 = vpack.c.b16 %v269, %v266
      %273 = vrot.lane.b32.xlu0 %v270, 127
      %v274 = vpop.permute.xlu0 %273
      %275 = vrot.lane.b32.xlu0 %v271, 127
      %v276 = vpop.permute.xlu0 %275
      %277 = vrot.lane.b32.xlu0 %v272, 127
      %v278 = vpop.permute.xlu0 %277
      %vm279 = vcmask 1039360
      %v280 = vsel %vm279, %v274, %v276
      %v281 = vsel %vm279, %v276, %v278
      %vm285 = vcmask 130048
      %v287 = vsel %vm285, %v259, 0
      %289 = vmatprep.subr.bf16.mxu0 0
      %290 = vmatpush1.bf16.msra.mxu0 0
      %291 = vmatprep.subr.bf16.mxu0 0
      %292 = vmatpush1.bf16.msra.mxu0 0
      %293 = vmatprep.subr.bf16.mxu0 0
      %294 = vmatpush1.bf16.msra.mxu0 0
      %295 = vmatprep.subr.bf16.mxu0 0
      %296 = vmatpush1.bf16.msra.mxu0 0
      %297 = vmatprep.subr.bf16.mxu0 0
      %298 = vmatpush1.bf16.msra.mxu0 0
      %299 = vmatprep.subr.bf16.mxu0 0
      %300 = vmatpush1.bf16.msra.mxu0 0
      %301 = vmatprep.subr.bf16.mxu0 0
      %302 = vmatpush1.bf16.msra.mxu0 0
      %303 = vmatprep.subr.bf16.mxu0 %v281
      %304 = vmatpush1.bf16.msra.mxu0 %v280
      %305 = vmatprep.subr.bf16.mxu0 0
      %306 = vmatpush2.bf16.msra.mxu0 0
      %307 = vmatprep.subr.bf16.mxu0 0
      %308 = vmatpush2.bf16.msra.mxu0 0
      %309 = vmatprep.subr.bf16.mxu0 0
      %310 = vmatpush2.bf16.msra.mxu0 0
      %311 = vmatprep.subr.bf16.mxu0 0
      %312 = vmatpush2.bf16.msra.mxu0 0
      %313 = vmatprep.subr.bf16.mxu0 0
      %314 = vmatpush2.bf16.msra.mxu0 0
      %315 = vmatprep.subr.bf16.mxu0 0
      %316 = vmatpush2.bf16.msra.mxu0 0
      %317 = vmatprep.subr.bf16.mxu0 0
      %318 = vmatpush2.bf16.msra.mxu0 0
      %319 = vmatprep.subr.bf16.mxu0 0
      %320 = vmatpush2.bf16.msra.mxu0 0
      %321 = vmatprep.mubr.bf16.mxu0 0
      %322 = vmatmul.mubr.bf16.gmra.mxu0 %v287
      %v323 = vpop.f32.mrf.mxu0
      %v324 = vadd.f32 0.0, %v323
      %v325 = vpop.f32.mrf.mxu0
      %v326 = vadd.f32 0.0, %v325
      %v327 = vpop.f32.mrf.mxu0
      %v328 = vadd.f32 0.0, %v327
      %v329 = vpop.f32.mrf.mxu0
      %v330 = vadd.f32 0.0, %v329
      %331 = vdwg.mxu0
      %332 = vmatprep.subr.bf16.mxu0 0
      %333 = vmatpush1.bf16.msra.mxu0 0
      %334 = vmatprep.subr.bf16.mxu0 0
      %335 = vmatpush1.bf16.msra.mxu0 0
      %336 = vmatprep.subr.bf16.mxu0 0
      %337 = vmatpush1.bf16.msra.mxu0 0
      %338 = vmatprep.subr.bf16.mxu0 0
      %339 = vmatpush1.bf16.msra.mxu0 0
      %340 = vmatprep.subr.bf16.mxu0 0
      %341 = vmatpush1.bf16.msra.mxu0 0
      %342 = vmatprep.subr.bf16.mxu0 0
      %343 = vmatpush1.bf16.msra.mxu0 0
      %344 = vmatprep.subr.bf16.mxu0 0
      %345 = vmatpush1.bf16.msra.mxu0 0
      %346 = vmatprep.subr.bf16.mxu0 0
      %347 = vmatpush1.bf16.msra.mxu0 %v278
      %348 = vmatprep.subr.bf16.mxu0 0
      %349 = vmatpush2.bf16.msra.mxu0 0
      %350 = vmatprep.subr.bf16.mxu0 0
      %351 = vmatpush2.bf16.msra.mxu0 0
      %352 = vmatprep.subr.bf16.mxu0 0
      %353 = vmatpush2.bf16.msra.mxu0 0
      %354 = vmatprep.subr.bf16.mxu0 0
      %355 = vmatpush2.bf16.msra.mxu0 0
      %356 = vmatprep.subr.bf16.mxu0 0
      %357 = vmatpush2.bf16.msra.mxu0 0
      %358 = vmatprep.subr.bf16.mxu0 0
      %359 = vmatpush2.bf16.msra.mxu0 0
      %360 = vmatprep.subr.bf16.mxu0 0
      %361 = vmatpush2.bf16.msra.mxu0 0
      %362 = vmatprep.subr.bf16.mxu0 0
      %363 = vmatpush2.bf16.msra.mxu0 0
      %364 = vmatprep.mubr.bf16.mxu0 0
      %365 = vmatmul.mubr.bf16.gmra.mxu0 %v287
      %v366 = vpop.f32.mrf.mxu0
      %v367 = vadd.f32 0.0, %v366
      %v368 = vpop.f32.mrf.mxu0
      %v369 = vpop.f32.mrf.mxu0
      %v370 = vadd.f32 0.0, %v369
      %v371 = vpop.f32.mrf.mxu0
      %372 = vdwg.mxu0
      %v375 = vunpack.c.l.b16 %v250
      %v376 = vunpack.c.l.b16 %v251
      %v377 = vpack.c.b16 %v376, %v375
      %v382 = vsel %vm285, %v377, 0
      %384 = vmatprep.subr.bf16.mxu0 0
      %385 = vmatpush1.bf16.msra.mxu0 0
      %386 = vmatprep.subr.bf16.mxu0 0
      %387 = vmatpush1.bf16.msra.mxu0 0
      %388 = vmatprep.subr.bf16.mxu0 0
      %389 = vmatpush1.bf16.msra.mxu0 0
      %390 = vmatprep.subr.bf16.mxu0 0
      %391 = vmatpush1.bf16.msra.mxu0 0
      %392 = vmatprep.subr.bf16.mxu0 0
      %393 = vmatpush1.bf16.msra.mxu0 0
      %394 = vmatprep.subr.bf16.mxu0 0
      %395 = vmatpush1.bf16.msra.mxu0 0
      %396 = vmatprep.subr.bf16.mxu0 0
      %397 = vmatpush1.bf16.msra.mxu0 0
      %398 = vmatprep.subr.bf16.mxu0 %v271
      %399 = vmatpush1.bf16.msra.mxu0 %v270
      %400 = vmatprep.subr.bf16.mxu0 0
      %401 = vmatpush2.bf16.msra.mxu0 0
      %402 = vmatprep.subr.bf16.mxu0 0
      %403 = vmatpush2.bf16.msra.mxu0 0
      %404 = vmatprep.subr.bf16.mxu0 0
      %405 = vmatpush2.bf16.msra.mxu0 0
      %406 = vmatprep.subr.bf16.mxu0 0
      %407 = vmatpush2.bf16.msra.mxu0 0
      %408 = vmatprep.subr.bf16.mxu0 0
      %409 = vmatpush2.bf16.msra.mxu0 0
      %410 = vmatprep.subr.bf16.mxu0 0
      %411 = vmatpush2.bf16.msra.mxu0 0
      %412 = vmatprep.subr.bf16.mxu0 0
      %413 = vmatpush2.bf16.msra.mxu0 0
      %414 = vmatprep.subr.bf16.mxu0 0
      %415 = vmatpush2.bf16.msra.mxu0 0
      %416 = vmatprep.mubr.bf16.mxu0 0
      %417 = vmatmul.mubr.bf16.gmra.mxu0 %v382
      %v418 = vpop.f32.mrf.mxu0
      %v419 = vadd.f32 %v324, %v418
      %v420 = vpop.f32.mrf.mxu0
      %v421 = vadd.f32 %v326, %v420
      %v422 = vpop.f32.mrf.mxu0
      %v423 = vadd.f32 %v328, %v422
      %v424 = vpop.f32.mrf.mxu0
      %v425 = vadd.f32 %v330, %v424
      %426 = vdwg.mxu0
      %427 = vmatprep.subr.bf16.mxu0 0
      %428 = vmatpush1.bf16.msra.mxu0 0
      %429 = vmatprep.subr.bf16.mxu0 0
      %430 = vmatpush1.bf16.msra.mxu0 0
      %431 = vmatprep.subr.bf16.mxu0 0
      %432 = vmatpush1.bf16.msra.mxu0 0
      %433 = vmatprep.subr.bf16.mxu0 0
      %434 = vmatpush1.bf16.msra.mxu0 0
      %435 = vmatprep.subr.bf16.mxu0 0
      %436 = vmatpush1.bf16.msra.mxu0 0
      %437 = vmatprep.subr.bf16.mxu0 0
      %438 = vmatpush1.bf16.msra.mxu0 0
      %439 = vmatprep.subr.bf16.mxu0 0
      %440 = vmatpush1.bf16.msra.mxu0 0
      %441 = vmatprep.subr.bf16.mxu0 0
      %442 = vmatpush1.bf16.msra.mxu0 %v272
      %443 = vmatprep.subr.bf16.mxu0 0
      %444 = vmatpush2.bf16.msra.mxu0 0
      %445 = vmatprep.subr.bf16.mxu0 0
      %446 = vmatpush2.bf16.msra.mxu0 0
      %447 = vmatprep.subr.bf16.mxu0 0
      %448 = vmatpush2.bf16.msra.mxu0 0
      %449 = vmatprep.subr.bf16.mxu0 0
      %450 = vmatpush2.bf16.msra.mxu0 0
      %451 = vmatprep.subr.bf16.mxu0 0
      %452 = vmatpush2.bf16.msra.mxu0 0
      %453 = vmatprep.subr.bf16.mxu0 0
      %454 = vmatpush2.bf16.msra.mxu0 0
      %455 = vmatprep.subr.bf16.mxu0 0
      %456 = vmatpush2.bf16.msra.mxu0 0
      %457 = vmatprep.subr.bf16.mxu0 0
      %458 = vmatpush2.bf16.msra.mxu0 0
      %459 = vmatprep.mubr.bf16.mxu0 0
      %460 = vmatmul.mubr.bf16.gmra.mxu0 %v382
      %v461 = vpop.f32.mrf.mxu0
      %v462 = vadd.f32 %v367, %v461
      %v463 = vpop.f32.mrf.mxu0
      %v464 = vpop.f32.mrf.mxu0
      %v465 = vadd.f32 %v370, %v464
      %v466 = vpop.f32.mrf.mxu0
      %467 = vdwg.mxu0
      %s468 = scalar_lea.vmem %s1, 16
      %v469 = vld [vmem:[%s468] sm:$0xf]
      %v470 = vld [vmem:[%s468 + $0x4] sm:$0xf]
      %v473 = vunpack.c.l.b16 %v469
      %v474 = vunpack.c.l.b16 %v470
      %v475 = vpack.c.b16 %v474, %v473
      %476 = vrot.lane.b32.xlu0 %v270, 126
      %v477 = vpop.permute.xlu0 %476
      %478 = vrot.lane.b32.xlu0 %v271, 126
      %v479 = vpop.permute.xlu0 %478
      %480 = vrot.lane.b32.xlu0 %v272, 126
      %v481 = vpop.permute.xlu0 %480
      %vm482 = vcmask 1031168
      %v483 = vsel %vm482, %v477, %v479
      %v484 = vsel %vm482, %v479, %v481
      %v489 = vsel %vm285, %v475, 0
      %491 = vmatprep.subr.bf16.mxu0 0
      %492 = vmatpush1.bf16.msra.mxu0 0
      %493 = vmatprep.subr.bf16.mxu0 0
      %494 = vmatpush1.bf16.msra.mxu0 0
      %495 = vmatprep.subr.bf16.mxu0 0
      %496 = vmatpush1.bf16.msra.mxu0 0
      %497 = vmatprep.subr.bf16.mxu0 0
      %498 = vmatpush1.bf16.msra.mxu0 0
      %499 = vmatprep.subr.bf16.mxu0 0
      %500 = vmatpush1.bf16.msra.mxu0 0
      %501 = vmatprep.subr.bf16.mxu0 0
      %502 = vmatpush1.bf16.msra.mxu0 0
      %503 = vmatprep.subr.bf16.mxu0 0
      %504 = vmatpush1.bf16.msra.mxu0 0
      %505 = vmatprep.subr.bf16.mxu0 %v484
      %506 = vmatpush1.bf16.msra.mxu0 %v483
      %507 = vmatprep.subr.bf16.mxu0 0
      %508 = vmatpush2.bf16.msra.mxu0 0
      %509 = vmatprep.subr.bf16.mxu0 0
      %510 = vmatpush2.bf16.msra.mxu0 0
      %511 = vmatprep.subr.bf16.mxu0 0
      %512 = vmatpush2.bf16.msra.mxu0 0
      %513 = vmatprep.subr.bf16.mxu0 0
      %514 = vmatpush2.bf16.msra.mxu0 0
      %515 = vmatprep.subr.bf16.mxu0 0
      %516 = vmatpush2.bf16.msra.mxu0 0
      %517 = vmatprep.subr.bf16.mxu0 0
      %518 = vmatpush2.bf16.msra.mxu0 0
      %519 = vmatprep.subr.bf16.mxu0 0
      %520 = vmatpush2.bf16.msra.mxu0 0
      %521 = vmatprep.subr.bf16.mxu0 0
      %522 = vmatpush2.bf16.msra.mxu0 0
      %523 = vmatprep.mubr.bf16.mxu0 0
      %524 = vmatmul.mubr.bf16.gmra.mxu0 %v489
      %v525 = vpop.f32.mrf.mxu0
      %v526 = vadd.f32 0.0, %v525
      %v527 = vpop.f32.mrf.mxu0
      %v528 = vadd.f32 0.0, %v527
      %v529 = vpop.f32.mrf.mxu0
      %v530 = vadd.f32 0.0, %v529
      %v531 = vpop.f32.mrf.mxu0
      %v532 = vadd.f32 0.0, %v531
      %533 = vdwg.mxu0
      %534 = vmatprep.subr.bf16.mxu0 0
      %535 = vmatpush1.bf16.msra.mxu0 0
      %536 = vmatprep.subr.bf16.mxu0 0
      %537 = vmatpush1.bf16.msra.mxu0 0
      %538 = vmatprep.subr.bf16.mxu0 0
      %539 = vmatpush1.bf16.msra.mxu0 0
      %540 = vmatprep.subr.bf16.mxu0 0
      %541 = vmatpush1.bf16.msra.mxu0 0
      %542 = vmatprep.subr.bf16.mxu0 0
      %543 = vmatpush1.bf16.msra.mxu0 0
      %544 = vmatprep.subr.bf16.mxu0 0
      %545 = vmatpush1.bf16.msra.mxu0 0
      %546 = vmatprep.subr.bf16.mxu0 0
      %547 = vmatpush1.bf16.msra.mxu0 0
      %548 = vmatprep.subr.bf16.mxu0 0
      %549 = vmatpush1.bf16.msra.mxu0 %v481
      %550 = vmatprep.subr.bf16.mxu0 0
      %551 = vmatpush2.bf16.msra.mxu0 0
      %552 = vmatprep.subr.bf16.mxu0 0
      %553 = vmatpush2.bf16.msra.mxu0 0
      %554 = vmatprep.subr.bf16.mxu0 0
      %555 = vmatpush2.bf16.msra.mxu0 0
      %556 = vmatprep.subr.bf16.mxu0 0
      %557 = vmatpush2.bf16.msra.mxu0 0
      %558 = vmatprep.subr.bf16.mxu0 0
      %559 = vmatpush2.bf16.msra.mxu0 0
      %560 = vmatprep.subr.bf16.mxu0 0
      %561 = vmatpush2.bf16.msra.mxu0 0
      %562 = vmatprep.subr.bf16.mxu0 0
      %563 = vmatpush2.bf16.msra.mxu0 0
      %564 = vmatprep.subr.bf16.mxu0 0
      %565 = vmatpush2.bf16.msra.mxu0 0
      %566 = vmatprep.mubr.bf16.mxu0 0
      %567 = vmatmul.mubr.bf16.gmra.mxu0 %v489
      %v568 = vpop.f32.mrf.mxu0
      %v569 = vadd.f32 0.0, %v568
      %v570 = vpop.f32.mrf.mxu0
      %v571 = vpop.f32.mrf.mxu0
      %v572 = vadd.f32 0.0, %v571
      %v573 = vpop.f32.mrf.mxu0
      %574 = vdwg.mxu0
      %v575 = vadd.f32 %v419, %v526
      %v576 = vadd.f32 %v421, %v528
      %v577 = vadd.f32 %v462, %v569
      %v578 = vadd.f32 %v423, %v530
      %v579 = vadd.f32 %v425, %v532
      %v580 = vadd.f32 %v465, %v572
      %s581 = scalar_lea.vmem %s1, 24
      %v582 = vld [vmem:[%s581] sm:$0xf]
      %v583 = vld [vmem:[%s581 + $0x4] sm:$0xf]
      %v586 = vunpack.c.l.b16 %v582
      %v587 = vunpack.c.l.b16 %v583
      %v588 = vpack.c.b16 %v587, %v586
      %589 = vrot.lane.b32.xlu0 %v270, 110
      %v590 = vpop.permute.xlu0 %589
      %591 = vrot.lane.b32.xlu0 %v271, 110
      %v592 = vpop.permute.xlu0 %591
      %593 = vrot.lane.b32.xlu0 %v272, 110
      %v594 = vpop.permute.xlu0 %593
      %vm595 = vcmask 900096
      %v596 = vsel %vm595, %v590, %v592
      %v597 = vsel %vm595, %v592, %v594
      %v602 = vsel %vm285, %v588, 0
      %604 = vmatprep.subr.bf16.mxu0 0
      %605 = vmatpush1.bf16.msra.mxu0 0
      %606 = vmatprep.subr.bf16.mxu0 0
      %607 = vmatpush1.bf16.msra.mxu0 0
      %608 = vmatprep.subr.bf16.mxu0 0
      %609 = vmatpush1.bf16.msra.mxu0 0
      %610 = vmatprep.subr.bf16.mxu0 0
      %611 = vmatpush1.bf16.msra.mxu0 0
      %612 = vmatprep.subr.bf16.mxu0 0
      %613 = vmatpush1.bf16.msra.mxu0 0
      %614 = vmatprep.subr.bf16.mxu0 0
      %615 = vmatpush1.bf16.msra.mxu0 0
      %616 = vmatprep.subr.bf16.mxu0 0
      %617 = vmatpush1.bf16.msra.mxu0 0
      %618 = vmatprep.subr.bf16.mxu0 %v597
      %619 = vmatpush1.bf16.msra.mxu0 %v596
      %620 = vmatprep.subr.bf16.mxu0 0
      %621 = vmatpush2.bf16.msra.mxu0 0
      %622 = vmatprep.subr.bf16.mxu0 0
      %623 = vmatpush2.bf16.msra.mxu0 0
      %624 = vmatprep.subr.bf16.mxu0 0
      %625 = vmatpush2.bf16.msra.mxu0 0
      %626 = vmatprep.subr.bf16.mxu0 0
      %627 = vmatpush2.bf16.msra.mxu0 0
      %628 = vmatprep.subr.bf16.mxu0 0
      %629 = vmatpush2.bf16.msra.mxu0 0
      %630 = vmatprep.subr.bf16.mxu0 0
      %631 = vmatpush2.bf16.msra.mxu0 0
      %632 = vmatprep.subr.bf16.mxu0 0
      %633 = vmatpush2.bf16.msra.mxu0 0
      %634 = vmatprep.subr.bf16.mxu0 0
      %635 = vmatpush2.bf16.msra.mxu0 0
      %636 = vmatprep.mubr.bf16.mxu0 0
      %637 = vmatmul.mubr.bf16.gmra.mxu0 %v602
      %v638 = vpop.f32.mrf.mxu0
      %v639 = vadd.f32 0.0, %v638
      %v640 = vpop.f32.mrf.mxu0
      %v641 = vadd.f32 0.0, %v640
      %v642 = vpop.f32.mrf.mxu0
      %v643 = vadd.f32 0.0, %v642
      %v644 = vpop.f32.mrf.mxu0
      %v645 = vadd.f32 0.0, %v644
      %646 = vdwg.mxu0
      %647 = vmatprep.subr.bf16.mxu0 0
      %648 = vmatpush1.bf16.msra.mxu0 0
      %649 = vmatprep.subr.bf16.mxu0 0
      %650 = vmatpush1.bf16.msra.mxu0 0
      %651 = vmatprep.subr.bf16.mxu0 0
      %652 = vmatpush1.bf16.msra.mxu0 0
      %653 = vmatprep.subr.bf16.mxu0 0
      %654 = vmatpush1.bf16.msra.mxu0 0
      %655 = vmatprep.subr.bf16.mxu0 0
      %656 = vmatpush1.bf16.msra.mxu0 0
      %657 = vmatprep.subr.bf16.mxu0 0
      %658 = vmatpush1.bf16.msra.mxu0 0
      %659 = vmatprep.subr.bf16.mxu0 0
      %660 = vmatpush1.bf16.msra.mxu0 0
      %661 = vmatprep.subr.bf16.mxu0 0
      %662 = vmatpush1.bf16.msra.mxu0 %v594
      %663 = vmatprep.subr.bf16.mxu0 0
      %664 = vmatpush2.bf16.msra.mxu0 0
      %665 = vmatprep.subr.bf16.mxu0 0
      %666 = vmatpush2.bf16.msra.mxu0 0
      %667 = vmatprep.subr.bf16.mxu0 0
      %668 = vmatpush2.bf16.msra.mxu0 0
      %669 = vmatprep.subr.bf16.mxu0 0
      %670 = vmatpush2.bf16.msra.mxu0 0
      %671 = vmatprep.subr.bf16.mxu0 0
      %672 = vmatpush2.bf16.msra.mxu0 0
      %673 = vmatprep.subr.bf16.mxu0 0
      %674 = vmatpush2.bf16.msra.mxu0 0
      %675 = vmatprep.subr.bf16.mxu0 0
      %676 = vmatpush2.bf16.msra.mxu0 0
      %677 = vmatprep.subr.bf16.mxu0 0
      %678 = vmatpush2.bf16.msra.mxu0 0
      %679 = vmatprep.mubr.bf16.mxu0 0
      %680 = vmatmul.mubr.bf16.gmra.mxu0 %v602
      %v681 = vpop.f32.mrf.mxu0
      %v682 = vadd.f32 0.0, %v681
      %v683 = vpop.f32.mrf.mxu0
      %v684 = vpop.f32.mrf.mxu0
      %v685 = vadd.f32 0.0, %v684
      %v686 = vpop.f32.mrf.mxu0
      %687 = vdwg.mxu0
      %v688 = vadd.f32 %v575, %v639
      %v689 = vadd.f32 %v576, %v641
      %v690 = vadd.f32 %v577, %v682
      %v691 = vadd.f32 %v578, %v643
      %v692 = vadd.f32 %v579, %v645
      %v693 = vadd.f32 %v580, %v685
      %s694 = scalar_lea.vmem %s1, 32
      %v695 = vld [vmem:[%s694] sm:$0xf]
      %v696 = vld [vmem:[%s694 + $0x4] sm:$0xf]
      %v699 = vunpack.c.l.b16 %v695
      %v700 = vunpack.c.l.b16 %v696
      %v701 = vpack.c.b16 %v700, %v699
      %702 = vrot.lane.b32.xlu0 %v270, 109
      %v703 = vpop.permute.xlu0 %702
      %704 = vrot.lane.b32.xlu0 %v271, 109
      %v705 = vpop.permute.xlu0 %704
      %706 = vrot.lane.b32.xlu0 %v272, 109
      %v707 = vpop.permute.xlu0 %706
      %vm708 = vcmask 891904
      %v709 = vsel %vm708, %v703, %v705
      %v710 = vsel %vm708, %v705, %v707
      %v715 = vsel %vm285, %v701, 0
      %717 = vmatprep.subr.bf16.mxu0 0
      %718 = vmatpush1.bf16.msra.mxu0 0
      %719 = vmatprep.subr.bf16.mxu0 0
      %720 = vmatpush1.bf16.msra.mxu0 0
      %721 = vmatprep.subr.bf16.mxu0 0
      %722 = vmatpush1.bf16.msra.mxu0 0
      %723 = vmatprep.subr.bf16.mxu0 0
      %724 = vmatpush1.bf16.msra.mxu0 0
      %725 = vmatprep.subr.bf16.mxu0 0
      %726 = vmatpush1.bf16.msra.mxu0 0
      %727 = vmatprep.subr.bf16.mxu0 0
      %728 = vmatpush1.bf16.msra.mxu0 0
      %729 = vmatprep.subr.bf16.mxu0 0
      %730 = vmatpush1.bf16.msra.mxu0 0
      %731 = vmatprep.subr.bf16.mxu0 %v710
      %732 = vmatpush1.bf16.msra.mxu0 %v709
      %733 = vmatprep.subr.bf16.mxu0 0
      %734 = vmatpush2.bf16.msra.mxu0 0
      %735 = vmatprep.subr.bf16.mxu0 0
      %736 = vmatpush2.bf16.msra.mxu0 0
      %737 = vmatprep.subr.bf16.mxu0 0
      %738 = vmatpush2.bf16.msra.mxu0 0
      %739 = vmatprep.subr.bf16.mxu0 0
      %740 = vmatpush2.bf16.msra.mxu0 0
      %741 = vmatprep.subr.bf16.mxu0 0
      %742 = vmatpush2.bf16.msra.mxu0 0
      %743 = vmatprep.subr.bf16.mxu0 0
      %744 = vmatpush2.bf16.msra.mxu0 0
      %745 = vmatprep.subr.bf16.mxu0 0
      %746 = vmatpush2.bf16.msra.mxu0 0
      %747 = vmatprep.subr.bf16.mxu0 0
      %748 = vmatpush2.bf16.msra.mxu0 0
      %749 = vmatprep.mubr.bf16.mxu0 0
      %750 = vmatmul.mubr.bf16.gmra.mxu0 %v715
      %v751 = vpop.f32.mrf.mxu0
      %v752 = vadd.f32 0.0, %v751
      %v753 = vpop.f32.mrf.mxu0
      %v754 = vadd.f32 0.0, %v753
      %v755 = vpop.f32.mrf.mxu0
      %v756 = vadd.f32 0.0, %v755
      %v757 = vpop.f32.mrf.mxu0
      %v758 = vadd.f32 0.0, %v757
      %759 = vdwg.mxu0
      %760 = vmatprep.subr.bf16.mxu0 0
      %761 = vmatpush1.bf16.msra.mxu0 0
      %762 = vmatprep.subr.bf16.mxu0 0
      %763 = vmatpush1.bf16.msra.mxu0 0
      %764 = vmatprep.subr.bf16.mxu0 0
      %765 = vmatpush1.bf16.msra.mxu0 0
      %766 = vmatprep.subr.bf16.mxu0 0
      %767 = vmatpush1.bf16.msra.mxu0 0
      %768 = vmatprep.subr.bf16.mxu0 0
      %769 = vmatpush1.bf16.msra.mxu0 0
      %770 = vmatprep.subr.bf16.mxu0 0
      %771 = vmatpush1.bf16.msra.mxu0 0
      %772 = vmatprep.subr.bf16.mxu0 0
      %773 = vmatpush1.bf16.msra.mxu0 0
      %774 = vmatprep.subr.bf16.mxu0 0
      %775 = vmatpush1.bf16.msra.mxu0 %v707
      %776 = vmatprep.subr.bf16.mxu0 0
      %777 = vmatpush2.bf16.msra.mxu0 0
      %778 = vmatprep.subr.bf16.mxu0 0
      %779 = vmatpush2.bf16.msra.mxu0 0
      %780 = vmatprep.subr.bf16.mxu0 0
      %781 = vmatpush2.bf16.msra.mxu0 0
      %782 = vmatprep.subr.bf16.mxu0 0
      %783 = vmatpush2.bf16.msra.mxu0 0
      %784 = vmatprep.subr.bf16.mxu0 0
      %785 = vmatpush2.bf16.msra.mxu0 0
      %786 = vmatprep.subr.bf16.mxu0 0
      %787 = vmatpush2.bf16.msra.mxu0 0
      %788 = vmatprep.subr.bf16.mxu0 0
      %789 = vmatpush2.bf16.msra.mxu0 0
      %790 = vmatprep.subr.bf16.mxu0 0
      %791 = vmatpush2.bf16.msra.mxu0 0
      %792 = vmatprep.mubr.bf16.mxu0 0
      %793 = vmatmul.mubr.bf16.gmra.mxu0 %v715
      %v794 = vpop.f32.mrf.mxu0
      %v795 = vadd.f32 0.0, %v794
      %v796 = vpop.f32.mrf.mxu0
      %v797 = vpop.f32.mrf.mxu0
      %v798 = vadd.f32 0.0, %v797
      %v799 = vpop.f32.mrf.mxu0
      %800 = vdwg.mxu0
      %v801 = vadd.f32 %v688, %v752
      %v802 = vadd.f32 %v689, %v754
      %v803 = vadd.f32 %v690, %v795
      %v804 = vadd.f32 %v691, %v756
      %v805 = vadd.f32 %v692, %v758
      %v806 = vadd.f32 %v693, %v798
      %s807 = scalar_lea.vmem %s1, 40
      %v808 = vld [vmem:[%s807] sm:$0xf]
      %v809 = vld [vmem:[%s807 + $0x4] sm:$0xf]
      %v812 = vunpack.c.l.b16 %v808
      %v813 = vunpack.c.l.b16 %v809
      %v814 = vpack.c.b16 %v813, %v812
      %815 = vrot.lane.b32.xlu0 %v270, 108
      %v816 = vpop.permute.xlu0 %815
      %817 = vrot.lane.b32.xlu0 %v271, 108
      %v818 = vpop.permute.xlu0 %817
      %819 = vrot.lane.b32.xlu0 %v272, 108
      %v820 = vpop.permute.xlu0 %819
      %vm821 = vcmask 883712
      %v822 = vsel %vm821, %v816, %v818
      %v823 = vsel %vm821, %v818, %v820
      %v828 = vsel %vm285, %v814, 0
      %830 = vmatprep.subr.bf16.mxu0 0
      %831 = vmatpush1.bf16.msra.mxu0 0
      %832 = vmatprep.subr.bf16.mxu0 0
      %833 = vmatpush1.bf16.msra.mxu0 0
      %834 = vmatprep.subr.bf16.mxu0 0
      %835 = vmatpush1.bf16.msra.mxu0 0
      %836 = vmatprep.subr.bf16.mxu0 0
      %837 = vmatpush1.bf16.msra.mxu0 0
      %838 = vmatprep.subr.bf16.mxu0 0
      %839 = vmatpush1.bf16.msra.mxu0 0
      %840 = vmatprep.subr.bf16.mxu0 0
      %841 = vmatpush1.bf16.msra.mxu0 0
      %842 = vmatprep.subr.bf16.mxu0 0
      %843 = vmatpush1.bf16.msra.mxu0 0
      %844 = vmatprep.subr.bf16.mxu0 %v823
      %845 = vmatpush1.bf16.msra.mxu0 %v822
      %846 = vmatprep.subr.bf16.mxu0 0
      %847 = vmatpush2.bf16.msra.mxu0 0
      %848 = vmatprep.subr.bf16.mxu0 0
      %849 = vmatpush2.bf16.msra.mxu0 0
      %850 = vmatprep.subr.bf16.mxu0 0
      %851 = vmatpush2.bf16.msra.mxu0 0
      %852 = vmatprep.subr.bf16.mxu0 0
      %853 = vmatpush2.bf16.msra.mxu0 0
      %854 = vmatprep.subr.bf16.mxu0 0
      %855 = vmatpush2.bf16.msra.mxu0 0
      %856 = vmatprep.subr.bf16.mxu0 0
      %857 = vmatpush2.bf16.msra.mxu0 0
      %858 = vmatprep.subr.bf16.mxu0 0
      %859 = vmatpush2.bf16.msra.mxu0 0
      %860 = vmatprep.subr.bf16.mxu0 0
      %861 = vmatpush2.bf16.msra.mxu0 0
      %862 = vmatprep.mubr.bf16.mxu0 0
      %863 = vmatmul.mubr.bf16.gmra.mxu0 %v828
      %v864 = vpop.f32.mrf.mxu0
      %v865 = vadd.f32 0.0, %v864
      %v866 = vpop.f32.mrf.mxu0
      %v867 = vadd.f32 0.0, %v866
      %v868 = vpop.f32.mrf.mxu0
      %v869 = vadd.f32 0.0, %v868
      %v870 = vpop.f32.mrf.mxu0
      %v871 = vadd.f32 0.0, %v870
      %872 = vdwg.mxu0
      %873 = vmatprep.subr.bf16.mxu0 0
      %874 = vmatpush1.bf16.msra.mxu0 0
      %875 = vmatprep.subr.bf16.mxu0 0
      %876 = vmatpush1.bf16.msra.mxu0 0
      %877 = vmatprep.subr.bf16.mxu0 0
      %878 = vmatpush1.bf16.msra.mxu0 0
      %879 = vmatprep.subr.bf16.mxu0 0
      %880 = vmatpush1.bf16.msra.mxu0 0
      %881 = vmatprep.subr.bf16.mxu0 0
      %882 = vmatpush1.bf16.msra.mxu0 0
      %883 = vmatprep.subr.bf16.mxu0 0
      %884 = vmatpush1.bf16.msra.mxu0 0
      %885 = vmatprep.subr.bf16.mxu0 0
      %886 = vmatpush1.bf16.msra.mxu0 0
      %887 = vmatprep.subr.bf16.mxu0 0
      %888 = vmatpush1.bf16.msra.mxu0 %v820
      %889 = vmatprep.subr.bf16.mxu0 0
      %890 = vmatpush2.bf16.msra.mxu0 0
      %891 = vmatprep.subr.bf16.mxu0 0
      %892 = vmatpush2.bf16.msra.mxu0 0
      %893 = vmatprep.subr.bf16.mxu0 0
      %894 = vmatpush2.bf16.msra.mxu0 0
      %895 = vmatprep.subr.bf16.mxu0 0
      %896 = vmatpush2.bf16.msra.mxu0 0
      %897 = vmatprep.subr.bf16.mxu0 0
      %898 = vmatpush2.bf16.msra.mxu0 0
      %899 = vmatprep.subr.bf16.mxu0 0
      %900 = vmatpush2.bf16.msra.mxu0 0
      %901 = vmatprep.subr.bf16.mxu0 0
      %902 = vmatpush2.bf16.msra.mxu0 0
      %903 = vmatprep.subr.bf16.mxu0 0
      %904 = vmatpush2.bf16.msra.mxu0 0
      %905 = vmatprep.mubr.bf16.mxu0 0
      %906 = vmatmul.mubr.bf16.gmra.mxu0 %v828
      %v907 = vpop.f32.mrf.mxu0
      %v908 = vadd.f32 0.0, %v907
      %v909 = vpop.f32.mrf.mxu0
      %v910 = vpop.f32.mrf.mxu0
      %v911 = vadd.f32 0.0, %v910
      %v912 = vpop.f32.mrf.mxu0
      %913 = vdwg.mxu0
      %v914 = vadd.f32 %v801, %v865
      %v915 = vadd.f32 %v802, %v867
      %v916 = vadd.f32 %v803, %v908
      %v917 = vadd.f32 %v804, %v869
      %v918 = vadd.f32 %v805, %v871
      %v919 = vadd.f32 %v806, %v911
      %s920 = scalar_lea.vmem %s1, 48
      %v921 = vld [vmem:[%s920] sm:$0xf]
      %v922 = vld [vmem:[%s920 + $0x4] sm:$0xf]
      %v925 = vunpack.c.l.b16 %v921
      %v926 = vunpack.c.l.b16 %v922
      %v927 = vpack.c.b16 %v926, %v925
      %928 = vrot.lane.b32.xlu0 %v270, 92
      %v929 = vpop.permute.xlu0 %928
      %930 = vrot.lane.b32.xlu0 %v271, 92
      %v931 = vpop.permute.xlu0 %930
      %932 = vrot.lane.b32.xlu0 %v272, 92
      %v933 = vpop.permute.xlu0 %932
      %vm934 = vcmask 752640
      %v935 = vsel %vm934, %v929, %v931
      %v936 = vsel %vm934, %v931, %v933
      %v941 = vsel %vm285, %v927, 0
      %943 = vmatprep.subr.bf16.mxu0 0
      %944 = vmatpush1.bf16.msra.mxu0 0
      %945 = vmatprep.subr.bf16.mxu0 0
      %946 = vmatpush1.bf16.msra.mxu0 0
      %947 = vmatprep.subr.bf16.mxu0 0
      %948 = vmatpush1.bf16.msra.mxu0 0
      %949 = vmatprep.subr.bf16.mxu0 0
      %950 = vmatpush1.bf16.msra.mxu0 0
      %951 = vmatprep.subr.bf16.mxu0 0
      %952 = vmatpush1.bf16.msra.mxu0 0
      %953 = vmatprep.subr.bf16.mxu0 0
      %954 = vmatpush1.bf16.msra.mxu0 0
      %955 = vmatprep.subr.bf16.mxu0 0
      %956 = vmatpush1.bf16.msra.mxu0 0
      %957 = vmatprep.subr.bf16.mxu0 %v936
      %958 = vmatpush1.bf16.msra.mxu0 %v935
      %959 = vmatprep.subr.bf16.mxu0 0
      %960 = vmatpush2.bf16.msra.mxu0 0
      %961 = vmatprep.subr.bf16.mxu0 0
      %962 = vmatpush2.bf16.msra.mxu0 0
      %963 = vmatprep.subr.bf16.mxu0 0
      %964 = vmatpush2.bf16.msra.mxu0 0
      %965 = vmatprep.subr.bf16.mxu0 0
      %966 = vmatpush2.bf16.msra.mxu0 0
      %967 = vmatprep.subr.bf16.mxu0 0
      %968 = vmatpush2.bf16.msra.mxu0 0
      %969 = vmatprep.subr.bf16.mxu0 0
      %970 = vmatpush2.bf16.msra.mxu0 0
      %971 = vmatprep.subr.bf16.mxu0 0
      %972 = vmatpush2.bf16.msra.mxu0 0
      %973 = vmatprep.subr.bf16.mxu0 0
      %974 = vmatpush2.bf16.msra.mxu0 0
      %975 = vmatprep.mubr.bf16.mxu0 0
      %976 = vmatmul.mubr.bf16.gmra.mxu0 %v941
      %v977 = vpop.f32.mrf.mxu0
      %v978 = vadd.f32 0.0, %v977
      %v979 = vpop.f32.mrf.mxu0
      %v980 = vadd.f32 0.0, %v979
      %v981 = vpop.f32.mrf.mxu0
      %v982 = vadd.f32 0.0, %v981
      %v983 = vpop.f32.mrf.mxu0
      %v984 = vadd.f32 0.0, %v983
      %985 = vdwg.mxu0
      %986 = vmatprep.subr.bf16.mxu0 0
      %987 = vmatpush1.bf16.msra.mxu0 0
      %988 = vmatprep.subr.bf16.mxu0 0
      %989 = vmatpush1.bf16.msra.mxu0 0
      %990 = vmatprep.subr.bf16.mxu0 0
      %991 = vmatpush1.bf16.msra.mxu0 0
      %992 = vmatprep.subr.bf16.mxu0 0
      %993 = vmatpush1.bf16.msra.mxu0 0
      %994 = vmatprep.subr.bf16.mxu0 0
      %995 = vmatpush1.bf16.msra.mxu0 0
      %996 = vmatprep.subr.bf16.mxu0 0
      %997 = vmatpush1.bf16.msra.mxu0 0
      %998 = vmatprep.subr.bf16.mxu0 0
      %999 = vmatpush1.bf16.msra.mxu0 0
      %1000 = vmatprep.subr.bf16.mxu0 0
      %1001 = vmatpush1.bf16.msra.mxu0 %v933
      %1002 = vmatprep.subr.bf16.mxu0 0
      %1003 = vmatpush2.bf16.msra.mxu0 0
      %1004 = vmatprep.subr.bf16.mxu0 0
      %1005 = vmatpush2.bf16.msra.mxu0 0
      %1006 = vmatprep.subr.bf16.mxu0 0
      %1007 = vmatpush2.bf16.msra.mxu0 0
      %1008 = vmatprep.subr.bf16.mxu0 0
      %1009 = vmatpush2.bf16.msra.mxu0 0
      %1010 = vmatprep.subr.bf16.mxu0 0
      %1011 = vmatpush2.bf16.msra.mxu0 0
      %1012 = vmatprep.subr.bf16.mxu0 0
      %1013 = vmatpush2.bf16.msra.mxu0 0
      %1014 = vmatprep.subr.bf16.mxu0 0
      %1015 = vmatpush2.bf16.msra.mxu0 0
      %1016 = vmatprep.subr.bf16.mxu0 0
      %1017 = vmatpush2.bf16.msra.mxu0 0
      %1018 = vmatprep.mubr.bf16.mxu0 0
      %1019 = vmatmul.mubr.bf16.gmra.mxu0 %v941
      %v1020 = vpop.f32.mrf.mxu0
      %v1021 = vadd.f32 0.0, %v1020
      %v1022 = vpop.f32.mrf.mxu0
      %v1023 = vpop.f32.mrf.mxu0
      %v1024 = vadd.f32 0.0, %v1023
      %v1025 = vpop.f32.mrf.mxu0
      %1026 = vdwg.mxu0
      %v1027 = vadd.f32 %v914, %v978
      %v1028 = vadd.f32 %v915, %v980
      %v1029 = vadd.f32 %v916, %v1021
      %v1030 = vadd.f32 %v917, %v982
      %v1031 = vadd.f32 %v918, %v984
      %v1032 = vadd.f32 %v919, %v1024
      %s1033 = scalar_lea.vmem %s1, 56
      %v1034 = vld [vmem:[%s1033] sm:$0xf]
      %v1035 = vld [vmem:[%s1033 + $0x4] sm:$0xf]
      %v1038 = vunpack.c.l.b16 %v1034
      %v1039 = vunpack.c.l.b16 %v1035
      %v1040 = vpack.c.b16 %v1039, %v1038
      %1041 = vrot.lane.b32.xlu0 %v270, 91
      %v1042 = vpop.permute.xlu0 %1041
      %1043 = vrot.lane.b32.xlu0 %v271, 91
      %v1044 = vpop.permute.xlu0 %1043
      %1045 = vrot.lane.b32.xlu0 %v272, 91
      %v1046 = vpop.permute.xlu0 %1045
      %vm1047 = vcmask 744448
      %v1048 = vsel %vm1047, %v1042, %v1044
      %v1049 = vsel %vm1047, %v1044, %v1046
      %v1054 = vsel %vm285, %v1040, 0
      %1056 = vmatprep.subr.bf16.mxu0 0
      %1057 = vmatpush1.bf16.msra.mxu0 0
      %1058 = vmatprep.subr.bf16.mxu0 0
      %1059 = vmatpush1.bf16.msra.mxu0 0
      %1060 = vmatprep.subr.bf16.mxu0 0
      %1061 = vmatpush1.bf16.msra.mxu0 0
      %1062 = vmatprep.subr.bf16.mxu0 0
      %1063 = vmatpush1.bf16.msra.mxu0 0
      %1064 = vmatprep.subr.bf16.mxu0 0
      %1065 = vmatpush1.bf16.msra.mxu0 0
      %1066 = vmatprep.subr.bf16.mxu0 0
      %1067 = vmatpush1.bf16.msra.mxu0 0
      %1068 = vmatprep.subr.bf16.mxu0 0
      %1069 = vmatpush1.bf16.msra.mxu0 0
      %1070 = vmatprep.subr.bf16.mxu0 %v1049
      %1071 = vmatpush1.bf16.msra.mxu0 %v1048
      %1072 = vmatprep.subr.bf16.mxu0 0
      %1073 = vmatpush2.bf16.msra.mxu0 0
      %1074 = vmatprep.subr.bf16.mxu0 0
      %1075 = vmatpush2.bf16.msra.mxu0 0
      %1076 = vmatprep.subr.bf16.mxu0 0
      %1077 = vmatpush2.bf16.msra.mxu0 0
      %1078 = vmatprep.subr.bf16.mxu0 0
      %1079 = vmatpush2.bf16.msra.mxu0 0
      %1080 = vmatprep.subr.bf16.mxu0 0
      %1081 = vmatpush2.bf16.msra.mxu0 0
      %1082 = vmatprep.subr.bf16.mxu0 0
      %1083 = vmatpush2.bf16.msra.mxu0 0
      %1084 = vmatprep.subr.bf16.mxu0 0
      %1085 = vmatpush2.bf16.msra.mxu0 0
      %1086 = vmatprep.subr.bf16.mxu0 0
      %1087 = vmatpush2.bf16.msra.mxu0 0
      %1088 = vmatprep.mubr.bf16.mxu0 0
      %1089 = vmatmul.mubr.bf16.gmra.mxu0 %v1054
      %v1090 = vpop.f32.mrf.mxu0
      %v1091 = vadd.f32 0.0, %v1090
      %v1092 = vpop.f32.mrf.mxu0
      %v1093 = vadd.f32 0.0, %v1092
      %v1094 = vpop.f32.mrf.mxu0
      %v1095 = vadd.f32 0.0, %v1094
      %v1096 = vpop.f32.mrf.mxu0
      %v1097 = vadd.f32 0.0, %v1096
      %1098 = vdwg.mxu0
      %1099 = vmatprep.subr.bf16.mxu0 0
      %1100 = vmatpush1.bf16.msra.mxu0 0
      %1101 = vmatprep.subr.bf16.mxu0 0
      %1102 = vmatpush1.bf16.msra.mxu0 0
      %1103 = vmatprep.subr.bf16.mxu0 0
      %1104 = vmatpush1.bf16.msra.mxu0 0
      %1105 = vmatprep.subr.bf16.mxu0 0
      %1106 = vmatpush1.bf16.msra.mxu0 0
      %1107 = vmatprep.subr.bf16.mxu0 0
      %1108 = vmatpush1.bf16.msra.mxu0 0
      %1109 = vmatprep.subr.bf16.mxu0 0
      %1110 = vmatpush1.bf16.msra.mxu0 0
      %1111 = vmatprep.subr.bf16.mxu0 0
      %1112 = vmatpush1.bf16.msra.mxu0 0
      %1113 = vmatprep.subr.bf16.mxu0 0
      %1114 = vmatpush1.bf16.msra.mxu0 %v1046
      %1115 = vmatprep.subr.bf16.mxu0 0
      %1116 = vmatpush2.bf16.msra.mxu0 0
      %1117 = vmatprep.subr.bf16.mxu0 0
      %1118 = vmatpush2.bf16.msra.mxu0 0
      %1119 = vmatprep.subr.bf16.mxu0 0
      %1120 = vmatpush2.bf16.msra.mxu0 0
      %1121 = vmatprep.subr.bf16.mxu0 0
      %1122 = vmatpush2.bf16.msra.mxu0 0
      %1123 = vmatprep.subr.bf16.mxu0 0
      %1124 = vmatpush2.bf16.msra.mxu0 0
      %1125 = vmatprep.subr.bf16.mxu0 0
      %1126 = vmatpush2.bf16.msra.mxu0 0
      %1127 = vmatprep.subr.bf16.mxu0 0
      %1128 = vmatpush2.bf16.msra.mxu0 0
      %1129 = vmatprep.subr.bf16.mxu0 0
      %1130 = vmatpush2.bf16.msra.mxu0 0
      %1131 = vmatprep.mubr.bf16.mxu0 0
      %1132 = vmatmul.mubr.bf16.gmra.mxu0 %v1054
      %v1133 = vpop.f32.mrf.mxu0
      %v1134 = vadd.f32 0.0, %v1133
      %v1135 = vpop.f32.mrf.mxu0
      %v1136 = vpop.f32.mrf.mxu0
      %v1137 = vadd.f32 0.0, %v1136
      %v1138 = vpop.f32.mrf.mxu0
      %1139 = vdwg.mxu0
      %v1140 = vadd.f32 %v1027, %v1091
      %v1141 = vadd.f32 %v1028, %v1093
      %v1142 = vadd.f32 %v1029, %v1134
      %v1143 = vadd.f32 %v1030, %v1095
      %v1144 = vadd.f32 %v1031, %v1097
      %v1145 = vadd.f32 %v1032, %v1137
      %s1146 = scalar_lea.vmem %s1, 64
      %v1147 = vld [vmem:[%s1146] sm:$0xf]
      %v1148 = vld [vmem:[%s1146 + $0x4] sm:$0xf]
      %v1151 = vunpack.c.l.b16 %v1147
      %v1152 = vunpack.c.l.b16 %v1148
      %v1153 = vpack.c.b16 %v1152, %v1151
      %1154 = vrot.lane.b32.xlu0 %v270, 90
      %v1155 = vpop.permute.xlu0 %1154
      %1156 = vrot.lane.b32.xlu0 %v271, 90
      %v1157 = vpop.permute.xlu0 %1156
      %1158 = vrot.lane.b32.xlu0 %v272, 90
      %v1159 = vpop.permute.xlu0 %1158
      %vm1160 = vcmask 736256
      %v1161 = vsel %vm1160, %v1155, %v1157
      %v1162 = vsel %vm1160, %v1157, %v1159
      %v1167 = vsel %vm285, %v1153, 0
      %1169 = vmatprep.subr.bf16.mxu0 0
      %1170 = vmatpush1.bf16.msra.mxu0 0
      %1171 = vmatprep.subr.bf16.mxu0 0
      %1172 = vmatpush1.bf16.msra.mxu0 0
      %1173 = vmatprep.subr.bf16.mxu0 0
      %1174 = vmatpush1.bf16.msra.mxu0 0
      %1175 = vmatprep.subr.bf16.mxu0 0
      %1176 = vmatpush1.bf16.msra.mxu0 0
      %1177 = vmatprep.subr.bf16.mxu0 0
      %1178 = vmatpush1.bf16.msra.mxu0 0
      %1179 = vmatprep.subr.bf16.mxu0 0
      %1180 = vmatpush1.bf16.msra.mxu0 0
      %1181 = vmatprep.subr.bf16.mxu0 0
      %1182 = vmatpush1.bf16.msra.mxu0 0
      %1183 = vmatprep.subr.bf16.mxu0 %v1162
      %1184 = vmatpush1.bf16.msra.mxu0 %v1161
      %1185 = vmatprep.subr.bf16.mxu0 0
      %1186 = vmatpush2.bf16.msra.mxu0 0
      %1187 = vmatprep.subr.bf16.mxu0 0
      %1188 = vmatpush2.bf16.msra.mxu0 0
      %1189 = vmatprep.subr.bf16.mxu0 0
      %1190 = vmatpush2.bf16.msra.mxu0 0
      %1191 = vmatprep.subr.bf16.mxu0 0
      %1192 = vmatpush2.bf16.msra.mxu0 0
      %1193 = vmatprep.subr.bf16.mxu0 0
      %1194 = vmatpush2.bf16.msra.mxu0 0
      %1195 = vmatprep.subr.bf16.mxu0 0
      %1196 = vmatpush2.bf16.msra.mxu0 0
      %1197 = vmatprep.subr.bf16.mxu0 0
      %1198 = vmatpush2.bf16.msra.mxu0 0
      %1199 = vmatprep.subr.bf16.mxu0 0
      %1200 = vmatpush2.bf16.msra.mxu0 0
      %1201 = vmatprep.mubr.bf16.mxu0 0
      %1202 = vmatmul.mubr.bf16.gmra.mxu0 %v1167
      %v1203 = vpop.f32.mrf.mxu0
      %v1204 = vadd.f32 0.0, %v1203
      %v1205 = vpop.f32.mrf.mxu0
      %v1206 = vadd.f32 0.0, %v1205
      %v1207 = vpop.f32.mrf.mxu0
      %v1208 = vadd.f32 0.0, %v1207
      %v1209 = vpop.f32.mrf.mxu0
      %v1210 = vadd.f32 0.0, %v1209
      %1211 = vdwg.mxu0
      %1212 = vmatprep.subr.bf16.mxu0 0
      %1213 = vmatpush1.bf16.msra.mxu0 0
      %1214 = vmatprep.subr.bf16.mxu0 0
      %1215 = vmatpush1.bf16.msra.mxu0 0
      %1216 = vmatprep.subr.bf16.mxu0 0
      %1217 = vmatpush1.bf16.msra.mxu0 0
      %1218 = vmatprep.subr.bf16.mxu0 0
      %1219 = vmatpush1.bf16.msra.mxu0 0
      %1220 = vmatprep.subr.bf16.mxu0 0
      %1221 = vmatpush1.bf16.msra.mxu0 0
      %1222 = vmatprep.subr.bf16.mxu0 0
      %1223 = vmatpush1.bf16.msra.mxu0 0
      %1224 = vmatprep.subr.bf16.mxu0 0
      %1225 = vmatpush1.bf16.msra.mxu0 0
      %1226 = vmatprep.subr.bf16.mxu0 0
      %1227 = vmatpush1.bf16.msra.mxu0 %v1159
      %1228 = vmatprep.subr.bf16.mxu0 0
      %1229 = vmatpush2.bf16.msra.mxu0 0
      %1230 = vmatprep.subr.bf16.mxu0 0
      %1231 = vmatpush2.bf16.msra.mxu0 0
      %1232 = vmatprep.subr.bf16.mxu0 0
      %1233 = vmatpush2.bf16.msra.mxu0 0
      %1234 = vmatprep.subr.bf16.mxu0 0
      %1235 = vmatpush2.bf16.msra.mxu0 0
      %1236 = vmatprep.subr.bf16.mxu0 0
      %1237 = vmatpush2.bf16.msra.mxu0 0
      %1238 = vmatprep.subr.bf16.mxu0 0
      %1239 = vmatpush2.bf16.msra.mxu0 0
      %1240 = vmatprep.subr.bf16.mxu0 0
      %1241 = vmatpush2.bf16.msra.mxu0 0
      %1242 = vmatprep.subr.bf16.mxu0 0
      %1243 = vmatpush2.bf16.msra.mxu0 0
      %1244 = vmatprep.mubr.bf16.mxu0 0
      %1245 = vmatmul.mubr.bf16.gmra.mxu0 %v1167
      %v1246 = vpop.f32.mrf.mxu0
      %v1247 = vadd.f32 0.0, %v1246
      %v1248 = vpop.f32.mrf.mxu0
      %v1249 = vpop.f32.mrf.mxu0
      %v1250 = vadd.f32 0.0, %v1249
      %v1251 = vpop.f32.mrf.mxu0
      %1252 = vdwg.mxu0
      %v1253 = vadd.f32 %v1140, %v1204
      %v1254 = vadd.f32 %v1141, %v1206
      %v1255 = vadd.f32 %v1142, %v1247
      %v1256 = vadd.f32 %v1143, %v1208
      %v1257 = vadd.f32 %v1144, %v1210
      %v1258 = vadd.f32 %v1145, %v1250
      %v1259 = vld [vmem:[%s239] sm:$0xff]
      %v1260 = vld [vmem:[%s239 + $0x8] sm:$0xf]
      %v1261 = vld [vmem:[%s239 + $0xc] sm:$0xff]
      %v1262 = vld [vmem:[%s239 + $0x14] sm:$0xf]
      %v1263 = vld [vmem:[%s3] sm:$0xf]
      %v1264 = vld [vmem:[%s3 + $0x4] sm:$0xf]
      %v1267 = vunpack.c.l.b16 %v1263
      %v1268 = vunpack.c.l.b16 %v1264
      %v1269 = vpack.c.b16 %v1268, %v1267
      %v1274 = vunpack.c.l.b16 %v1259
      %v1275 = vunpack.c.h.b16 %v1259
      %v1276 = vunpack.c.l.b16 %v1260
      %v1277 = vunpack.c.l.b16 %v1261
      %v1278 = vunpack.c.h.b16 %v1261
      %v1279 = vunpack.c.l.b16 %v1262
      %v1280 = vpack.c.b16 %v1277, %v1274
      %v1281 = vpack.c.b16 %v1278, %v1275
      %v1282 = vpack.c.b16 %v1279, %v1276
      %v1287 = vsel %vm285, %v1269, 0
      %1289 = vmatprep.subr.bf16.mxu0 0
      %1290 = vmatpush1.bf16.msra.mxu0 0
      %1291 = vmatprep.subr.bf16.mxu0 0
      %1292 = vmatpush1.bf16.msra.mxu0 0
      %1293 = vmatprep.subr.bf16.mxu0 0
      %1294 = vmatpush1.bf16.msra.mxu0 0
      %1295 = vmatprep.subr.bf16.mxu0 0
      %1296 = vmatpush1.bf16.msra.mxu0 0
      %1297 = vmatprep.subr.bf16.mxu0 0
      %1298 = vmatpush1.bf16.msra.mxu0 0
      %1299 = vmatprep.subr.bf16.mxu0 0
      %1300 = vmatpush1.bf16.msra.mxu0 0
      %1301 = vmatprep.subr.bf16.mxu0 0
      %1302 = vmatpush1.bf16.msra.mxu0 0
      %1303 = vmatprep.subr.bf16.mxu0 %v1281
      %1304 = vmatpush1.bf16.msra.mxu0 %v1280
      %1305 = vmatprep.subr.bf16.mxu0 0
      %1306 = vmatpush2.bf16.msra.mxu0 0
      %1307 = vmatprep.subr.bf16.mxu0 0
      %1308 = vmatpush2.bf16.msra.mxu0 0
      %1309 = vmatprep.subr.bf16.mxu0 0
      %1310 = vmatpush2.bf16.msra.mxu0 0
      %1311 = vmatprep.subr.bf16.mxu0 0
      %1312 = vmatpush2.bf16.msra.mxu0 0
      %1313 = vmatprep.subr.bf16.mxu0 0
      %1314 = vmatpush2.bf16.msra.mxu0 0
      %1315 = vmatprep.subr.bf16.mxu0 0
      %1316 = vmatpush2.bf16.msra.mxu0 0
      %1317 = vmatprep.subr.bf16.mxu0 0
      %1318 = vmatpush2.bf16.msra.mxu0 0
      %1319 = vmatprep.subr.bf16.mxu0 0
      %1320 = vmatpush2.bf16.msra.mxu0 0
      %1321 = vmatprep.mubr.bf16.mxu0 0
      %1322 = vmatmul.mubr.bf16.gmra.mxu0 %v1287
      %v1323 = vpop.f32.mrf.mxu0
      %v1324 = vadd.f32 0.0, %v1323
      %v1325 = vpop.f32.mrf.mxu0
      %v1326 = vadd.f32 0.0, %v1325
      %v1327 = vpop.f32.mrf.mxu0
      %v1328 = vadd.f32 0.0, %v1327
      %v1329 = vpop.f32.mrf.mxu0
      %v1330 = vadd.f32 0.0, %v1329
      %1331 = vdwg.mxu0
      %1332 = vmatprep.subr.bf16.mxu0 0
      %1333 = vmatpush1.bf16.msra.mxu0 0
      %1334 = vmatprep.subr.bf16.mxu0 0
      %1335 = vmatpush1.bf16.msra.mxu0 0
      %1336 = vmatprep.subr.bf16.mxu0 0
      %1337 = vmatpush1.bf16.msra.mxu0 0
      %1338 = vmatprep.subr.bf16.mxu0 0
      %1339 = vmatpush1.bf16.msra.mxu0 0
      %1340 = vmatprep.subr.bf16.mxu0 0
      %1341 = vmatpush1.bf16.msra.mxu0 0
      %1342 = vmatprep.subr.bf16.mxu0 0
      %1343 = vmatpush1.bf16.msra.mxu0 0
      %1344 = vmatprep.subr.bf16.mxu0 0
      %1345 = vmatpush1.bf16.msra.mxu0 0
      %1346 = vmatprep.subr.bf16.mxu0 0
      %1347 = vmatpush1.bf16.msra.mxu0 %v1282
      %1348 = vmatprep.subr.bf16.mxu0 0
      %1349 = vmatpush2.bf16.msra.mxu0 0
      %1350 = vmatprep.subr.bf16.mxu0 0
      %1351 = vmatpush2.bf16.msra.mxu0 0
      %1352 = vmatprep.subr.bf16.mxu0 0
      %1353 = vmatpush2.bf16.msra.mxu0 0
      %1354 = vmatprep.subr.bf16.mxu0 0
      %1355 = vmatpush2.bf16.msra.mxu0 0
      %1356 = vmatprep.subr.bf16.mxu0 0
      %1357 = vmatpush2.bf16.msra.mxu0 0
      %1358 = vmatprep.subr.bf16.mxu0 0
      %1359 = vmatpush2.bf16.msra.mxu0 0
      %1360 = vmatprep.subr.bf16.mxu0 0
      %1361 = vmatpush2.bf16.msra.mxu0 0
      %1362 = vmatprep.subr.bf16.mxu0 0
      %1363 = vmatpush2.bf16.msra.mxu0 0
      %1364 = vmatprep.mubr.bf16.mxu0 0
      %1365 = vmatmul.mubr.bf16.gmra.mxu0 %v1287
      %v1366 = vpop.f32.mrf.mxu0
      %v1367 = vadd.f32 0.0, %v1366
      %v1368 = vpop.f32.mrf.mxu0
      %v1369 = vpop.f32.mrf.mxu0
      %v1370 = vadd.f32 0.0, %v1369
      %v1371 = vpop.f32.mrf.mxu0
      %1372 = vdwg.mxu0
      %v1373 = vadd.f32 %v1253, %v1324
      %v1374 = vadd.f32 %v1254, %v1326
      %v1375 = vadd.f32 %v1255, %v1367
      %v1376 = vadd.f32 %v1256, %v1328
      %v1377 = vadd.f32 %v1257, %v1330
      %v1378 = vadd.f32 %v1258, %v1370
      %s1379 = scalar_lea.vmem %s3, 8
      %v1380 = vld [vmem:[%s1379] sm:$0xf]
      %v1381 = vld [vmem:[%s1379 + $0x4] sm:$0xf]
      %v1384 = vunpack.c.l.b16 %v1380
      %v1385 = vunpack.c.l.b16 %v1381
      %v1386 = vpack.c.b16 %v1385, %v1384
      %1387 = vrot.lane.b32.xlu0 %v1280, 127
      %v1388 = vpop.permute.xlu0 %1387
      %1389 = vrot.lane.b32.xlu0 %v1281, 127
      %v1390 = vpop.permute.xlu0 %1389
      %1391 = vrot.lane.b32.xlu0 %v1282, 127
      %v1392 = vpop.permute.xlu0 %1391
      %v1393 = vsel %vm279, %v1388, %v1390
      %v1394 = vsel %vm279, %v1390, %v1392
      %v1399 = vsel %vm285, %v1386, 0
      %1401 = vmatprep.subr.bf16.mxu0 0
      %1402 = vmatpush1.bf16.msra.mxu0 0
      %1403 = vmatprep.subr.bf16.mxu0 0
      %1404 = vmatpush1.bf16.msra.mxu0 0
      %1405 = vmatprep.subr.bf16.mxu0 0
      %1406 = vmatpush1.bf16.msra.mxu0 0
      %1407 = vmatprep.subr.bf16.mxu0 0
      %1408 = vmatpush1.bf16.msra.mxu0 0
      %1409 = vmatprep.subr.bf16.mxu0 0
      %1410 = vmatpush1.bf16.msra.mxu0 0
      %1411 = vmatprep.subr.bf16.mxu0 0
      %1412 = vmatpush1.bf16.msra.mxu0 0
      %1413 = vmatprep.subr.bf16.mxu0 0
      %1414 = vmatpush1.bf16.msra.mxu0 0
      %1415 = vmatprep.subr.bf16.mxu0 %v1394
      %1416 = vmatpush1.bf16.msra.mxu0 %v1393
      %1417 = vmatprep.subr.bf16.mxu0 0
      %1418 = vmatpush2.bf16.msra.mxu0 0
      %1419 = vmatprep.subr.bf16.mxu0 0
      %1420 = vmatpush2.bf16.msra.mxu0 0
      %1421 = vmatprep.subr.bf16.mxu0 0
      %1422 = vmatpush2.bf16.msra.mxu0 0
      %1423 = vmatprep.subr.bf16.mxu0 0
      %1424 = vmatpush2.bf16.msra.mxu0 0
      %1425 = vmatprep.subr.bf16.mxu0 0
      %1426 = vmatpush2.bf16.msra.mxu0 0
      %1427 = vmatprep.subr.bf16.mxu0 0
      %1428 = vmatpush2.bf16.msra.mxu0 0
      %1429 = vmatprep.subr.bf16.mxu0 0
      %1430 = vmatpush2.bf16.msra.mxu0 0
      %1431 = vmatprep.subr.bf16.mxu0 0
      %1432 = vmatpush2.bf16.msra.mxu0 0
      %1433 = vmatprep.mubr.bf16.mxu0 0
      %1434 = vmatmul.mubr.bf16.gmra.mxu0 %v1399
      %v1435 = vpop.f32.mrf.mxu0
      %v1436 = vadd.f32 0.0, %v1435
      %v1437 = vpop.f32.mrf.mxu0
      %v1438 = vadd.f32 0.0, %v1437
      %v1439 = vpop.f32.mrf.mxu0
      %v1440 = vadd.f32 0.0, %v1439
      %v1441 = vpop.f32.mrf.mxu0
      %v1442 = vadd.f32 0.0, %v1441
      %1443 = vdwg.mxu0
      %1444 = vmatprep.subr.bf16.mxu0 0
      %1445 = vmatpush1.bf16.msra.mxu0 0
      %1446 = vmatprep.subr.bf16.mxu0 0
      %1447 = vmatpush1.bf16.msra.mxu0 0
      %1448 = vmatprep.subr.bf16.mxu0 0
      %1449 = vmatpush1.bf16.msra.mxu0 0
      %1450 = vmatprep.subr.bf16.mxu0 0
      %1451 = vmatpush1.bf16.msra.mxu0 0
      %1452 = vmatprep.subr.bf16.mxu0 0
      %1453 = vmatpush1.bf16.msra.mxu0 0
      %1454 = vmatprep.subr.bf16.mxu0 0
      %1455 = vmatpush1.bf16.msra.mxu0 0
      %1456 = vmatprep.subr.bf16.mxu0 0
      %1457 = vmatpush1.bf16.msra.mxu0 0
      %1458 = vmatprep.subr.bf16.mxu0 0
      %1459 = vmatpush1.bf16.msra.mxu0 %v1392
      %1460 = vmatprep.subr.bf16.mxu0 0
      %1461 = vmatpush2.bf16.msra.mxu0 0
      %1462 = vmatprep.subr.bf16.mxu0 0
      %1463 = vmatpush2.bf16.msra.mxu0 0
      %1464 = vmatprep.subr.bf16.mxu0 0
      %1465 = vmatpush2.bf16.msra.mxu0 0
      %1466 = vmatprep.subr.bf16.mxu0 0
      %1467 = vmatpush2.bf16.msra.mxu0 0
      %1468 = vmatprep.subr.bf16.mxu0 0
      %1469 = vmatpush2.bf16.msra.mxu0 0
      %1470 = vmatprep.subr.bf16.mxu0 0
      %1471 = vmatpush2.bf16.msra.mxu0 0
      %1472 = vmatprep.subr.bf16.mxu0 0
      %1473 = vmatpush2.bf16.msra.mxu0 0
      %1474 = vmatprep.subr.bf16.mxu0 0
      %1475 = vmatpush2.bf16.msra.mxu0 0
      %1476 = vmatprep.mubr.bf16.mxu0 0
      %1477 = vmatmul.mubr.bf16.gmra.mxu0 %v1399
      %v1478 = vpop.f32.mrf.mxu0
      %v1479 = vadd.f32 0.0, %v1478
      %v1480 = vpop.f32.mrf.mxu0
      %v1481 = vpop.f32.mrf.mxu0
      %v1482 = vadd.f32 0.0, %v1481
      %v1483 = vpop.f32.mrf.mxu0
      %1484 = vdwg.mxu0
      %v1485 = vadd.f32 %v1373, %v1436
      %v1486 = vadd.f32 %v1374, %v1438
      %v1487 = vadd.f32 %v1375, %v1479
      %v1488 = vadd.f32 %v1376, %v1440
      %v1489 = vadd.f32 %v1377, %v1442
      %v1490 = vadd.f32 %v1378, %v1482
      %s1491 = scalar_lea.vmem %s3, 16
      %v1492 = vld [vmem:[%s1491] sm:$0xf]
      %v1493 = vld [vmem:[%s1491 + $0x4] sm:$0xf]
      %v1496 = vunpack.c.l.b16 %v1492
      %v1497 = vunpack.c.l.b16 %v1493
      %v1498 = vpack.c.b16 %v1497, %v1496
      %1499 = vrot.lane.b32.xlu0 %v1280, 126
      %v1500 = vpop.permute.xlu0 %1499
      %1501 = vrot.lane.b32.xlu0 %v1281, 126
      %v1502 = vpop.permute.xlu0 %1501
      %1503 = vrot.lane.b32.xlu0 %v1282, 126
      %v1504 = vpop.permute.xlu0 %1503
      %v1505 = vsel %vm482, %v1500, %v1502
      %v1506 = vsel %vm482, %v1502, %v1504
      %v1511 = vsel %vm285, %v1498, 0
      %1513 = vmatprep.subr.bf16.mxu0 0
      %1514 = vmatpush1.bf16.msra.mxu0 0
      %1515 = vmatprep.subr.bf16.mxu0 0
      %1516 = vmatpush1.bf16.msra.mxu0 0
      %1517 = vmatprep.subr.bf16.mxu0 0
      %1518 = vmatpush1.bf16.msra.mxu0 0
      %1519 = vmatprep.subr.bf16.mxu0 0
      %1520 = vmatpush1.bf16.msra.mxu0 0
      %1521 = vmatprep.subr.bf16.mxu0 0
      %1522 = vmatpush1.bf16.msra.mxu0 0
      %1523 = vmatprep.subr.bf16.mxu0 0
      %1524 = vmatpush1.bf16.msra.mxu0 0
      %1525 = vmatprep.subr.bf16.mxu0 0
      %1526 = vmatpush1.bf16.msra.mxu0 0
      %1527 = vmatprep.subr.bf16.mxu0 %v1506
      %1528 = vmatpush1.bf16.msra.mxu0 %v1505
      %1529 = vmatprep.subr.bf16.mxu0 0
      %1530 = vmatpush2.bf16.msra.mxu0 0
      %1531 = vmatprep.subr.bf16.mxu0 0
      %1532 = vmatpush2.bf16.msra.mxu0 0
      %1533 = vmatprep.subr.bf16.mxu0 0
      %1534 = vmatpush2.bf16.msra.mxu0 0
      %1535 = vmatprep.subr.bf16.mxu0 0
      %1536 = vmatpush2.bf16.msra.mxu0 0
      %1537 = vmatprep.subr.bf16.mxu0 0
      %1538 = vmatpush2.bf16.msra.mxu0 0
      %1539 = vmatprep.subr.bf16.mxu0 0
      %1540 = vmatpush2.bf16.msra.mxu0 0
      %1541 = vmatprep.subr.bf16.mxu0 0
      %1542 = vmatpush2.bf16.msra.mxu0 0
      %1543 = vmatprep.subr.bf16.mxu0 0
      %1544 = vmatpush2.bf16.msra.mxu0 0
      %1545 = vmatprep.mubr.bf16.mxu0 0
      %1546 = vmatmul.mubr.bf16.gmra.mxu0 %v1511
      %v1547 = vpop.f32.mrf.mxu0
      %v1548 = vadd.f32 0.0, %v1547
      %v1549 = vpop.f32.mrf.mxu0
      %v1550 = vadd.f32 0.0, %v1549
      %v1551 = vpop.f32.mrf.mxu0
      %v1552 = vadd.f32 0.0, %v1551
      %v1553 = vpop.f32.mrf.mxu0
      %v1554 = vadd.f32 0.0, %v1553
      %1555 = vdwg.mxu0
      %1556 = vmatprep.subr.bf16.mxu0 0
      %1557 = vmatpush1.bf16.msra.mxu0 0
      %1558 = vmatprep.subr.bf16.mxu0 0
      %1559 = vmatpush1.bf16.msra.mxu0 0
      %1560 = vmatprep.subr.bf16.mxu0 0
      %1561 = vmatpush1.bf16.msra.mxu0 0
      %1562 = vmatprep.subr.bf16.mxu0 0
      %1563 = vmatpush1.bf16.msra.mxu0 0
      %1564 = vmatprep.subr.bf16.mxu0 0
      %1565 = vmatpush1.bf16.msra.mxu0 0
      %1566 = vmatprep.subr.bf16.mxu0 0
      %1567 = vmatpush1.bf16.msra.mxu0 0
      %1568 = vmatprep.subr.bf16.mxu0 0
      %1569 = vmatpush1.bf16.msra.mxu0 0
      %1570 = vmatprep.subr.bf16.mxu0 0
      %1571 = vmatpush1.bf16.msra.mxu0 %v1504
      %1572 = vmatprep.subr.bf16.mxu0 0
      %1573 = vmatpush2.bf16.msra.mxu0 0
      %1574 = vmatprep.subr.bf16.mxu0 0
      %1575 = vmatpush2.bf16.msra.mxu0 0
      %1576 = vmatprep.subr.bf16.mxu0 0
      %1577 = vmatpush2.bf16.msra.mxu0 0
      %1578 = vmatprep.subr.bf16.mxu0 0
      %1579 = vmatpush2.bf16.msra.mxu0 0
      %1580 = vmatprep.subr.bf16.mxu0 0
      %1581 = vmatpush2.bf16.msra.mxu0 0
      %1582 = vmatprep.subr.bf16.mxu0 0
      %1583 = vmatpush2.bf16.msra.mxu0 0
      %1584 = vmatprep.subr.bf16.mxu0 0
      %1585 = vmatpush2.bf16.msra.mxu0 0
      %1586 = vmatprep.subr.bf16.mxu0 0
      %1587 = vmatpush2.bf16.msra.mxu0 0
      %1588 = vmatprep.mubr.bf16.mxu0 0
      %1589 = vmatmul.mubr.bf16.gmra.mxu0 %v1511
      %v1590 = vpop.f32.mrf.mxu0
      %v1591 = vadd.f32 0.0, %v1590
      %v1592 = vpop.f32.mrf.mxu0
      %v1593 = vpop.f32.mrf.mxu0
      %v1594 = vadd.f32 0.0, %v1593
      %v1595 = vpop.f32.mrf.mxu0
      %1596 = vdwg.mxu0
      %v1597 = vadd.f32 %v1485, %v1548
      %v1598 = vadd.f32 %v1486, %v1550
      %v1599 = vadd.f32 %v1487, %v1591
      %v1600 = vadd.f32 %v1488, %v1552
      %v1601 = vadd.f32 %v1489, %v1554
      %v1602 = vadd.f32 %v1490, %v1594
      %s1603 = scalar_lea.vmem %s3, 24
      %v1604 = vld [vmem:[%s1603] sm:$0xf]
      %v1605 = vld [vmem:[%s1603 + $0x4] sm:$0xf]
      %v1608 = vunpack.c.l.b16 %v1604
      %v1609 = vunpack.c.l.b16 %v1605
      %v1610 = vpack.c.b16 %v1609, %v1608
      %1611 = vrot.lane.b32.xlu0 %v1280, 110
      %v1612 = vpop.permute.xlu0 %1611
      %1613 = vrot.lane.b32.xlu0 %v1281, 110
      %v1614 = vpop.permute.xlu0 %1613
      %1615 = vrot.lane.b32.xlu0 %v1282, 110
      %v1616 = vpop.permute.xlu0 %1615
      %v1617 = vsel %vm595, %v1612, %v1614
      %v1618 = vsel %vm595, %v1614, %v1616
      %v1623 = vsel %vm285, %v1610, 0
      %1625 = vmatprep.subr.bf16.mxu0 0
      %1626 = vmatpush1.bf16.msra.mxu0 0
      %1627 = vmatprep.subr.bf16.mxu0 0
      %1628 = vmatpush1.bf16.msra.mxu0 0
      %1629 = vmatprep.subr.bf16.mxu0 0
      %1630 = vmatpush1.bf16.msra.mxu0 0
      %1631 = vmatprep.subr.bf16.mxu0 0
      %1632 = vmatpush1.bf16.msra.mxu0 0
      %1633 = vmatprep.subr.bf16.mxu0 0
      %1634 = vmatpush1.bf16.msra.mxu0 0
      %1635 = vmatprep.subr.bf16.mxu0 0
      %1636 = vmatpush1.bf16.msra.mxu0 0
      %1637 = vmatprep.subr.bf16.mxu0 0
      %1638 = vmatpush1.bf16.msra.mxu0 0
      %1639 = vmatprep.subr.bf16.mxu0 %v1618
      %1640 = vmatpush1.bf16.msra.mxu0 %v1617
      %1641 = vmatprep.subr.bf16.mxu0 0
      %1642 = vmatpush2.bf16.msra.mxu0 0
      %1643 = vmatprep.subr.bf16.mxu0 0
      %1644 = vmatpush2.bf16.msra.mxu0 0
      %1645 = vmatprep.subr.bf16.mxu0 0
      %1646 = vmatpush2.bf16.msra.mxu0 0
      %1647 = vmatprep.subr.bf16.mxu0 0
      %1648 = vmatpush2.bf16.msra.mxu0 0
      %1649 = vmatprep.subr.bf16.mxu0 0
      %1650 = vmatpush2.bf16.msra.mxu0 0
      %1651 = vmatprep.subr.bf16.mxu0 0
      %1652 = vmatpush2.bf16.msra.mxu0 0
      %1653 = vmatprep.subr.bf16.mxu0 0
      %1654 = vmatpush2.bf16.msra.mxu0 0
      %1655 = vmatprep.subr.bf16.mxu0 0
      %1656 = vmatpush2.bf16.msra.mxu0 0
      %1657 = vmatprep.mubr.bf16.mxu0 0
      %1658 = vmatmul.mubr.bf16.gmra.mxu0 %v1623
      %v1659 = vpop.f32.mrf.mxu0
      %v1660 = vadd.f32 0.0, %v1659
      %v1661 = vpop.f32.mrf.mxu0
      %v1662 = vadd.f32 0.0, %v1661
      %v1663 = vpop.f32.mrf.mxu0
      %v1664 = vadd.f32 0.0, %v1663
      %v1665 = vpop.f32.mrf.mxu0
      %v1666 = vadd.f32 0.0, %v1665
      %1667 = vdwg.mxu0
      %1668 = vmatprep.subr.bf16.mxu0 0
      %1669 = vmatpush1.bf16.msra.mxu0 0
      %1670 = vmatprep.subr.bf16.mxu0 0
      %1671 = vmatpush1.bf16.msra.mxu0 0
      %1672 = vmatprep.subr.bf16.mxu0 0
      %1673 = vmatpush1.bf16.msra.mxu0 0
      %1674 = vmatprep.subr.bf16.mxu0 0
      %1675 = vmatpush1.bf16.msra.mxu0 0
      %1676 = vmatprep.subr.bf16.mxu0 0
      %1677 = vmatpush1.bf16.msra.mxu0 0
      %1678 = vmatprep.subr.bf16.mxu0 0
      %1679 = vmatpush1.bf16.msra.mxu0 0
      %1680 = vmatprep.subr.bf16.mxu0 0
      %1681 = vmatpush1.bf16.msra.mxu0 0
      %1682 = vmatprep.subr.bf16.mxu0 0
      %1683 = vmatpush1.bf16.msra.mxu0 %v1616
      %1684 = vmatprep.subr.bf16.mxu0 0
      %1685 = vmatpush2.bf16.msra.mxu0 0
      %1686 = vmatprep.subr.bf16.mxu0 0
      %1687 = vmatpush2.bf16.msra.mxu0 0
      %1688 = vmatprep.subr.bf16.mxu0 0
      %1689 = vmatpush2.bf16.msra.mxu0 0
      %1690 = vmatprep.subr.bf16.mxu0 0
      %1691 = vmatpush2.bf16.msra.mxu0 0
      %1692 = vmatprep.subr.bf16.mxu0 0
      %1693 = vmatpush2.bf16.msra.mxu0 0
      %1694 = vmatprep.subr.bf16.mxu0 0
      %1695 = vmatpush2.bf16.msra.mxu0 0
      %1696 = vmatprep.subr.bf16.mxu0 0
      %1697 = vmatpush2.bf16.msra.mxu0 0
      %1698 = vmatprep.subr.bf16.mxu0 0
      %1699 = vmatpush2.bf16.msra.mxu0 0
      %1700 = vmatprep.mubr.bf16.mxu0 0
      %1701 = vmatmul.mubr.bf16.gmra.mxu0 %v1623
      %v1702 = vpop.f32.mrf.mxu0
      %v1703 = vadd.f32 0.0, %v1702
      %v1704 = vpop.f32.mrf.mxu0
      %v1705 = vpop.f32.mrf.mxu0
      %v1706 = vadd.f32 0.0, %v1705
      %v1707 = vpop.f32.mrf.mxu0
      %1708 = vdwg.mxu0
      %v1709 = vadd.f32 %v1597, %v1660
      %v1710 = vadd.f32 %v1598, %v1662
      %v1711 = vadd.f32 %v1599, %v1703
      %v1712 = vadd.f32 %v1600, %v1664
      %v1713 = vadd.f32 %v1601, %v1666
      %v1714 = vadd.f32 %v1602, %v1706
      %s1715 = scalar_lea.vmem %s3, 32
      %v1716 = vld [vmem:[%s1715] sm:$0xf]
      %v1717 = vld [vmem:[%s1715 + $0x4] sm:$0xf]
      %v1720 = vunpack.c.l.b16 %v1716
      %v1721 = vunpack.c.l.b16 %v1717
      %v1722 = vpack.c.b16 %v1721, %v1720
      %1723 = vrot.lane.b32.xlu0 %v1280, 109
      %v1724 = vpop.permute.xlu0 %1723
      %1725 = vrot.lane.b32.xlu0 %v1281, 109
      %v1726 = vpop.permute.xlu0 %1725
      %1727 = vrot.lane.b32.xlu0 %v1282, 109
      %v1728 = vpop.permute.xlu0 %1727
      %v1729 = vsel %vm708, %v1724, %v1726
      %v1730 = vsel %vm708, %v1726, %v1728
      %v1735 = vsel %vm285, %v1722, 0
      %1737 = vmatprep.subr.bf16.mxu0 0
      %1738 = vmatpush1.bf16.msra.mxu0 0
      %1739 = vmatprep.subr.bf16.mxu0 0
      %1740 = vmatpush1.bf16.msra.mxu0 0
      %1741 = vmatprep.subr.bf16.mxu0 0
      %1742 = vmatpush1.bf16.msra.mxu0 0
      %1743 = vmatprep.subr.bf16.mxu0 0
      %1744 = vmatpush1.bf16.msra.mxu0 0
      %1745 = vmatprep.subr.bf16.mxu0 0
      %1746 = vmatpush1.bf16.msra.mxu0 0
      %1747 = vmatprep.subr.bf16.mxu0 0
      %1748 = vmatpush1.bf16.msra.mxu0 0
      %1749 = vmatprep.subr.bf16.mxu0 0
      %1750 = vmatpush1.bf16.msra.mxu0 0
      %1751 = vmatprep.subr.bf16.mxu0 %v1730
      %1752 = vmatpush1.bf16.msra.mxu0 %v1729
      %1753 = vmatprep.subr.bf16.mxu0 0
      %1754 = vmatpush2.bf16.msra.mxu0 0
      %1755 = vmatprep.subr.bf16.mxu0 0
      %1756 = vmatpush2.bf16.msra.mxu0 0
      %1757 = vmatprep.subr.bf16.mxu0 0
      %1758 = vmatpush2.bf16.msra.mxu0 0
      %1759 = vmatprep.subr.bf16.mxu0 0
      %1760 = vmatpush2.bf16.msra.mxu0 0
      %1761 = vmatprep.subr.bf16.mxu0 0
      %1762 = vmatpush2.bf16.msra.mxu0 0
      %1763 = vmatprep.subr.bf16.mxu0 0
      %1764 = vmatpush2.bf16.msra.mxu0 0
      %1765 = vmatprep.subr.bf16.mxu0 0
      %1766 = vmatpush2.bf16.msra.mxu0 0
      %1767 = vmatprep.subr.bf16.mxu0 0
      %1768 = vmatpush2.bf16.msra.mxu0 0
      %1769 = vmatprep.mubr.bf16.mxu0 0
      %1770 = vmatmul.mubr.bf16.gmra.mxu0 %v1735
      %v1771 = vpop.f32.mrf.mxu0
      %v1772 = vadd.f32 0.0, %v1771
      %v1773 = vpop.f32.mrf.mxu0
      %v1774 = vadd.f32 0.0, %v1773
      %v1775 = vpop.f32.mrf.mxu0
      %v1776 = vadd.f32 0.0, %v1775
      %v1777 = vpop.f32.mrf.mxu0
      %v1778 = vadd.f32 0.0, %v1777
      %1779 = vdwg.mxu0
      %1780 = vmatprep.subr.bf16.mxu0 0
      %1781 = vmatpush1.bf16.msra.mxu0 0
      %1782 = vmatprep.subr.bf16.mxu0 0
      %1783 = vmatpush1.bf16.msra.mxu0 0
      %1784 = vmatprep.subr.bf16.mxu0 0
      %1785 = vmatpush1.bf16.msra.mxu0 0
      %1786 = vmatprep.subr.bf16.mxu0 0
      %1787 = vmatpush1.bf16.msra.mxu0 0
      %1788 = vmatprep.subr.bf16.mxu0 0
      %1789 = vmatpush1.bf16.msra.mxu0 0
      %1790 = vmatprep.subr.bf16.mxu0 0
      %1791 = vmatpush1.bf16.msra.mxu0 0
      %1792 = vmatprep.subr.bf16.mxu0 0
      %1793 = vmatpush1.bf16.msra.mxu0 0
      %1794 = vmatprep.subr.bf16.mxu0 0
      %1795 = vmatpush1.bf16.msra.mxu0 %v1728
      %1796 = vmatprep.subr.bf16.mxu0 0
      %1797 = vmatpush2.bf16.msra.mxu0 0
      %1798 = vmatprep.subr.bf16.mxu0 0
      %1799 = vmatpush2.bf16.msra.mxu0 0
      %1800 = vmatprep.subr.bf16.mxu0 0
      %1801 = vmatpush2.bf16.msra.mxu0 0
      %1802 = vmatprep.subr.bf16.mxu0 0
      %1803 = vmatpush2.bf16.msra.mxu0 0
      %1804 = vmatprep.subr.bf16.mxu0 0
      %1805 = vmatpush2.bf16.msra.mxu0 0
      %1806 = vmatprep.subr.bf16.mxu0 0
      %1807 = vmatpush2.bf16.msra.mxu0 0
      %1808 = vmatprep.subr.bf16.mxu0 0
      %1809 = vmatpush2.bf16.msra.mxu0 0
      %1810 = vmatprep.subr.bf16.mxu0 0
      %1811 = vmatpush2.bf16.msra.mxu0 0
      %1812 = vmatprep.mubr.bf16.mxu0 0
      %1813 = vmatmul.mubr.bf16.gmra.mxu0 %v1735
      %v1814 = vpop.f32.mrf.mxu0
      %v1815 = vadd.f32 0.0, %v1814
      %v1816 = vpop.f32.mrf.mxu0
      %v1817 = vpop.f32.mrf.mxu0
      %v1818 = vadd.f32 0.0, %v1817
      %v1819 = vpop.f32.mrf.mxu0
      %1820 = vdwg.mxu0
      %v1821 = vadd.f32 %v1709, %v1772
      %v1822 = vadd.f32 %v1710, %v1774
      %v1823 = vadd.f32 %v1711, %v1815
      %v1824 = vadd.f32 %v1712, %v1776
      %v1825 = vadd.f32 %v1713, %v1778
      %v1826 = vadd.f32 %v1714, %v1818
      %s1827 = scalar_lea.vmem %s3, 40
      %v1828 = vld [vmem:[%s1827] sm:$0xf]
      %v1829 = vld [vmem:[%s1827 + $0x4] sm:$0xf]
      %v1832 = vunpack.c.l.b16 %v1828
      %v1833 = vunpack.c.l.b16 %v1829
      %v1834 = vpack.c.b16 %v1833, %v1832
      %1835 = vrot.lane.b32.xlu0 %v1280, 108
      %v1836 = vpop.permute.xlu0 %1835
      %1837 = vrot.lane.b32.xlu0 %v1281, 108
      %v1838 = vpop.permute.xlu0 %1837
      %1839 = vrot.lane.b32.xlu0 %v1282, 108
      %v1840 = vpop.permute.xlu0 %1839
      %v1841 = vsel %vm821, %v1836, %v1838
      %v1842 = vsel %vm821, %v1838, %v1840
      %v1847 = vsel %vm285, %v1834, 0
      %1849 = vmatprep.subr.bf16.mxu0 0
      %1850 = vmatpush1.bf16.msra.mxu0 0
      %1851 = vmatprep.subr.bf16.mxu0 0
      %1852 = vmatpush1.bf16.msra.mxu0 0
      %1853 = vmatprep.subr.bf16.mxu0 0
      %1854 = vmatpush1.bf16.msra.mxu0 0
      %1855 = vmatprep.subr.bf16.mxu0 0
      %1856 = vmatpush1.bf16.msra.mxu0 0
      %1857 = vmatprep.subr.bf16.mxu0 0
      %1858 = vmatpush1.bf16.msra.mxu0 0
      %1859 = vmatprep.subr.bf16.mxu0 0
      %1860 = vmatpush1.bf16.msra.mxu0 0
      %1861 = vmatprep.subr.bf16.mxu0 0
      %1862 = vmatpush1.bf16.msra.mxu0 0
      %1863 = vmatprep.subr.bf16.mxu0 %v1842
      %1864 = vmatpush1.bf16.msra.mxu0 %v1841
      %1865 = vmatprep.subr.bf16.mxu0 0
      %1866 = vmatpush2.bf16.msra.mxu0 0
      %1867 = vmatprep.subr.bf16.mxu0 0
      %1868 = vmatpush2.bf16.msra.mxu0 0
      %1869 = vmatprep.subr.bf16.mxu0 0
      %1870 = vmatpush2.bf16.msra.mxu0 0
      %1871 = vmatprep.subr.bf16.mxu0 0
      %1872 = vmatpush2.bf16.msra.mxu0 0
      %1873 = vmatprep.subr.bf16.mxu0 0
      %1874 = vmatpush2.bf16.msra.mxu0 0
      %1875 = vmatprep.subr.bf16.mxu0 0
      %1876 = vmatpush2.bf16.msra.mxu0 0
      %1877 = vmatprep.subr.bf16.mxu0 0
      %1878 = vmatpush2.bf16.msra.mxu0 0
      %1879 = vmatprep.subr.bf16.mxu0 0
      %1880 = vmatpush2.bf16.msra.mxu0 0
      %1881 = vmatprep.mubr.bf16.mxu0 0
      %1882 = vmatmul.mubr.bf16.gmra.mxu0 %v1847
      %v1883 = vpop.f32.mrf.mxu0
      %v1884 = vadd.f32 0.0, %v1883
      %v1885 = vpop.f32.mrf.mxu0
      %v1886 = vadd.f32 0.0, %v1885
      %v1887 = vpop.f32.mrf.mxu0
      %v1888 = vadd.f32 0.0, %v1887
      %v1889 = vpop.f32.mrf.mxu0
      %v1890 = vadd.f32 0.0, %v1889
      %1891 = vdwg.mxu0
      %1892 = vmatprep.subr.bf16.mxu0 0
      %1893 = vmatpush1.bf16.msra.mxu0 0
      %1894 = vmatprep.subr.bf16.mxu0 0
      %1895 = vmatpush1.bf16.msra.mxu0 0
      %1896 = vmatprep.subr.bf16.mxu0 0
      %1897 = vmatpush1.bf16.msra.mxu0 0
      %1898 = vmatprep.subr.bf16.mxu0 0
      %1899 = vmatpush1.bf16.msra.mxu0 0
      %1900 = vmatprep.subr.bf16.mxu0 0
      %1901 = vmatpush1.bf16.msra.mxu0 0
      %1902 = vmatprep.subr.bf16.mxu0 0
      %1903 = vmatpush1.bf16.msra.mxu0 0
      %1904 = vmatprep.subr.bf16.mxu0 0
      %1905 = vmatpush1.bf16.msra.mxu0 0
      %1906 = vmatprep.subr.bf16.mxu0 0
      %1907 = vmatpush1.bf16.msra.mxu0 %v1840
      %1908 = vmatprep.subr.bf16.mxu0 0
      %1909 = vmatpush2.bf16.msra.mxu0 0
      %1910 = vmatprep.subr.bf16.mxu0 0
      %1911 = vmatpush2.bf16.msra.mxu0 0
      %1912 = vmatprep.subr.bf16.mxu0 0
      %1913 = vmatpush2.bf16.msra.mxu0 0
      %1914 = vmatprep.subr.bf16.mxu0 0
      %1915 = vmatpush2.bf16.msra.mxu0 0
      %1916 = vmatprep.subr.bf16.mxu0 0
      %1917 = vmatpush2.bf16.msra.mxu0 0
      %1918 = vmatprep.subr.bf16.mxu0 0
      %1919 = vmatpush2.bf16.msra.mxu0 0
      %1920 = vmatprep.subr.bf16.mxu0 0
      %1921 = vmatpush2.bf16.msra.mxu0 0
      %1922 = vmatprep.subr.bf16.mxu0 0
      %1923 = vmatpush2.bf16.msra.mxu0 0
      %1924 = vmatprep.mubr.bf16.mxu0 0
      %1925 = vmatmul.mubr.bf16.gmra.mxu0 %v1847
      %v1926 = vpop.f32.mrf.mxu0
      %v1927 = vadd.f32 0.0, %v1926
      %v1928 = vpop.f32.mrf.mxu0
      %v1929 = vpop.f32.mrf.mxu0
      %v1930 = vadd.f32 0.0, %v1929
      %v1931 = vpop.f32.mrf.mxu0
      %1932 = vdwg.mxu0
      %v1933 = vadd.f32 %v1821, %v1884
      %v1934 = vadd.f32 %v1822, %v1886
      %v1935 = vadd.f32 %v1823, %v1927
      %v1936 = vadd.f32 %v1824, %v1888
      %v1937 = vadd.f32 %v1825, %v1890
      %v1938 = vadd.f32 %v1826, %v1930
      %s1939 = scalar_lea.vmem %s3, 48
      %v1940 = vld [vmem:[%s1939] sm:$0xf]
      %v1941 = vld [vmem:[%s1939 + $0x4] sm:$0xf]
      %v1944 = vunpack.c.l.b16 %v1940
      %v1945 = vunpack.c.l.b16 %v1941
      %v1946 = vpack.c.b16 %v1945, %v1944
      %1947 = vrot.lane.b32.xlu0 %v1280, 92
      %v1948 = vpop.permute.xlu0 %1947
      %1949 = vrot.lane.b32.xlu0 %v1281, 92
      %v1950 = vpop.permute.xlu0 %1949
      %1951 = vrot.lane.b32.xlu0 %v1282, 92
      %v1952 = vpop.permute.xlu0 %1951
      %v1953 = vsel %vm934, %v1948, %v1950
      %v1954 = vsel %vm934, %v1950, %v1952
      %v1959 = vsel %vm285, %v1946, 0
      %1961 = vmatprep.subr.bf16.mxu0 0
      %1962 = vmatpush1.bf16.msra.mxu0 0
      %1963 = vmatprep.subr.bf16.mxu0 0
      %1964 = vmatpush1.bf16.msra.mxu0 0
      %1965 = vmatprep.subr.bf16.mxu0 0
      %1966 = vmatpush1.bf16.msra.mxu0 0
      %1967 = vmatprep.subr.bf16.mxu0 0
      %1968 = vmatpush1.bf16.msra.mxu0 0
      %1969 = vmatprep.subr.bf16.mxu0 0
      %1970 = vmatpush1.bf16.msra.mxu0 0
      %1971 = vmatprep.subr.bf16.mxu0 0
      %1972 = vmatpush1.bf16.msra.mxu0 0
      %1973 = vmatprep.subr.bf16.mxu0 0
      %1974 = vmatpush1.bf16.msra.mxu0 0
      %1975 = vmatprep.subr.bf16.mxu0 %v1954
      %1976 = vmatpush1.bf16.msra.mxu0 %v1953
      %1977 = vmatprep.subr.bf16.mxu0 0
      %1978 = vmatpush2.bf16.msra.mxu0 0
      %1979 = vmatprep.subr.bf16.mxu0 0
      %1980 = vmatpush2.bf16.msra.mxu0 0
      %1981 = vmatprep.subr.bf16.mxu0 0
      %1982 = vmatpush2.bf16.msra.mxu0 0
      %1983 = vmatprep.subr.bf16.mxu0 0
      %1984 = vmatpush2.bf16.msra.mxu0 0
      %1985 = vmatprep.subr.bf16.mxu0 0
      %1986 = vmatpush2.bf16.msra.mxu0 0
      %1987 = vmatprep.subr.bf16.mxu0 0
      %1988 = vmatpush2.bf16.msra.mxu0 0
      %1989 = vmatprep.subr.bf16.mxu0 0
      %1990 = vmatpush2.bf16.msra.mxu0 0
      %1991 = vmatprep.subr.bf16.mxu0 0
      %1992 = vmatpush2.bf16.msra.mxu0 0
      %1993 = vmatprep.mubr.bf16.mxu0 0
      %1994 = vmatmul.mubr.bf16.gmra.mxu0 %v1959
      %v1995 = vpop.f32.mrf.mxu0
      %v1996 = vadd.f32 0.0, %v1995
      %v1997 = vpop.f32.mrf.mxu0
      %v1998 = vadd.f32 0.0, %v1997
      %v1999 = vpop.f32.mrf.mxu0
      %v2000 = vadd.f32 0.0, %v1999
      %v2001 = vpop.f32.mrf.mxu0
      %v2002 = vadd.f32 0.0, %v2001
      %2003 = vdwg.mxu0
      %2004 = vmatprep.subr.bf16.mxu0 0
      %2005 = vmatpush1.bf16.msra.mxu0 0
      %2006 = vmatprep.subr.bf16.mxu0 0
      %2007 = vmatpush1.bf16.msra.mxu0 0
      %2008 = vmatprep.subr.bf16.mxu0 0
      %2009 = vmatpush1.bf16.msra.mxu0 0
      %2010 = vmatprep.subr.bf16.mxu0 0
      %2011 = vmatpush1.bf16.msra.mxu0 0
      %2012 = vmatprep.subr.bf16.mxu0 0
      %2013 = vmatpush1.bf16.msra.mxu0 0
      %2014 = vmatprep.subr.bf16.mxu0 0
      %2015 = vmatpush1.bf16.msra.mxu0 0
      %2016 = vmatprep.subr.bf16.mxu0 0
      %2017 = vmatpush1.bf16.msra.mxu0 0
      %2018 = vmatprep.subr.bf16.mxu0 0
      %2019 = vmatpush1.bf16.msra.mxu0 %v1952
      %2020 = vmatprep.subr.bf16.mxu0 0
      %2021 = vmatpush2.bf16.msra.mxu0 0
      %2022 = vmatprep.subr.bf16.mxu0 0
      %2023 = vmatpush2.bf16.msra.mxu0 0
      %2024 = vmatprep.subr.bf16.mxu0 0
      %2025 = vmatpush2.bf16.msra.mxu0 0
      %2026 = vmatprep.subr.bf16.mxu0 0
      %2027 = vmatpush2.bf16.msra.mxu0 0
      %2028 = vmatprep.subr.bf16.mxu0 0
      %2029 = vmatpush2.bf16.msra.mxu0 0
      %2030 = vmatprep.subr.bf16.mxu0 0
      %2031 = vmatpush2.bf16.msra.mxu0 0
      %2032 = vmatprep.subr.bf16.mxu0 0
      %2033 = vmatpush2.bf16.msra.mxu0 0
      %2034 = vmatprep.subr.bf16.mxu0 0
      %2035 = vmatpush2.bf16.msra.mxu0 0
      %2036 = vmatprep.mubr.bf16.mxu0 0
      %2037 = vmatmul.mubr.bf16.gmra.mxu0 %v1959
      %v2038 = vpop.f32.mrf.mxu0
      %v2039 = vadd.f32 0.0, %v2038
      %v2040 = vpop.f32.mrf.mxu0
      %v2041 = vpop.f32.mrf.mxu0
      %v2042 = vadd.f32 0.0, %v2041
      %v2043 = vpop.f32.mrf.mxu0
      %2044 = vdwg.mxu0
      %v2045 = vadd.f32 %v1933, %v1996
      %v2046 = vadd.f32 %v1934, %v1998
      %v2047 = vadd.f32 %v1935, %v2039
      %v2048 = vadd.f32 %v1936, %v2000
      %v2049 = vadd.f32 %v1937, %v2002
      %v2050 = vadd.f32 %v1938, %v2042
      %s2051 = scalar_lea.vmem %s3, 56
      %v2052 = vld [vmem:[%s2051] sm:$0xf]
      %v2053 = vld [vmem:[%s2051 + $0x4] sm:$0xf]
      %v2056 = vunpack.c.l.b16 %v2052
      %v2057 = vunpack.c.l.b16 %v2053
      %v2058 = vpack.c.b16 %v2057, %v2056
      %2059 = vrot.lane.b32.xlu0 %v1280, 91
      %v2060 = vpop.permute.xlu0 %2059
      %2061 = vrot.lane.b32.xlu0 %v1281, 91
      %v2062 = vpop.permute.xlu0 %2061
      %2063 = vrot.lane.b32.xlu0 %v1282, 91
      %v2064 = vpop.permute.xlu0 %2063
      %v2065 = vsel %vm1047, %v2060, %v2062
      %v2066 = vsel %vm1047, %v2062, %v2064
      %v2071 = vsel %vm285, %v2058, 0
      %2073 = vmatprep.subr.bf16.mxu0 0
      %2074 = vmatpush1.bf16.msra.mxu0 0
      %2075 = vmatprep.subr.bf16.mxu0 0
      %2076 = vmatpush1.bf16.msra.mxu0 0
      %2077 = vmatprep.subr.bf16.mxu0 0
      %2078 = vmatpush1.bf16.msra.mxu0 0
      %2079 = vmatprep.subr.bf16.mxu0 0
      %2080 = vmatpush1.bf16.msra.mxu0 0
      %2081 = vmatprep.subr.bf16.mxu0 0
      %2082 = vmatpush1.bf16.msra.mxu0 0
      %2083 = vmatprep.subr.bf16.mxu0 0
      %2084 = vmatpush1.bf16.msra.mxu0 0
      %2085 = vmatprep.subr.bf16.mxu0 0
      %2086 = vmatpush1.bf16.msra.mxu0 0
      %2087 = vmatprep.subr.bf16.mxu0 %v2066
      %2088 = vmatpush1.bf16.msra.mxu0 %v2065
      %2089 = vmatprep.subr.bf16.mxu0 0
      %2090 = vmatpush2.bf16.msra.mxu0 0
      %2091 = vmatprep.subr.bf16.mxu0 0
      %2092 = vmatpush2.bf16.msra.mxu0 0
      %2093 = vmatprep.subr.bf16.mxu0 0
      %2094 = vmatpush2.bf16.msra.mxu0 0
      %2095 = vmatprep.subr.bf16.mxu0 0
      %2096 = vmatpush2.bf16.msra.mxu0 0
      %2097 = vmatprep.subr.bf16.mxu0 0
      %2098 = vmatpush2.bf16.msra.mxu0 0
      %2099 = vmatprep.subr.bf16.mxu0 0
      %2100 = vmatpush2.bf16.msra.mxu0 0
      %2101 = vmatprep.subr.bf16.mxu0 0
      %2102 = vmatpush2.bf16.msra.mxu0 0
      %2103 = vmatprep.subr.bf16.mxu0 0
      %2104 = vmatpush2.bf16.msra.mxu0 0
      %2105 = vmatprep.mubr.bf16.mxu0 0
      %2106 = vmatmul.mubr.bf16.gmra.mxu0 %v2071
      %v2107 = vpop.f32.mrf.mxu0
      %v2108 = vadd.f32 0.0, %v2107
      %v2109 = vpop.f32.mrf.mxu0
      %v2110 = vadd.f32 0.0, %v2109
      %v2111 = vpop.f32.mrf.mxu0
      %v2112 = vadd.f32 0.0, %v2111
      %v2113 = vpop.f32.mrf.mxu0
      %v2114 = vadd.f32 0.0, %v2113
      %2115 = vdwg.mxu0
      %2116 = vmatprep.subr.bf16.mxu0 0
      %2117 = vmatpush1.bf16.msra.mxu0 0
      %2118 = vmatprep.subr.bf16.mxu0 0
      %2119 = vmatpush1.bf16.msra.mxu0 0
      %2120 = vmatprep.subr.bf16.mxu0 0
      %2121 = vmatpush1.bf16.msra.mxu0 0
      %2122 = vmatprep.subr.bf16.mxu0 0
      %2123 = vmatpush1.bf16.msra.mxu0 0
      %2124 = vmatprep.subr.bf16.mxu0 0
      %2125 = vmatpush1.bf16.msra.mxu0 0
      %2126 = vmatprep.subr.bf16.mxu0 0
      %2127 = vmatpush1.bf16.msra.mxu0 0
      %2128 = vmatprep.subr.bf16.mxu0 0
      %2129 = vmatpush1.bf16.msra.mxu0 0
      %2130 = vmatprep.subr.bf16.mxu0 0
      %2131 = vmatpush1.bf16.msra.mxu0 %v2064
      %2132 = vmatprep.subr.bf16.mxu0 0
      %2133 = vmatpush2.bf16.msra.mxu0 0
      %2134 = vmatprep.subr.bf16.mxu0 0
      %2135 = vmatpush2.bf16.msra.mxu0 0
      %2136 = vmatprep.subr.bf16.mxu0 0
      %2137 = vmatpush2.bf16.msra.mxu0 0
      %2138 = vmatprep.subr.bf16.mxu0 0
      %2139 = vmatpush2.bf16.msra.mxu0 0
      %2140 = vmatprep.subr.bf16.mxu0 0
      %2141 = vmatpush2.bf16.msra.mxu0 0
      %2142 = vmatprep.subr.bf16.mxu0 0
      %2143 = vmatpush2.bf16.msra.mxu0 0
      %2144 = vmatprep.subr.bf16.mxu0 0
      %2145 = vmatpush2.bf16.msra.mxu0 0
      %2146 = vmatprep.subr.bf16.mxu0 0
      %2147 = vmatpush2.bf16.msra.mxu0 0
      %2148 = vmatprep.mubr.bf16.mxu0 0
      %2149 = vmatmul.mubr.bf16.gmra.mxu0 %v2071
      %v2150 = vpop.f32.mrf.mxu0
      %v2151 = vadd.f32 0.0, %v2150
      %v2152 = vpop.f32.mrf.mxu0
      %v2153 = vpop.f32.mrf.mxu0
      %v2154 = vadd.f32 0.0, %v2153
      %v2155 = vpop.f32.mrf.mxu0
      %2156 = vdwg.mxu0
      %v2157 = vadd.f32 %v2045, %v2108
      %v2158 = vadd.f32 %v2046, %v2110
      %v2159 = vadd.f32 %v2047, %v2151
      %v2160 = vadd.f32 %v2048, %v2112
      %v2161 = vadd.f32 %v2049, %v2114
      %v2162 = vadd.f32 %v2050, %v2154
      %s2163 = scalar_lea.vmem %s3, 64
      %v2164 = vld [vmem:[%s2163] sm:$0xf]
      %v2165 = vld [vmem:[%s2163 + $0x4] sm:$0xf]
      %v2168 = vunpack.c.l.b16 %v2164
      %v2169 = vunpack.c.l.b16 %v2165
      %v2170 = vpack.c.b16 %v2169, %v2168
      %2171 = vrot.lane.b32.xlu0 %v1280, 90
      %v2172 = vpop.permute.xlu0 %2171
      %2173 = vrot.lane.b32.xlu0 %v1281, 90
      %v2174 = vpop.permute.xlu0 %2173
      %2175 = vrot.lane.b32.xlu0 %v1282, 90
      %v2176 = vpop.permute.xlu0 %2175
      %v2177 = vsel %vm1160, %v2172, %v2174
      %v2178 = vsel %vm1160, %v2174, %v2176
      %v2183 = vsel %vm285, %v2170, 0
      %2185 = vmatprep.subr.bf16.mxu0 0
      %2186 = vmatpush1.bf16.msra.mxu0 0
      %2187 = vmatprep.subr.bf16.mxu0 0
      %2188 = vmatpush1.bf16.msra.mxu0 0
      %2189 = vmatprep.subr.bf16.mxu0 0
      %2190 = vmatpush1.bf16.msra.mxu0 0
      %2191 = vmatprep.subr.bf16.mxu0 0
      %2192 = vmatpush1.bf16.msra.mxu0 0
      %2193 = vmatprep.subr.bf16.mxu0 0
      %2194 = vmatpush1.bf16.msra.mxu0 0
      %2195 = vmatprep.subr.bf16.mxu0 0
      %2196 = vmatpush1.bf16.msra.mxu0 0
      %2197 = vmatprep.subr.bf16.mxu0 0
      %2198 = vmatpush1.bf16.msra.mxu0 0
      %2199 = vmatprep.subr.bf16.mxu0 %v2178
      %2200 = vmatpush1.bf16.msra.mxu0 %v2177
      %2201 = vmatprep.subr.bf16.mxu0 0
      %2202 = vmatpush2.bf16.msra.mxu0 0
      %2203 = vmatprep.subr.bf16.mxu0 0
      %2204 = vmatpush2.bf16.msra.mxu0 0
      %2205 = vmatprep.subr.bf16.mxu0 0
      %2206 = vmatpush2.bf16.msra.mxu0 0
      %2207 = vmatprep.subr.bf16.mxu0 0
      %2208 = vmatpush2.bf16.msra.mxu0 0
      %2209 = vmatprep.subr.bf16.mxu0 0
      %2210 = vmatpush2.bf16.msra.mxu0 0
      %2211 = vmatprep.subr.bf16.mxu0 0
      %2212 = vmatpush2.bf16.msra.mxu0 0
      %2213 = vmatprep.subr.bf16.mxu0 0
      %2214 = vmatpush2.bf16.msra.mxu0 0
      %2215 = vmatprep.subr.bf16.mxu0 0
      %2216 = vmatpush2.bf16.msra.mxu0 0
      %2217 = vmatprep.mubr.bf16.mxu0 0
      %2218 = vmatmul.mubr.bf16.gmra.mxu0 %v2183
      %v2219 = vpop.f32.mrf.mxu0
      %v2220 = vadd.f32 0.0, %v2219
      %v2221 = vpop.f32.mrf.mxu0
      %v2222 = vadd.f32 0.0, %v2221
      %v2223 = vpop.f32.mrf.mxu0
      %v2224 = vadd.f32 0.0, %v2223
      %v2225 = vpop.f32.mrf.mxu0
      %v2226 = vadd.f32 0.0, %v2225
      %2227 = vdwg.mxu0
      %2228 = vmatprep.subr.bf16.mxu0 0
      %2229 = vmatpush1.bf16.msra.mxu0 0
      %2230 = vmatprep.subr.bf16.mxu0 0
      %2231 = vmatpush1.bf16.msra.mxu0 0
      %2232 = vmatprep.subr.bf16.mxu0 0
      %2233 = vmatpush1.bf16.msra.mxu0 0
      %2234 = vmatprep.subr.bf16.mxu0 0
      %2235 = vmatpush1.bf16.msra.mxu0 0
      %2236 = vmatprep.subr.bf16.mxu0 0
      %2237 = vmatpush1.bf16.msra.mxu0 0
      %2238 = vmatprep.subr.bf16.mxu0 0
      %2239 = vmatpush1.bf16.msra.mxu0 0
      %2240 = vmatprep.subr.bf16.mxu0 0
      %2241 = vmatpush1.bf16.msra.mxu0 0
      %2242 = vmatprep.subr.bf16.mxu0 0
      %2243 = vmatpush1.bf16.msra.mxu0 %v2176
      %2244 = vmatprep.subr.bf16.mxu0 0
      %2245 = vmatpush2.bf16.msra.mxu0 0
      %2246 = vmatprep.subr.bf16.mxu0 0
      %2247 = vmatpush2.bf16.msra.mxu0 0
      %2248 = vmatprep.subr.bf16.mxu0 0
      %2249 = vmatpush2.bf16.msra.mxu0 0
      %2250 = vmatprep.subr.bf16.mxu0 0
      %2251 = vmatpush2.bf16.msra.mxu0 0
      %2252 = vmatprep.subr.bf16.mxu0 0
      %2253 = vmatpush2.bf16.msra.mxu0 0
      %2254 = vmatprep.subr.bf16.mxu0 0
      %2255 = vmatpush2.bf16.msra.mxu0 0
      %2256 = vmatprep.subr.bf16.mxu0 0
      %2257 = vmatpush2.bf16.msra.mxu0 0
      %2258 = vmatprep.subr.bf16.mxu0 0
      %2259 = vmatpush2.bf16.msra.mxu0 0
      %2260 = vmatprep.mubr.bf16.mxu0 0
      %2261 = vmatmul.mubr.bf16.gmra.mxu0 %v2183
      %v2262 = vpop.f32.mrf.mxu0
      %v2263 = vadd.f32 0.0, %v2262
      %v2264 = vpop.f32.mrf.mxu0
      %v2265 = vpop.f32.mrf.mxu0
      %v2266 = vadd.f32 0.0, %v2265
      %v2267 = vpop.f32.mrf.mxu0
      %2268 = vdwg.mxu0
      %v2269 = vadd.f32 %v2157, %v2220
      %v2270 = vadd.f32 %v2158, %v2222
      %v2271 = vadd.f32 %v2159, %v2263
      %v2272 = vadd.f32 %v2160, %v2224
      %v2273 = vadd.f32 %v2161, %v2226
      %v2274 = vadd.f32 %v2162, %v2266
      %v2275 = vld [vmem:[%s4] sm:$0xff]
      %v2276 = vld [vmem:[%s4 + $0x8] sm:$0xff]
      %2278 = vset.pattern.permute.xlu0 0
      %2279 = vperm.xlu0 %2278, %v2275
      %v2280 = vpop.permute.xlu0 %2279
      %2283 = vset.pattern.permute.xlu0 0
      %2284 = vperm.xlu0 %2283, %v2276
      %v2285 = vpop.permute.xlu0 %2284
      %v2287 = vadd.f32 %v2269, %v2280
      %v2288 = vadd.f32 %v2270, %v2280
      %v2289 = vadd.f32 %v2271, %v2280
      %v2290 = vadd.f32 %v2272, %v2285
      %v2291 = vadd.f32 %v2273, %v2285
      %v2292 = vadd.f32 %v2274, %v2285
      %v2293 = vmax.f32 %v2287, 0.0
      %v2294 = vmax.f32 %v2288, 0.0
      %v2295 = vmax.f32 %v2289, 0.0
      %v2296 = vmax.f32 %v2290, 0.0
      %v2297 = vmax.f32 %v2291, 0.0
      %v2298 = vmax.f32 %v2292, 0.0
      %v2299 = vpack.c.bf16 %v2296, %v2293
      %v2300 = vpack.c.bf16 %v2297, %v2294
      %v2301 = vpack.c.bf16 %v2298, %v2295
      %v2305 = vunpack.c.l.b16 %v2299
      %v2306 = vunpack.c.l.b16 %v2300
      %v2307 = vunpack.c.l.b16 %v2301
      %v2308 = vunpack.c.h.b16 %v2299
      %v2309 = vunpack.c.h.b16 %v2300
      %v2310 = vunpack.c.h.b16 %v2301
      %v2311 = vpack.c.b16 %v2306, %v2305
      %v2312 = vpack.c.b16 %v2307, %v2307
      %v2313 = vpack.c.b16 %v2309, %v2308
      %v2314 = vpack.c.b16 %v2310, %v2310
      %2319 = vst [vmem:[%s244] sm:$0xff] %v2311
      %vm2320 = vcmask 404480
      %2321 = vst.msk [vmem:[%s244 + $0x8] sm:$0xf] %vm2320, %v2312
      %2322 = vst [vmem:[%s244 + $0xc] sm:$0xff] %v2313
      %2323 = vst.msk [vmem:[%s244 + $0x14] sm:$0xf] %vm2320, %v2314
      %p2324 = scmp.lt.s32.totalorder %s16, 1
      %s2325 = scalar_select %p2324, %s16, 1
      %s2326 = smul.addr %s2325, 6
      %s2327 = smul.addr %s2326, 4
      %s2328 = scalar_lea.vmem %s5, %s2327
      // Predicated region
      $region41: #{conv_3nv1_forward.11} parent=39 // pred_check
        %p2329 = pneg %p149
      $region42: #{conv_3nv1_forward.11} parent=39 // pred_check_branch
        %2331 = sbr.rel (%p2329) target = $region44
      $region43: #{conv_3nv1_forward.11} parent=39 // pred_region
        _
      $region44: #{conv_3nv1_forward.11} parent=39 // pred_fallthru
        _
    $region40: #{conv_3nv1_forward.11} parent=5 // pred_fallthru
      _
    %p2332 = scmp.le.s32.totalorder 2, %s11
    // Predicated region
    $region45: #{conv_3nv1_forward.11} parent=5 // pred_check
      %p2333 = pneg %p2332
    $region46: #{conv_3nv1_forward.11} parent=5 // pred_check_branch
      %2335 = sbr.rel (%p2333) target = $region48
    $region47: #{conv_3nv1_forward.11} parent=5 // pred_region
      %s2336 = ssub.s32 %s11, 2
      // Predicated region
      $region49: #{conv_3nv1_forward.11} parent=47 // pred_check
        %p2337 = pneg %p155
      $region50: #{conv_3nv1_forward.11} parent=47 // pred_check_branch
        %2339 = sbr.rel (%p2337) target = $region52
      $region51: #{conv_3nv1_forward.11} parent=47 // pred_region
        %p2340 = scmp.lt.s32.totalorder %s17, 1
        %s2341 = scalar_select %p2340, %s17, 1
        %s2342 = smul.addr %s2341, 6
        %s2343 = smul.addr %s2342, 4
        %s2344 = scalar_lea.vmem %s5, %s2343
      $region52: #{conv_3nv1_forward.11} parent=47 // pred_fallthru
        _
    $region48: #{conv_3nv1_forward.11} parent=5 // pred_fallthru
      _
  $region6: #{conv_3nv1_forward.11} parent=0 // loop_footer
    %s15 = sadd.s32 1, %s11
  $region7: #{conv_3nv1_forward.11} parent=0 // loop_footer_branch
    %10 = sbr.rel target = $region3
  $region8: #{conv_3nv1_forward.11} parent=0 // loop_exit
    _

// kernel: conv_3nv1_forward.15
$region0: #{conv_3nv1_forward.15}
  #allocation0 [shape = 'u32[]', space=smem, size = 0x4, offset = 0x4, fixed_abs, tag = 'smem constant byte address 0x4 - core index']
  #allocation1 [shape = 'u32[144,128]{1,0:T(1,128)}', space=vmem, size = 0x12000, scoped, tag = 'internal scratch']
  %s0 = inlined_call_operand.vmem [shape: bf16[2,16,120], index: 0, kind: input, shape index: {}]
  %s1 = inlined_call_operand.vmem [shape: bf16[9,16,16], index: 1, kind: input, shape index: {}]
  %s2 = inlined_call_operand.vmem [shape: bf16[2,32,120], index: 2, kind: input, shape index: {}]
  %s3 = inlined_call_operand.vmem [shape: bf16[1,16,32], index: 3, kind: input, shape index: {}]
  %s4 = inlined_call_operand.vmem [shape: f32[16,1], index: 4, kind: input, shape index: {}]
  %s5 = inlined_call_operand.vmem [shape: f32[2,16,90], index: 5, kind: output, shape index: {}]
  %s6 = sld [smem:[#allocation0]]
  $region53: #{conv_3nv1_forward.15} parent=0
    _
  %s8 = ssub.s32 1, %s6
  %s9 = scalar_select 0, %s8, %s6
  loop: start=0, step=1, limit=4
  $region2: #{conv_3nv1_forward.15} parent=0 // loop_pre_header
    _
  $region3: #{conv_3nv1_forward.15} parent=0 // loop_header
    %s11 = sphi 0, %s15
    %p12 = scmp.ge.s32.totalorder %s11, 4
    %s21 = sphi 0, %s23
    %s24 = sphi 0, %s21
    %s25 = sphi 0, %s24
    %s41 = sphi 0, %s25
    %s45 = sphi 0, %s45
    %s47 = sphi 0, %s45
    %s48 = sphi 0, %s47
    %s62 = sphi 0, %s48
    %s68 = sphi 0, %s70
    %s71 = sphi 0, %s68
    %s72 = sphi 0, %s71
    %s88 = sphi 0, %s72
    %s92 = sphi 0, %s92
    %s94 = sphi 0, %s92
    %s95 = sphi 0, %s94
    %s109 = sphi 0, %s95
    %s113 = sphi 0, %s113
    %s115 = sphi 0, %s113
    %s116 = sphi 0, %s115
    %s130 = sphi 0, %s116
    %s136 = sphi 0, %s138
    %s139 = sphi 0, %s136
    %s140 = sphi 0, %s139
    %s156 = sphi 0, %s140
  $region4: #{conv_3nv1_forward.15} parent=0 // loop_header_branch
    %14 = sbr.rel (%p12) target = $region8
  $region5: #{conv_3nv1_forward.15} parent=0 // loop_body
    %s16 = ssub.s32 %s11, 1
    %s17 = ssub.s32 %s11, 2
    %s18 = sadd.s32 %s11, 1
    %s19 = ssub.s32 %s11, %s18
    %p20 = scmp.eq.s32.totalorder %s19, 0
    %s22 = sadd.s32 %s21, 1
    %s23 = scalar_select %p20, %s21, %s22
    %p26 = pneg %p20
    %p27 = scmp.eq.s32.totalorder %s11, 1
    %p28 = por %p26, %p27
    %p29 = scmp.ne.s32.totalorder %s21, %s24
    %p30 = scmp.eq.s32.totalorder %s11, 0
    %p31 = por %p29, %p30
    %p32 = scmp.ne.s32.totalorder %s21, %s24
    %p33 = scmp.eq.s32.totalorder %s16, 1
    %p34 = por %p32, %p33
    %p35 = scmp.ne.s32.totalorder %s24, %s25
    %p36 = scmp.eq.s32.totalorder %s16, 0
    %p37 = por %p35, %p36
    %p38 = scmp.ne.s32.totalorder %s24, %s25
    %p39 = scmp.eq.s32.totalorder %s17, 1
    %p40 = por %p38, %p39
    %p42 = scmp.ne.s32.totalorder %s25, %s41
    %p43 = scmp.eq.s32.totalorder %s17, 0
    %p44 = por %p42, %p43
    %s46 = sadd.s32 %s45, 1
    %p49 = scmp.eq.s32.totalorder %s11, 1
    %p50 = scmp.ne.s32.totalorder %s45, %s47
    %p51 = scmp.eq.s32.totalorder %s11, 0
    %p52 = por %p50, %p51
    %p53 = scmp.ne.s32.totalorder %s45, %s47
    %p54 = scmp.eq.s32.totalorder %s16, 1
    %p55 = por %p53, %p54
    %p56 = scmp.ne.s32.totalorder %s47, %s48
    %p57 = scmp.eq.s32.totalorder %s16, 0
    %p58 = por %p56, %p57
    %p59 = scmp.ne.s32.totalorder %s47, %s48
    %p60 = scmp.eq.s32.totalorder %s17, 1
    %p61 = por %p59, %p60
    %p63 = scmp.ne.s32.totalorder %s48, %s62
    %p64 = scmp.eq.s32.totalorder %s17, 0
    %p65 = por %p63, %p64
    %s66 = ssub.s32 %s11, %s18
    %p67 = scmp.eq.s32.totalorder %s66, 0
    %s69 = sadd.s32 %s68, 1
    %s70 = scalar_select %p67, %s68, %s69
    %p73 = pneg %p67
    %p74 = scmp.eq.s32.totalorder %s11, 1
    %p75 = por %p73, %p74
    %p76 = scmp.ne.s32.totalorder %s68, %s71
    %p77 = scmp.eq.s32.totalorder %s11, 0
    %p78 = por %p76, %p77
    %p79 = scmp.ne.s32.totalorder %s68, %s71
    %p80 = scmp.eq.s32.totalorder %s16, 1
    %p81 = por %p79, %p80
    %p82 = scmp.ne.s32.totalorder %s71, %s72
    %p83 = scmp.eq.s32.totalorder %s16, 0
    %p84 = por %p82, %p83
    %p85 = scmp.ne.s32.totalorder %s71, %s72
    %p86 = scmp.eq.s32.totalorder %s17, 1
    %p87 = por %p85, %p86
    %p89 = scmp.ne.s32.totalorder %s72, %s88
    %p90 = scmp.eq.s32.totalorder %s17, 0
    %p91 = por %p89, %p90
    %s93 = sadd.s32 %s92, 1
    %p96 = scmp.eq.s32.totalorder %s11, 1
    %p97 = scmp.ne.s32.totalorder %s92, %s94
    %p98 = scmp.eq.s32.totalorder %s11, 0
    %p99 = por %p97, %p98
    %p100 = scmp.ne.s32.totalorder %s92, %s94
    %p101 = scmp.eq.s32.totalorder %s16, 1
    %p102 = por %p100, %p101
    %p103 = scmp.ne.s32.totalorder %s94, %s95
    %p104 = scmp.eq.s32.totalorder %s16, 0
    %p105 = por %p103, %p104
    %p106 = scmp.ne.s32.totalorder %s94, %s95
    %p107 = scmp.eq.s32.totalorder %s17, 1
    %p108 = por %p106, %p107
    %p110 = scmp.ne.s32.totalorder %s95, %s109
    %p111 = scmp.eq.s32.totalorder %s17, 0
    %p112 = por %p110, %p111
    %s114 = sadd.s32 %s113, 1
    %p117 = scmp.eq.s32.totalorder %s11, 1
    %p118 = scmp.ne.s32.totalorder %s113, %s115
    %p119 = scmp.eq.s32.totalorder %s11, 0
    %p120 = por %p118, %p119
    %p121 = scmp.ne.s32.totalorder %s113, %s115
    %p122 = scmp.eq.s32.totalorder %s16, 1
    %p123 = por %p121, %p122
    %p124 = scmp.ne.s32.totalorder %s115, %s116
    %p125 = scmp.eq.s32.totalorder %s16, 0
    %p126 = por %p124, %p125
    %p127 = scmp.ne.s32.totalorder %s115, %s116
    %p128 = scmp.eq.s32.totalorder %s17, 1
    %p129 = por %p127, %p128
    %p131 = scmp.ne.s32.totalorder %s116, %s130
    %p132 = scmp.eq.s32.totalorder %s17, 0
    %p133 = por %p131, %p132
    %s134 = ssub.s32 %s11, %s18
    %p135 = scmp.eq.s32.totalorder %s134, 0
    %s137 = sadd.s32 %s136, 1
    %s138 = scalar_select %p135, %s136, %s137
    %p141 = pneg %p135
    %p142 = scmp.eq.s32.totalorder %s11, 1
    %p143 = por %p141, %p142
    %p144 = scmp.ne.s32.totalorder %s136, %s139
    %p145 = scmp.eq.s32.totalorder %s11, 0
    %p146 = por %p144, %p145
    %p147 = scmp.ne.s32.totalorder %s136, %s139
    %p148 = scmp.eq.s32.totalorder %s16, 1
    %p149 = por %p147, %p148
    %p150 = scmp.ne.s32.totalorder %s139, %s140
    %p151 = scmp.eq.s32.totalorder %s16, 0
    %p152 = por %p150, %p151
    %p153 = scmp.ne.s32.totalorder %s139, %s140
    %p154 = scmp.eq.s32.totalorder %s17, 1
    %p155 = por %p153, %p154
    %p157 = scmp.ne.s32.totalorder %s140, %s156
    %p158 = scmp.eq.s32.totalorder %s17, 0
    %p159 = por %p157, %p158
    %p160 = scmp.le.s32.totalorder 1, %s11
    %p161 = scmp.lt.s32.totalorder %s11, 3
    %p162 = pnand %p160, %p161
    %p163 = pneg %p162
    // Predicated region
    $region9: #{conv_3nv1_forward.15} parent=5 // pred_check
      _
    $region10: #{conv_3nv1_forward.15} parent=5 // pred_check_branch
      %165 = sbr.rel (%p162) target = $region12
    $region11: #{conv_3nv1_forward.15} parent=5 // pred_region
      %s166 = ssub.s32 %s11, 1
      // Predicated region
      $region13: #{conv_3nv1_forward.15} parent=11 // pred_check
        %p167 = pneg %p58
      $region14: #{conv_3nv1_forward.15} parent=11 // pred_check_branch
        %169 = sbr.rel (%p167) target = $region16
      $region15: #{conv_3nv1_forward.15} parent=11 // pred_region
        _
      $region16: #{conv_3nv1_forward.15} parent=11 // pred_fallthru
        _
      // Predicated region
      $region17: #{conv_3nv1_forward.15} parent=11 // pred_check
        %p170 = pneg %p105
      $region18: #{conv_3nv1_forward.15} parent=11 // pred_check_branch
        %172 = sbr.rel (%p170) target = $region20
      $region19: #{conv_3nv1_forward.15} parent=11 // pred_region
        _
      $region20: #{conv_3nv1_forward.15} parent=11 // pred_fallthru
        _
      // Predicated region
      $region21: #{conv_3nv1_forward.15} parent=11 // pred_check
        %p173 = pneg %p126
      $region22: #{conv_3nv1_forward.15} parent=11 // pred_check_branch
        %175 = sbr.rel (%p173) target = $region24
      $region23: #{conv_3nv1_forward.15} parent=11 // pred_region
        _
      $region24: #{conv_3nv1_forward.15} parent=11 // pred_fallthru
        _
    $region12: #{conv_3nv1_forward.15} parent=5 // pred_fallthru
      _
    %p176 = scmp.lt.s32.totalorder %s11, 2
    // Predicated region
    $region25: #{conv_3nv1_forward.15} parent=5 // pred_check
      %p177 = pneg %p176
    $region26: #{conv_3nv1_forward.15} parent=5 // pred_check_branch
      %179 = sbr.rel (%p177) target = $region28
    $region27: #{conv_3nv1_forward.15} parent=5 // pred_region
      // Predicated region
      $region29: #{conv_3nv1_forward.15} parent=27 // pred_check
        %p180 = pneg %p31
      $region30: #{conv_3nv1_forward.15} parent=27 // pred_check_branch
        %182 = sbr.rel (%p180) target = $region32
      $region31: #{conv_3nv1_forward.15} parent=27 // pred_region
        %p183 = scmp.lt.s32.totalorder %s11, 1
        %s184 = scalar_select %p183, %s11, 1
        %s185 = smul.addr %s184, 2
        %s186 = smul.addr %s185, 4
        %s187 = scalar_lea.vmem %s0, %s186
      $region32: #{conv_3nv1_forward.15} parent=27 // pred_fallthru
        _
      // Predicated region
      $region33: #{conv_3nv1_forward.15} parent=27 // pred_check
        %p188 = pneg %p78
      $region34: #{conv_3nv1_forward.15} parent=27 // pred_check_branch
        %190 = sbr.rel (%p188) target = $region36
      $region35: #{conv_3nv1_forward.15} parent=27 // pred_region
        %p191 = scmp.lt.s32.totalorder %s11, 1
        %s192 = scalar_select %p191, %s11, 1
        %s193 = smul.addr %s192, 4
        %s194 = smul.addr %s193, 4
        %s195 = scalar_lea.vmem %s2, %s194
      $region36: #{conv_3nv1_forward.15} parent=27 // pred_fallthru
        _
    $region28: #{conv_3nv1_forward.15} parent=5 // pred_fallthru
      _
    %p196 = scmp.le.s32.totalorder 1, %s11
    %p197 = scmp.lt.s32.totalorder %s11, 3
    %p198 = pnand %p196, %p197
    %p199 = pneg %p198
    // Predicated region
    $region37: #{conv_3nv1_forward.15} parent=5 // pred_check
      _
    $region38: #{conv_3nv1_forward.15} parent=5 // pred_check_branch
      %201 = sbr.rel (%p198) target = $region40
    $region39: #{conv_3nv1_forward.15} parent=5 // pred_region
      %s202 = ssub.s32 %s11, 1
      %p203 = scmp.lt.s32.totalorder %s16, 1
      %s204 = scalar_select %p203, %s16, 1
      %s205 = smul.addr %s204, 2
      %s206 = smul.addr %s205, 4
      %s207 = scalar_lea.vmem %s0, %s206
      %p208 = pneg %p37
      %p209 = pneg %p34
      %p210 = pneg %p58
      %p211 = pneg %p55
      %p212 = scmp.lt.s32.totalorder %s16, 1
      %s213 = scalar_select %p212, %s16, 1
      %s214 = smul.addr %s213, 4
      %s215 = smul.addr %s214, 4
      %s216 = scalar_lea.vmem %s2, %s215
      %p217 = pneg %p84
      %p218 = pneg %p81
      %p219 = pneg %p105
      %p220 = pneg %p102
      %p221 = pneg %p126
      %p222 = pneg %p123
      %p223 = pneg %p152
      %p224 = pneg %p149
      %p225 = scmp.lt.s32.totalorder %s16, 1
      %s226 = scalar_select %p225, %s16, 1
      %s227 = smul.addr %s226, 2
      %s228 = smul.addr %s227, 8
      %s229 = scalar_lea.vmem %s5, %s228
      %p230 = scmp.lt.s32.totalorder %s16, 1
      %s231 = scalar_select %p230, %s16, 1
      %s232 = smul.addr %s231, 2
      %s233 = smul.addr %s232, 4
      %s234 = scalar_lea.vmem %s0, %s233
      %p235 = scmp.lt.s32.totalorder %s16, 1
      %s236 = scalar_select %p235, %s16, 1
      %s237 = smul.addr %s236, 4
      %s238 = smul.addr %s237, 4
      %s239 = scalar_lea.vmem %s2, %s238
      %p240 = scmp.lt.s32.totalorder %s16, 1
      %s241 = scalar_select %p240, %s16, 1
      %s242 = smul.addr %s241, 2
      %s243 = smul.addr %s242, 8
      %s244 = scalar_lea.vmem %s5, %s243
      %v246 = vld [vmem:[%s234] sm:$0xf]
      %v247 = vld [vmem:[%s234 + $0x4] sm:$0xf]
      %v248 = vld [vmem:[%s1] sm:$0xf]
      %v249 = vld [vmem:[%s1 + $0x4] sm:$0xf]
      %s250 = scalar_lea.vmem %s1, 8
      %v251 = vld [vmem:[%s250] sm:$0xf]
      %v252 = vld [vmem:[%s250 + $0x4] sm:$0xf]
      %v255 = vunpack.c.l.b16 %v251
      %v256 = vunpack.c.l.b16 %v252
      %v257 = vpack.c.b16 %v256, %v255
      %v260 = vunpack.c.l.b16 %v246
      %v261 = vunpack.c.l.b16 %v247
      %v262 = vpack.c.b16 %v261, %v260
      %263 = vrot.lane.b32.xlu0 %v262, 127
      %v264 = vpop.permute.xlu0 %263
      %vm266 = vcmask 130048
      %v268 = vsel %vm266, %v257, 0
      %270 = vmatprep.subr.bf16.mxu0 0
      %271 = vmatpush1.bf16.msra.mxu0 0
      %272 = vmatprep.subr.bf16.mxu0 0
      %273 = vmatpush1.bf16.msra.mxu0 0
      %274 = vmatprep.subr.bf16.mxu0 0
      %275 = vmatpush1.bf16.msra.mxu0 0
      %276 = vmatprep.subr.bf16.mxu0 0
      %277 = vmatpush1.bf16.msra.mxu0 0
      %278 = vmatprep.subr.bf16.mxu0 0
      %279 = vmatpush1.bf16.msra.mxu0 0
      %280 = vmatprep.subr.bf16.mxu0 0
      %281 = vmatpush1.bf16.msra.mxu0 0
      %282 = vmatprep.subr.bf16.mxu0 0
      %283 = vmatpush1.bf16.msra.mxu0 0
      %284 = vmatprep.subr.bf16.mxu0 0
      %285 = vmatpush1.bf16.msra.mxu0 %v264
      %286 = vmatprep.subr.bf16.mxu0 0
      %287 = vmatpush2.bf16.msra.mxu0 0
      %288 = vmatprep.subr.bf16.mxu0 0
      %289 = vmatpush2.bf16.msra.mxu0 0
      %290 = vmatprep.subr.bf16.mxu0 0
      %291 = vmatpush2.bf16.msra.mxu0 0
      %292 = vmatprep.subr.bf16.mxu0 0
      %293 = vmatpush2.bf16.msra.mxu0 0
      %294 = vmatprep.subr.bf16.mxu0 0
      %295 = vmatpush2.bf16.msra.mxu0 0
      %296 = vmatprep.subr.bf16.mxu0 0
      %297 = vmatpush2.bf16.msra.mxu0 0
      %298 = vmatprep.subr.bf16.mxu0 0
      %299 = vmatpush2.bf16.msra.mxu0 0
      %300 = vmatprep.subr.bf16.mxu0 0
      %301 = vmatpush2.bf16.msra.mxu0 0
      %302 = vmatprep.mubr.bf16.mxu0 0
      %303 = vmatmul.mubr.bf16.gmra.mxu0 %v268
      %v304 = vpop.f32.mrf.mxu0
      %v305 = vadd.f32 0.0, %v304
      %v306 = vpop.f32.mrf.mxu0
      %v307 = vpop.f32.mrf.mxu0
      %v308 = vadd.f32 0.0, %v307
      %v309 = vpop.f32.mrf.mxu0
      %310 = vdwg.mxu0
      %v313 = vunpack.c.l.b16 %v248
      %v314 = vunpack.c.l.b16 %v249
      %v315 = vpack.c.b16 %v314, %v313
      %v318 = vsel %vm266, %v315, 0
      %320 = vmatprep.subr.bf16.mxu0 0
      %321 = vmatpush1.bf16.msra.mxu0 0
      %322 = vmatprep.subr.bf16.mxu0 0
      %323 = vmatpush1.bf16.msra.mxu0 0
      %324 = vmatprep.subr.bf16.mxu0 0
      %325 = vmatpush1.bf16.msra.mxu0 0
      %326 = vmatprep.subr.bf16.mxu0 0
      %327 = vmatpush1.bf16.msra.mxu0 0
      %328 = vmatprep.subr.bf16.mxu0 0
      %329 = vmatpush1.bf16.msra.mxu0 0
      %330 = vmatprep.subr.bf16.mxu0 0
      %331 = vmatpush1.bf16.msra.mxu0 0
      %332 = vmatprep.subr.bf16.mxu0 0
      %333 = vmatpush1.bf16.msra.mxu0 0
      %334 = vmatprep.subr.bf16.mxu0 0
      %335 = vmatpush1.bf16.msra.mxu0 %v262
      %336 = vmatprep.subr.bf16.mxu0 0
      %337 = vmatpush2.bf16.msra.mxu0 0
      %338 = vmatprep.subr.bf16.mxu0 0
      %339 = vmatpush2.bf16.msra.mxu0 0
      %340 = vmatprep.subr.bf16.mxu0 0
      %341 = vmatpush2.bf16.msra.mxu0 0
      %342 = vmatprep.subr.bf16.mxu0 0
      %343 = vmatpush2.bf16.msra.mxu0 0
      %344 = vmatprep.subr.bf16.mxu0 0
      %345 = vmatpush2.bf16.msra.mxu0 0
      %346 = vmatprep.subr.bf16.mxu0 0
      %347 = vmatpush2.bf16.msra.mxu0 0
      %348 = vmatprep.subr.bf16.mxu0 0
      %349 = vmatpush2.bf16.msra.mxu0 0
      %350 = vmatprep.subr.bf16.mxu0 0
      %351 = vmatpush2.bf16.msra.mxu0 0
      %352 = vmatprep.mubr.bf16.mxu0 0
      %353 = vmatmul.mubr.bf16.gmra.mxu0 %v318
      %v354 = vpop.f32.mrf.mxu0
      %v355 = vadd.f32 %v305, %v354
      %v356 = vpop.f32.mrf.mxu0
      %v357 = vpop.f32.mrf.mxu0
      %v358 = vadd.f32 %v308, %v357
      %v359 = vpop.f32.mrf.mxu0
      %360 = vdwg.mxu0
      %s361 = scalar_lea.vmem %s1, 16
      %v362 = vld [vmem:[%s361] sm:$0xf]
      %v363 = vld [vmem:[%s361 + $0x4] sm:$0xf]
      %v366 = vunpack.c.l.b16 %v362
      %v367 = vunpack.c.l.b16 %v363
      %v368 = vpack.c.b16 %v367, %v366
      %369 = vrot.lane.b32.xlu0 %v262, 126
      %v370 = vpop.permute.xlu0 %369
      %v373 = vsel %vm266, %v368, 0
      %375 = vmatprep.subr.bf16.mxu0 0
      %376 = vmatpush1.bf16.msra.mxu0 0
      %377 = vmatprep.subr.bf16.mxu0 0
      %378 = vmatpush1.bf16.msra.mxu0 0
      %379 = vmatprep.subr.bf16.mxu0 0
      %380 = vmatpush1.bf16.msra.mxu0 0
      %381 = vmatprep.subr.bf16.mxu0 0
      %382 = vmatpush1.bf16.msra.mxu0 0
      %383 = vmatprep.subr.bf16.mxu0 0
      %384 = vmatpush1.bf16.msra.mxu0 0
      %385 = vmatprep.subr.bf16.mxu0 0
      %386 = vmatpush1.bf16.msra.mxu0 0
      %387 = vmatprep.subr.bf16.mxu0 0
      %388 = vmatpush1.bf16.msra.mxu0 0
      %389 = vmatprep.subr.bf16.mxu0 0
      %390 = vmatpush1.bf16.msra.mxu0 %v370
      %391 = vmatprep.subr.bf16.mxu0 0
      %392 = vmatpush2.bf16.msra.mxu0 0
      %393 = vmatprep.subr.bf16.mxu0 0
      %394 = vmatpush2.bf16.msra.mxu0 0
      %395 = vmatprep.subr.bf16.mxu0 0
      %396 = vmatpush2.bf16.msra.mxu0 0
      %397 = vmatprep.subr.bf16.mxu0 0
      %398 = vmatpush2.bf16.msra.mxu0 0
      %399 = vmatprep.subr.bf16.mxu0 0
      %400 = vmatpush2.bf16.msra.mxu0 0
      %401 = vmatprep.subr.bf16.mxu0 0
      %402 = vmatpush2.bf16.msra.mxu0 0
      %403 = vmatprep.subr.bf16.mxu0 0
      %404 = vmatpush2.bf16.msra.mxu0 0
      %405 = vmatprep.subr.bf16.mxu0 0
      %406 = vmatpush2.bf16.msra.mxu0 0
      %407 = vmatprep.mubr.bf16.mxu0 0
      %408 = vmatmul.mubr.bf16.gmra.mxu0 %v373
      %v409 = vpop.f32.mrf.mxu0
      %v410 = vadd.f32 0.0, %v409
      %v411 = vpop.f32.mrf.mxu0
      %v412 = vpop.f32.mrf.mxu0
      %v413 = vadd.f32 0.0, %v412
      %v414 = vpop.f32.mrf.mxu0
      %415 = vdwg.mxu0
      %v416 = vadd.f32 %v355, %v410
      %v417 = vadd.f32 %v358, %v413
      %s418 = scalar_lea.vmem %s1, 24
      %v419 = vld [vmem:[%s418] sm:$0xf]
      %v420 = vld [vmem:[%s418 + $0x4] sm:$0xf]
      %v423 = vunpack.c.l.b16 %v419
      %v424 = vunpack.c.l.b16 %v420
      %v425 = vpack.c.b16 %v424, %v423
      %426 = vrot.lane.b32.xlu0 %v262, 118
      %v427 = vpop.permute.xlu0 %426
      %v430 = vsel %vm266, %v425, 0
      %432 = vmatprep.subr.bf16.mxu0 0
      %433 = vmatpush1.bf16.msra.mxu0 0
      %434 = vmatprep.subr.bf16.mxu0 0
      %435 = vmatpush1.bf16.msra.mxu0 0
      %436 = vmatprep.subr.bf16.mxu0 0
      %437 = vmatpush1.bf16.msra.mxu0 0
      %438 = vmatprep.subr.bf16.mxu0 0
      %439 = vmatpush1.bf16.msra.mxu0 0
      %440 = vmatprep.subr.bf16.mxu0 0
      %441 = vmatpush1.bf16.msra.mxu0 0
      %442 = vmatprep.subr.bf16.mxu0 0
      %443 = vmatpush1.bf16.msra.mxu0 0
      %444 = vmatprep.subr.bf16.mxu0 0
      %445 = vmatpush1.bf16.msra.mxu0 0
      %446 = vmatprep.subr.bf16.mxu0 0
      %447 = vmatpush1.bf16.msra.mxu0 %v427
      %448 = vmatprep.subr.bf16.mxu0 0
      %449 = vmatpush2.bf16.msra.mxu0 0
      %450 = vmatprep.subr.bf16.mxu0 0
      %451 = vmatpush2.bf16.msra.mxu0 0
      %452 = vmatprep.subr.bf16.mxu0 0
      %453 = vmatpush2.bf16.msra.mxu0 0
      %454 = vmatprep.subr.bf16.mxu0 0
      %455 = vmatpush2.bf16.msra.mxu0 0
      %456 = vmatprep.subr.bf16.mxu0 0
      %457 = vmatpush2.bf16.msra.mxu0 0
      %458 = vmatprep.subr.bf16.mxu0 0
      %459 = vmatpush2.bf16.msra.mxu0 0
      %460 = vmatprep.subr.bf16.mxu0 0
      %461 = vmatpush2.bf16.msra.mxu0 0
      %462 = vmatprep.subr.bf16.mxu0 0
      %463 = vmatpush2.bf16.msra.mxu0 0
      %464 = vmatprep.mubr.bf16.mxu0 0
      %465 = vmatmul.mubr.bf16.gmra.mxu0 %v430
      %v466 = vpop.f32.mrf.mxu0
      %v467 = vadd.f32 0.0, %v466
      %v468 = vpop.f32.mrf.mxu0
      %v469 = vpop.f32.mrf.mxu0
      %v470 = vadd.f32 0.0, %v469
      %v471 = vpop.f32.mrf.mxu0
      %472 = vdwg.mxu0
      %v473 = vadd.f32 %v416, %v467
      %v474 = vadd.f32 %v417, %v470
      %s475 = scalar_lea.vmem %s1, 32
      %v476 = vld [vmem:[%s475] sm:$0xf]
      %v477 = vld [vmem:[%s475 + $0x4] sm:$0xf]
      %v480 = vunpack.c.l.b16 %v476
      %v481 = vunpack.c.l.b16 %v477
      %v482 = vpack.c.b16 %v481, %v480
      %483 = vrot.lane.b32.xlu0 %v262, 117
      %v484 = vpop.permute.xlu0 %483
      %v487 = vsel %vm266, %v482, 0
      %489 = vmatprep.subr.bf16.mxu0 0
      %490 = vmatpush1.bf16.msra.mxu0 0
      %491 = vmatprep.subr.bf16.mxu0 0
      %492 = vmatpush1.bf16.msra.mxu0 0
      %493 = vmatprep.subr.bf16.mxu0 0
      %494 = vmatpush1.bf16.msra.mxu0 0
      %495 = vmatprep.subr.bf16.mxu0 0
      %496 = vmatpush1.bf16.msra.mxu0 0
      %497 = vmatprep.subr.bf16.mxu0 0
      %498 = vmatpush1.bf16.msra.mxu0 0
      %499 = vmatprep.subr.bf16.mxu0 0
      %500 = vmatpush1.bf16.msra.mxu0 0
      %501 = vmatprep.subr.bf16.mxu0 0
      %502 = vmatpush1.bf16.msra.mxu0 0
      %503 = vmatprep.subr.bf16.mxu0 0
      %504 = vmatpush1.bf16.msra.mxu0 %v484
      %505 = vmatprep.subr.bf16.mxu0 0
      %506 = vmatpush2.bf16.msra.mxu0 0
      %507 = vmatprep.subr.bf16.mxu0 0
      %508 = vmatpush2.bf16.msra.mxu0 0
      %509 = vmatprep.subr.bf16.mxu0 0
      %510 = vmatpush2.bf16.msra.mxu0 0
      %511 = vmatprep.subr.bf16.mxu0 0
      %512 = vmatpush2.bf16.msra.mxu0 0
      %513 = vmatprep.subr.bf16.mxu0 0
      %514 = vmatpush2.bf16.msra.mxu0 0
      %515 = vmatprep.subr.bf16.mxu0 0
      %516 = vmatpush2.bf16.msra.mxu0 0
      %517 = vmatprep.subr.bf16.mxu0 0
      %518 = vmatpush2.bf16.msra.mxu0 0
      %519 = vmatprep.subr.bf16.mxu0 0
      %520 = vmatpush2.bf16.msra.mxu0 0
      %521 = vmatprep.mubr.bf16.mxu0 0
      %522 = vmatmul.mubr.bf16.gmra.mxu0 %v487
      %v523 = vpop.f32.mrf.mxu0
      %v524 = vadd.f32 0.0, %v523
      %v525 = vpop.f32.mrf.mxu0
      %v526 = vpop.f32.mrf.mxu0
      %v527 = vadd.f32 0.0, %v526
      %v528 = vpop.f32.mrf.mxu0
      %529 = vdwg.mxu0
      %v530 = vadd.f32 %v473, %v524
      %v531 = vadd.f32 %v474, %v527
      %s532 = scalar_lea.vmem %s1, 40
      %v533 = vld [vmem:[%s532] sm:$0xf]
      %v534 = vld [vmem:[%s532 + $0x4] sm:$0xf]
      %v537 = vunpack.c.l.b16 %v533
      %v538 = vunpack.c.l.b16 %v534
      %v539 = vpack.c.b16 %v538, %v537
      %540 = vrot.lane.b32.xlu0 %v262, 116
      %v541 = vpop.permute.xlu0 %540
      %v544 = vsel %vm266, %v539, 0
      %546 = vmatprep.subr.bf16.mxu0 0
      %547 = vmatpush1.bf16.msra.mxu0 0
      %548 = vmatprep.subr.bf16.mxu0 0
      %549 = vmatpush1.bf16.msra.mxu0 0
      %550 = vmatprep.subr.bf16.mxu0 0
      %551 = vmatpush1.bf16.msra.mxu0 0
      %552 = vmatprep.subr.bf16.mxu0 0
      %553 = vmatpush1.bf16.msra.mxu0 0
      %554 = vmatprep.subr.bf16.mxu0 0
      %555 = vmatpush1.bf16.msra.mxu0 0
      %556 = vmatprep.subr.bf16.mxu0 0
      %557 = vmatpush1.bf16.msra.mxu0 0
      %558 = vmatprep.subr.bf16.mxu0 0
      %559 = vmatpush1.bf16.msra.mxu0 0
      %560 = vmatprep.subr.bf16.mxu0 0
      %561 = vmatpush1.bf16.msra.mxu0 %v541
      %562 = vmatprep.subr.bf16.mxu0 0
      %563 = vmatpush2.bf16.msra.mxu0 0
      %564 = vmatprep.subr.bf16.mxu0 0
      %565 = vmatpush2.bf16.msra.mxu0 0
      %566 = vmatprep.subr.bf16.mxu0 0
      %567 = vmatpush2.bf16.msra.mxu0 0
      %568 = vmatprep.subr.bf16.mxu0 0
      %569 = vmatpush2.bf16.msra.mxu0 0
      %570 = vmatprep.subr.bf16.mxu0 0
      %571 = vmatpush2.bf16.msra.mxu0 0
      %572 = vmatprep.subr.bf16.mxu0 0
      %573 = vmatpush2.bf16.msra.mxu0 0
      %574 = vmatprep.subr.bf16.mxu0 0
      %575 = vmatpush2.bf16.msra.mxu0 0
      %576 = vmatprep.subr.bf16.mxu0 0
      %577 = vmatpush2.bf16.msra.mxu0 0
      %578 = vmatprep.mubr.bf16.mxu0 0
      %579 = vmatmul.mubr.bf16.gmra.mxu0 %v544
      %v580 = vpop.f32.mrf.mxu0
      %v581 = vadd.f32 0.0, %v580
      %v582 = vpop.f32.mrf.mxu0
      %v583 = vpop.f32.mrf.mxu0
      %v584 = vadd.f32 0.0, %v583
      %v585 = vpop.f32.mrf.mxu0
      %586 = vdwg.mxu0
      %v587 = vadd.f32 %v530, %v581
      %v588 = vadd.f32 %v531, %v584
      %s589 = scalar_lea.vmem %s1, 48
      %v590 = vld [vmem:[%s589] sm:$0xf]
      %v591 = vld [vmem:[%s589 + $0x4] sm:$0xf]
      %v594 = vunpack.c.l.b16 %v590
      %v595 = vunpack.c.l.b16 %v591
      %v596 = vpack.c.b16 %v595, %v594
      %597 = vrot.lane.b32.xlu0 %v262, 108
      %v598 = vpop.permute.xlu0 %597
      %v601 = vsel %vm266, %v596, 0
      %603 = vmatprep.subr.bf16.mxu0 0
      %604 = vmatpush1.bf16.msra.mxu0 0
      %605 = vmatprep.subr.bf16.mxu0 0
      %606 = vmatpush1.bf16.msra.mxu0 0
      %607 = vmatprep.subr.bf16.mxu0 0
      %608 = vmatpush1.bf16.msra.mxu0 0
      %609 = vmatprep.subr.bf16.mxu0 0
      %610 = vmatpush1.bf16.msra.mxu0 0
      %611 = vmatprep.subr.bf16.mxu0 0
      %612 = vmatpush1.bf16.msra.mxu0 0
      %613 = vmatprep.subr.bf16.mxu0 0
      %614 = vmatpush1.bf16.msra.mxu0 0
      %615 = vmatprep.subr.bf16.mxu0 0
      %616 = vmatpush1.bf16.msra.mxu0 0
      %617 = vmatprep.subr.bf16.mxu0 0
      %618 = vmatpush1.bf16.msra.mxu0 %v598
      %619 = vmatprep.subr.bf16.mxu0 0
      %620 = vmatpush2.bf16.msra.mxu0 0
      %621 = vmatprep.subr.bf16.mxu0 0
      %622 = vmatpush2.bf16.msra.mxu0 0
      %623 = vmatprep.subr.bf16.mxu0 0
      %624 = vmatpush2.bf16.msra.mxu0 0
      %625 = vmatprep.subr.bf16.mxu0 0
      %626 = vmatpush2.bf16.msra.mxu0 0
      %627 = vmatprep.subr.bf16.mxu0 0
      %628 = vmatpush2.bf16.msra.mxu0 0
      %629 = vmatprep.subr.bf16.mxu0 0
      %630 = vmatpush2.bf16.msra.mxu0 0
      %631 = vmatprep.subr.bf16.mxu0 0
      %632 = vmatpush2.bf16.msra.mxu0 0
      %633 = vmatprep.subr.bf16.mxu0 0
      %634 = vmatpush2.bf16.msra.mxu0 0
      %635 = vmatprep.mubr.bf16.mxu0 0
      %636 = vmatmul.mubr.bf16.gmra.mxu0 %v601
      %v637 = vpop.f32.mrf.mxu0
      %v638 = vadd.f32 0.0, %v637
      %v639 = vpop.f32.mrf.mxu0
      %v640 = vpop.f32.mrf.mxu0
      %v641 = vadd.f32 0.0, %v640
      %v642 = vpop.f32.mrf.mxu0
      %643 = vdwg.mxu0
      %v644 = vadd.f32 %v587, %v638
      %v645 = vadd.f32 %v588, %v641
      %s646 = scalar_lea.vmem %s1, 56
      %v647 = vld [vmem:[%s646] sm:$0xf]
      %v648 = vld [vmem:[%s646 + $0x4] sm:$0xf]
      %v651 = vunpack.c.l.b16 %v647
      %v652 = vunpack.c.l.b16 %v648
      %v653 = vpack.c.b16 %v652, %v651
      %654 = vrot.lane.b32.xlu0 %v262, 107
      %v655 = vpop.permute.xlu0 %654
      %v658 = vsel %vm266, %v653, 0
      %660 = vmatprep.subr.bf16.mxu0 0
      %661 = vmatpush1.bf16.msra.mxu0 0
      %662 = vmatprep.subr.bf16.mxu0 0
      %663 = vmatpush1.bf16.msra.mxu0 0
      %664 = vmatprep.subr.bf16.mxu0 0
      %665 = vmatpush1.bf16.msra.mxu0 0
      %666 = vmatprep.subr.bf16.mxu0 0
      %667 = vmatpush1.bf16.msra.mxu0 0
      %668 = vmatprep.subr.bf16.mxu0 0
      %669 = vmatpush1.bf16.msra.mxu0 0
      %670 = vmatprep.subr.bf16.mxu0 0
      %671 = vmatpush1.bf16.msra.mxu0 0
      %672 = vmatprep.subr.bf16.mxu0 0
      %673 = vmatpush1.bf16.msra.mxu0 0
      %674 = vmatprep.subr.bf16.mxu0 0
      %675 = vmatpush1.bf16.msra.mxu0 %v655
      %676 = vmatprep.subr.bf16.mxu0 0
      %677 = vmatpush2.bf16.msra.mxu0 0
      %678 = vmatprep.subr.bf16.mxu0 0
      %679 = vmatpush2.bf16.msra.mxu0 0
      %680 = vmatprep.subr.bf16.mxu0 0
      %681 = vmatpush2.bf16.msra.mxu0 0
      %682 = vmatprep.subr.bf16.mxu0 0
      %683 = vmatpush2.bf16.msra.mxu0 0
      %684 = vmatprep.subr.bf16.mxu0 0
      %685 = vmatpush2.bf16.msra.mxu0 0
      %686 = vmatprep.subr.bf16.mxu0 0
      %687 = vmatpush2.bf16.msra.mxu0 0
      %688 = vmatprep.subr.bf16.mxu0 0
      %689 = vmatpush2.bf16.msra.mxu0 0
      %690 = vmatprep.subr.bf16.mxu0 0
      %691 = vmatpush2.bf16.msra.mxu0 0
      %692 = vmatprep.mubr.bf16.mxu0 0
      %693 = vmatmul.mubr.bf16.gmra.mxu0 %v658
      %v694 = vpop.f32.mrf.mxu0
      %v695 = vadd.f32 0.0, %v694
      %v696 = vpop.f32.mrf.mxu0
      %v697 = vpop.f32.mrf.mxu0
      %v698 = vadd.f32 0.0, %v697
      %v699 = vpop.f32.mrf.mxu0
      %700 = vdwg.mxu0
      %v701 = vadd.f32 %v644, %v695
      %v702 = vadd.f32 %v645, %v698
      %s703 = scalar_lea.vmem %s1, 64
      %v704 = vld [vmem:[%s703] sm:$0xf]
      %v705 = vld [vmem:[%s703 + $0x4] sm:$0xf]
      %v708 = vunpack.c.l.b16 %v704
      %v709 = vunpack.c.l.b16 %v705
      %v710 = vpack.c.b16 %v709, %v708
      %711 = vrot.lane.b32.xlu0 %v262, 106
      %v712 = vpop.permute.xlu0 %711
      %v715 = vsel %vm266, %v710, 0
      %717 = vmatprep.subr.bf16.mxu0 0
      %718 = vmatpush1.bf16.msra.mxu0 0
      %719 = vmatprep.subr.bf16.mxu0 0
      %720 = vmatpush1.bf16.msra.mxu0 0
      %721 = vmatprep.subr.bf16.mxu0 0
      %722 = vmatpush1.bf16.msra.mxu0 0
      %723 = vmatprep.subr.bf16.mxu0 0
      %724 = vmatpush1.bf16.msra.mxu0 0
      %725 = vmatprep.subr.bf16.mxu0 0
      %726 = vmatpush1.bf16.msra.mxu0 0
      %727 = vmatprep.subr.bf16.mxu0 0
      %728 = vmatpush1.bf16.msra.mxu0 0
      %729 = vmatprep.subr.bf16.mxu0 0
      %730 = vmatpush1.bf16.msra.mxu0 0
      %731 = vmatprep.subr.bf16.mxu0 0
      %732 = vmatpush1.bf16.msra.mxu0 %v712
      %733 = vmatprep.subr.bf16.mxu0 0
      %734 = vmatpush2.bf16.msra.mxu0 0
      %735 = vmatprep.subr.bf16.mxu0 0
      %736 = vmatpush2.bf16.msra.mxu0 0
      %737 = vmatprep.subr.bf16.mxu0 0
      %738 = vmatpush2.bf16.msra.mxu0 0
      %739 = vmatprep.subr.bf16.mxu0 0
      %740 = vmatpush2.bf16.msra.mxu0 0
      %741 = vmatprep.subr.bf16.mxu0 0
      %742 = vmatpush2.bf16.msra.mxu0 0
      %743 = vmatprep.subr.bf16.mxu0 0
      %744 = vmatpush2.bf16.msra.mxu0 0
      %745 = vmatprep.subr.bf16.mxu0 0
      %746 = vmatpush2.bf16.msra.mxu0 0
      %747 = vmatprep.subr.bf16.mxu0 0
      %748 = vmatpush2.bf16.msra.mxu0 0
      %749 = vmatprep.mubr.bf16.mxu0 0
      %750 = vmatmul.mubr.bf16.gmra.mxu0 %v715
      %v751 = vpop.f32.mrf.mxu0
      %v752 = vadd.f32 0.0, %v751
      %v753 = vpop.f32.mrf.mxu0
      %v754 = vpop.f32.mrf.mxu0
      %v755 = vadd.f32 0.0, %v754
      %v756 = vpop.f32.mrf.mxu0
      %757 = vdwg.mxu0
      %v758 = vadd.f32 %v701, %v752
      %v759 = vadd.f32 %v702, %v755
      %v760 = vld [vmem:[%s239] sm:$0xf]
      %v761 = vld [vmem:[%s239 + $0x4] sm:$0xf]
      %v762 = vld [vmem:[%s239 + $0x8] sm:$0xf]
      %v763 = vld [vmem:[%s239 + $0xc] sm:$0xf]
      %v764 = vld [vmem:[%s3] sm:$0xf]
      %v765 = vld [vmem:[%s3 + $0x4] sm:$0xf]
      %v768 = vunpack.c.l.b16 %v764
      %v769 = vunpack.c.l.b16 %v765
      %v770 = vpack.c.b16 %v769, %v768
      %v775 = vunpack.c.l.b16 %v760
      %v776 = vunpack.c.l.b16 %v761
      %v777 = vunpack.c.l.b16 %v762
      %v778 = vunpack.c.l.b16 %v763
      %v779 = vpack.c.b16 %v776, %v775
      %v780 = vpack.c.b16 %v778, %v777
      %781 = vrot.lane.b32.xlu0 %v779, 117
      %v782 = vpop.permute.xlu0 %781
      %783 = vrot.lane.b32.xlu0 %v780, 117
      %v784 = vpop.permute.xlu0 %783
      %vm787 = vcmask 261120
      %v789 = vsel %vm787, %v770, 0
      %791 = vmatprep.subr.bf16.mxu0 0
      %792 = vmatpush1.bf16.msra.mxu0 0
      %793 = vmatprep.subr.bf16.mxu0 0
      %794 = vmatpush1.bf16.msra.mxu0 0
      %795 = vmatprep.subr.bf16.mxu0 0
      %796 = vmatpush1.bf16.msra.mxu0 0
      %797 = vmatprep.subr.bf16.mxu0 0
      %798 = vmatpush1.bf16.msra.mxu0 0
      %799 = vmatprep.subr.bf16.mxu0 0
      %800 = vmatpush1.bf16.msra.mxu0 0
      %801 = vmatprep.subr.bf16.mxu0 0
      %802 = vmatpush1.bf16.msra.mxu0 0
      %803 = vmatprep.subr.bf16.mxu0 0
      %804 = vmatpush1.bf16.msra.mxu0 %v784
      %805 = vmatprep.subr.bf16.mxu0 0
      %806 = vmatpush1.bf16.msra.mxu0 %v782
      %807 = vmatprep.subr.bf16.mxu0 0
      %808 = vmatpush2.bf16.msra.mxu0 0
      %809 = vmatprep.subr.bf16.mxu0 0
      %810 = vmatpush2.bf16.msra.mxu0 0
      %811 = vmatprep.subr.bf16.mxu0 0
      %812 = vmatpush2.bf16.msra.mxu0 0
      %813 = vmatprep.subr.bf16.mxu0 0
      %814 = vmatpush2.bf16.msra.mxu0 0
      %815 = vmatprep.subr.bf16.mxu0 0
      %816 = vmatpush2.bf16.msra.mxu0 0
      %817 = vmatprep.subr.bf16.mxu0 0
      %818 = vmatpush2.bf16.msra.mxu0 0
      %819 = vmatprep.subr.bf16.mxu0 0
      %820 = vmatpush2.bf16.msra.mxu0 0
      %821 = vmatprep.subr.bf16.mxu0 0
      %822 = vmatpush2.bf16.msra.mxu0 0
      %823 = vmatprep.mubr.bf16.mxu0 0
      %824 = vmatmul.mubr.bf16.gmra.mxu0 %v789
      %v825 = vpop.f32.mrf.mxu0
      %v826 = vadd.f32 0.0, %v825
      %v827 = vpop.f32.mrf.mxu0
      %v828 = vpop.f32.mrf.mxu0
      %v829 = vadd.f32 0.0, %v828
      %v830 = vpop.f32.mrf.mxu0
      %831 = vdwg.mxu0
      %v832 = vadd.f32 %v758, %v826
      %v833 = vadd.f32 %v759, %v829
      %v834 = vld [vmem:[%s4] sm:$0xff]
      %v835 = vld [vmem:[%s4 + $0x8] sm:$0xff]
      %837 = vset.pattern.permute.xlu0 0
      %838 = vperm.xlu0 %837, %v834
      %v839 = vpop.permute.xlu0 %838
      %842 = vset.pattern.permute.xlu0 0
      %843 = vperm.xlu0 %842, %v835
      %v844 = vpop.permute.xlu0 %843
      %v846 = vadd.f32 %v832, %v839
      %v847 = vadd.f32 %v833, %v844
      %v848 = vmax.f32 %v846, 0.0
      %v849 = vmax.f32 %v847, 0.0
      %vm850 = vcmask 736256
      %851 = vst.msk [vmem:[%s244] sm:$0xff] %vm850, %v848
      %852 = vst.msk [vmem:[%s244 + $0x8] sm:$0xff] %vm850, %v849
      %p853 = scmp.lt.s32.totalorder %s16, 1
      %s854 = scalar_select %p853, %s16, 1
      %s855 = smul.addr %s854, 2
      %s856 = smul.addr %s855, 8
      %s857 = scalar_lea.vmem %s5, %s856
      // Predicated region
      $region41: #{conv_3nv1_forward.15} parent=39 // pred_check
        %p858 = pneg %p149
      $region42: #{conv_3nv1_forward.15} parent=39 // pred_check_branch
        %860 = sbr.rel (%p858) target = $region44
      $region43: #{conv_3nv1_forward.15} parent=39 // pred_region
        _
      $region44: #{conv_3nv1_forward.15} parent=39 // pred_fallthru
        _
    $region40: #{conv_3nv1_forward.15} parent=5 // pred_fallthru
      _
    %p861 = scmp.le.s32.totalorder 2, %s11
    // Predicated region
    $region45: #{conv_3nv1_forward.15} parent=5 // pred_check
      %p862 = pneg %p861
    $region46: #{conv_3nv1_forward.15} parent=5 // pred_check_branch
      %864 = sbr.rel (%p862) target = $region48
    $region47: #{conv_3nv1_forward.15} parent=5 // pred_region
      %s865 = ssub.s32 %s11, 2
      // Predicated region
      $region49: #{conv_3nv1_forward.15} parent=47 // pred_check
        %p866 = pneg %p155
      $region50: #{conv_3nv1_forward.15} parent=47 // pred_check_branch
        %868 = sbr.rel (%p866) target = $region52
      $region51: #{conv_3nv1_forward.15} parent=47 // pred_region
        %p869 = scmp.lt.s32.totalorder %s17, 1
        %s870 = scalar_select %p869, %s17, 1
        %s871 = smul.addr %s870, 2
        %s872 = smul.addr %s871, 8
        %s873 = scalar_lea.vmem %s5, %s872
      $region52: #{conv_3nv1_forward.15} parent=47 // pred_fallthru
        _
    $region48: #{conv_3nv1_forward.15} parent=5 // pred_fallthru
      _
  $region6: #{conv_3nv1_forward.15} parent=0 // loop_footer
    %s15 = sadd.s32 1, %s11
  $region7: #{conv_3nv1_forward.15} parent=0 // loop_footer_branch
    %10 = sbr.rel target = $region3
  $region8: #{conv_3nv1_forward.15} parent=0 // loop_exit
    _

</llo_original>
